<compile_context>
chip_gen: v7x
topology: tpu7x:2x2x1
jax: 0.10.0
libtpu: 0.0.40
codegen_flags: <defaults>
</compile_context>

<pallas_src>
import functools

import jax
import jax.numpy as jnp
from jax import lax
from jax.experimental import pallas as pl
from jax.experimental.pallas import tpu as pltpu


def _resl_block_kernel(x_ref, u_ref, masks_ref, w1_ref, b1_ref, w2_ref, b2_ref,
                       out_ref, ext_ref, *, w2_cols, off):
    """One batch element per grid step.  Layout: channel-major, spatial-in-lane.

    x_ref    : (1, Cin, H*W)      original NCHW input, spatial flattened
    u_ref    : (H*W, off+S+off)   fused upsample+pad operator (0/1, zero borders)
    masks_ref: (2, S)             column-validity masks (left-tap, right-tap)
    w1_ref   : (3, 3, Cout, Cin)  conv1 taps, channel-major
    b1_ref   : (Cout, 1)
    w2_ref   : (3, 3, Cout, Cout)
    b2_ref   : (Cout, 1)
    out_ref  : (1, Cout, S)       NCHW output, spatial flattened (lane-dense)
    ext_ref  : (Cout, off+S+off)  VMEM scratch: zero-bordered conv2 input
    """
    cout = out_ref.shape[1]
    s = out_ref.shape[2]
    w2c = w2_cols

    masks = masks_ref[...]
    mask_l = masks[0:1, :]          # 0.0 where x == 0       (for dx == -1 taps)
    mask_r = masks[1:2, :]          # 0.0 where x == W2 - 1  (for dx == +1 taps)

    # ---- fused nearest-x2 upsample + "SAME" zero pad: one MXU matmul ----
    # u_ref's border columns are all-zero, so up_ext already carries the flat
    # zero border needed by conv1's out-of-range row taps.
    up_ext = jnp.dot(x_ref[0], u_ref[...],
                     preferred_element_type=jnp.float32)   # (Cin, off+S+off)

    ones_row = jnp.ones((1, cout), jnp.float32)             # hoisted constants
    inv_cout = 1.0 / cout

    def conv3x3(get_patch, w_ref, b_ref):
        # Bias-initialised accumulator; spatial (S) is the lane axis, so the
        # per-tap accumulate adds touch only ~Cout*S/1024 vregs.
        acc = jnp.broadcast_to(b_ref[...], (cout, s)).astype(jnp.float32)
        for dy in range(3):
            for dx in range(3):
                shift = (dy - 1) * w2c + (dx - 1)
                patch = get_patch(off + shift)               # (C, S)
                if dx == 0:
                    patch = patch * mask_l
                elif dx == 2:
                    patch = patch * mask_r
                acc = acc + jnp.dot(w_ref[dy, dx], patch,
                                    preferred_element_type=jnp.float32)
        return acc

    def pixelnorm_lrelu(a):
        # PixelWiseNorm over channels (sublane axis) as a 1xC MXU matmul
        # (keeps the reduction off the VPU/XLU), then LeakyReLU(0.2).
        ssum = jnp.dot(ones_row, a * a, preferred_element_type=jnp.float32)
        inv = lax.rsqrt(ssum * inv_cout + 1e-8)              # (1, S)
        a = a * inv
        return jnp.where(a > 0, a, 0.2 * a)

    # ---- conv1 on the (virtually padded) upsampled image ----
    h1 = pixelnorm_lrelu(conv3x3(lambda s0: up_ext[:, s0:s0 + s],
                                 w1_ref, b1_ref))

    # ---- stage h1 into the zero-bordered flat scratch for conv2 ----
    # Interior store is lane-aligned (off and S are multiples of 128); only
    # the two small border strips are zeroed each step, not the whole scratch.
    ext = ext_ref.shape[1]
    ext_ref[:, 0:off] = jnp.zeros((cout, off), jnp.float32)
    ext_ref[:, off + s:ext] = jnp.zeros((cout, ext - off - s), jnp.float32)
    ext_ref[:, off:off + s] = h1

    h2 = pixelnorm_lrelu(conv3x3(lambda s0: ext_ref[:, s0:s0 + s],
                                 w2_ref, b2_ref))

    out_ref[...] = h2.reshape(1, cout, s).astype(out_ref.dtype)


def resl_block_forward(x_nchw, w1_hwio, b1, w2_hwio, b2):
    """x_nchw: (N, Cin, H, W) f32.  Returns (N, Cout, 2H, 2W) NCHW, like PyTorch."""
    n, cin, h, w = x_nchw.shape
    cout = w1_hwio.shape[-1]
    h2, w2 = 2 * h, 2 * w
    s = h2 * w2
    hw = h * w
    # Flat zero border wide enough for a +/-(W2+1) tap shift, lane-aligned.
    off = ((w2 + 1 + 127) // 128) * 128
    ext = off + s + off

    # NCHW in / NCHW out; both reshapes are metadata-only (no HBM pass).
    x_flat = x_nchw.reshape(n, cin, hw)

    # Fused upsample+pad operator: U[m, off+s'] = 1 iff m is the nearest-
    # neighbour source pixel of upsampled flat pixel s'; border columns are 0.
    s_idx = jnp.arange(s, dtype=jnp.int32)
    src = (s_idx // w2 // 2) * w + (s_idx % w2) // 2
    u_core = (jnp.arange(hw, dtype=jnp.int32)[:, None] == src[None, :])
    u_ext = jnp.pad(u_core.astype(x_nchw.dtype), ((0, 0), (off, ext - off - s)))

    # Column-validity masks for the dx = -1 / dx = +1 taps (flat shifts wrap
    # across image rows; these zero the wrapped lanes).
    col = s_idx % w2
    masks = jnp.stack([(col != 0), (col != w2 - 1)], axis=0).astype(jnp.float32)

    # Channel-major weights: each 3x3 tap becomes a (Cout, C) matmul lhs.
    w1_cm = jnp.transpose(w1_hwio, (0, 1, 3, 2))   # (3, 3, Cout, Cin)
    w2_cm = jnp.transpose(w2_hwio, (0, 1, 3, 2))   # (3, 3, Cout, Cout)
    b1_cm = b1.reshape(cout, 1)
    b2_cm = b2.reshape(cout, 1)

    kernel = functools.partial(_resl_block_kernel, w2_cols=w2, off=off)

    out_flat = pl.pallas_call(
        kernel,
        out_shape=jax.ShapeDtypeStruct((n, cout, s), x_nchw.dtype),
        grid_spec=pltpu.PrefetchScalarGridSpec(
            num_scalar_prefetch=0,
            grid=(n,),
            in_specs=[
                pl.BlockSpec((1, cin, hw), lambda i: (i, 0, 0)),
                pl.BlockSpec((hw, ext), lambda i: (0, 0)),
                pl.BlockSpec((2, s), lambda i: (0, 0)),
                pl.BlockSpec((3, 3, cout, cin), lambda i: (0, 0, 0, 0)),
                pl.BlockSpec((cout, 1), lambda i: (0, 0)),
                pl.BlockSpec((3, 3, cout, cout), lambda i: (0, 0, 0, 0)),
                pl.BlockSpec((cout, 1), lambda i: (0, 0)),
            ],
            out_specs=pl.BlockSpec((1, cout, s), lambda i: (i, 0, 0)),
            scratch_shapes=[pltpu.VMEM((cout, ext), jnp.float32)],
        ),
        compiler_params=pltpu.CompilerParams(
            dimension_semantics=("parallel",)),
    )(x_flat, u_ext, masks, w1_cm, b1_cm, w2_cm, b2_cm)

    # Output is already NCHW; this reshape is metadata-only (no transpose pass).
    return out_flat.reshape(n, cout, h2, w2)


def _ref_forward(x_nchw, w1_hwio, b1, w2_hwio, b2):
    """Pure-JAX reference of the same forward pass (for the correctness check)."""
    up = jnp.repeat(jnp.repeat(x_nchw, 2, axis=2), 2, axis=3)
    y = jnp.transpose(up, (0, 2, 3, 1))
    dn = ("NHWC", "HWIO", "NHWC")

    def pixelnorm(v):
        return v * lax.rsqrt(jnp.mean(v * v, axis=-1, keepdims=True) + 1e-8)

    def lrelu(v):
        return jnp.where(v > 0, v, 0.2 * v)

    y = lax.conv_general_dilated(y, w1_hwio, (1, 1), "SAME",
                                 dimension_numbers=dn) + b1
    y = lrelu(pixelnorm(y))
    y = lax.conv_general_dilated(y, w2_hwio, (1, 1), "SAME",
                                 dimension_numbers=dn) + b2
    y = lrelu(pixelnorm(y))
    return jnp.transpose(y, (0, 3, 1, 2))


if __name__ == "__main__":
    # Small synthetic resl_to_ch entry: (in_c, out_c) = (4, 8)
    in_c, out_c = 4, 8
    N, H, W = 2, 16, 16

    key = jax.random.PRNGKey(0)
    kx, k1, k2, k3, k4 = jax.random.split(key, 5)
    x = jax.random.normal(kx, (N, in_c, H, W), jnp.float32)

    # Conv2d weights in PyTorch OIHW, N(0,1) init as in PGGAN; EqualizedLR
    # applies a runtime scale of sqrt(2 / fan_in), fan_in = in_channels * 3 * 3.
    w1_oihw = jax.random.normal(k1, (out_c, in_c, 3, 3), jnp.float32)
    w2_oihw = jax.random.normal(k2, (out_c, out_c, 3, 3), jnp.float32)
    b1 = 0.1 * jax.random.normal(k3, (out_c,), jnp.float32)
    b2 = 0.1 * jax.random.normal(k4, (out_c,), jnp.float32)

    w1_hwio = jnp.transpose(w1_oihw, (2, 3, 1, 0)) * jnp.sqrt(2.0 / (in_c * 9))
    w2_hwio = jnp.transpose(w2_oihw, (2, 3, 1, 0)) * jnp.sqrt(2.0 / (out_c * 9))

    out = resl_block_forward(x, w1_hwio, b1, w2_hwio, b2)
    out = jax.block_until_ready(out)

    ref = _ref_forward(x, w1_hwio, b1, w2_hwio, b2)
    assert out.shape == (N, out_c, 2 * H, 2 * W), out.shape
    max_err = float(jnp.max(jnp.abs(out - ref)))
    assert max_err < 2e-3, f"max abs error vs reference: {max_err}"
    print("KERNEL_OK")
</pallas_src>

<mosaic_0001>
module attributes {stable_mosaic.version = 11 : i64} {
  func.func @_resl_block_kernel(%arg0: i32, %arg1: memref<1x4x256xf32, #tpu.memory_space<vmem>>, %arg2: memref<256x1280xf32, #tpu.memory_space<vmem>>, %arg3: memref<2x1024xf32, #tpu.memory_space<vmem>>, %arg4: memref<3x3x8x4xf32, #tpu.memory_space<vmem>>, %arg5: memref<8x1xf32, #tpu.memory_space<vmem>>, %arg6: memref<3x3x8x8xf32, #tpu.memory_space<vmem>>, %arg7: memref<8x1xf32, #tpu.memory_space<vmem>>, %arg8: memref<1x8x1024xf32, #tpu.memory_space<vmem>>, %arg9: memref<8x1280xf32, #tpu.memory_space<vmem>>) attributes {dimension_semantics = [#tpu.dimension_semantics<parallel>], iteration_bounds = array<i64: 2>, scalar_prefetch = 0 : i64, scratch_operands = 1 : i64, tpu.core_type = #tpu.core_type<tc>, window_params = [{transform_indices = @transform_0, window_bounds = array<i64: 1, 4, 256>}, {pipeline_mode = #tpu.pipeline_mode<synchronous>, transform_indices = @transform_1, window_bounds = array<i64: 256, 1280>}, {pipeline_mode = #tpu.pipeline_mode<synchronous>, transform_indices = @transform_2, window_bounds = array<i64: 2, 1024>}, {pipeline_mode = #tpu.pipeline_mode<synchronous>, transform_indices = @transform_3, window_bounds = array<i64: 3, 3, 8, 4>}, {pipeline_mode = #tpu.pipeline_mode<synchronous>, transform_indices = @transform_4, window_bounds = array<i64: 8, 1>}, {pipeline_mode = #tpu.pipeline_mode<synchronous>, transform_indices = @transform_5, window_bounds = array<i64: 3, 3, 8, 8>}, {pipeline_mode = #tpu.pipeline_mode<synchronous>, transform_indices = @transform_6, window_bounds = array<i64: 8, 1>}, {transform_indices = @transform_7, window_bounds = array<i64: 1, 8, 1024>}]} {
    %c0 = arith.constant 0 : index
    %c0_0 = arith.constant 0 : index
    %0 = vector.load %arg3[%c0, %c0_0] : memref<2x1024xf32, #tpu.memory_space<vmem>>, vector<2x1024xf32>
    %1 = vector.extract_strided_slice %0 {offsets = [0, 0], sizes = [1, 1024], strides = [1, 1]} : vector<2x1024xf32> to vector<1x1024xf32>
    %2 = vector.extract_strided_slice %0 {offsets = [1, 0], sizes = [1, 1024], strides = [1, 1]} : vector<2x1024xf32> to vector<1x1024xf32>
    %c0_1 = arith.constant 0 : index
    %c0_2 = arith.constant 0 : index
    %c0_3 = arith.constant 0 : index
    %3 = vector.load %arg1[%c0_1, %c0_2, %c0_3] : memref<1x4x256xf32, #tpu.memory_space<vmem>>, vector<1x4x256xf32>
    %4 = vector.shape_cast %3 : vector<1x4x256xf32> to vector<4x256xf32>
    %c0_4 = arith.constant 0 : index
    %c0_5 = arith.constant 0 : index
    %5 = vector.load %arg2[%c0_4, %c0_5] : memref<256x1280xf32, #tpu.memory_space<vmem>>, vector<256x1280xf32>
    %cst = arith.constant dense<0.000000e+00> : vector<4x1280xf32>
    %6 = tpu.matmul %4, %5, %cst {dimension_numbers = #tpu.dot_dimension_numbers<[1], [0], [0], [1], [0, 0, 1, 1], [], []>} : vector<4x256xf32>, vector<256x1280xf32>, vector<4x1280xf32> -> vector<4x1280xf32>
    %cst_6 = arith.constant 1.000000e+00 : f32
    %7 = vector.broadcast %cst_6 : f32 to vector<1x8xf32>
    %c0_7 = arith.constant 0 : index
    %c0_8 = arith.constant 0 : index
    %8 = vector.load %arg5[%c0_7, %c0_8] : memref<8x1xf32, #tpu.memory_space<vmem>>, vector<8x1xf32>
    %9 = vector.shape_cast %8 : vector<8x1xf32> to vector<8x1xf32>
    %10 = vector.broadcast %9 : vector<8x1xf32> to vector<8x1024xf32>
    %11 = vector.extract_strided_slice %6 {offsets = [0, 95], sizes = [4, 1024], strides = [1, 1]} : vector<4x1280xf32> to vector<4x1024xf32>
    %12 = vector.broadcast %1 : vector<1x1024xf32> to vector<4x1024xf32>
    %13 = arith.mulf %11, %12 : vector<4x1024xf32>
    %c0_9 = arith.constant 0 : index
    %c0_10 = arith.constant 0 : index
    %c0_11 = arith.constant 0 : index
    %c0_12 = arith.constant 0 : index
    %14 = vector.load %arg4[%c0_9, %c0_10, %c0_11, %c0_12] : memref<3x3x8x4xf32, #tpu.memory_space<vmem>>, vector<1x1x8x4xf32>
    %15 = vector.shape_cast %14 : vector<1x1x8x4xf32> to vector<8x4xf32>
    %cst_13 = arith.constant dense<0.000000e+00> : vector<8x1024xf32>
    %16 = tpu.matmul %15, %13, %cst_13 {dimension_numbers = #tpu.dot_dimension_numbers<[1], [0], [0], [1], [0, 0, 1, 1], [], []>} : vector<8x4xf32>, vector<4x1024xf32>, vector<8x1024xf32> -> vector<8x1024xf32>
    %17 = arith.addf %10, %16 : vector<8x1024xf32>
    %18 = vector.extract_strided_slice %6 {offsets = [0, 96], sizes = [4, 1024], strides = [1, 1]} : vector<4x1280xf32> to vector<4x1024xf32>
    %c0_14 = arith.constant 0 : index
    %c1 = arith.constant 1 : index
    %c0_15 = arith.constant 0 : index
    %c0_16 = arith.constant 0 : index
    %19 = vector.load %arg4[%c0_14, %c1, %c0_15, %c0_16] : memref<3x3x8x4xf32, #tpu.memory_space<vmem>>, vector<1x1x8x4xf32>
    %20 = vector.shape_cast %19 : vector<1x1x8x4xf32> to vector<8x4xf32>
    %cst_17 = arith.constant dense<0.000000e+00> : vector<8x1024xf32>
    %21 = tpu.matmul %20, %18, %cst_17 {dimension_numbers = #tpu.dot_dimension_numbers<[1], [0], [0], [1], [0, 0, 1, 1], [], []>} : vector<8x4xf32>, vector<4x1024xf32>, vector<8x1024xf32> -> vector<8x1024xf32>
    %22 = arith.addf %17, %21 : vector<8x1024xf32>
    %23 = vector.extract_strided_slice %6 {offsets = [0, 97], sizes = [4, 1024], strides = [1, 1]} : vector<4x1280xf32> to vector<4x1024xf32>
    %24 = vector.broadcast %2 : vector<1x1024xf32> to vector<4x1024xf32>
    %25 = arith.mulf %23, %24 : vector<4x1024xf32>
    %c0_18 = arith.constant 0 : index
    %c2 = arith.constant 2 : index
    %c0_19 = arith.constant 0 : index
    %c0_20 = arith.constant 0 : index
    %26 = vector.load %arg4[%c0_18, %c2, %c0_19, %c0_20] : memref<3x3x8x4xf32, #tpu.memory_space<vmem>>, vector<1x1x8x4xf32>
    %27 = vector.shape_cast %26 : vector<1x1x8x4xf32> to vector<8x4xf32>
    %cst_21 = arith.constant dense<0.000000e+00> : vector<8x1024xf32>
    %28 = tpu.matmul %27, %25, %cst_21 {dimension_numbers = #tpu.dot_dimension_numbers<[1], [0], [0], [1], [0, 0, 1, 1], [], []>} : vector<8x4xf32>, vector<4x1024xf32>, vector<8x1024xf32> -> vector<8x1024xf32>
    %29 = arith.addf %22, %28 : vector<8x1024xf32>
    %30 = vector.extract_strided_slice %6 {offsets = [0, 127], sizes = [4, 1024], strides = [1, 1]} : vector<4x1280xf32> to vector<4x1024xf32>
    %31 = vector.broadcast %1 : vector<1x1024xf32> to vector<4x1024xf32>
    %32 = arith.mulf %30, %31 : vector<4x1024xf32>
    %c1_22 = arith.constant 1 : index
    %c0_23 = arith.constant 0 : index
    %c0_24 = arith.constant 0 : index
    %c0_25 = arith.constant 0 : index
    %33 = vector.load %arg4[%c1_22, %c0_23, %c0_24, %c0_25] : memref<3x3x8x4xf32, #tpu.memory_space<vmem>>, vector<1x1x8x4xf32>
    %34 = vector.shape_cast %33 : vector<1x1x8x4xf32> to vector<8x4xf32>
    %cst_26 = arith.constant dense<0.000000e+00> : vector<8x1024xf32>
    %35 = tpu.matmul %34, %32, %cst_26 {dimension_numbers = #tpu.dot_dimension_numbers<[1], [0], [0], [1], [0, 0, 1, 1], [], []>} : vector<8x4xf32>, vector<4x1024xf32>, vector<8x1024xf32> -> vector<8x1024xf32>
    %36 = arith.addf %29, %35 : vector<8x1024xf32>
    %37 = vector.extract_strided_slice %6 {offsets = [0, 128], sizes = [4, 1024], strides = [1, 1]} : vector<4x1280xf32> to vector<4x1024xf32>
    %c1_27 = arith.constant 1 : index
    %c1_28 = arith.constant 1 : index
    %c0_29 = arith.constant 0 : index
    %c0_30 = arith.constant 0 : index
    %38 = vector.load %arg4[%c1_27, %c1_28, %c0_29, %c0_30] : memref<3x3x8x4xf32, #tpu.memory_space<vmem>>, vector<1x1x8x4xf32>
    %39 = vector.shape_cast %38 : vector<1x1x8x4xf32> to vector<8x4xf32>
    %cst_31 = arith.constant dense<0.000000e+00> : vector<8x1024xf32>
    %40 = tpu.matmul %39, %37, %cst_31 {dimension_numbers = #tpu.dot_dimension_numbers<[1], [0], [0], [1], [0, 0, 1, 1], [], []>} : vector<8x4xf32>, vector<4x1024xf32>, vector<8x1024xf32> -> vector<8x1024xf32>
    %41 = arith.addf %36, %40 : vector<8x1024xf32>
    %42 = vector.extract_strided_slice %6 {offsets = [0, 129], sizes = [4, 1024], strides = [1, 1]} : vector<4x1280xf32> to vector<4x1024xf32>
    %43 = vector.broadcast %2 : vector<1x1024xf32> to vector<4x1024xf32>
    %44 = arith.mulf %42, %43 : vector<4x1024xf32>
    %c1_32 = arith.constant 1 : index
    %c2_33 = arith.constant 2 : index
    %c0_34 = arith.constant 0 : index
    %c0_35 = arith.constant 0 : index
    %45 = vector.load %arg4[%c1_32, %c2_33, %c0_34, %c0_35] : memref<3x3x8x4xf32, #tpu.memory_space<vmem>>, vector<1x1x8x4xf32>
    %46 = vector.shape_cast %45 : vector<1x1x8x4xf32> to vector<8x4xf32>
    %cst_36 = arith.constant dense<0.000000e+00> : vector<8x1024xf32>
    %47 = tpu.matmul %46, %44, %cst_36 {dimension_numbers = #tpu.dot_dimension_numbers<[1], [0], [0], [1], [0, 0, 1, 1], [], []>} : vector<8x4xf32>, vector<4x1024xf32>, vector<8x1024xf32> -> vector<8x1024xf32>
    %48 = arith.addf %41, %47 : vector<8x1024xf32>
    %49 = vector.extract_strided_slice %6 {offsets = [0, 159], sizes = [4, 1024], strides = [1, 1]} : vector<4x1280xf32> to vector<4x1024xf32>
    %50 = vector.broadcast %1 : vector<1x1024xf32> to vector<4x1024xf32>
    %51 = arith.mulf %49, %50 : vector<4x1024xf32>
    %c2_37 = arith.constant 2 : index
    %c0_38 = arith.constant 0 : index
    %c0_39 = arith.constant 0 : index
    %c0_40 = arith.constant 0 : index
    %52 = vector.load %arg4[%c2_37, %c0_38, %c0_39, %c0_40] : memref<3x3x8x4xf32, #tpu.memory_space<vmem>>, vector<1x1x8x4xf32>
    %53 = vector.shape_cast %52 : vector<1x1x8x4xf32> to vector<8x4xf32>
    %cst_41 = arith.constant dense<0.000000e+00> : vector<8x1024xf32>
    %54 = tpu.matmul %53, %51, %cst_41 {dimension_numbers = #tpu.dot_dimension_numbers<[1], [0], [0], [1], [0, 0, 1, 1], [], []>} : vector<8x4xf32>, vector<4x1024xf32>, vector<8x1024xf32> -> vector<8x1024xf32>
    %55 = arith.addf %48, %54 : vector<8x1024xf32>
    %56 = vector.extract_strided_slice %6 {offsets = [0, 160], sizes = [4, 1024], strides = [1, 1]} : vector<4x1280xf32> to vector<4x1024xf32>
    %c2_42 = arith.constant 2 : index
    %c1_43 = arith.constant 1 : index
    %c0_44 = arith.constant 0 : index
    %c0_45 = arith.constant 0 : index
    %57 = vector.load %arg4[%c2_42, %c1_43, %c0_44, %c0_45] : memref<3x3x8x4xf32, #tpu.memory_space<vmem>>, vector<1x1x8x4xf32>
    %58 = vector.shape_cast %57 : vector<1x1x8x4xf32> to vector<8x4xf32>
    %cst_46 = arith.constant dense<0.000000e+00> : vector<8x1024xf32>
    %59 = tpu.matmul %58, %56, %cst_46 {dimension_numbers = #tpu.dot_dimension_numbers<[1], [0], [0], [1], [0, 0, 1, 1], [], []>} : vector<8x4xf32>, vector<4x1024xf32>, vector<8x1024xf32> -> vector<8x1024xf32>
    %60 = arith.addf %55, %59 : vector<8x1024xf32>
    %61 = vector.extract_strided_slice %6 {offsets = [0, 161], sizes = [4, 1024], strides = [1, 1]} : vector<4x1280xf32> to vector<4x1024xf32>
    %62 = vector.broadcast %2 : vector<1x1024xf32> to vector<4x1024xf32>
    %63 = arith.mulf %61, %62 : vector<4x1024xf32>
    %c2_47 = arith.constant 2 : index
    %c2_48 = arith.constant 2 : index
    %c0_49 = arith.constant 0 : index
    %c0_50 = arith.constant 0 : index
    %64 = vector.load %arg4[%c2_47, %c2_48, %c0_49, %c0_50] : memref<3x3x8x4xf32, #tpu.memory_space<vmem>>, vector<1x1x8x4xf32>
    %65 = vector.shape_cast %64 : vector<1x1x8x4xf32> to vector<8x4xf32>
    %cst_51 = arith.constant dense<0.000000e+00> : vector<8x1024xf32>
    %66 = tpu.matmul %65, %63, %cst_51 {dimension_numbers = #tpu.dot_dimension_numbers<[1], [0], [0], [1], [0, 0, 1, 1], [], []>} : vector<8x4xf32>, vector<4x1024xf32>, vector<8x1024xf32> -> vector<8x1024xf32>
    %67 = arith.addf %60, %66 : vector<8x1024xf32>
    %68 = arith.mulf %67, %67 : vector<8x1024xf32>
    %cst_52 = arith.constant dense<0.000000e+00> : vector<1x1024xf32>
    %69 = tpu.matmul %7, %68, %cst_52 {dimension_numbers = #tpu.dot_dimension_numbers<[1], [0], [0], [1], [0, 0, 1, 1], [], []>} : vector<1x8xf32>, vector<8x1024xf32>, vector<1x1024xf32> -> vector<1x1024xf32>
    %cst_53 = arith.constant 1.250000e-01 : f32
    %70 = vector.broadcast %cst_53 : f32 to vector<1x1024xf32>
    %71 = arith.mulf %69, %70 : vector<1x1024xf32>
    %cst_54 = arith.constant 9.99999993E-9 : f32
    %72 = vector.broadcast %cst_54 : f32 to vector<1x1024xf32>
    %73 = arith.addf %71, %72 : vector<1x1024xf32>
    %74 = math.rsqrt %73 : vector<1x1024xf32>
    %75 = vector.broadcast %74 : vector<1x1024xf32> to vector<8x1024xf32>
    %76 = arith.mulf %67, %75 : vector<8x1024xf32>
    %cst_55 = arith.constant 0.000000e+00 : f32
    %77 = vector.broadcast %cst_55 : f32 to vector<8x1024xf32>
    %78 = arith.cmpf ogt, %76, %77 : vector<8x1024xf32>
    %cst_56 = arith.constant 2.000000e-01 : f32
    %79 = vector.broadcast %cst_56 : f32 to vector<8x1024xf32>
    %80 = arith.mulf %79, %76 : vector<8x1024xf32>
    %81 = arith.select %78, %76, %80 : vector<8x1024xi1>, vector<8x1024xf32>
    %cst_57 = arith.constant 0.000000e+00 : f32
    %82 = vector.broadcast %cst_57 : f32 to vector<8x128xf32>
    %c0_58 = arith.constant 0 : index
    %c0_59 = arith.constant 0 : index
    %83 = vector.load %arg9[%c0_58, %c0_59] : memref<8x1280xf32, #tpu.memory_space<vmem>>, vector<8x128xf32>
    tpu.vector_store %arg9[%c0_58, %c0_59], %82 {strides = array<i32>} : memref<8x1280xf32, #tpu.memory_space<vmem>>, vector<8x128xf32>,
    %cst_60 = arith.constant 0.000000e+00 : f32
    %84 = vector.broadcast %cst_60 : f32 to vector<8x128xf32>
    %c0_61 = arith.constant 0 : index
    %c1152 = arith.constant 1152 : index
    %85 = vector.load %arg9[%c0_61, %c1152] : memref<8x1280xf32, #tpu.memory_space<vmem>>, vector<8x128xf32>
    tpu.vector_store %arg9[%c0_61, %c1152], %84 {strides = array<i32>} : memref<8x1280xf32, #tpu.memory_space<vmem>>, vector<8x128xf32>,
    %c0_62 = arith.constant 0 : index
    %c128 = arith.constant 128 : index
    %86 = vector.load %arg9[%c0_62, %c128] : memref<8x1280xf32, #tpu.memory_space<vmem>>, vector<8x1024xf32>
    tpu.vector_store %arg9[%c0_62, %c128], %81 {strides = array<i32>} : memref<8x1280xf32, #tpu.memory_space<vmem>>, vector<8x1024xf32>,
    %c0_63 = arith.constant 0 : index
    %c0_64 = arith.constant 0 : index
    %87 = vector.load %arg7[%c0_63, %c0_64] : memref<8x1xf32, #tpu.memory_space<vmem>>, vector<8x1xf32>
    %88 = vector.shape_cast %87 : vector<8x1xf32> to vector<8x1xf32>
    %89 = vector.broadcast %88 : vector<8x1xf32> to vector<8x1024xf32>
    %c0_65 = arith.constant 0 : index
    %c95 = arith.constant 95 : index
    %90 = vector.load %arg9[%c0_65, %c95] : memref<8x1280xf32, #tpu.memory_space<vmem>>, vector<8x1024xf32>
    %91 = vector.broadcast %1 : vector<1x1024xf32> to vector<8x1024xf32>
    %92 = arith.mulf %90, %91 : vector<8x1024xf32>
    %c0_66 = arith.constant 0 : index
    %c0_67 = arith.constant 0 : index
    %c0_68 = arith.constant 0 : index
    %c0_69 = arith.constant 0 : index
    %93 = vector.load %arg6[%c0_66, %c0_67, %c0_68, %c0_69] : memref<3x3x8x8xf32, #tpu.memory_space<vmem>>, vector<1x1x8x8xf32>
    %94 = vector.shape_cast %93 : vector<1x1x8x8xf32> to vector<8x8xf32>
    %cst_70 = arith.constant dense<0.000000e+00> : vector<8x1024xf32>
    %95 = tpu.matmul %94, %92, %cst_70 {dimension_numbers = #tpu.dot_dimension_numbers<[1], [0], [0], [1], [0, 0, 1, 1], [], []>} : vector<8x8xf32>, vector<8x1024xf32>, vector<8x1024xf32> -> vector<8x1024xf32>
    %96 = arith.addf %89, %95 : vector<8x1024xf32>
    %c0_71 = arith.constant 0 : index
    %c96 = arith.constant 96 : index
    %97 = vector.load %arg9[%c0_71, %c96] : memref<8x1280xf32, #tpu.memory_space<vmem>>, vector<8x1024xf32>
    %c0_72 = arith.constant 0 : index
    %c1_73 = arith.constant 1 : index
    %c0_74 = arith.constant 0 : index
    %c0_75 = arith.constant 0 : index
    %98 = vector.load %arg6[%c0_72, %c1_73, %c0_74, %c0_75] : memref<3x3x8x8xf32, #tpu.memory_space<vmem>>, vector<1x1x8x8xf32>
    %99 = vector.shape_cast %98 : vector<1x1x8x8xf32> to vector<8x8xf32>
    %cst_76 = arith.constant dense<0.000000e+00> : vector<8x1024xf32>
    %100 = tpu.matmul %99, %97, %cst_76 {dimension_numbers = #tpu.dot_dimension_numbers<[1], [0], [0], [1], [0, 0, 1, 1], [], []>} : vector<8x8xf32>, vector<8x1024xf32>, vector<8x1024xf32> -> vector<8x1024xf32>
    %101 = arith.addf %96, %100 : vector<8x1024xf32>
    %c0_77 = arith.constant 0 : index
    %c97 = arith.constant 97 : index
    %102 = vector.load %arg9[%c0_77, %c97] : memref<8x1280xf32, #tpu.memory_space<vmem>>, vector<8x1024xf32>
    %103 = vector.broadcast %2 : vector<1x1024xf32> to vector<8x1024xf32>
    %104 = arith.mulf %102, %103 : vector<8x1024xf32>
    %c0_78 = arith.constant 0 : index
    %c2_79 = arith.constant 2 : index
    %c0_80 = arith.constant 0 : index
    %c0_81 = arith.constant 0 : index
    %105 = vector.load %arg6[%c0_78, %c2_79, %c0_80, %c0_81] : memref<3x3x8x8xf32, #tpu.memory_space<vmem>>, vector<1x1x8x8xf32>
    %106 = vector.shape_cast %105 : vector<1x1x8x8xf32> to vector<8x8xf32>
    %cst_82 = arith.constant dense<0.000000e+00> : vector<8x1024xf32>
    %107 = tpu.matmul %106, %104, %cst_82 {dimension_numbers = #tpu.dot_dimension_numbers<[1], [0], [0], [1], [0, 0, 1, 1], [], []>} : vector<8x8xf32>, vector<8x1024xf32>, vector<8x1024xf32> -> vector<8x1024xf32>
    %108 = arith.addf %101, %107 : vector<8x1024xf32>
    %c0_83 = arith.constant 0 : index
    %c127 = arith.constant 127 : index
    %109 = vector.load %arg9[%c0_83, %c127] : memref<8x1280xf32, #tpu.memory_space<vmem>>, vector<8x1024xf32>
    %110 = vector.broadcast %1 : vector<1x1024xf32> to vector<8x1024xf32>
    %111 = arith.mulf %109, %110 : vector<8x1024xf32>
    %c1_84 = arith.constant 1 : index
    %c0_85 = arith.constant 0 : index
    %c0_86 = arith.constant 0 : index
    %c0_87 = arith.constant 0 : index
    %112 = vector.load %arg6[%c1_84, %c0_85, %c0_86, %c0_87] : memref<3x3x8x8xf32, #tpu.memory_space<vmem>>, vector<1x1x8x8xf32>
    %113 = vector.shape_cast %112 : vector<1x1x8x8xf32> to vector<8x8xf32>
    %cst_88 = arith.constant dense<0.000000e+00> : vector<8x1024xf32>
    %114 = tpu.matmul %113, %111, %cst_88 {dimension_numbers = #tpu.dot_dimension_numbers<[1], [0], [0], [1], [0, 0, 1, 1], [], []>} : vector<8x8xf32>, vector<8x1024xf32>, vector<8x1024xf32> -> vector<8x1024xf32>
    %115 = arith.addf %108, %114 : vector<8x1024xf32>
    %c0_89 = arith.constant 0 : index
    %c128_90 = arith.constant 128 : index
    %116 = vector.load %arg9[%c0_89, %c128_90] : memref<8x1280xf32, #tpu.memory_space<vmem>>, vector<8x1024xf32>
    %c1_91 = arith.constant 1 : index
    %c1_92 = arith.constant 1 : index
    %c0_93 = arith.constant 0 : index
    %c0_94 = arith.constant 0 : index
    %117 = vector.load %arg6[%c1_91, %c1_92, %c0_93, %c0_94] : memref<3x3x8x8xf32, #tpu.memory_space<vmem>>, vector<1x1x8x8xf32>
    %118 = vector.shape_cast %117 : vector<1x1x8x8xf32> to vector<8x8xf32>
    %cst_95 = arith.constant dense<0.000000e+00> : vector<8x1024xf32>
    %119 = tpu.matmul %118, %116, %cst_95 {dimension_numbers = #tpu.dot_dimension_numbers<[1], [0], [0], [1], [0, 0, 1, 1], [], []>} : vector<8x8xf32>, vector<8x1024xf32>, vector<8x1024xf32> -> vector<8x1024xf32>
    %120 = arith.addf %115, %119 : vector<8x1024xf32>
    %c0_96 = arith.constant 0 : index
    %c129 = arith.constant 129 : index
    %121 = vector.load %arg9[%c0_96, %c129] : memref<8x1280xf32, #tpu.memory_space<vmem>>, vector<8x1024xf32>
    %122 = vector.broadcast %2 : vector<1x1024xf32> to vector<8x1024xf32>
    %123 = arith.mulf %121, %122 : vector<8x1024xf32>
    %c1_97 = arith.constant 1 : index
    %c2_98 = arith.constant 2 : index
    %c0_99 = arith.constant 0 : index
    %c0_100 = arith.constant 0 : index
    %124 = vector.load %arg6[%c1_97, %c2_98, %c0_99, %c0_100] : memref<3x3x8x8xf32, #tpu.memory_space<vmem>>, vector<1x1x8x8xf32>
    %125 = vector.shape_cast %124 : vector<1x1x8x8xf32> to vector<8x8xf32>
    %cst_101 = arith.constant dense<0.000000e+00> : vector<8x1024xf32>
    %126 = tpu.matmul %125, %123, %cst_101 {dimension_numbers = #tpu.dot_dimension_numbers<[1], [0], [0], [1], [0, 0, 1, 1], [], []>} : vector<8x8xf32>, vector<8x1024xf32>, vector<8x1024xf32> -> vector<8x1024xf32>
    %127 = arith.addf %120, %126 : vector<8x1024xf32>
    %c0_102 = arith.constant 0 : index
    %c159 = arith.constant 159 : index
    %128 = vector.load %arg9[%c0_102, %c159] : memref<8x1280xf32, #tpu.memory_space<vmem>>, vector<8x1024xf32>
    %129 = vector.broadcast %1 : vector<1x1024xf32> to vector<8x1024xf32>
    %130 = arith.mulf %128, %129 : vector<8x1024xf32>
    %c2_103 = arith.constant 2 : index
    %c0_104 = arith.constant 0 : index
    %c0_105 = arith.constant 0 : index
    %c0_106 = arith.constant 0 : index
    %131 = vector.load %arg6[%c2_103, %c0_104, %c0_105, %c0_106] : memref<3x3x8x8xf32, #tpu.memory_space<vmem>>, vector<1x1x8x8xf32>
    %132 = vector.shape_cast %131 : vector<1x1x8x8xf32> to vector<8x8xf32>
    %cst_107 = arith.constant dense<0.000000e+00> : vector<8x1024xf32>
    %133 = tpu.matmul %132, %130, %cst_107 {dimension_numbers = #tpu.dot_dimension_numbers<[1], [0], [0], [1], [0, 0, 1, 1], [], []>} : vector<8x8xf32>, vector<8x1024xf32>, vector<8x1024xf32> -> vector<8x1024xf32>
    %134 = arith.addf %127, %133 : vector<8x1024xf32>
    %c0_108 = arith.constant 0 : index
    %c160 = arith.constant 160 : index
    %135 = vector.load %arg9[%c0_108, %c160] : memref<8x1280xf32, #tpu.memory_space<vmem>>, vector<8x1024xf32>
    %c2_109 = arith.constant 2 : index
    %c1_110 = arith.constant 1 : index
    %c0_111 = arith.constant 0 : index
    %c0_112 = arith.constant 0 : index
    %136 = vector.load %arg6[%c2_109, %c1_110, %c0_111, %c0_112] : memref<3x3x8x8xf32, #tpu.memory_space<vmem>>, vector<1x1x8x8xf32>
    %137 = vector.shape_cast %136 : vector<1x1x8x8xf32> to vector<8x8xf32>
    %cst_113 = arith.constant dense<0.000000e+00> : vector<8x1024xf32>
    %138 = tpu.matmul %137, %135, %cst_113 {dimension_numbers = #tpu.dot_dimension_numbers<[1], [0], [0], [1], [0, 0, 1, 1], [], []>} : vector<8x8xf32>, vector<8x1024xf32>, vector<8x1024xf32> -> vector<8x1024xf32>
    %139 = arith.addf %134, %138 : vector<8x1024xf32>
    %c0_114 = arith.constant 0 : index
    %c161 = arith.constant 161 : index
    %140 = vector.load %arg9[%c0_114, %c161] : memref<8x1280xf32, #tpu.memory_space<vmem>>, vector<8x1024xf32>
    %141 = vector.broadcast %2 : vector<1x1024xf32> to vector<8x1024xf32>
    %142 = arith.mulf %140, %141 : vector<8x1024xf32>
    %c2_115 = arith.constant 2 : index
    %c2_116 = arith.constant 2 : index
    %c0_117 = arith.constant 0 : index
    %c0_118 = arith.constant 0 : index
    %143 = vector.load %arg6[%c2_115, %c2_116, %c0_117, %c0_118] : memref<3x3x8x8xf32, #tpu.memory_space<vmem>>, vector<1x1x8x8xf32>
    %144 = vector.shape_cast %143 : vector<1x1x8x8xf32> to vector<8x8xf32>
    %cst_119 = arith.constant dense<0.000000e+00> : vector<8x1024xf32>
    %145 = tpu.matmul %144, %142, %cst_119 {dimension_numbers = #tpu.dot_dimension_numbers<[1], [0], [0], [1], [0, 0, 1, 1], [], []>} : vector<8x8xf32>, vector<8x1024xf32>, vector<8x1024xf32> -> vector<8x1024xf32>
    %146 = arith.addf %139, %145 : vector<8x1024xf32>
    %147 = arith.mulf %146, %146 : vector<8x1024xf32>
    %cst_120 = arith.constant dense<0.000000e+00> : vector<1x1024xf32>
    %148 = tpu.matmul %7, %147, %cst_120 {dimension_numbers = #tpu.dot_dimension_numbers<[1], [0], [0], [1], [0, 0, 1, 1], [], []>} : vector<1x8xf32>, vector<8x1024xf32>, vector<1x1024xf32> -> vector<1x1024xf32>
    %cst_121 = arith.constant 1.250000e-01 : f32
    %149 = vector.broadcast %cst_121 : f32 to vector<1x1024xf32>
    %150 = arith.mulf %148, %149 : vector<1x1024xf32>
    %cst_122 = arith.constant 9.99999993E-9 : f32
    %151 = vector.broadcast %cst_122 : f32 to vector<1x1024xf32>
    %152 = arith.addf %150, %151 : vector<1x1024xf32>
    %153 = math.rsqrt %152 : vector<1x1024xf32>
    %154 = vector.broadcast %153 : vector<1x1024xf32> to vector<8x1024xf32>
    %155 = arith.mulf %146, %154 : vector<8x1024xf32>
    %cst_123 = arith.constant 0.000000e+00 : f32
    %156 = vector.broadcast %cst_123 : f32 to vector<8x1024xf32>
    %157 = arith.cmpf ogt, %155, %156 : vector<8x1024xf32>
    %cst_124 = arith.constant 2.000000e-01 : f32
    %158 = vector.broadcast %cst_124 : f32 to vector<8x1024xf32>
    %159 = arith.mulf %158, %155 : vector<8x1024xf32>
    %160 = arith.select %157, %155, %159 : vector<8x1024xi1>, vector<8x1024xf32>
    %161 = vector.shape_cast %160 : vector<8x1024xf32> to vector<1x8x1024xf32>
    %c0_125 = arith.constant 0 : index
    %c0_126 = arith.constant 0 : index
    %c0_127 = arith.constant 0 : index
    %162 = vector.load %arg8[%c0_125, %c0_126, %c0_127] : memref<1x8x1024xf32, #tpu.memory_space<vmem>>, vector<1x8x1024xf32>
    tpu.vector_store %arg8[%c0_125, %c0_126, %c0_127], %161 {strides = array<i32>} : memref<1x8x1024xf32, #tpu.memory_space<vmem>>, vector<1x8x1024xf32>,
    return
  }
  func.func @transform_0(%arg0: i32) -> (i32, i32, i32) {
    %c0_i32 = arith.constant 0 : i32
    %c0_i32_0 = arith.constant 0 : i32
    %c0_i32_1 = arith.constant 0 : i32
    return %arg0, %c0_i32, %c0_i32_0 : i32, i32, i32
  }
  func.func @transform_1(%arg0: i32) -> (i32, i32) {
    %c0_i32 = arith.constant 0 : i32
    %c0_i32_0 = arith.constant 0 : i32
    %c0_i32_1 = arith.constant 0 : i32
    return %c0_i32, %c0_i32_0 : i32, i32
  }
  func.func @transform_2(%arg0: i32) -> (i32, i32) {
    %c0_i32 = arith.constant 0 : i32
    %c0_i32_0 = arith.constant 0 : i32
    %c0_i32_1 = arith.constant 0 : i32
    return %c0_i32, %c0_i32_0 : i32, i32
  }
  func.func @transform_3(%arg0: i32) -> (i32, i32, i32, i32) {
    %c0_i32 = arith.constant 0 : i32
    %c0_i32_0 = arith.constant 0 : i32
    %c0_i32_1 = arith.constant 0 : i32
    %c0_i32_2 = arith.constant 0 : i32
    %c0_i32_3 = arith.constant 0 : i32
    return %c0_i32, %c0_i32_0, %c0_i32_1, %c0_i32_2 : i32, i32, i32, i32
  }
  func.func @transform_4(%arg0: i32) -> (i32, i32) {
    %c0_i32 = arith.constant 0 : i32
    %c0_i32_0 = arith.constant 0 : i32
    %c0_i32_1 = arith.constant 0 : i32
    return %c0_i32, %c0_i32_0 : i32, i32
  }
  func.func @transform_5(%arg0: i32) -> (i32, i32, i32, i32) {
    %c0_i32 = arith.constant 0 : i32
    %c0_i32_0 = arith.constant 0 : i32
    %c0_i32_1 = arith.constant 0 : i32
    %c0_i32_2 = arith.constant 0 : i32
    %c0_i32_3 = arith.constant 0 : i32
    return %c0_i32, %c0_i32_0, %c0_i32_1, %c0_i32_2 : i32, i32, i32, i32
  }
  func.func @transform_6(%arg0: i32) -> (i32, i32) {
    %c0_i32 = arith.constant 0 : i32
    %c0_i32_0 = arith.constant 0 : i32
    %c0_i32_1 = arith.constant 0 : i32
    return %c0_i32, %c0_i32_0 : i32, i32
  }
  func.func @transform_7(%arg0: i32) -> (i32, i32, i32) {
    %c0_i32 = arith.constant 0 : i32
    %c0_i32_0 = arith.constant 0 : i32
    %c0_i32_1 = arith.constant 0 : i32
    return %arg0, %c0_i32, %c0_i32_0 : i32, i32, i32
  }
}

</mosaic_0001>

<llo_original>
// kernel: tpu_custom_call.1
$region0: #{tpu_custom_call.1}
  #allocation0 [shape = 'u32[]', space=smem, size = 0x4, offset = 0x4, fixed_abs, tag = 'smem constant byte address 0x4 - core index']
  #allocation1 [shape = 'u32[144,128]{1,0:T(1,128)}', space=vmem, size = 0x12000, scoped, tag = 'internal scratch']
  #allocation2 [shape = 'f32[8,1280]{1,0:T(8,128)}', space=vmem, size = 0xa000, scoped, tag = 'scratch operand']
  %s0 = inlined_call_operand.hbm [shape: f32[2,4,256], index: 0, kind: input, shape index: {}]
  %s1 = inlined_call_operand.hbm [shape: f32[256,1280], index: 1, kind: input, shape index: {}]
  %s2 = inlined_call_operand.hbm [shape: f32[2,1024], index: 2, kind: input, shape index: {}]
  %s3 = inlined_call_operand.vmem [shape: f32[3,3,8,4], index: 3, kind: input, shape index: {}]
  %s4 = inlined_call_operand.vmem [shape: f32[8,1], index: 4, kind: input, shape index: {}]
  %s5 = inlined_call_operand.hbm [shape: f32[3,3,8,8], index: 5, kind: input, shape index: {}]
  %s6 = inlined_call_operand.vmem [shape: f32[8,1], index: 6, kind: input, shape index: {}]
  %s7 = inlined_call_operand.hbm [shape: f32[2,8,1024], index: 7, kind: output, shape index: {}]
  %s8 = sld [smem:[#allocation0]]
  $region77: #{tpu_custom_call.1} parent=0
    _
  %s10 = ssub.s32 1, %s8
  %s11 = scalar_select 0, %s10, %s8
  $region1: #{tpu_custom_call.1} parent=0
    #allocation3 [shape = 'u8[8192]{0}', space=vmem, size = 0x2000, scoped, tag = 'input window, operand 0']
    #allocation4 [shape = 's32[2]{0}', space=sflag, size = 0x8, scoped, tag = 'scoped memory for tpu_custom_call.1']
    #allocation5 [shape = 's32[2]{0}', space=sflag, size = 0x8, scoped, tag = 'scoped memory for tpu_custom_call.1']
    #allocation6 [shape = 'u8[1310720]{0}', space=vmem, size = 0x140000, scoped, tag = 'input window, operand 1, single buffered']
    #allocation7 [shape = 's32[1]{0}', space=sflag, size = 0x4, scoped, tag = 'scoped memory for tpu_custom_call.1']
    #allocation8 [shape = 'u8[8192]{0}', space=vmem, size = 0x2000, scoped, tag = 'input window, operand 2, single buffered']
    #allocation9 [shape = 'u8[36864]{0}', space=vmem, size = 0x9000, scoped, tag = 'input window, operand 5, single buffered']
    #allocation10 [shape = 's32[1]{0}', space=sflag, size = 0x4, scoped, tag = 'scoped memory for tpu_custom_call.1']
    #allocation11 [shape = 'u8[65536]{0}', space=vmem, size = 0x10000, scoped, tag = 'output window, operand 0']
    %12 = vsyncpa [#allocation4], 0
    %s13 = scalar_lea.sflag [#allocation4], 1
    %14 = vsyncpa %s13, 0
    %15 = vsyncpa [#allocation7], 0
    %16 = vsyncpa [#allocation10], 0
    %17 = vsyncpa [#allocation5], 0
    %s18 = scalar_lea.sflag [#allocation5], 1
    %19 = vsyncpa %s18, 0
    loop: start=0, step=1, limit=4
    $region2: #{tpu_custom_call.1} parent=1 // loop_pre_header
      _
    $region3: #{tpu_custom_call.1} parent=1 // loop_header
      %s21 = sphi 0, %s25
      %p22 = scmp.ge.s32.totalorder %s21, 4
      %s31 = sphi 0, %s33
      %s34 = sphi 0, %s31
      %s35 = sphi 0, %s34
      %s51 = sphi 0, %s35
      %s55 = sphi 0, %s55
      %s57 = sphi 0, %s55
      %s58 = sphi 0, %s57
      %s72 = sphi 0, %s58
      %s76 = sphi 0, %s76
      %s78 = sphi 0, %s76
      %s79 = sphi 0, %s78
      %s93 = sphi 0, %s79
      %s97 = sphi 0, %s97
      %s99 = sphi 0, %s97
      %s100 = sphi 0, %s99
      %s114 = sphi 0, %s100
      %s118 = sphi 0, %s118
      %s120 = sphi 0, %s118
      %s121 = sphi 0, %s120
      %s135 = sphi 0, %s121
      %s139 = sphi 0, %s139
      %s141 = sphi 0, %s139
      %s142 = sphi 0, %s141
      %s156 = sphi 0, %s142
      %s160 = sphi 0, %s160
      %s162 = sphi 0, %s160
      %s163 = sphi 0, %s162
      %s177 = sphi 0, %s163
      %s183 = sphi 0, %s185
      %s186 = sphi 0, %s183
      %s187 = sphi 0, %s186
      %s203 = sphi 0, %s187
    $region4: #{tpu_custom_call.1} parent=1 // loop_header_branch
      %24 = sbr.rel (%p22) target = $region8
    $region5: #{tpu_custom_call.1} parent=1 // loop_body
      %s26 = ssub.s32 %s21, 1
      %s27 = ssub.s32 %s21, 2
      %s28 = sadd.s32 %s21, 1
      %s29 = ssub.s32 %s21, %s28
      %p30 = scmp.eq.s32.totalorder %s29, 0
      %s32 = sadd.s32 %s31, 1
      %s33 = scalar_select %p30, %s31, %s32
      %p36 = pneg %p30
      %p37 = scmp.eq.s32.totalorder %s21, 1
      %p38 = por %p36, %p37
      %p39 = scmp.ne.s32.totalorder %s31, %s34
      %p40 = scmp.eq.s32.totalorder %s21, 0
      %p41 = por %p39, %p40
      %p42 = scmp.ne.s32.totalorder %s31, %s34
      %p43 = scmp.eq.s32.totalorder %s26, 1
      %p44 = por %p42, %p43
      %p45 = scmp.ne.s32.totalorder %s34, %s35
      %p46 = scmp.eq.s32.totalorder %s26, 0
      %p47 = por %p45, %p46
      %p48 = scmp.ne.s32.totalorder %s34, %s35
      %p49 = scmp.eq.s32.totalorder %s27, 1
      %p50 = por %p48, %p49
      %p52 = scmp.ne.s32.totalorder %s35, %s51
      %p53 = scmp.eq.s32.totalorder %s27, 0
      %p54 = por %p52, %p53
      %s56 = sadd.s32 %s55, 1
      %p59 = scmp.eq.s32.totalorder %s21, 1
      %p60 = scmp.ne.s32.totalorder %s55, %s57
      %p61 = scmp.eq.s32.totalorder %s21, 0
      %p62 = por %p60, %p61
      %p63 = scmp.ne.s32.totalorder %s55, %s57
      %p64 = scmp.eq.s32.totalorder %s26, 1
      %p65 = por %p63, %p64
      %p66 = scmp.ne.s32.totalorder %s57, %s58
      %p67 = scmp.eq.s32.totalorder %s26, 0
      %p68 = por %p66, %p67
      %p69 = scmp.ne.s32.totalorder %s57, %s58
      %p70 = scmp.eq.s32.totalorder %s27, 1
      %p71 = por %p69, %p70
      %p73 = scmp.ne.s32.totalorder %s58, %s72
      %p74 = scmp.eq.s32.totalorder %s27, 0
      %p75 = por %p73, %p74
      %s77 = sadd.s32 %s76, 1
      %p80 = scmp.eq.s32.totalorder %s21, 1
      %p81 = scmp.ne.s32.totalorder %s76, %s78
      %p82 = scmp.eq.s32.totalorder %s21, 0
      %p83 = por %p81, %p82
      %p84 = scmp.ne.s32.totalorder %s76, %s78
      %p85 = scmp.eq.s32.totalorder %s26, 1
      %p86 = por %p84, %p85
      %p87 = scmp.ne.s32.totalorder %s78, %s79
      %p88 = scmp.eq.s32.totalorder %s26, 0
      %p89 = por %p87, %p88
      %p90 = scmp.ne.s32.totalorder %s78, %s79
      %p91 = scmp.eq.s32.totalorder %s27, 1
      %p92 = por %p90, %p91
      %p94 = scmp.ne.s32.totalorder %s79, %s93
      %p95 = scmp.eq.s32.totalorder %s27, 0
      %p96 = por %p94, %p95
      %s98 = sadd.s32 %s97, 1
      %p101 = scmp.eq.s32.totalorder %s21, 1
      %p102 = scmp.ne.s32.totalorder %s97, %s99
      %p103 = scmp.eq.s32.totalorder %s21, 0
      %p104 = por %p102, %p103
      %p105 = scmp.ne.s32.totalorder %s97, %s99
      %p106 = scmp.eq.s32.totalorder %s26, 1
      %p107 = por %p105, %p106
      %p108 = scmp.ne.s32.totalorder %s99, %s100
      %p109 = scmp.eq.s32.totalorder %s26, 0
      %p110 = por %p108, %p109
      %p111 = scmp.ne.s32.totalorder %s99, %s100
      %p112 = scmp.eq.s32.totalorder %s27, 1
      %p113 = por %p111, %p112
      %p115 = scmp.ne.s32.totalorder %s100, %s114
      %p116 = scmp.eq.s32.totalorder %s27, 0
      %p117 = por %p115, %p116
      %s119 = sadd.s32 %s118, 1
      %p122 = scmp.eq.s32.totalorder %s21, 1
      %p123 = scmp.ne.s32.totalorder %s118, %s120
      %p124 = scmp.eq.s32.totalorder %s21, 0
      %p125 = por %p123, %p124
      %p126 = scmp.ne.s32.totalorder %s118, %s120
      %p127 = scmp.eq.s32.totalorder %s26, 1
      %p128 = por %p126, %p127
      %p129 = scmp.ne.s32.totalorder %s120, %s121
      %p130 = scmp.eq.s32.totalorder %s26, 0
      %p131 = por %p129, %p130
      %p132 = scmp.ne.s32.totalorder %s120, %s121
      %p133 = scmp.eq.s32.totalorder %s27, 1
      %p134 = por %p132, %p133
      %p136 = scmp.ne.s32.totalorder %s121, %s135
      %p137 = scmp.eq.s32.totalorder %s27, 0
      %p138 = por %p136, %p137
      %s140 = sadd.s32 %s139, 1
      %p143 = scmp.eq.s32.totalorder %s21, 1
      %p144 = scmp.ne.s32.totalorder %s139, %s141
      %p145 = scmp.eq.s32.totalorder %s21, 0
      %p146 = por %p144, %p145
      %p147 = scmp.ne.s32.totalorder %s139, %s141
      %p148 = scmp.eq.s32.totalorder %s26, 1
      %p149 = por %p147, %p148
      %p150 = scmp.ne.s32.totalorder %s141, %s142
      %p151 = scmp.eq.s32.totalorder %s26, 0
      %p152 = por %p150, %p151
      %p153 = scmp.ne.s32.totalorder %s141, %s142
      %p154 = scmp.eq.s32.totalorder %s27, 1
      %p155 = por %p153, %p154
      %p157 = scmp.ne.s32.totalorder %s142, %s156
      %p158 = scmp.eq.s32.totalorder %s27, 0
      %p159 = por %p157, %p158
      %s161 = sadd.s32 %s160, 1
      %p164 = scmp.eq.s32.totalorder %s21, 1
      %p165 = scmp.ne.s32.totalorder %s160, %s162
      %p166 = scmp.eq.s32.totalorder %s21, 0
      %p167 = por %p165, %p166
      %p168 = scmp.ne.s32.totalorder %s160, %s162
      %p169 = scmp.eq.s32.totalorder %s26, 1
      %p170 = por %p168, %p169
      %p171 = scmp.ne.s32.totalorder %s162, %s163
      %p172 = scmp.eq.s32.totalorder %s26, 0
      %p173 = por %p171, %p172
      %p174 = scmp.ne.s32.totalorder %s162, %s163
      %p175 = scmp.eq.s32.totalorder %s27, 1
      %p176 = por %p174, %p175
      %p178 = scmp.ne.s32.totalorder %s163, %s177
      %p179 = scmp.eq.s32.totalorder %s27, 0
      %p180 = por %p178, %p179
      %s181 = ssub.s32 %s21, %s28
      %p182 = scmp.eq.s32.totalorder %s181, 0
      %s184 = sadd.s32 %s183, 1
      %s185 = scalar_select %p182, %s183, %s184
      %p188 = pneg %p182
      %p189 = scmp.eq.s32.totalorder %s21, 1
      %p190 = por %p188, %p189
      %p191 = scmp.ne.s32.totalorder %s183, %s186
      %p192 = scmp.eq.s32.totalorder %s21, 0
      %p193 = por %p191, %p192
      %p194 = scmp.ne.s32.totalorder %s183, %s186
      %p195 = scmp.eq.s32.totalorder %s26, 1
      %p196 = por %p194, %p195
      %p197 = scmp.ne.s32.totalorder %s186, %s187
      %p198 = scmp.eq.s32.totalorder %s26, 0
      %p199 = por %p197, %p198
      %p200 = scmp.ne.s32.totalorder %s186, %s187
      %p201 = scmp.eq.s32.totalorder %s27, 1
      %p202 = por %p200, %p201
      %p204 = scmp.ne.s32.totalorder %s187, %s203
      %p205 = scmp.eq.s32.totalorder %s27, 0
      %p206 = por %p204, %p205
      %p207 = scmp.le.s32.totalorder 1, %s21
      %p208 = scmp.lt.s32.totalorder %s21, 3
      %p209 = pnand %p207, %p208
      %p210 = pneg %p209
      // Predicated region
      $region9: #{tpu_custom_call.1} parent=5 // pred_check
        _
      $region10: #{tpu_custom_call.1} parent=5 // pred_check_branch
        %212 = sbr.rel (%p209) target = $region12
      $region11: #{tpu_custom_call.1} parent=5 // pred_region
        %s213 = ssub.s32 %s21, 1
        // Predicated region
        $region13: #{tpu_custom_call.1} parent=11 // pred_check
          %p214 = pneg %p68
        $region14: #{tpu_custom_call.1} parent=11 // pred_check_branch
          %216 = sbr.rel (%p214) target = $region16
        $region15: #{tpu_custom_call.1} parent=11 // pred_region
          %s218 = ssub.s32 40960, 40960
          %219 = vsyncadd [#allocation7], %s218
          %s220 = sshll.u32 [#allocation6], 4
          %s221 = int_to_ptr.vmem [resolvable:$true] %s220
          %226 = dma.hbm_to_vmem [thread:$0]  %s1, 40960, %s221, [#allocation7], 1280, 1280, 80
        $region16: #{tpu_custom_call.1} parent=11 // pred_fallthru
          _
        // Predicated region
        $region17: #{tpu_custom_call.1} parent=11 // pred_check
          %p227 = pneg %p89
        $region18: #{tpu_custom_call.1} parent=11 // pred_check_branch
          %229 = sbr.rel (%p227) target = $region20
        $region19: #{tpu_custom_call.1} parent=11 // pred_region
          %s231 = ssub.s32 256, 256
          %232 = vsyncadd [#allocation7], %s231
          %s234 = sshll.u32 [#allocation8], 4
          %s235 = int_to_ptr.vmem [resolvable:$true] %s234
          %237 = dma.hbm_to_vmem [thread:$0]  %s2, 256, %s235, [#allocation7]
        $region20: #{tpu_custom_call.1} parent=11 // pred_fallthru
          _
        // Predicated region
        $region21: #{tpu_custom_call.1} parent=11 // pred_check
          %p238 = pneg %p110
        $region22: #{tpu_custom_call.1} parent=11 // pred_check_branch
          %240 = sbr.rel (%p238) target = $region24
        $region23: #{tpu_custom_call.1} parent=11 // pred_region
          _
        $region24: #{tpu_custom_call.1} parent=11 // pred_fallthru
          _
        // Predicated region
        $region25: #{tpu_custom_call.1} parent=11 // pred_check
          %p241 = pneg %p131
        $region26: #{tpu_custom_call.1} parent=11 // pred_check_branch
          %243 = sbr.rel (%p241) target = $region28
        $region27: #{tpu_custom_call.1} parent=11 // pred_region
          _
        $region28: #{tpu_custom_call.1} parent=11 // pred_fallthru
          _
        // Predicated region
        $region29: #{tpu_custom_call.1} parent=11 // pred_check
          %p244 = pneg %p152
        $region30: #{tpu_custom_call.1} parent=11 // pred_check_branch
          %246 = sbr.rel (%p244) target = $region32
        $region31: #{tpu_custom_call.1} parent=11 // pred_region
          %s248 = ssub.s32 1152, 1152
          %249 = vsyncadd [#allocation10], %s248
          %s250 = sshll.u32 [#allocation9], 4
          %s251 = int_to_ptr.vmem [resolvable:$true] %s250
          %256 = dma.hbm_to_vmem [thread:$0]  %s5, 1152, %s251, [#allocation10], 128, 128, 8
        $region32: #{tpu_custom_call.1} parent=11 // pred_fallthru
          _
        // Predicated region
        $region33: #{tpu_custom_call.1} parent=11 // pred_check
          %p257 = pneg %p173
        $region34: #{tpu_custom_call.1} parent=11 // pred_check_branch
          %259 = sbr.rel (%p257) target = $region36
        $region35: #{tpu_custom_call.1} parent=11 // pred_region
          _
        $region36: #{tpu_custom_call.1} parent=11 // pred_fallthru
          _
      $region12: #{tpu_custom_call.1} parent=5 // pred_fallthru
        _
      %p260 = scmp.lt.s32.totalorder %s21, 2
      // Predicated region
      $region37: #{tpu_custom_call.1} parent=5 // pred_check
        %p261 = pneg %p260
      $region38: #{tpu_custom_call.1} parent=5 // pred_check_branch
        %263 = sbr.rel (%p261) target = $region40
      $region39: #{tpu_custom_call.1} parent=5 // pred_region
        // Predicated region
        $region41: #{tpu_custom_call.1} parent=39 // pred_check
          %p264 = pneg %p41
        $region42: #{tpu_custom_call.1} parent=39 // pred_check_branch
          %266 = sbr.rel (%p264) target = $region44
        $region43: #{tpu_custom_call.1} parent=39 // pred_region
          %s267 = sand.u32 %s31, 1
          %s268 = scalar_lea.sflag [#allocation4], %s267
          %s269 = sand.u32 %s31, 1
          %s270 = smul.addr %s269, 8
          %s271 = scalar_lea.vmem [#allocation3], %s270
          %s273 = ssub.s32 128, 128
          %274 = vsyncadd %s268, %s273
          %s275 = smul.addr %s21, 2
          %s276 = smul.addr %s275, 64
          %s277 = scalar_lea.hbm %s0, %s276
          %s279 = sshll.u32 %s271, 4
          %s280 = int_to_ptr.vmem [resolvable:$true] %s279
          %282 = dma.hbm_to_vmem [thread:$0]  %s277, 128, %s280, %s268
        $region44: #{tpu_custom_call.1} parent=39 // pred_fallthru
          _
      $region40: #{tpu_custom_call.1} parent=5 // pred_fallthru
        _
      %p283 = scmp.le.s32.totalorder 1, %s21
      %p284 = scmp.lt.s32.totalorder %s21, 3
      %p285 = pnand %p283, %p284
      %p286 = pneg %p285
      // Predicated region
      $region45: #{tpu_custom_call.1} parent=5 // pred_check
        _
      $region46: #{tpu_custom_call.1} parent=5 // pred_check_branch
        %288 = sbr.rel (%p285) target = $region48
      $region47: #{tpu_custom_call.1} parent=5 // pred_region
        %s289 = ssub.s32 %s21, 1
        %s290 = sand.u32 %s34, 1
        %s291 = scalar_lea.sflag [#allocation4], %s290
        %s292 = sand.u32 %s34, 1
        %s293 = smul.addr %s292, 8
        %s294 = scalar_lea.vmem [#allocation3], %s293
        // Predicated region
        $region49: #{tpu_custom_call.1} parent=47 // pred_check
          %p295 = pneg %p47
        $region50: #{tpu_custom_call.1} parent=47 // pred_check_branch
          %297 = sbr.rel (%p295) target = $region52
        $region51: #{tpu_custom_call.1} parent=47 // pred_region
          %298 = dma.done %s291, 128
        $region52: #{tpu_custom_call.1} parent=47 // pred_fallthru
          _
        // Predicated region
        $region53: #{tpu_custom_call.1} parent=47 // pred_check
          %p299 = pneg %p68
        $region54: #{tpu_custom_call.1} parent=47 // pred_check_branch
          %301 = sbr.rel (%p299) target = $region56
        $region55: #{tpu_custom_call.1} parent=47 // pred_region
          %302 = dma.done [#allocation7], 40960
        $region56: #{tpu_custom_call.1} parent=47 // pred_fallthru
          _
        // Predicated region
        $region57: #{tpu_custom_call.1} parent=47 // pred_check
          %p303 = pneg %p89
        $region58: #{tpu_custom_call.1} parent=47 // pred_check_branch
          %305 = sbr.rel (%p303) target = $region60
        $region59: #{tpu_custom_call.1} parent=47 // pred_region
          %306 = dma.done [#allocation7], 256
        $region60: #{tpu_custom_call.1} parent=47 // pred_fallthru
          _
        // Predicated region
        $region61: #{tpu_custom_call.1} parent=47 // pred_check
          %p307 = pneg %p152
        $region62: #{tpu_custom_call.1} parent=47 // pred_check_branch
          %309 = sbr.rel (%p307) target = $region64
        $region63: #{tpu_custom_call.1} parent=47 // pred_region
          %310 = dma.done [#allocation10], 1152
        $region64: #{tpu_custom_call.1} parent=47 // pred_fallthru
          _
        %s311 = sand.u32 %s34, 1
        %s312 = scalar_lea.sflag [#allocation4], %s311
        %s313 = sand.u32 %s34, 1
        %s314 = smul.addr %s313, 8
        %s315 = scalar_lea.vmem [#allocation3], %s314
        %p316 = pneg %p47
        %p317 = pneg %p44
        %p318 = pneg %p68
        %p319 = pneg %p65
        %p320 = pneg %p89
        %p321 = pneg %p86
        %p322 = pneg %p110
        %p323 = pneg %p107
        %p324 = pneg %p131
        %p325 = pneg %p128
        %p326 = pneg %p152
        %p327 = pneg %p149
        %p328 = pneg %p173
        %p329 = pneg %p170
        %p330 = pneg %p199
        %p331 = pneg %p196
        %s332 = sand.u32 %s186, 1
        %s333 = scalar_lea.sflag [#allocation5], %s332
        %s334 = sand.u32 %s186, 1
        %s335 = smul.addr %s334, 64
        %s336 = scalar_lea.vmem [#allocation11], %s335
        %v337 = vld [vmem:[#allocation8] sm:$0xff]
        %v338 = vld [vmem:[#allocation8 + $0x8] sm:$0xff]
        %v339 = vld [vmem:[%s294] sm:$0xff]
        %v340 = vld [vmem:[#allocation6] sm:$0xff]
        %v341 = vld [vmem:[#allocation6 + $0x8] sm:$0xff]
        %v342 = vld [vmem:[#allocation6 + $0x10] sm:$0xff]
        %v343 = vld [vmem:[#allocation6 + $0x18] sm:$0xff]
        %v344 = vld [vmem:[#allocation6 + $0x20] sm:$0xff]
        %v345 = vld [vmem:[#allocation6 + $0x28] sm:$0xff]
        %v346 = vld [vmem:[#allocation6 + $0x30] sm:$0xff]
        %v347 = vld [vmem:[#allocation6 + $0x38] sm:$0xff]
        %v348 = vld [vmem:[#allocation6 + $0x40] sm:$0xff]
        %v349 = vld [vmem:[#allocation6 + $0x48] sm:$0xff]
        %v350 = vld [vmem:[#allocation6 + $0x50] sm:$0xff]
        %v351 = vld [vmem:[#allocation6 + $0x58] sm:$0xff]
        %v352 = vld [vmem:[#allocation6 + $0x60] sm:$0xff]
        %v353 = vld [vmem:[#allocation6 + $0x68] sm:$0xff]
        %v354 = vld [vmem:[#allocation6 + $0x70] sm:$0xff]
        %v355 = vld [vmem:[#allocation6 + $0x78] sm:$0xff]
        %v356 = vld [vmem:[#allocation6 + $0x80] sm:$0xff]
        %v357 = vld [vmem:[#allocation6 + $0x88] sm:$0xff]
        %v358 = vld [vmem:[#allocation6 + $0x90] sm:$0xff]
        %v359 = vld [vmem:[#allocation6 + $0x98] sm:$0xff]
        %v360 = vld [vmem:[#allocation6 + $0xa0] sm:$0xff]
        %v361 = vld [vmem:[#allocation6 + $0xa8] sm:$0xff]
        %v362 = vld [vmem:[#allocation6 + $0xb0] sm:$0xff]
        %v363 = vld [vmem:[#allocation6 + $0xb8] sm:$0xff]
        %v364 = vld [vmem:[#allocation6 + $0xc0] sm:$0xff]
        %v365 = vld [vmem:[#allocation6 + $0xc8] sm:$0xff]
        %v366 = vld [vmem:[#allocation6 + $0xd0] sm:$0xff]
        %v367 = vld [vmem:[#allocation6 + $0xd8] sm:$0xff]
        %v368 = vld [vmem:[#allocation6 + $0xe0] sm:$0xff]
        %v369 = vld [vmem:[#allocation6 + $0xe8] sm:$0xff]
        %v370 = vld [vmem:[#allocation6 + $0xf0] sm:$0xff]
        %v371 = vld [vmem:[#allocation6 + $0xf8] sm:$0xff]
        %v372 = vld [vmem:[#allocation6 + $0x100] sm:$0xff]
        %v373 = vld [vmem:[#allocation6 + $0x108] sm:$0xff]
        %v374 = vld [vmem:[#allocation6 + $0x110] sm:$0xff]
        %v375 = vld [vmem:[#allocation6 + $0x118] sm:$0xff]
        %v376 = vld [vmem:[#allocation6 + $0x120] sm:$0xff]
        %v377 = vld [vmem:[#allocation6 + $0x128] sm:$0xff]
        %v378 = vld [vmem:[#allocation6 + $0x130] sm:$0xff]
        %v379 = vld [vmem:[#allocation6 + $0x138] sm:$0xff]
        %v380 = vld [vmem:[#allocation6 + $0x140] sm:$0xff]
        %v381 = vld [vmem:[#allocation6 + $0x148] sm:$0xff]
        %v382 = vld [vmem:[#allocation6 + $0x150] sm:$0xff]
        %v383 = vld [vmem:[#allocation6 + $0x158] sm:$0xff]
        %v384 = vld [vmem:[#allocation6 + $0x160] sm:$0xff]
        %v385 = vld [vmem:[#allocation6 + $0x168] sm:$0xff]
        %v386 = vld [vmem:[#allocation6 + $0x170] sm:$0xff]
        %v387 = vld [vmem:[#allocation6 + $0x178] sm:$0xff]
        %v388 = vld [vmem:[#allocation6 + $0x180] sm:$0xff]
        %v389 = vld [vmem:[#allocation6 + $0x188] sm:$0xff]
        %v390 = vld [vmem:[#allocation6 + $0x190] sm:$0xff]
        %v391 = vld [vmem:[#allocation6 + $0x198] sm:$0xff]
        %v392 = vld [vmem:[#allocation6 + $0x1a0] sm:$0xff]
        %v393 = vld [vmem:[#allocation6 + $0x1a8] sm:$0xff]
        %v394 = vld [vmem:[#allocation6 + $0x1b0] sm:$0xff]
        %v395 = vld [vmem:[#allocation6 + $0x1b8] sm:$0xff]
        %v396 = vld [vmem:[#allocation6 + $0x1c0] sm:$0xff]
        %v397 = vld [vmem:[#allocation6 + $0x1c8] sm:$0xff]
        %v398 = vld [vmem:[#allocation6 + $0x1d0] sm:$0xff]
        %v399 = vld [vmem:[#allocation6 + $0x1d8] sm:$0xff]
        %v400 = vld [vmem:[#allocation6 + $0x1e0] sm:$0xff]
        %v401 = vld [vmem:[#allocation6 + $0x1e8] sm:$0xff]
        %v402 = vld [vmem:[#allocation6 + $0x1f0] sm:$0xff]
        %v403 = vld [vmem:[#allocation6 + $0x1f8] sm:$0xff]
        %v404 = vld [vmem:[#allocation6 + $0x200] sm:$0xff]
        %v405 = vld [vmem:[#allocation6 + $0x208] sm:$0xff]
        %v406 = vld [vmem:[#allocation6 + $0x210] sm:$0xff]
        %v407 = vld [vmem:[#allocation6 + $0x218] sm:$0xff]
        %v408 = vld [vmem:[#allocation6 + $0x220] sm:$0xff]
        %v409 = vld [vmem:[#allocation6 + $0x228] sm:$0xff]
        %v410 = vld [vmem:[#allocation6 + $0x230] sm:$0xff]
        %v411 = vld [vmem:[#allocation6 + $0x238] sm:$0xff]
        %v412 = vld [vmem:[#allocation6 + $0x240] sm:$0xff]
        %v413 = vld [vmem:[#allocation6 + $0x248] sm:$0xff]
        %v414 = vld [vmem:[#allocation6 + $0x250] sm:$0xff]
        %v415 = vld [vmem:[#allocation6 + $0x258] sm:$0xff]
        %v416 = vld [vmem:[#allocation6 + $0x260] sm:$0xff]
        %v417 = vld [vmem:[#allocation6 + $0x268] sm:$0xff]
        %v418 = vld [vmem:[#allocation6 + $0x270] sm:$0xff]
        %v419 = vld [vmem:[#allocation6 + $0x278] sm:$0xff]
        %v420 = vld [vmem:[#allocation6 + $0x280] sm:$0xff]
        %v421 = vld [vmem:[#allocation6 + $0x288] sm:$0xff]
        %v422 = vld [vmem:[#allocation6 + $0x290] sm:$0xff]
        %v423 = vld [vmem:[#allocation6 + $0x298] sm:$0xff]
        %v424 = vld [vmem:[#allocation6 + $0x2a0] sm:$0xff]
        %v425 = vld [vmem:[#allocation6 + $0x2a8] sm:$0xff]
        %v426 = vld [vmem:[#allocation6 + $0x2b0] sm:$0xff]
        %v427 = vld [vmem:[#allocation6 + $0x2b8] sm:$0xff]
        %v428 = vld [vmem:[#allocation6 + $0x2c0] sm:$0xff]
        %v429 = vld [vmem:[#allocation6 + $0x2c8] sm:$0xff]
        %v430 = vld [vmem:[#allocation6 + $0x2d0] sm:$0xff]
        %v431 = vld [vmem:[#allocation6 + $0x2d8] sm:$0xff]
        %v432 = vld [vmem:[#allocation6 + $0x2e0] sm:$0xff]
        %v433 = vld [vmem:[#allocation6 + $0x2e8] sm:$0xff]
        %v434 = vld [vmem:[#allocation6 + $0x2f0] sm:$0xff]
        %v435 = vld [vmem:[#allocation6 + $0x2f8] sm:$0xff]
        %v436 = vld [vmem:[#allocation6 + $0x300] sm:$0xff]
        %v437 = vld [vmem:[#allocation6 + $0x308] sm:$0xff]
        %v438 = vld [vmem:[#allocation6 + $0x310] sm:$0xff]
        %v439 = vld [vmem:[#allocation6 + $0x318] sm:$0xff]
        %v440 = vld [vmem:[#allocation6 + $0x320] sm:$0xff]
        %v441 = vld [vmem:[#allocation6 + $0x328] sm:$0xff]
        %v442 = vld [vmem:[#allocation6 + $0x330] sm:$0xff]
        %v443 = vld [vmem:[#allocation6 + $0x338] sm:$0xff]
        %v444 = vld [vmem:[#allocation6 + $0x340] sm:$0xff]
        %v445 = vld [vmem:[#allocation6 + $0x348] sm:$0xff]
        %v446 = vld [vmem:[#allocation6 + $0x350] sm:$0xff]
        %v447 = vld [vmem:[#allocation6 + $0x358] sm:$0xff]
        %v448 = vld [vmem:[#allocation6 + $0x360] sm:$0xff]
        %v449 = vld [vmem:[#allocation6 + $0x368] sm:$0xff]
        %v450 = vld [vmem:[#allocation6 + $0x370] sm:$0xff]
        %v451 = vld [vmem:[#allocation6 + $0x378] sm:$0xff]
        %v452 = vld [vmem:[#allocation6 + $0x380] sm:$0xff]
        %v453 = vld [vmem:[#allocation6 + $0x388] sm:$0xff]
        %v454 = vld [vmem:[#allocation6 + $0x390] sm:$0xff]
        %v455 = vld [vmem:[#allocation6 + $0x398] sm:$0xff]
        %v456 = vld [vmem:[#allocation6 + $0x3a0] sm:$0xff]
        %v457 = vld [vmem:[#allocation6 + $0x3a8] sm:$0xff]
        %v458 = vld [vmem:[#allocation6 + $0x3b0] sm:$0xff]
        %v459 = vld [vmem:[#allocation6 + $0x3b8] sm:$0xff]
        %v460 = vld [vmem:[#allocation6 + $0x3c0] sm:$0xff]
        %v461 = vld [vmem:[#allocation6 + $0x3c8] sm:$0xff]
        %v462 = vld [vmem:[#allocation6 + $0x3d0] sm:$0xff]
        %v463 = vld [vmem:[#allocation6 + $0x3d8] sm:$0xff]
        %v464 = vld [vmem:[#allocation6 + $0x3e0] sm:$0xff]
        %v465 = vld [vmem:[#allocation6 + $0x3e8] sm:$0xff]
        %v466 = vld [vmem:[#allocation6 + $0x3f0] sm:$0xff]
        %v467 = vld [vmem:[#allocation6 + $0x3f8] sm:$0xff]
        %v468 = vld [vmem:[#allocation6 + $0x400] sm:$0xff]
        %v469 = vld [vmem:[#allocation6 + $0x408] sm:$0xff]
        %v470 = vld [vmem:[#allocation6 + $0x410] sm:$0xff]
        %v471 = vld [vmem:[#allocation6 + $0x418] sm:$0xff]
        %v472 = vld [vmem:[#allocation6 + $0x420] sm:$0xff]
        %v473 = vld [vmem:[#allocation6 + $0x428] sm:$0xff]
        %v474 = vld [vmem:[#allocation6 + $0x430] sm:$0xff]
        %v475 = vld [vmem:[#allocation6 + $0x438] sm:$0xff]
        %v476 = vld [vmem:[#allocation6 + $0x440] sm:$0xff]
        %v477 = vld [vmem:[#allocation6 + $0x448] sm:$0xff]
        %v478 = vld [vmem:[#allocation6 + $0x450] sm:$0xff]
        %v479 = vld [vmem:[#allocation6 + $0x458] sm:$0xff]
        %v480 = vld [vmem:[#allocation6 + $0x460] sm:$0xff]
        %v481 = vld [vmem:[#allocation6 + $0x468] sm:$0xff]
        %v482 = vld [vmem:[#allocation6 + $0x470] sm:$0xff]
        %v483 = vld [vmem:[#allocation6 + $0x478] sm:$0xff]
        %v484 = vld [vmem:[#allocation6 + $0x480] sm:$0xff]
        %v485 = vld [vmem:[#allocation6 + $0x488] sm:$0xff]
        %v486 = vld [vmem:[#allocation6 + $0x490] sm:$0xff]
        %v487 = vld [vmem:[#allocation6 + $0x498] sm:$0xff]
        %v488 = vld [vmem:[#allocation6 + $0x4a0] sm:$0xff]
        %v489 = vld [vmem:[#allocation6 + $0x4a8] sm:$0xff]
        %v490 = vld [vmem:[#allocation6 + $0x4b0] sm:$0xff]
        %v491 = vld [vmem:[#allocation6 + $0x4b8] sm:$0xff]
        %v492 = vld [vmem:[#allocation6 + $0x4c0] sm:$0xff]
        %v493 = vld [vmem:[#allocation6 + $0x4c8] sm:$0xff]
        %v494 = vld [vmem:[#allocation6 + $0x4d0] sm:$0xff]
        %v495 = vld [vmem:[#allocation6 + $0x4d8] sm:$0xff]
        %v496 = vld [vmem:[#allocation6 + $0x4e0] sm:$0xff]
        %v497 = vld [vmem:[#allocation6 + $0x4e8] sm:$0xff]
        %v498 = vld [vmem:[#allocation6 + $0x4f0] sm:$0xff]
        %v499 = vld [vmem:[#allocation6 + $0x4f8] sm:$0xff]
        %v500 = vld [vmem:[#allocation6 + $0x500] sm:$0xff]
        %v501 = vld [vmem:[#allocation6 + $0x508] sm:$0xff]
        %v502 = vld [vmem:[#allocation6 + $0x510] sm:$0xff]
        %v503 = vld [vmem:[#allocation6 + $0x518] sm:$0xff]
        %v504 = vld [vmem:[#allocation6 + $0x520] sm:$0xff]
        %v505 = vld [vmem:[#allocation6 + $0x528] sm:$0xff]
        %v506 = vld [vmem:[#allocation6 + $0x530] sm:$0xff]
        %v507 = vld [vmem:[#allocation6 + $0x538] sm:$0xff]
        %v508 = vld [vmem:[#allocation6 + $0x540] sm:$0xff]
        %v509 = vld [vmem:[#allocation6 + $0x548] sm:$0xff]
        %v510 = vld [vmem:[#allocation6 + $0x550] sm:$0xff]
        %v511 = vld [vmem:[#allocation6 + $0x558] sm:$0xff]
        %v512 = vld [vmem:[#allocation6 + $0x560] sm:$0xff]
        %v513 = vld [vmem:[#allocation6 + $0x568] sm:$0xff]
        %v514 = vld [vmem:[#allocation6 + $0x570] sm:$0xff]
        %v515 = vld [vmem:[#allocation6 + $0x578] sm:$0xff]
        %v516 = vld [vmem:[#allocation6 + $0x580] sm:$0xff]
        %v517 = vld [vmem:[#allocation6 + $0x588] sm:$0xff]
        %v518 = vld [vmem:[#allocation6 + $0x590] sm:$0xff]
        %v519 = vld [vmem:[#allocation6 + $0x598] sm:$0xff]
        %v520 = vld [vmem:[#allocation6 + $0x5a0] sm:$0xff]
        %v521 = vld [vmem:[#allocation6 + $0x5a8] sm:$0xff]
        %v522 = vld [vmem:[#allocation6 + $0x5b0] sm:$0xff]
        %v523 = vld [vmem:[#allocation6 + $0x5b8] sm:$0xff]
        %v524 = vld [vmem:[#allocation6 + $0x5c0] sm:$0xff]
        %v525 = vld [vmem:[#allocation6 + $0x5c8] sm:$0xff]
        %v526 = vld [vmem:[#allocation6 + $0x5d0] sm:$0xff]
        %v527 = vld [vmem:[#allocation6 + $0x5d8] sm:$0xff]
        %v528 = vld [vmem:[#allocation6 + $0x5e0] sm:$0xff]
        %v529 = vld [vmem:[#allocation6 + $0x5e8] sm:$0xff]
        %v530 = vld [vmem:[#allocation6 + $0x5f0] sm:$0xff]
        %v531 = vld [vmem:[#allocation6 + $0x5f8] sm:$0xff]
        %v532 = vld [vmem:[#allocation6 + $0x600] sm:$0xff]
        %v533 = vld [vmem:[#allocation6 + $0x608] sm:$0xff]
        %v534 = vld [vmem:[#allocation6 + $0x610] sm:$0xff]
        %v535 = vld [vmem:[#allocation6 + $0x618] sm:$0xff]
        %v536 = vld [vmem:[#allocation6 + $0x620] sm:$0xff]
        %v537 = vld [vmem:[#allocation6 + $0x628] sm:$0xff]
        %v538 = vld [vmem:[#allocation6 + $0x630] sm:$0xff]
        %v539 = vld [vmem:[#allocation6 + $0x638] sm:$0xff]
        %v540 = vld [vmem:[#allocation6 + $0x640] sm:$0xff]
        %v541 = vld [vmem:[#allocation6 + $0x648] sm:$0xff]
        %v542 = vld [vmem:[#allocation6 + $0x650] sm:$0xff]
        %v543 = vld [vmem:[#allocation6 + $0x658] sm:$0xff]
        %v544 = vld [vmem:[#allocation6 + $0x660] sm:$0xff]
        %v545 = vld [vmem:[#allocation6 + $0x668] sm:$0xff]
        %v546 = vld [vmem:[#allocation6 + $0x670] sm:$0xff]
        %v547 = vld [vmem:[#allocation6 + $0x678] sm:$0xff]
        %v548 = vld [vmem:[#allocation6 + $0x680] sm:$0xff]
        %v549 = vld [vmem:[#allocation6 + $0x688] sm:$0xff]
        %v550 = vld [vmem:[#allocation6 + $0x690] sm:$0xff]
        %v551 = vld [vmem:[#allocation6 + $0x698] sm:$0xff]
        %v552 = vld [vmem:[#allocation6 + $0x6a0] sm:$0xff]
        %v553 = vld [vmem:[#allocation6 + $0x6a8] sm:$0xff]
        %v554 = vld [vmem:[#allocation6 + $0x6b0] sm:$0xff]
        %v555 = vld [vmem:[#allocation6 + $0x6b8] sm:$0xff]
        %v556 = vld [vmem:[#allocation6 + $0x6c0] sm:$0xff]
        %v557 = vld [vmem:[#allocation6 + $0x6c8] sm:$0xff]
        %v558 = vld [vmem:[#allocation6 + $0x6d0] sm:$0xff]
        %v559 = vld [vmem:[#allocation6 + $0x6d8] sm:$0xff]
        %v560 = vld [vmem:[#allocation6 + $0x6e0] sm:$0xff]
        %v561 = vld [vmem:[#allocation6 + $0x6e8] sm:$0xff]
        %v562 = vld [vmem:[#allocation6 + $0x6f0] sm:$0xff]
        %v563 = vld [vmem:[#allocation6 + $0x6f8] sm:$0xff]
        %v564 = vld [vmem:[#allocation6 + $0x700] sm:$0xff]
        %v565 = vld [vmem:[#allocation6 + $0x708] sm:$0xff]
        %v566 = vld [vmem:[#allocation6 + $0x710] sm:$0xff]
        %v567 = vld [vmem:[#allocation6 + $0x718] sm:$0xff]
        %v568 = vld [vmem:[#allocation6 + $0x720] sm:$0xff]
        %v569 = vld [vmem:[#allocation6 + $0x728] sm:$0xff]
        %v570 = vld [vmem:[#allocation6 + $0x730] sm:$0xff]
        %v571 = vld [vmem:[#allocation6 + $0x738] sm:$0xff]
        %v572 = vld [vmem:[#allocation6 + $0x740] sm:$0xff]
        %v573 = vld [vmem:[#allocation6 + $0x748] sm:$0xff]
        %v574 = vld [vmem:[#allocation6 + $0x750] sm:$0xff]
        %v575 = vld [vmem:[#allocation6 + $0x758] sm:$0xff]
        %v576 = vld [vmem:[#allocation6 + $0x760] sm:$0xff]
        %v577 = vld [vmem:[#allocation6 + $0x768] sm:$0xff]
        %v578 = vld [vmem:[#allocation6 + $0x770] sm:$0xff]
        %v579 = vld [vmem:[#allocation6 + $0x778] sm:$0xff]
        %v580 = vld [vmem:[#allocation6 + $0x780] sm:$0xff]
        %v581 = vld [vmem:[#allocation6 + $0x788] sm:$0xff]
        %v582 = vld [vmem:[#allocation6 + $0x790] sm:$0xff]
        %v583 = vld [vmem:[#allocation6 + $0x798] sm:$0xff]
        %v584 = vld [vmem:[#allocation6 + $0x7a0] sm:$0xff]
        %v585 = vld [vmem:[#allocation6 + $0x7a8] sm:$0xff]
        %v586 = vld [vmem:[#allocation6 + $0x7b0] sm:$0xff]
        %v587 = vld [vmem:[#allocation6 + $0x7b8] sm:$0xff]
        %v588 = vld [vmem:[#allocation6 + $0x7c0] sm:$0xff]
        %v589 = vld [vmem:[#allocation6 + $0x7c8] sm:$0xff]
        %v590 = vld [vmem:[#allocation6 + $0x7d0] sm:$0xff]
        %v591 = vld [vmem:[#allocation6 + $0x7d8] sm:$0xff]
        %v592 = vld [vmem:[#allocation6 + $0x7e0] sm:$0xff]
        %v593 = vld [vmem:[#allocation6 + $0x7e8] sm:$0xff]
        %v594 = vld [vmem:[#allocation6 + $0x7f0] sm:$0xff]
        %v595 = vld [vmem:[#allocation6 + $0x7f8] sm:$0xff]
        %v596 = vld [vmem:[#allocation6 + $0x800] sm:$0xff]
        %v597 = vld [vmem:[#allocation6 + $0x808] sm:$0xff]
        %v598 = vld [vmem:[#allocation6 + $0x810] sm:$0xff]
        %v599 = vld [vmem:[#allocation6 + $0x818] sm:$0xff]
        %v600 = vld [vmem:[#allocation6 + $0x820] sm:$0xff]
        %v601 = vld [vmem:[#allocation6 + $0x828] sm:$0xff]
        %v602 = vld [vmem:[#allocation6 + $0x830] sm:$0xff]
        %v603 = vld [vmem:[#allocation6 + $0x838] sm:$0xff]
        %v604 = vld [vmem:[#allocation6 + $0x840] sm:$0xff]
        %v605 = vld [vmem:[#allocation6 + $0x848] sm:$0xff]
        %v606 = vld [vmem:[#allocation6 + $0x850] sm:$0xff]
        %v607 = vld [vmem:[#allocation6 + $0x858] sm:$0xff]
        %v608 = vld [vmem:[#allocation6 + $0x860] sm:$0xff]
        %v609 = vld [vmem:[#allocation6 + $0x868] sm:$0xff]
        %v610 = vld [vmem:[#allocation6 + $0x870] sm:$0xff]
        %v611 = vld [vmem:[#allocation6 + $0x878] sm:$0xff]
        %v612 = vld [vmem:[#allocation6 + $0x880] sm:$0xff]
        %v613 = vld [vmem:[#allocation6 + $0x888] sm:$0xff]
        %v614 = vld [vmem:[#allocation6 + $0x890] sm:$0xff]
        %v615 = vld [vmem:[#allocation6 + $0x898] sm:$0xff]
        %v616 = vld [vmem:[#allocation6 + $0x8a0] sm:$0xff]
        %v617 = vld [vmem:[#allocation6 + $0x8a8] sm:$0xff]
        %v618 = vld [vmem:[#allocation6 + $0x8b0] sm:$0xff]
        %v619 = vld [vmem:[#allocation6 + $0x8b8] sm:$0xff]
        %v620 = vld [vmem:[#allocation6 + $0x8c0] sm:$0xff]
        %v621 = vld [vmem:[#allocation6 + $0x8c8] sm:$0xff]
        %v622 = vld [vmem:[#allocation6 + $0x8d0] sm:$0xff]
        %v623 = vld [vmem:[#allocation6 + $0x8d8] sm:$0xff]
        %v624 = vld [vmem:[#allocation6 + $0x8e0] sm:$0xff]
        %v625 = vld [vmem:[#allocation6 + $0x8e8] sm:$0xff]
        %v626 = vld [vmem:[#allocation6 + $0x8f0] sm:$0xff]
        %v627 = vld [vmem:[#allocation6 + $0x8f8] sm:$0xff]
        %v628 = vld [vmem:[#allocation6 + $0x900] sm:$0xff]
        %v629 = vld [vmem:[#allocation6 + $0x908] sm:$0xff]
        %v630 = vld [vmem:[#allocation6 + $0x910] sm:$0xff]
        %v631 = vld [vmem:[#allocation6 + $0x918] sm:$0xff]
        %v632 = vld [vmem:[#allocation6 + $0x920] sm:$0xff]
        %v633 = vld [vmem:[#allocation6 + $0x928] sm:$0xff]
        %v634 = vld [vmem:[#allocation6 + $0x930] sm:$0xff]
        %v635 = vld [vmem:[#allocation6 + $0x938] sm:$0xff]
        %v636 = vld [vmem:[#allocation6 + $0x940] sm:$0xff]
        %v637 = vld [vmem:[#allocation6 + $0x948] sm:$0xff]
        %v638 = vld [vmem:[#allocation6 + $0x950] sm:$0xff]
        %v639 = vld [vmem:[#allocation6 + $0x958] sm:$0xff]
        %v640 = vld [vmem:[#allocation6 + $0x960] sm:$0xff]
        %v641 = vld [vmem:[#allocation6 + $0x968] sm:$0xff]
        %v642 = vld [vmem:[#allocation6 + $0x970] sm:$0xff]
        %v643 = vld [vmem:[#allocation6 + $0x978] sm:$0xff]
        %v644 = vld [vmem:[#allocation6 + $0x980] sm:$0xff]
        %v645 = vld [vmem:[#allocation6 + $0x988] sm:$0xff]
        %v646 = vld [vmem:[#allocation6 + $0x990] sm:$0xff]
        %v647 = vld [vmem:[#allocation6 + $0x998] sm:$0xff]
        %v648 = vld [vmem:[#allocation6 + $0x9a0] sm:$0xff]
        %v649 = vld [vmem:[#allocation6 + $0x9a8] sm:$0xff]
        %v650 = vld [vmem:[#allocation6 + $0x9b0] sm:$0xff]
        %v651 = vld [vmem:[#allocation6 + $0x9b8] sm:$0xff]
        %v652 = vld [vmem:[#allocation6 + $0x9c0] sm:$0xff]
        %v653 = vld [vmem:[#allocation6 + $0x9c8] sm:$0xff]
        %v654 = vld [vmem:[#allocation6 + $0x9d0] sm:$0xff]
        %v655 = vld [vmem:[#allocation6 + $0x9d8] sm:$0xff]
        %v656 = vld [vmem:[#allocation6 + $0x9e0] sm:$0xff]
        %v657 = vld [vmem:[#allocation6 + $0x9e8] sm:$0xff]
        %v658 = vld [vmem:[#allocation6 + $0x9f0] sm:$0xff]
        %v659 = vld [vmem:[#allocation6 + $0x9f8] sm:$0xff]
        %v661 = vcombine.high %v339, %v339
        %663 = vmatprep.subr.mxu0 %v341
        %664 = vmatpush1.msra.mxu0 %v340
        %665 = vmatprep.subr.mxu0 %v351
        %666 = vmatpush1.msra.mxu0 %v350
        %667 = vmatprep.subr.mxu0 %v361
        %668 = vmatpush1.msra.mxu0 %v360
        %669 = vmatprep.subr.mxu0 %v371
        %670 = vmatpush1.msra.mxu0 %v370
        %671 = vmatprep.subr.mxu0 %v381
        %672 = vmatpush1.msra.mxu0 %v380
        %673 = vmatprep.subr.mxu0 %v391
        %674 = vmatpush1.msra.mxu0 %v390
        %675 = vmatprep.subr.mxu0 %v401
        %676 = vmatpush1.msra.mxu0 %v400
        %677 = vmatprep.subr.mxu0 %v411
        %678 = vmatpush1.msra.mxu0 %v410
        %679 = vmatprep.subr.mxu0 %v421
        %680 = vmatpush1.msra.mxu0 %v420
        %681 = vmatprep.subr.mxu0 %v431
        %682 = vmatpush1.msra.mxu0 %v430
        %683 = vmatprep.subr.mxu0 %v441
        %684 = vmatpush1.msra.mxu0 %v440
        %685 = vmatprep.subr.mxu0 %v451
        %686 = vmatpush1.msra.mxu0 %v450
        %687 = vmatprep.subr.mxu0 %v461
        %688 = vmatpush1.msra.mxu0 %v460
        %689 = vmatprep.subr.mxu0 %v471
        %690 = vmatpush1.msra.mxu0 %v470
        %691 = vmatprep.subr.mxu0 %v481
        %692 = vmatpush1.msra.mxu0 %v480
        %693 = vmatprep.subr.mxu0 %v491
        %694 = vmatpush1.msra.mxu0 %v490
        %695 = vmatprep.subr.mxu0 %v501
        %696 = vmatpush1.msra.mxu0 %v500
        %697 = vmatprep.subr.mxu0 %v511
        %698 = vmatpush1.msra.mxu0 %v510
        %699 = vmatprep.subr.mxu0 %v521
        %700 = vmatpush1.msra.mxu0 %v520
        %701 = vmatprep.subr.mxu0 %v531
        %702 = vmatpush1.msra.mxu0 %v530
        %703 = vmatprep.subr.mxu0 %v541
        %704 = vmatpush1.msra.mxu0 %v540
        %705 = vmatprep.subr.mxu0 %v551
        %706 = vmatpush1.msra.mxu0 %v550
        %707 = vmatprep.subr.mxu0 %v561
        %708 = vmatpush1.msra.mxu0 %v560
        %709 = vmatprep.subr.mxu0 %v571
        %710 = vmatpush1.msra.mxu0 %v570
        %711 = vmatprep.subr.mxu0 %v581
        %712 = vmatpush1.msra.mxu0 %v580
        %713 = vmatprep.subr.mxu0 %v591
        %714 = vmatpush1.msra.mxu0 %v590
        %715 = vmatprep.subr.mxu0 %v601
        %716 = vmatpush1.msra.mxu0 %v600
        %717 = vmatprep.subr.mxu0 %v611
        %718 = vmatpush1.msra.mxu0 %v610
        %719 = vmatprep.subr.mxu0 %v621
        %720 = vmatpush1.msra.mxu0 %v620
        %721 = vmatprep.subr.mxu0 %v631
        %722 = vmatpush1.msra.mxu0 %v630
        %723 = vmatprep.subr.mxu0 %v641
        %724 = vmatpush1.msra.mxu0 %v640
        %725 = vmatprep.subr.mxu0 %v651
        %726 = vmatpush1.msra.mxu0 %v650
        %727 = vmatprep.mubr.f32.mxu0 %v661
        %728 = vmatmul.mubr.f32.gmra.mrb[0].mxu0 %v339
        %v729 = vpop.f32.mrb[0].mxu0
        %v730 = vadd.f32 0.0, %v729
        %v731 = vpop.f32.mrb[0].mxu0
        %v732 = vadd.f32 0.0, %v731
        %733 = vdwg.mxu0
        %734 = vmatprep.subr.mxu0 %v343
        %735 = vmatpush1.msra.mxu0 %v342
        %736 = vmatprep.subr.mxu0 %v353
        %737 = vmatpush1.msra.mxu0 %v352
        %738 = vmatprep.subr.mxu0 %v363
        %739 = vmatpush1.msra.mxu0 %v362
        %740 = vmatprep.subr.mxu0 %v373
        %741 = vmatpush1.msra.mxu0 %v372
        %742 = vmatprep.subr.mxu0 %v383
        %743 = vmatpush1.msra.mxu0 %v382
        %744 = vmatprep.subr.mxu0 %v393
        %745 = vmatpush1.msra.mxu0 %v392
        %746 = vmatprep.subr.mxu0 %v403
        %747 = vmatpush1.msra.mxu0 %v402
        %748 = vmatprep.subr.mxu0 %v413
        %749 = vmatpush1.msra.mxu0 %v412
        %750 = vmatprep.subr.mxu0 %v423
        %751 = vmatpush1.msra.mxu0 %v422
        %752 = vmatprep.subr.mxu0 %v433
        %753 = vmatpush1.msra.mxu0 %v432
        %754 = vmatprep.subr.mxu0 %v443
        %755 = vmatpush1.msra.mxu0 %v442
        %756 = vmatprep.subr.mxu0 %v453
        %757 = vmatpush1.msra.mxu0 %v452
        %758 = vmatprep.subr.mxu0 %v463
        %759 = vmatpush1.msra.mxu0 %v462
        %760 = vmatprep.subr.mxu0 %v473
        %761 = vmatpush1.msra.mxu0 %v472
        %762 = vmatprep.subr.mxu0 %v483
        %763 = vmatpush1.msra.mxu0 %v482
        %764 = vmatprep.subr.mxu0 %v493
        %765 = vmatpush1.msra.mxu0 %v492
        %766 = vmatprep.subr.mxu0 %v503
        %767 = vmatpush1.msra.mxu0 %v502
        %768 = vmatprep.subr.mxu0 %v513
        %769 = vmatpush1.msra.mxu0 %v512
        %770 = vmatprep.subr.mxu0 %v523
        %771 = vmatpush1.msra.mxu0 %v522
        %772 = vmatprep.subr.mxu0 %v533
        %773 = vmatpush1.msra.mxu0 %v532
        %774 = vmatprep.subr.mxu0 %v543
        %775 = vmatpush1.msra.mxu0 %v542
        %776 = vmatprep.subr.mxu0 %v553
        %777 = vmatpush1.msra.mxu0 %v552
        %778 = vmatprep.subr.mxu0 %v563
        %779 = vmatpush1.msra.mxu0 %v562
        %780 = vmatprep.subr.mxu0 %v573
        %781 = vmatpush1.msra.mxu0 %v572
        %782 = vmatprep.subr.mxu0 %v583
        %783 = vmatpush1.msra.mxu0 %v582
        %784 = vmatprep.subr.mxu0 %v593
        %785 = vmatpush1.msra.mxu0 %v592
        %786 = vmatprep.subr.mxu0 %v603
        %787 = vmatpush1.msra.mxu0 %v602
        %788 = vmatprep.subr.mxu0 %v613
        %789 = vmatpush1.msra.mxu0 %v612
        %790 = vmatprep.subr.mxu0 %v623
        %791 = vmatpush1.msra.mxu0 %v622
        %792 = vmatprep.subr.mxu0 %v633
        %793 = vmatpush1.msra.mxu0 %v632
        %794 = vmatprep.subr.mxu0 %v643
        %795 = vmatpush1.msra.mxu0 %v642
        %796 = vmatprep.subr.mxu0 %v653
        %797 = vmatpush1.msra.mxu0 %v652
        %798 = vmatprep.mubr.f32.mxu0 %v661
        %799 = vmatmul.mubr.f32.gmra.mrb[0].mxu0 %v339
        %v800 = vpop.f32.mrb[0].mxu0
        %v801 = vadd.f32 0.0, %v800
        %v802 = vpop.f32.mrb[0].mxu0
        %v803 = vadd.f32 0.0, %v802
        %804 = vdwg.mxu0
        %805 = vmatprep.subr.mxu0 %v345
        %806 = vmatpush1.msra.mxu0 %v344
        %807 = vmatprep.subr.mxu0 %v355
        %808 = vmatpush1.msra.mxu0 %v354
        %809 = vmatprep.subr.mxu0 %v365
        %810 = vmatpush1.msra.mxu0 %v364
        %811 = vmatprep.subr.mxu0 %v375
        %812 = vmatpush1.msra.mxu0 %v374
        %813 = vmatprep.subr.mxu0 %v385
        %814 = vmatpush1.msra.mxu0 %v384
        %815 = vmatprep.subr.mxu0 %v395
        %816 = vmatpush1.msra.mxu0 %v394
        %817 = vmatprep.subr.mxu0 %v405
        %818 = vmatpush1.msra.mxu0 %v404
        %819 = vmatprep.subr.mxu0 %v415
        %820 = vmatpush1.msra.mxu0 %v414
        %821 = vmatprep.subr.mxu0 %v425
        %822 = vmatpush1.msra.mxu0 %v424
        %823 = vmatprep.subr.mxu0 %v435
        %824 = vmatpush1.msra.mxu0 %v434
        %825 = vmatprep.subr.mxu0 %v445
        %826 = vmatpush1.msra.mxu0 %v444
        %827 = vmatprep.subr.mxu0 %v455
        %828 = vmatpush1.msra.mxu0 %v454
        %829 = vmatprep.subr.mxu0 %v465
        %830 = vmatpush1.msra.mxu0 %v464
        %831 = vmatprep.subr.mxu0 %v475
        %832 = vmatpush1.msra.mxu0 %v474
        %833 = vmatprep.subr.mxu0 %v485
        %834 = vmatpush1.msra.mxu0 %v484
        %835 = vmatprep.subr.mxu0 %v495
        %836 = vmatpush1.msra.mxu0 %v494
        %837 = vmatprep.subr.mxu0 %v505
        %838 = vmatpush1.msra.mxu0 %v504
        %839 = vmatprep.subr.mxu0 %v515
        %840 = vmatpush1.msra.mxu0 %v514
        %841 = vmatprep.subr.mxu0 %v525
        %842 = vmatpush1.msra.mxu0 %v524
        %843 = vmatprep.subr.mxu0 %v535
        %844 = vmatpush1.msra.mxu0 %v534
        %845 = vmatprep.subr.mxu0 %v545
        %846 = vmatpush1.msra.mxu0 %v544
        %847 = vmatprep.subr.mxu0 %v555
        %848 = vmatpush1.msra.mxu0 %v554
        %849 = vmatprep.subr.mxu0 %v565
        %850 = vmatpush1.msra.mxu0 %v564
        %851 = vmatprep.subr.mxu0 %v575
        %852 = vmatpush1.msra.mxu0 %v574
        %853 = vmatprep.subr.mxu0 %v585
        %854 = vmatpush1.msra.mxu0 %v584
        %855 = vmatprep.subr.mxu0 %v595
        %856 = vmatpush1.msra.mxu0 %v594
        %857 = vmatprep.subr.mxu0 %v605
        %858 = vmatpush1.msra.mxu0 %v604
        %859 = vmatprep.subr.mxu0 %v615
        %860 = vmatpush1.msra.mxu0 %v614
        %861 = vmatprep.subr.mxu0 %v625
        %862 = vmatpush1.msra.mxu0 %v624
        %863 = vmatprep.subr.mxu0 %v635
        %864 = vmatpush1.msra.mxu0 %v634
        %865 = vmatprep.subr.mxu0 %v645
        %866 = vmatpush1.msra.mxu0 %v644
        %867 = vmatprep.subr.mxu0 %v655
        %868 = vmatpush1.msra.mxu0 %v654
        %869 = vmatprep.mubr.f32.mxu0 %v661
        %870 = vmatmul.mubr.f32.gmra.mrb[0].mxu0 %v339
        %v871 = vpop.f32.mrb[0].mxu0
        %v872 = vadd.f32 0.0, %v871
        %v873 = vpop.f32.mrb[0].mxu0
        %v874 = vadd.f32 0.0, %v873
        %875 = vdwg.mxu0
        %876 = vmatprep.subr.mxu0 %v347
        %877 = vmatpush1.msra.mxu0 %v346
        %878 = vmatprep.subr.mxu0 %v357
        %879 = vmatpush1.msra.mxu0 %v356
        %880 = vmatprep.subr.mxu0 %v367
        %881 = vmatpush1.msra.mxu0 %v366
        %882 = vmatprep.subr.mxu0 %v377
        %883 = vmatpush1.msra.mxu0 %v376
        %884 = vmatprep.subr.mxu0 %v387
        %885 = vmatpush1.msra.mxu0 %v386
        %886 = vmatprep.subr.mxu0 %v397
        %887 = vmatpush1.msra.mxu0 %v396
        %888 = vmatprep.subr.mxu0 %v407
        %889 = vmatpush1.msra.mxu0 %v406
        %890 = vmatprep.subr.mxu0 %v417
        %891 = vmatpush1.msra.mxu0 %v416
        %892 = vmatprep.subr.mxu0 %v427
        %893 = vmatpush1.msra.mxu0 %v426
        %894 = vmatprep.subr.mxu0 %v437
        %895 = vmatpush1.msra.mxu0 %v436
        %896 = vmatprep.subr.mxu0 %v447
        %897 = vmatpush1.msra.mxu0 %v446
        %898 = vmatprep.subr.mxu0 %v457
        %899 = vmatpush1.msra.mxu0 %v456
        %900 = vmatprep.subr.mxu0 %v467
        %901 = vmatpush1.msra.mxu0 %v466
        %902 = vmatprep.subr.mxu0 %v477
        %903 = vmatpush1.msra.mxu0 %v476
        %904 = vmatprep.subr.mxu0 %v487
        %905 = vmatpush1.msra.mxu0 %v486
        %906 = vmatprep.subr.mxu0 %v497
        %907 = vmatpush1.msra.mxu0 %v496
        %908 = vmatprep.subr.mxu0 %v507
        %909 = vmatpush1.msra.mxu0 %v506
        %910 = vmatprep.subr.mxu0 %v517
        %911 = vmatpush1.msra.mxu0 %v516
        %912 = vmatprep.subr.mxu0 %v527
        %913 = vmatpush1.msra.mxu0 %v526
        %914 = vmatprep.subr.mxu0 %v537
        %915 = vmatpush1.msra.mxu0 %v536
        %916 = vmatprep.subr.mxu0 %v547
        %917 = vmatpush1.msra.mxu0 %v546
        %918 = vmatprep.subr.mxu0 %v557
        %919 = vmatpush1.msra.mxu0 %v556
        %920 = vmatprep.subr.mxu0 %v567
        %921 = vmatpush1.msra.mxu0 %v566
        %922 = vmatprep.subr.mxu0 %v577
        %923 = vmatpush1.msra.mxu0 %v576
        %924 = vmatprep.subr.mxu0 %v587
        %925 = vmatpush1.msra.mxu0 %v586
        %926 = vmatprep.subr.mxu0 %v597
        %927 = vmatpush1.msra.mxu0 %v596
        %928 = vmatprep.subr.mxu0 %v607
        %929 = vmatpush1.msra.mxu0 %v606
        %930 = vmatprep.subr.mxu0 %v617
        %931 = vmatpush1.msra.mxu0 %v616
        %932 = vmatprep.subr.mxu0 %v627
        %933 = vmatpush1.msra.mxu0 %v626
        %934 = vmatprep.subr.mxu0 %v637
        %935 = vmatpush1.msra.mxu0 %v636
        %936 = vmatprep.subr.mxu0 %v647
        %937 = vmatpush1.msra.mxu0 %v646
        %938 = vmatprep.subr.mxu0 %v657
        %939 = vmatpush1.msra.mxu0 %v656
        %940 = vmatprep.mubr.f32.mxu0 %v661
        %941 = vmatmul.mubr.f32.gmra.mrb[0].mxu0 %v339
        %v942 = vpop.f32.mrb[0].mxu0
        %v943 = vadd.f32 0.0, %v942
        %v944 = vpop.f32.mrb[0].mxu0
        %v945 = vadd.f32 0.0, %v944
        %946 = vdwg.mxu0
        %947 = vmatprep.subr.mxu0 %v349
        %948 = vmatpush1.msra.mxu0 %v348
        %949 = vmatprep.subr.mxu0 %v359
        %950 = vmatpush1.msra.mxu0 %v358
        %951 = vmatprep.subr.mxu0 %v369
        %952 = vmatpush1.msra.mxu0 %v368
        %953 = vmatprep.subr.mxu0 %v379
        %954 = vmatpush1.msra.mxu0 %v378
        %955 = vmatprep.subr.mxu0 %v389
        %956 = vmatpush1.msra.mxu0 %v388
        %957 = vmatprep.subr.mxu0 %v399
        %958 = vmatpush1.msra.mxu0 %v398
        %959 = vmatprep.subr.mxu0 %v409
        %960 = vmatpush1.msra.mxu0 %v408
        %961 = vmatprep.subr.mxu0 %v419
        %962 = vmatpush1.msra.mxu0 %v418
        %963 = vmatprep.subr.mxu0 %v429
        %964 = vmatpush1.msra.mxu0 %v428
        %965 = vmatprep.subr.mxu0 %v439
        %966 = vmatpush1.msra.mxu0 %v438
        %967 = vmatprep.subr.mxu0 %v449
        %968 = vmatpush1.msra.mxu0 %v448
        %969 = vmatprep.subr.mxu0 %v459
        %970 = vmatpush1.msra.mxu0 %v458
        %971 = vmatprep.subr.mxu0 %v469
        %972 = vmatpush1.msra.mxu0 %v468
        %973 = vmatprep.subr.mxu0 %v479
        %974 = vmatpush1.msra.mxu0 %v478
        %975 = vmatprep.subr.mxu0 %v489
        %976 = vmatpush1.msra.mxu0 %v488
        %977 = vmatprep.subr.mxu0 %v499
        %978 = vmatpush1.msra.mxu0 %v498
        %979 = vmatprep.subr.mxu0 %v509
        %980 = vmatpush1.msra.mxu0 %v508
        %981 = vmatprep.subr.mxu0 %v519
        %982 = vmatpush1.msra.mxu0 %v518
        %983 = vmatprep.subr.mxu0 %v529
        %984 = vmatpush1.msra.mxu0 %v528
        %985 = vmatprep.subr.mxu0 %v539
        %986 = vmatpush1.msra.mxu0 %v538
        %987 = vmatprep.subr.mxu0 %v549
        %988 = vmatpush1.msra.mxu0 %v548
        %989 = vmatprep.subr.mxu0 %v559
        %990 = vmatpush1.msra.mxu0 %v558
        %991 = vmatprep.subr.mxu0 %v569
        %992 = vmatpush1.msra.mxu0 %v568
        %993 = vmatprep.subr.mxu0 %v579
        %994 = vmatpush1.msra.mxu0 %v578
        %995 = vmatprep.subr.mxu0 %v589
        %996 = vmatpush1.msra.mxu0 %v588
        %997 = vmatprep.subr.mxu0 %v599
        %998 = vmatpush1.msra.mxu0 %v598
        %999 = vmatprep.subr.mxu0 %v609
        %1000 = vmatpush1.msra.mxu0 %v608
        %1001 = vmatprep.subr.mxu0 %v619
        %1002 = vmatpush1.msra.mxu0 %v618
        %1003 = vmatprep.subr.mxu0 %v629
        %1004 = vmatpush1.msra.mxu0 %v628
        %1005 = vmatprep.subr.mxu0 %v639
        %1006 = vmatpush1.msra.mxu0 %v638
        %1007 = vmatprep.subr.mxu0 %v649
        %1008 = vmatpush1.msra.mxu0 %v648
        %1009 = vmatprep.subr.mxu0 %v659
        %1010 = vmatpush1.msra.mxu0 %v658
        %1011 = vmatprep.mubr.f32.mxu0 %v661
        %1012 = vmatmul.mubr.f32.gmra.mrb[0].mxu0 %v339
        %v1013 = vpop.f32.mrb[0].mxu0
        %v1014 = vadd.f32 0.0, %v1013
        %v1015 = vpop.f32.mrb[0].mxu0
        %v1016 = vadd.f32 0.0, %v1015
        %1017 = vdwg.mxu0
        %v1018 = vld [vmem:[%s4] sm:$0xff]
        %1020 = vset.pattern.permute.xlu0 0
        %1021 = vperm.xlu0 %1020, %v1018
        %v1022 = vpop.permute.xlu0 %1021
        %v1026 = vlaneseq
        %v1027 = vshrl.u32 %v1026, 7
        %v1028 = vsub.s32 0, %v1027
        %v1029 = vrot.slane %v337, %v1028
        %v1030 = vlaneseq
        %v1031 = vshrl.u32 %v1030, 7
        %v1032 = vsub.s32 2, %v1031
        %v1033 = vrot.slane %v337, %v1032
        %v1034 = vlaneseq
        %v1035 = vshrl.u32 %v1034, 7
        %v1036 = vsub.s32 4, %v1035
        %v1037 = vrot.slane %v337, %v1036
        %v1038 = vlaneseq
        %v1039 = vshrl.u32 %v1038, 7
        %v1040 = vsub.s32 6, %v1039
        %v1041 = vrot.slane %v337, %v1040
        %v1042 = vlaneseq
        %v1043 = vshrl.u32 %v1042, 7
        %v1044 = vsub.s32 0, %v1043
        %v1045 = vrot.slane %v338, %v1044
        %v1046 = vlaneseq
        %v1047 = vshrl.u32 %v1046, 7
        %v1048 = vsub.s32 2, %v1047
        %v1049 = vrot.slane %v338, %v1048
        %v1050 = vlaneseq
        %v1051 = vshrl.u32 %v1050, 7
        %v1052 = vsub.s32 4, %v1051
        %v1053 = vrot.slane %v338, %v1052
        %v1054 = vlaneseq
        %v1055 = vshrl.u32 %v1054, 7
        %v1056 = vsub.s32 6, %v1055
        %v1057 = vrot.slane %v338, %v1056
        %v1066 = vlaneseq
        %v1067 = vshrl.u32 %v1066, 7
        %v1068 = vsub.s32 0, %v1067
        %v1069 = vrot.slane %v1029, %v1068
        %v1070 = vlaneseq
        %v1071 = vshrl.u32 %v1070, 7
        %v1072 = vsub.s32 0, %v1071
        %v1073 = vrot.slane %v1033, %v1072
        %v1074 = vlaneseq
        %v1075 = vshrl.u32 %v1074, 7
        %v1076 = vsub.s32 0, %v1075
        %v1077 = vrot.slane %v1037, %v1076
        %v1078 = vlaneseq
        %v1079 = vshrl.u32 %v1078, 7
        %v1080 = vsub.s32 0, %v1079
        %v1081 = vrot.slane %v1041, %v1080
        %v1082 = vlaneseq
        %v1083 = vshrl.u32 %v1082, 7
        %v1084 = vsub.s32 0, %v1083
        %v1085 = vrot.slane %v1045, %v1084
        %v1086 = vlaneseq
        %v1087 = vshrl.u32 %v1086, 7
        %v1088 = vsub.s32 0, %v1087
        %v1089 = vrot.slane %v1049, %v1088
        %v1090 = vlaneseq
        %v1091 = vshrl.u32 %v1090, 7
        %v1092 = vsub.s32 0, %v1091
        %v1093 = vrot.slane %v1053, %v1092
        %v1094 = vlaneseq
        %v1095 = vshrl.u32 %v1094, 7
        %v1096 = vsub.s32 0, %v1095
        %v1097 = vrot.slane %v1057, %v1096
        %1106 = vrot.lane.b32.xlu0 %v1069, 95
        %v1107 = vpop.permute.xlu0 %1106
        %1108 = vrot.lane.b32.xlu0 %v1073, 95
        %v1109 = vpop.permute.xlu0 %1108
        %1110 = vrot.lane.b32.xlu0 %v1077, 95
        %v1111 = vpop.permute.xlu0 %1110
        %1112 = vrot.lane.b32.xlu0 %v1081, 95
        %v1113 = vpop.permute.xlu0 %1112
        %1114 = vrot.lane.b32.xlu0 %v1085, 95
        %v1115 = vpop.permute.xlu0 %1114
        %1116 = vrot.lane.b32.xlu0 %v1089, 95
        %v1117 = vpop.permute.xlu0 %1116
        %1118 = vrot.lane.b32.xlu0 %v1093, 95
        %v1119 = vpop.permute.xlu0 %1118
        %1120 = vrot.lane.b32.xlu0 %v1097, 95
        %v1121 = vpop.permute.xlu0 %1120
        %vm1122 = vcmask 777216
        %v1123 = vsel %vm1122, %v1107, %v1109
        %v1124 = vsel %vm1122, %v1109, %v1111
        %v1125 = vsel %vm1122, %v1111, %v1113
        %v1126 = vsel %vm1122, %v1113, %v1115
        %v1127 = vsel %vm1122, %v1115, %v1117
        %v1128 = vsel %vm1122, %v1117, %v1119
        %v1129 = vsel %vm1122, %v1119, %v1121
        %v1139 = vmul.f32 %v730, %v1107
        %v1140 = vmul.f32 %v732, %v1123
        %v1141 = vmul.f32 %v801, %v1124
        %v1142 = vmul.f32 %v803, %v1125
        %v1143 = vmul.f32 %v872, %v1126
        %v1144 = vmul.f32 %v874, %v1127
        %v1145 = vmul.f32 %v943, %v1128
        %v1146 = vmul.f32 %v945, %v1129
        %v1147 = vmul.f32 %v1014, %v1121
        %v1148 = vld [vmem:[%s3] sm:$0xff]
        %1158 = vrot.lane.b32.xlu0 %v1139, 33
        %v1159 = vpop.permute.xlu0 %1158
        %1160 = vrot.lane.b32.xlu0 %v1140, 33
        %v1161 = vpop.permute.xlu0 %1160
        %1162 = vrot.lane.b32.xlu0 %v1141, 33
        %v1163 = vpop.permute.xlu0 %1162
        %1164 = vrot.lane.b32.xlu0 %v1142, 33
        %v1165 = vpop.permute.xlu0 %1164
        %1166 = vrot.lane.b32.xlu0 %v1143, 33
        %v1167 = vpop.permute.xlu0 %1166
        %1168 = vrot.lane.b32.xlu0 %v1144, 33
        %v1169 = vpop.permute.xlu0 %1168
        %1170 = vrot.lane.b32.xlu0 %v1145, 33
        %v1171 = vpop.permute.xlu0 %1170
        %1172 = vrot.lane.b32.xlu0 %v1146, 33
        %v1173 = vpop.permute.xlu0 %1172
        %1174 = vrot.lane.b32.xlu0 %v1147, 33
        %v1175 = vpop.permute.xlu0 %1174
        %vm1176 = vcmask 269312
        %v1177 = vsel %vm1176, %v1159, %v1161
        %v1178 = vsel %vm1176, %v1161, %v1163
        %v1179 = vsel %vm1176, %v1163, %v1165
        %v1180 = vsel %vm1176, %v1165, %v1167
        %v1181 = vsel %vm1176, %v1167, %v1169
        %v1182 = vsel %vm1176, %v1169, %v1171
        %v1183 = vsel %vm1176, %v1171, %v1173
        %v1184 = vsel %vm1176, %v1173, %v1175
        %vm1185 = vcmask 31744
        %v1187 = vsel %vm1185, %v1148, 0
        %vm1189 = vcmask 1043456
        %v1190 = vsel %vm1189, %v1177, 0
        %v1192 = vsel %vm1189, %v1178, 0
        %v1194 = vsel %vm1189, %v1179, 0
        %v1196 = vsel %vm1189, %v1180, 0
        %v1198 = vsel %vm1189, %v1181, 0
        %v1200 = vsel %vm1189, %v1182, 0
        %v1202 = vsel %vm1189, %v1183, 0
        %v1204 = vsel %vm1189, %v1184, 0
        %1206 = vmatprep.subr.mxu0 %v1192
        %1207 = vmatpush1.msra.mxu0 %v1190
        %1208 = vmatprep.subr.mxu0 0.0
        %1209 = vmatpush1.msra.mxu0 0.0
        %1210 = vmatprep.subr.mxu0 0.0
        %1211 = vmatpush1.msra.mxu0 0.0
        %1212 = vmatprep.subr.mxu0 0.0
        %1213 = vmatpush1.msra.mxu0 0.0
        %1214 = vmatprep.subr.mxu0 0.0
        %1215 = vmatpush1.msra.mxu0 0.0
        %1216 = vmatprep.subr.mxu0 0.0
        %1217 = vmatpush1.msra.mxu0 0.0
        %1218 = vmatprep.subr.mxu0 0.0
        %1219 = vmatpush1.msra.mxu0 0.0
        %1220 = vmatprep.subr.mxu0 0.0
        %1221 = vmatpush1.msra.mxu0 0.0
        %1222 = vmatprep.subr.mxu0 0.0
        %1223 = vmatpush1.msra.mxu0 0.0
        %1224 = vmatprep.subr.mxu0 0.0
        %1225 = vmatpush1.msra.mxu0 0.0
        %1226 = vmatprep.subr.mxu0 0.0
        %1227 = vmatpush1.msra.mxu0 0.0
        %1228 = vmatprep.subr.mxu0 0.0
        %1229 = vmatpush1.msra.mxu0 0.0
        %1230 = vmatprep.subr.mxu0 0.0
        %1231 = vmatpush1.msra.mxu0 0.0
        %1232 = vmatprep.subr.mxu0 0.0
        %1233 = vmatpush1.msra.mxu0 0.0
        %1234 = vmatprep.subr.mxu0 0.0
        %1235 = vmatpush1.msra.mxu0 0.0
        %1236 = vmatprep.subr.mxu0 0.0
        %1237 = vmatpush1.msra.mxu0 0.0
        %1238 = vmatprep.subr.mxu0 0.0
        %1239 = vmatpush1.msra.mxu0 0.0
        %1240 = vmatprep.subr.mxu0 0.0
        %1241 = vmatpush1.msra.mxu0 0.0
        %1242 = vmatprep.subr.mxu0 0.0
        %1243 = vmatpush1.msra.mxu0 0.0
        %1244 = vmatprep.subr.mxu0 0.0
        %1245 = vmatpush1.msra.mxu0 0.0
        %1246 = vmatprep.subr.mxu0 0.0
        %1247 = vmatpush1.msra.mxu0 0.0
        %1248 = vmatprep.subr.mxu0 0.0
        %1249 = vmatpush1.msra.mxu0 0.0
        %1250 = vmatprep.subr.mxu0 0.0
        %1251 = vmatpush1.msra.mxu0 0.0
        %1252 = vmatprep.subr.mxu0 0.0
        %1253 = vmatpush1.msra.mxu0 0.0
        %1254 = vmatprep.subr.mxu0 0.0
        %1255 = vmatpush1.msra.mxu0 0.0
        %1256 = vmatprep.subr.mxu0 0.0
        %1257 = vmatpush1.msra.mxu0 0.0
        %1258 = vmatprep.subr.mxu0 0.0
        %1259 = vmatpush1.msra.mxu0 0.0
        %1260 = vmatprep.subr.mxu0 0.0
        %1261 = vmatpush1.msra.mxu0 0.0
        %1262 = vmatprep.subr.mxu0 0.0
        %1263 = vmatpush1.msra.mxu0 0.0
        %1264 = vmatprep.subr.mxu0 0.0
        %1265 = vmatpush1.msra.mxu0 0.0
        %1266 = vmatprep.subr.mxu0 0.0
        %1267 = vmatpush1.msra.mxu0 0.0
        %1268 = vmatprep.subr.mxu0 0.0
        %1269 = vmatpush1.msra.mxu0 0.0
        %1270 = vmatprep.mubr.f32.mxu0 0.0
        %1271 = vmatmul.mubr.f32.gmra.mrb[0].mxu0 %v1187
        %v1272 = vpop.f32.mrb[0].mxu0
        %v1273 = vadd.f32 0.0, %v1272
        %v1274 = vpop.f32.mrb[0].mxu0
        %v1275 = vadd.f32 0.0, %v1274
        %1276 = vdwg.mxu0
        %1277 = vmatprep.subr.mxu0 %v1196
        %1278 = vmatpush1.msra.mxu0 %v1194
        %1279 = vmatprep.subr.mxu0 0.0
        %1280 = vmatpush1.msra.mxu0 0.0
        %1281 = vmatprep.subr.mxu0 0.0
        %1282 = vmatpush1.msra.mxu0 0.0
        %1283 = vmatprep.subr.mxu0 0.0
        %1284 = vmatpush1.msra.mxu0 0.0
        %1285 = vmatprep.subr.mxu0 0.0
        %1286 = vmatpush1.msra.mxu0 0.0
        %1287 = vmatprep.subr.mxu0 0.0
        %1288 = vmatpush1.msra.mxu0 0.0
        %1289 = vmatprep.subr.mxu0 0.0
        %1290 = vmatpush1.msra.mxu0 0.0
        %1291 = vmatprep.subr.mxu0 0.0
        %1292 = vmatpush1.msra.mxu0 0.0
        %1293 = vmatprep.subr.mxu0 0.0
        %1294 = vmatpush1.msra.mxu0 0.0
        %1295 = vmatprep.subr.mxu0 0.0
        %1296 = vmatpush1.msra.mxu0 0.0
        %1297 = vmatprep.subr.mxu0 0.0
        %1298 = vmatpush1.msra.mxu0 0.0
        %1299 = vmatprep.subr.mxu0 0.0
        %1300 = vmatpush1.msra.mxu0 0.0
        %1301 = vmatprep.subr.mxu0 0.0
        %1302 = vmatpush1.msra.mxu0 0.0
        %1303 = vmatprep.subr.mxu0 0.0
        %1304 = vmatpush1.msra.mxu0 0.0
        %1305 = vmatprep.subr.mxu0 0.0
        %1306 = vmatpush1.msra.mxu0 0.0
        %1307 = vmatprep.subr.mxu0 0.0
        %1308 = vmatpush1.msra.mxu0 0.0
        %1309 = vmatprep.subr.mxu0 0.0
        %1310 = vmatpush1.msra.mxu0 0.0
        %1311 = vmatprep.subr.mxu0 0.0
        %1312 = vmatpush1.msra.mxu0 0.0
        %1313 = vmatprep.subr.mxu0 0.0
        %1314 = vmatpush1.msra.mxu0 0.0
        %1315 = vmatprep.subr.mxu0 0.0
        %1316 = vmatpush1.msra.mxu0 0.0
        %1317 = vmatprep.subr.mxu0 0.0
        %1318 = vmatpush1.msra.mxu0 0.0
        %1319 = vmatprep.subr.mxu0 0.0
        %1320 = vmatpush1.msra.mxu0 0.0
        %1321 = vmatprep.subr.mxu0 0.0
        %1322 = vmatpush1.msra.mxu0 0.0
        %1323 = vmatprep.subr.mxu0 0.0
        %1324 = vmatpush1.msra.mxu0 0.0
        %1325 = vmatprep.subr.mxu0 0.0
        %1326 = vmatpush1.msra.mxu0 0.0
        %1327 = vmatprep.subr.mxu0 0.0
        %1328 = vmatpush1.msra.mxu0 0.0
        %1329 = vmatprep.subr.mxu0 0.0
        %1330 = vmatpush1.msra.mxu0 0.0
        %1331 = vmatprep.subr.mxu0 0.0
        %1332 = vmatpush1.msra.mxu0 0.0
        %1333 = vmatprep.subr.mxu0 0.0
        %1334 = vmatpush1.msra.mxu0 0.0
        %1335 = vmatprep.subr.mxu0 0.0
        %1336 = vmatpush1.msra.mxu0 0.0
        %1337 = vmatprep.subr.mxu0 0.0
        %1338 = vmatpush1.msra.mxu0 0.0
        %1339 = vmatprep.subr.mxu0 0.0
        %1340 = vmatpush1.msra.mxu0 0.0
        %1341 = vmatprep.mubr.f32.mxu0 0.0
        %1342 = vmatmul.mubr.f32.gmra.mrb[0].mxu0 %v1187
        %v1343 = vpop.f32.mrb[0].mxu0
        %v1344 = vadd.f32 0.0, %v1343
        %v1345 = vpop.f32.mrb[0].mxu0
        %v1346 = vadd.f32 0.0, %v1345
        %1347 = vdwg.mxu0
        %1348 = vmatprep.subr.mxu0 %v1200
        %1349 = vmatpush1.msra.mxu0 %v1198
        %1350 = vmatprep.subr.mxu0 0.0
        %1351 = vmatpush1.msra.mxu0 0.0
        %1352 = vmatprep.subr.mxu0 0.0
        %1353 = vmatpush1.msra.mxu0 0.0
        %1354 = vmatprep.subr.mxu0 0.0
        %1355 = vmatpush1.msra.mxu0 0.0
        %1356 = vmatprep.subr.mxu0 0.0
        %1357 = vmatpush1.msra.mxu0 0.0
        %1358 = vmatprep.subr.mxu0 0.0
        %1359 = vmatpush1.msra.mxu0 0.0
        %1360 = vmatprep.subr.mxu0 0.0
        %1361 = vmatpush1.msra.mxu0 0.0
        %1362 = vmatprep.subr.mxu0 0.0
        %1363 = vmatpush1.msra.mxu0 0.0
        %1364 = vmatprep.subr.mxu0 0.0
        %1365 = vmatpush1.msra.mxu0 0.0
        %1366 = vmatprep.subr.mxu0 0.0
        %1367 = vmatpush1.msra.mxu0 0.0
        %1368 = vmatprep.subr.mxu0 0.0
        %1369 = vmatpush1.msra.mxu0 0.0
        %1370 = vmatprep.subr.mxu0 0.0
        %1371 = vmatpush1.msra.mxu0 0.0
        %1372 = vmatprep.subr.mxu0 0.0
        %1373 = vmatpush1.msra.mxu0 0.0
        %1374 = vmatprep.subr.mxu0 0.0
        %1375 = vmatpush1.msra.mxu0 0.0
        %1376 = vmatprep.subr.mxu0 0.0
        %1377 = vmatpush1.msra.mxu0 0.0
        %1378 = vmatprep.subr.mxu0 0.0
        %1379 = vmatpush1.msra.mxu0 0.0
        %1380 = vmatprep.subr.mxu0 0.0
        %1381 = vmatpush1.msra.mxu0 0.0
        %1382 = vmatprep.subr.mxu0 0.0
        %1383 = vmatpush1.msra.mxu0 0.0
        %1384 = vmatprep.subr.mxu0 0.0
        %1385 = vmatpush1.msra.mxu0 0.0
        %1386 = vmatprep.subr.mxu0 0.0
        %1387 = vmatpush1.msra.mxu0 0.0
        %1388 = vmatprep.subr.mxu0 0.0
        %1389 = vmatpush1.msra.mxu0 0.0
        %1390 = vmatprep.subr.mxu0 0.0
        %1391 = vmatpush1.msra.mxu0 0.0
        %1392 = vmatprep.subr.mxu0 0.0
        %1393 = vmatpush1.msra.mxu0 0.0
        %1394 = vmatprep.subr.mxu0 0.0
        %1395 = vmatpush1.msra.mxu0 0.0
        %1396 = vmatprep.subr.mxu0 0.0
        %1397 = vmatpush1.msra.mxu0 0.0
        %1398 = vmatprep.subr.mxu0 0.0
        %1399 = vmatpush1.msra.mxu0 0.0
        %1400 = vmatprep.subr.mxu0 0.0
        %1401 = vmatpush1.msra.mxu0 0.0
        %1402 = vmatprep.subr.mxu0 0.0
        %1403 = vmatpush1.msra.mxu0 0.0
        %1404 = vmatprep.subr.mxu0 0.0
        %1405 = vmatpush1.msra.mxu0 0.0
        %1406 = vmatprep.subr.mxu0 0.0
        %1407 = vmatpush1.msra.mxu0 0.0
        %1408 = vmatprep.subr.mxu0 0.0
        %1409 = vmatpush1.msra.mxu0 0.0
        %1410 = vmatprep.subr.mxu0 0.0
        %1411 = vmatpush1.msra.mxu0 0.0
        %1412 = vmatprep.mubr.f32.mxu0 0.0
        %1413 = vmatmul.mubr.f32.gmra.mrb[0].mxu0 %v1187
        %v1414 = vpop.f32.mrb[0].mxu0
        %v1415 = vadd.f32 0.0, %v1414
        %v1416 = vpop.f32.mrb[0].mxu0
        %v1417 = vadd.f32 0.0, %v1416
        %1418 = vdwg.mxu0
        %1419 = vmatprep.subr.mxu0 %v1204
        %1420 = vmatpush1.msra.mxu0 %v1202
        %1421 = vmatprep.subr.mxu0 0.0
        %1422 = vmatpush1.msra.mxu0 0.0
        %1423 = vmatprep.subr.mxu0 0.0
        %1424 = vmatpush1.msra.mxu0 0.0
        %1425 = vmatprep.subr.mxu0 0.0
        %1426 = vmatpush1.msra.mxu0 0.0
        %1427 = vmatprep.subr.mxu0 0.0
        %1428 = vmatpush1.msra.mxu0 0.0
        %1429 = vmatprep.subr.mxu0 0.0
        %1430 = vmatpush1.msra.mxu0 0.0
        %1431 = vmatprep.subr.mxu0 0.0
        %1432 = vmatpush1.msra.mxu0 0.0
        %1433 = vmatprep.subr.mxu0 0.0
        %1434 = vmatpush1.msra.mxu0 0.0
        %1435 = vmatprep.subr.mxu0 0.0
        %1436 = vmatpush1.msra.mxu0 0.0
        %1437 = vmatprep.subr.mxu0 0.0
        %1438 = vmatpush1.msra.mxu0 0.0
        %1439 = vmatprep.subr.mxu0 0.0
        %1440 = vmatpush1.msra.mxu0 0.0
        %1441 = vmatprep.subr.mxu0 0.0
        %1442 = vmatpush1.msra.mxu0 0.0
        %1443 = vmatprep.subr.mxu0 0.0
        %1444 = vmatpush1.msra.mxu0 0.0
        %1445 = vmatprep.subr.mxu0 0.0
        %1446 = vmatpush1.msra.mxu0 0.0
        %1447 = vmatprep.subr.mxu0 0.0
        %1448 = vmatpush1.msra.mxu0 0.0
        %1449 = vmatprep.subr.mxu0 0.0
        %1450 = vmatpush1.msra.mxu0 0.0
        %1451 = vmatprep.subr.mxu0 0.0
        %1452 = vmatpush1.msra.mxu0 0.0
        %1453 = vmatprep.subr.mxu0 0.0
        %1454 = vmatpush1.msra.mxu0 0.0
        %1455 = vmatprep.subr.mxu0 0.0
        %1456 = vmatpush1.msra.mxu0 0.0
        %1457 = vmatprep.subr.mxu0 0.0
        %1458 = vmatpush1.msra.mxu0 0.0
        %1459 = vmatprep.subr.mxu0 0.0
        %1460 = vmatpush1.msra.mxu0 0.0
        %1461 = vmatprep.subr.mxu0 0.0
        %1462 = vmatpush1.msra.mxu0 0.0
        %1463 = vmatprep.subr.mxu0 0.0
        %1464 = vmatpush1.msra.mxu0 0.0
        %1465 = vmatprep.subr.mxu0 0.0
        %1466 = vmatpush1.msra.mxu0 0.0
        %1467 = vmatprep.subr.mxu0 0.0
        %1468 = vmatpush1.msra.mxu0 0.0
        %1469 = vmatprep.subr.mxu0 0.0
        %1470 = vmatpush1.msra.mxu0 0.0
        %1471 = vmatprep.subr.mxu0 0.0
        %1472 = vmatpush1.msra.mxu0 0.0
        %1473 = vmatprep.subr.mxu0 0.0
        %1474 = vmatpush1.msra.mxu0 0.0
        %1475 = vmatprep.subr.mxu0 0.0
        %1476 = vmatpush1.msra.mxu0 0.0
        %1477 = vmatprep.subr.mxu0 0.0
        %1478 = vmatpush1.msra.mxu0 0.0
        %1479 = vmatprep.subr.mxu0 0.0
        %1480 = vmatpush1.msra.mxu0 0.0
        %1481 = vmatprep.subr.mxu0 0.0
        %1482 = vmatpush1.msra.mxu0 0.0
        %1483 = vmatprep.mubr.f32.mxu0 0.0
        %1484 = vmatmul.mubr.f32.gmra.mrb[0].mxu0 %v1187
        %v1485 = vpop.f32.mrb[0].mxu0
        %v1486 = vadd.f32 0.0, %v1485
        %v1487 = vpop.f32.mrb[0].mxu0
        %v1488 = vadd.f32 0.0, %v1487
        %1489 = vdwg.mxu0
        %v1490 = vadd.f32 %v1022, %v1273
        %v1491 = vadd.f32 %v1022, %v1275
        %v1492 = vadd.f32 %v1022, %v1344
        %v1493 = vadd.f32 %v1022, %v1346
        %v1494 = vadd.f32 %v1022, %v1415
        %v1495 = vadd.f32 %v1022, %v1417
        %v1496 = vadd.f32 %v1022, %v1486
        %v1497 = vadd.f32 %v1022, %v1488
        %s1498 = scalar_lea.vmem %s3, 8
        %v1499 = vld [vmem:[%s1498] sm:$0xff]
        %1509 = vrot.lane.b32.xlu0 %v730, 32
        %v1510 = vpop.permute.xlu0 %1509
        %1511 = vrot.lane.b32.xlu0 %v732, 32
        %v1512 = vpop.permute.xlu0 %1511
        %1513 = vrot.lane.b32.xlu0 %v801, 32
        %v1514 = vpop.permute.xlu0 %1513
        %1515 = vrot.lane.b32.xlu0 %v803, 32
        %v1516 = vpop.permute.xlu0 %1515
        %1517 = vrot.lane.b32.xlu0 %v872, 32
        %v1518 = vpop.permute.xlu0 %1517
        %1519 = vrot.lane.b32.xlu0 %v874, 32
        %v1520 = vpop.permute.xlu0 %1519
        %1521 = vrot.lane.b32.xlu0 %v943, 32
        %v1522 = vpop.permute.xlu0 %1521
        %1523 = vrot.lane.b32.xlu0 %v945, 32
        %v1524 = vpop.permute.xlu0 %1523
        %1525 = vrot.lane.b32.xlu0 %v1014, 32
        %v1526 = vpop.permute.xlu0 %1525
        %vm1527 = vcmask 261120
        %v1528 = vsel %vm1527, %v1510, %v1512
        %v1529 = vsel %vm1527, %v1512, %v1514
        %v1530 = vsel %vm1527, %v1514, %v1516
        %v1531 = vsel %vm1527, %v1516, %v1518
        %v1532 = vsel %vm1527, %v1518, %v1520
        %v1533 = vsel %vm1527, %v1520, %v1522
        %v1534 = vsel %vm1527, %v1522, %v1524
        %v1535 = vsel %vm1527, %v1524, %v1526
        %v1537 = vsel %vm1185, %v1499, 0
        %v1539 = vsel %vm1189, %v1528, 0
        %v1541 = vsel %vm1189, %v1529, 0
        %v1543 = vsel %vm1189, %v1530, 0
        %v1545 = vsel %vm1189, %v1531, 0
        %v1547 = vsel %vm1189, %v1532, 0
        %v1549 = vsel %vm1189, %v1533, 0
        %v1551 = vsel %vm1189, %v1534, 0
        %v1553 = vsel %vm1189, %v1535, 0
        %1555 = vmatprep.subr.mxu0 %v1541
        %1556 = vmatpush1.msra.mxu0 %v1539
        %1557 = vmatprep.subr.mxu0 0.0
        %1558 = vmatpush1.msra.mxu0 0.0
        %1559 = vmatprep.subr.mxu0 0.0
        %1560 = vmatpush1.msra.mxu0 0.0
        %1561 = vmatprep.subr.mxu0 0.0
        %1562 = vmatpush1.msra.mxu0 0.0
        %1563 = vmatprep.subr.mxu0 0.0
        %1564 = vmatpush1.msra.mxu0 0.0
        %1565 = vmatprep.subr.mxu0 0.0
        %1566 = vmatpush1.msra.mxu0 0.0
        %1567 = vmatprep.subr.mxu0 0.0
        %1568 = vmatpush1.msra.mxu0 0.0
        %1569 = vmatprep.subr.mxu0 0.0
        %1570 = vmatpush1.msra.mxu0 0.0
        %1571 = vmatprep.subr.mxu0 0.0
        %1572 = vmatpush1.msra.mxu0 0.0
        %1573 = vmatprep.subr.mxu0 0.0
        %1574 = vmatpush1.msra.mxu0 0.0
        %1575 = vmatprep.subr.mxu0 0.0
        %1576 = vmatpush1.msra.mxu0 0.0
        %1577 = vmatprep.subr.mxu0 0.0
        %1578 = vmatpush1.msra.mxu0 0.0
        %1579 = vmatprep.subr.mxu0 0.0
        %1580 = vmatpush1.msra.mxu0 0.0
        %1581 = vmatprep.subr.mxu0 0.0
        %1582 = vmatpush1.msra.mxu0 0.0
        %1583 = vmatprep.subr.mxu0 0.0
        %1584 = vmatpush1.msra.mxu0 0.0
        %1585 = vmatprep.subr.mxu0 0.0
        %1586 = vmatpush1.msra.mxu0 0.0
        %1587 = vmatprep.subr.mxu0 0.0
        %1588 = vmatpush1.msra.mxu0 0.0
        %1589 = vmatprep.subr.mxu0 0.0
        %1590 = vmatpush1.msra.mxu0 0.0
        %1591 = vmatprep.subr.mxu0 0.0
        %1592 = vmatpush1.msra.mxu0 0.0
        %1593 = vmatprep.subr.mxu0 0.0
        %1594 = vmatpush1.msra.mxu0 0.0
        %1595 = vmatprep.subr.mxu0 0.0
        %1596 = vmatpush1.msra.mxu0 0.0
        %1597 = vmatprep.subr.mxu0 0.0
        %1598 = vmatpush1.msra.mxu0 0.0
        %1599 = vmatprep.subr.mxu0 0.0
        %1600 = vmatpush1.msra.mxu0 0.0
        %1601 = vmatprep.subr.mxu0 0.0
        %1602 = vmatpush1.msra.mxu0 0.0
        %1603 = vmatprep.subr.mxu0 0.0
        %1604 = vmatpush1.msra.mxu0 0.0
        %1605 = vmatprep.subr.mxu0 0.0
        %1606 = vmatpush1.msra.mxu0 0.0
        %1607 = vmatprep.subr.mxu0 0.0
        %1608 = vmatpush1.msra.mxu0 0.0
        %1609 = vmatprep.subr.mxu0 0.0
        %1610 = vmatpush1.msra.mxu0 0.0
        %1611 = vmatprep.subr.mxu0 0.0
        %1612 = vmatpush1.msra.mxu0 0.0
        %1613 = vmatprep.subr.mxu0 0.0
        %1614 = vmatpush1.msra.mxu0 0.0
        %1615 = vmatprep.subr.mxu0 0.0
        %1616 = vmatpush1.msra.mxu0 0.0
        %1617 = vmatprep.subr.mxu0 0.0
        %1618 = vmatpush1.msra.mxu0 0.0
        %1619 = vmatprep.mubr.f32.mxu0 0.0
        %1620 = vmatmul.mubr.f32.gmra.mrb[0].mxu0 %v1537
        %v1621 = vpop.f32.mrb[0].mxu0
        %v1622 = vadd.f32 0.0, %v1621
        %v1623 = vpop.f32.mrb[0].mxu0
        %v1624 = vadd.f32 0.0, %v1623
        %1625 = vdwg.mxu0
        %1626 = vmatprep.subr.mxu0 %v1545
        %1627 = vmatpush1.msra.mxu0 %v1543
        %1628 = vmatprep.subr.mxu0 0.0
        %1629 = vmatpush1.msra.mxu0 0.0
        %1630 = vmatprep.subr.mxu0 0.0
        %1631 = vmatpush1.msra.mxu0 0.0
        %1632 = vmatprep.subr.mxu0 0.0
        %1633 = vmatpush1.msra.mxu0 0.0
        %1634 = vmatprep.subr.mxu0 0.0
        %1635 = vmatpush1.msra.mxu0 0.0
        %1636 = vmatprep.subr.mxu0 0.0
        %1637 = vmatpush1.msra.mxu0 0.0
        %1638 = vmatprep.subr.mxu0 0.0
        %1639 = vmatpush1.msra.mxu0 0.0
        %1640 = vmatprep.subr.mxu0 0.0
        %1641 = vmatpush1.msra.mxu0 0.0
        %1642 = vmatprep.subr.mxu0 0.0
        %1643 = vmatpush1.msra.mxu0 0.0
        %1644 = vmatprep.subr.mxu0 0.0
        %1645 = vmatpush1.msra.mxu0 0.0
        %1646 = vmatprep.subr.mxu0 0.0
        %1647 = vmatpush1.msra.mxu0 0.0
        %1648 = vmatprep.subr.mxu0 0.0
        %1649 = vmatpush1.msra.mxu0 0.0
        %1650 = vmatprep.subr.mxu0 0.0
        %1651 = vmatpush1.msra.mxu0 0.0
        %1652 = vmatprep.subr.mxu0 0.0
        %1653 = vmatpush1.msra.mxu0 0.0
        %1654 = vmatprep.subr.mxu0 0.0
        %1655 = vmatpush1.msra.mxu0 0.0
        %1656 = vmatprep.subr.mxu0 0.0
        %1657 = vmatpush1.msra.mxu0 0.0
        %1658 = vmatprep.subr.mxu0 0.0
        %1659 = vmatpush1.msra.mxu0 0.0
        %1660 = vmatprep.subr.mxu0 0.0
        %1661 = vmatpush1.msra.mxu0 0.0
        %1662 = vmatprep.subr.mxu0 0.0
        %1663 = vmatpush1.msra.mxu0 0.0
        %1664 = vmatprep.subr.mxu0 0.0
        %1665 = vmatpush1.msra.mxu0 0.0
        %1666 = vmatprep.subr.mxu0 0.0
        %1667 = vmatpush1.msra.mxu0 0.0
        %1668 = vmatprep.subr.mxu0 0.0
        %1669 = vmatpush1.msra.mxu0 0.0
        %1670 = vmatprep.subr.mxu0 0.0
        %1671 = vmatpush1.msra.mxu0 0.0
        %1672 = vmatprep.subr.mxu0 0.0
        %1673 = vmatpush1.msra.mxu0 0.0
        %1674 = vmatprep.subr.mxu0 0.0
        %1675 = vmatpush1.msra.mxu0 0.0
        %1676 = vmatprep.subr.mxu0 0.0
        %1677 = vmatpush1.msra.mxu0 0.0
        %1678 = vmatprep.subr.mxu0 0.0
        %1679 = vmatpush1.msra.mxu0 0.0
        %1680 = vmatprep.subr.mxu0 0.0
        %1681 = vmatpush1.msra.mxu0 0.0
        %1682 = vmatprep.subr.mxu0 0.0
        %1683 = vmatpush1.msra.mxu0 0.0
        %1684 = vmatprep.subr.mxu0 0.0
        %1685 = vmatpush1.msra.mxu0 0.0
        %1686 = vmatprep.subr.mxu0 0.0
        %1687 = vmatpush1.msra.mxu0 0.0
        %1688 = vmatprep.subr.mxu0 0.0
        %1689 = vmatpush1.msra.mxu0 0.0
        %1690 = vmatprep.mubr.f32.mxu0 0.0
        %1691 = vmatmul.mubr.f32.gmra.mrb[0].mxu0 %v1537
        %v1692 = vpop.f32.mrb[0].mxu0
        %v1693 = vadd.f32 0.0, %v1692
        %v1694 = vpop.f32.mrb[0].mxu0
        %v1695 = vadd.f32 0.0, %v1694
        %1696 = vdwg.mxu0
        %1697 = vmatprep.subr.mxu0 %v1549
        %1698 = vmatpush1.msra.mxu0 %v1547
        %1699 = vmatprep.subr.mxu0 0.0
        %1700 = vmatpush1.msra.mxu0 0.0
        %1701 = vmatprep.subr.mxu0 0.0
        %1702 = vmatpush1.msra.mxu0 0.0
        %1703 = vmatprep.subr.mxu0 0.0
        %1704 = vmatpush1.msra.mxu0 0.0
        %1705 = vmatprep.subr.mxu0 0.0
        %1706 = vmatpush1.msra.mxu0 0.0
        %1707 = vmatprep.subr.mxu0 0.0
        %1708 = vmatpush1.msra.mxu0 0.0
        %1709 = vmatprep.subr.mxu0 0.0
        %1710 = vmatpush1.msra.mxu0 0.0
        %1711 = vmatprep.subr.mxu0 0.0
        %1712 = vmatpush1.msra.mxu0 0.0
        %1713 = vmatprep.subr.mxu0 0.0
        %1714 = vmatpush1.msra.mxu0 0.0
        %1715 = vmatprep.subr.mxu0 0.0
        %1716 = vmatpush1.msra.mxu0 0.0
        %1717 = vmatprep.subr.mxu0 0.0
        %1718 = vmatpush1.msra.mxu0 0.0
        %1719 = vmatprep.subr.mxu0 0.0
        %1720 = vmatpush1.msra.mxu0 0.0
        %1721 = vmatprep.subr.mxu0 0.0
        %1722 = vmatpush1.msra.mxu0 0.0
        %1723 = vmatprep.subr.mxu0 0.0
        %1724 = vmatpush1.msra.mxu0 0.0
        %1725 = vmatprep.subr.mxu0 0.0
        %1726 = vmatpush1.msra.mxu0 0.0
        %1727 = vmatprep.subr.mxu0 0.0
        %1728 = vmatpush1.msra.mxu0 0.0
        %1729 = vmatprep.subr.mxu0 0.0
        %1730 = vmatpush1.msra.mxu0 0.0
        %1731 = vmatprep.subr.mxu0 0.0
        %1732 = vmatpush1.msra.mxu0 0.0
        %1733 = vmatprep.subr.mxu0 0.0
        %1734 = vmatpush1.msra.mxu0 0.0
        %1735 = vmatprep.subr.mxu0 0.0
        %1736 = vmatpush1.msra.mxu0 0.0
        %1737 = vmatprep.subr.mxu0 0.0
        %1738 = vmatpush1.msra.mxu0 0.0
        %1739 = vmatprep.subr.mxu0 0.0
        %1740 = vmatpush1.msra.mxu0 0.0
        %1741 = vmatprep.subr.mxu0 0.0
        %1742 = vmatpush1.msra.mxu0 0.0
        %1743 = vmatprep.subr.mxu0 0.0
        %1744 = vmatpush1.msra.mxu0 0.0
        %1745 = vmatprep.subr.mxu0 0.0
        %1746 = vmatpush1.msra.mxu0 0.0
        %1747 = vmatprep.subr.mxu0 0.0
        %1748 = vmatpush1.msra.mxu0 0.0
        %1749 = vmatprep.subr.mxu0 0.0
        %1750 = vmatpush1.msra.mxu0 0.0
        %1751 = vmatprep.subr.mxu0 0.0
        %1752 = vmatpush1.msra.mxu0 0.0
        %1753 = vmatprep.subr.mxu0 0.0
        %1754 = vmatpush1.msra.mxu0 0.0
        %1755 = vmatprep.subr.mxu0 0.0
        %1756 = vmatpush1.msra.mxu0 0.0
        %1757 = vmatprep.subr.mxu0 0.0
        %1758 = vmatpush1.msra.mxu0 0.0
        %1759 = vmatprep.subr.mxu0 0.0
        %1760 = vmatpush1.msra.mxu0 0.0
        %1761 = vmatprep.mubr.f32.mxu0 0.0
        %1762 = vmatmul.mubr.f32.gmra.mrb[0].mxu0 %v1537
        %v1763 = vpop.f32.mrb[0].mxu0
        %v1764 = vadd.f32 0.0, %v1763
        %v1765 = vpop.f32.mrb[0].mxu0
        %v1766 = vadd.f32 0.0, %v1765
        %1767 = vdwg.mxu0
        %1768 = vmatprep.subr.mxu0 %v1553
        %1769 = vmatpush1.msra.mxu0 %v1551
        %1770 = vmatprep.subr.mxu0 0.0
        %1771 = vmatpush1.msra.mxu0 0.0
        %1772 = vmatprep.subr.mxu0 0.0
        %1773 = vmatpush1.msra.mxu0 0.0
        %1774 = vmatprep.subr.mxu0 0.0
        %1775 = vmatpush1.msra.mxu0 0.0
        %1776 = vmatprep.subr.mxu0 0.0
        %1777 = vmatpush1.msra.mxu0 0.0
        %1778 = vmatprep.subr.mxu0 0.0
        %1779 = vmatpush1.msra.mxu0 0.0
        %1780 = vmatprep.subr.mxu0 0.0
        %1781 = vmatpush1.msra.mxu0 0.0
        %1782 = vmatprep.subr.mxu0 0.0
        %1783 = vmatpush1.msra.mxu0 0.0
        %1784 = vmatprep.subr.mxu0 0.0
        %1785 = vmatpush1.msra.mxu0 0.0
        %1786 = vmatprep.subr.mxu0 0.0
        %1787 = vmatpush1.msra.mxu0 0.0
        %1788 = vmatprep.subr.mxu0 0.0
        %1789 = vmatpush1.msra.mxu0 0.0
        %1790 = vmatprep.subr.mxu0 0.0
        %1791 = vmatpush1.msra.mxu0 0.0
        %1792 = vmatprep.subr.mxu0 0.0
        %1793 = vmatpush1.msra.mxu0 0.0
        %1794 = vmatprep.subr.mxu0 0.0
        %1795 = vmatpush1.msra.mxu0 0.0
        %1796 = vmatprep.subr.mxu0 0.0
        %1797 = vmatpush1.msra.mxu0 0.0
        %1798 = vmatprep.subr.mxu0 0.0
        %1799 = vmatpush1.msra.mxu0 0.0
        %1800 = vmatprep.subr.mxu0 0.0
        %1801 = vmatpush1.msra.mxu0 0.0
        %1802 = vmatprep.subr.mxu0 0.0
        %1803 = vmatpush1.msra.mxu0 0.0
        %1804 = vmatprep.subr.mxu0 0.0
        %1805 = vmatpush1.msra.mxu0 0.0
        %1806 = vmatprep.subr.mxu0 0.0
        %1807 = vmatpush1.msra.mxu0 0.0
        %1808 = vmatprep.subr.mxu0 0.0
        %1809 = vmatpush1.msra.mxu0 0.0
        %1810 = vmatprep.subr.mxu0 0.0
        %1811 = vmatpush1.msra.mxu0 0.0
        %1812 = vmatprep.subr.mxu0 0.0
        %1813 = vmatpush1.msra.mxu0 0.0
        %1814 = vmatprep.subr.mxu0 0.0
        %1815 = vmatpush1.msra.mxu0 0.0
        %1816 = vmatprep.subr.mxu0 0.0
        %1817 = vmatpush1.msra.mxu0 0.0
        %1818 = vmatprep.subr.mxu0 0.0
        %1819 = vmatpush1.msra.mxu0 0.0
        %1820 = vmatprep.subr.mxu0 0.0
        %1821 = vmatpush1.msra.mxu0 0.0
        %1822 = vmatprep.subr.mxu0 0.0
        %1823 = vmatpush1.msra.mxu0 0.0
        %1824 = vmatprep.subr.mxu0 0.0
        %1825 = vmatpush1.msra.mxu0 0.0
        %1826 = vmatprep.subr.mxu0 0.0
        %1827 = vmatpush1.msra.mxu0 0.0
        %1828 = vmatprep.subr.mxu0 0.0
        %1829 = vmatpush1.msra.mxu0 0.0
        %1830 = vmatprep.subr.mxu0 0.0
        %1831 = vmatpush1.msra.mxu0 0.0
        %1832 = vmatprep.mubr.f32.mxu0 0.0
        %1833 = vmatmul.mubr.f32.gmra.mrb[0].mxu0 %v1537
        %v1834 = vpop.f32.mrb[0].mxu0
        %v1835 = vadd.f32 0.0, %v1834
        %v1836 = vpop.f32.mrb[0].mxu0
        %v1837 = vadd.f32 0.0, %v1836
        %1838 = vdwg.mxu0
        %v1839 = vadd.f32 %v1490, %v1622
        %v1840 = vadd.f32 %v1491, %v1624
        %v1841 = vadd.f32 %v1492, %v1693
        %v1842 = vadd.f32 %v1493, %v1695
        %v1843 = vadd.f32 %v1494, %v1764
        %v1844 = vadd.f32 %v1495, %v1766
        %v1845 = vadd.f32 %v1496, %v1835
        %v1846 = vadd.f32 %v1497, %v1837
        %v1847 = vlaneseq
        %v1848 = vshrl.u32 %v1847, 7
        %v1849 = vsub.s32 1, %v1848
        %v1850 = vrot.slane %v337, %v1849
        %v1851 = vlaneseq
        %v1852 = vshrl.u32 %v1851, 7
        %v1853 = vsub.s32 3, %v1852
        %v1854 = vrot.slane %v337, %v1853
        %v1855 = vlaneseq
        %v1856 = vshrl.u32 %v1855, 7
        %v1857 = vsub.s32 5, %v1856
        %v1858 = vrot.slane %v337, %v1857
        %v1859 = vlaneseq
        %v1860 = vshrl.u32 %v1859, 7
        %v1861 = vsub.s32 7, %v1860
        %v1862 = vrot.slane %v337, %v1861
        %v1863 = vlaneseq
        %v1864 = vshrl.u32 %v1863, 7
        %v1865 = vsub.s32 1, %v1864
        %v1866 = vrot.slane %v338, %v1865
        %v1867 = vlaneseq
        %v1868 = vshrl.u32 %v1867, 7
        %v1869 = vsub.s32 3, %v1868
        %v1870 = vrot.slane %v338, %v1869
        %v1871 = vlaneseq
        %v1872 = vshrl.u32 %v1871, 7
        %v1873 = vsub.s32 5, %v1872
        %v1874 = vrot.slane %v338, %v1873
        %v1875 = vlaneseq
        %v1876 = vshrl.u32 %v1875, 7
        %v1877 = vsub.s32 7, %v1876
        %v1878 = vrot.slane %v338, %v1877
        %v1887 = vlaneseq
        %v1888 = vshrl.u32 %v1887, 7
        %v1889 = vsub.s32 1, %v1888
        %v1890 = vrot.slane %v1850, %v1889
        %v1891 = vlaneseq
        %v1892 = vshrl.u32 %v1891, 7
        %v1893 = vsub.s32 1, %v1892
        %v1894 = vrot.slane %v1854, %v1893
        %v1895 = vlaneseq
        %v1896 = vshrl.u32 %v1895, 7
        %v1897 = vsub.s32 1, %v1896
        %v1898 = vrot.slane %v1858, %v1897
        %v1899 = vlaneseq
        %v1900 = vshrl.u32 %v1899, 7
        %v1901 = vsub.s32 1, %v1900
        %v1902 = vrot.slane %v1862, %v1901
        %v1903 = vlaneseq
        %v1904 = vshrl.u32 %v1903, 7
        %v1905 = vsub.s32 1, %v1904
        %v1906 = vrot.slane %v1866, %v1905
        %v1907 = vlaneseq
        %v1908 = vshrl.u32 %v1907, 7
        %v1909 = vsub.s32 1, %v1908
        %v1910 = vrot.slane %v1870, %v1909
        %v1911 = vlaneseq
        %v1912 = vshrl.u32 %v1911, 7
        %v1913 = vsub.s32 1, %v1912
        %v1914 = vrot.slane %v1874, %v1913
        %v1915 = vlaneseq
        %v1916 = vshrl.u32 %v1915, 7
        %v1917 = vsub.s32 1, %v1916
        %v1918 = vrot.slane %v1878, %v1917
        %1927 = vrot.lane.b32.xlu0 %v1890, 97
        %v1928 = vpop.permute.xlu0 %1927
        %1929 = vrot.lane.b32.xlu0 %v1894, 97
        %v1930 = vpop.permute.xlu0 %1929
        %1931 = vrot.lane.b32.xlu0 %v1898, 97
        %v1932 = vpop.permute.xlu0 %1931
        %1933 = vrot.lane.b32.xlu0 %v1902, 97
        %v1934 = vpop.permute.xlu0 %1933
        %1935 = vrot.lane.b32.xlu0 %v1906, 97
        %v1936 = vpop.permute.xlu0 %1935
        %1937 = vrot.lane.b32.xlu0 %v1910, 97
        %v1938 = vpop.permute.xlu0 %1937
        %1939 = vrot.lane.b32.xlu0 %v1914, 97
        %v1940 = vpop.permute.xlu0 %1939
        %1941 = vrot.lane.b32.xlu0 %v1918, 97
        %v1942 = vpop.permute.xlu0 %1941
        %vm1943 = vcmask 793600
        %v1944 = vsel %vm1943, %v1928, %v1930
        %v1945 = vsel %vm1943, %v1930, %v1932
        %v1946 = vsel %vm1943, %v1932, %v1934
        %v1947 = vsel %vm1943, %v1934, %v1936
        %v1948 = vsel %vm1943, %v1936, %v1938
        %v1949 = vsel %vm1943, %v1938, %v1940
        %v1950 = vsel %vm1943, %v1940, %v1942
        %v1960 = vmul.f32 %v730, %v1928
        %v1961 = vmul.f32 %v732, %v1944
        %v1962 = vmul.f32 %v801, %v1945
        %v1963 = vmul.f32 %v803, %v1946
        %v1964 = vmul.f32 %v872, %v1947
        %v1965 = vmul.f32 %v874, %v1948
        %v1966 = vmul.f32 %v943, %v1949
        %v1967 = vmul.f32 %v945, %v1950
        %v1968 = vmul.f32 %v1014, %v1942
        %s1969 = scalar_lea.vmem %s3, 16
        %v1970 = vld [vmem:[%s1969] sm:$0xff]
        %1980 = vrot.lane.b32.xlu0 %v1960, 31
        %v1981 = vpop.permute.xlu0 %1980
        %1982 = vrot.lane.b32.xlu0 %v1961, 31
        %v1983 = vpop.permute.xlu0 %1982
        %1984 = vrot.lane.b32.xlu0 %v1962, 31
        %v1985 = vpop.permute.xlu0 %1984
        %1986 = vrot.lane.b32.xlu0 %v1963, 31
        %v1987 = vpop.permute.xlu0 %1986
        %1988 = vrot.lane.b32.xlu0 %v1964, 31
        %v1989 = vpop.permute.xlu0 %1988
        %1990 = vrot.lane.b32.xlu0 %v1965, 31
        %v1991 = vpop.permute.xlu0 %1990
        %1992 = vrot.lane.b32.xlu0 %v1966, 31
        %v1993 = vpop.permute.xlu0 %1992
        %1994 = vrot.lane.b32.xlu0 %v1967, 31
        %v1995 = vpop.permute.xlu0 %1994
        %1996 = vrot.lane.b32.xlu0 %v1968, 31
        %v1997 = vpop.permute.xlu0 %1996
        %vm1998 = vcmask 252928
        %v1999 = vsel %vm1998, %v1981, %v1983
        %v2000 = vsel %vm1998, %v1983, %v1985
        %v2001 = vsel %vm1998, %v1985, %v1987
        %v2002 = vsel %vm1998, %v1987, %v1989
        %v2003 = vsel %vm1998, %v1989, %v1991
        %v2004 = vsel %vm1998, %v1991, %v1993
        %v2005 = vsel %vm1998, %v1993, %v1995
        %v2006 = vsel %vm1998, %v1995, %v1997
        %v2008 = vsel %vm1185, %v1970, 0
        %v2010 = vsel %vm1189, %v1999, 0
        %v2012 = vsel %vm1189, %v2000, 0
        %v2014 = vsel %vm1189, %v2001, 0
        %v2016 = vsel %vm1189, %v2002, 0
        %v2018 = vsel %vm1189, %v2003, 0
        %v2020 = vsel %vm1189, %v2004, 0
        %v2022 = vsel %vm1189, %v2005, 0
        %v2024 = vsel %vm1189, %v2006, 0
        %2026 = vmatprep.subr.mxu0 %v2012
        %2027 = vmatpush1.msra.mxu0 %v2010
        %2028 = vmatprep.subr.mxu0 0.0
        %2029 = vmatpush1.msra.mxu0 0.0
        %2030 = vmatprep.subr.mxu0 0.0
        %2031 = vmatpush1.msra.mxu0 0.0
        %2032 = vmatprep.subr.mxu0 0.0
        %2033 = vmatpush1.msra.mxu0 0.0
        %2034 = vmatprep.subr.mxu0 0.0
        %2035 = vmatpush1.msra.mxu0 0.0
        %2036 = vmatprep.subr.mxu0 0.0
        %2037 = vmatpush1.msra.mxu0 0.0
        %2038 = vmatprep.subr.mxu0 0.0
        %2039 = vmatpush1.msra.mxu0 0.0
        %2040 = vmatprep.subr.mxu0 0.0
        %2041 = vmatpush1.msra.mxu0 0.0
        %2042 = vmatprep.subr.mxu0 0.0
        %2043 = vmatpush1.msra.mxu0 0.0
        %2044 = vmatprep.subr.mxu0 0.0
        %2045 = vmatpush1.msra.mxu0 0.0
        %2046 = vmatprep.subr.mxu0 0.0
        %2047 = vmatpush1.msra.mxu0 0.0
        %2048 = vmatprep.subr.mxu0 0.0
        %2049 = vmatpush1.msra.mxu0 0.0
        %2050 = vmatprep.subr.mxu0 0.0
        %2051 = vmatpush1.msra.mxu0 0.0
        %2052 = vmatprep.subr.mxu0 0.0
        %2053 = vmatpush1.msra.mxu0 0.0
        %2054 = vmatprep.subr.mxu0 0.0
        %2055 = vmatpush1.msra.mxu0 0.0
        %2056 = vmatprep.subr.mxu0 0.0
        %2057 = vmatpush1.msra.mxu0 0.0
        %2058 = vmatprep.subr.mxu0 0.0
        %2059 = vmatpush1.msra.mxu0 0.0
        %2060 = vmatprep.subr.mxu0 0.0
        %2061 = vmatpush1.msra.mxu0 0.0
        %2062 = vmatprep.subr.mxu0 0.0
        %2063 = vmatpush1.msra.mxu0 0.0
        %2064 = vmatprep.subr.mxu0 0.0
        %2065 = vmatpush1.msra.mxu0 0.0
        %2066 = vmatprep.subr.mxu0 0.0
        %2067 = vmatpush1.msra.mxu0 0.0
        %2068 = vmatprep.subr.mxu0 0.0
        %2069 = vmatpush1.msra.mxu0 0.0
        %2070 = vmatprep.subr.mxu0 0.0
        %2071 = vmatpush1.msra.mxu0 0.0
        %2072 = vmatprep.subr.mxu0 0.0
        %2073 = vmatpush1.msra.mxu0 0.0
        %2074 = vmatprep.subr.mxu0 0.0
        %2075 = vmatpush1.msra.mxu0 0.0
        %2076 = vmatprep.subr.mxu0 0.0
        %2077 = vmatpush1.msra.mxu0 0.0
        %2078 = vmatprep.subr.mxu0 0.0
        %2079 = vmatpush1.msra.mxu0 0.0
        %2080 = vmatprep.subr.mxu0 0.0
        %2081 = vmatpush1.msra.mxu0 0.0
        %2082 = vmatprep.subr.mxu0 0.0
        %2083 = vmatpush1.msra.mxu0 0.0
        %2084 = vmatprep.subr.mxu0 0.0
        %2085 = vmatpush1.msra.mxu0 0.0
        %2086 = vmatprep.subr.mxu0 0.0
        %2087 = vmatpush1.msra.mxu0 0.0
        %2088 = vmatprep.subr.mxu0 0.0
        %2089 = vmatpush1.msra.mxu0 0.0
        %2090 = vmatprep.mubr.f32.mxu0 0.0
        %2091 = vmatmul.mubr.f32.gmra.mrb[0].mxu0 %v2008
        %v2092 = vpop.f32.mrb[0].mxu0
        %v2093 = vadd.f32 0.0, %v2092
        %v2094 = vpop.f32.mrb[0].mxu0
        %v2095 = vadd.f32 0.0, %v2094
        %2096 = vdwg.mxu0
        %2097 = vmatprep.subr.mxu0 %v2016
        %2098 = vmatpush1.msra.mxu0 %v2014
        %2099 = vmatprep.subr.mxu0 0.0
        %2100 = vmatpush1.msra.mxu0 0.0
        %2101 = vmatprep.subr.mxu0 0.0
        %2102 = vmatpush1.msra.mxu0 0.0
        %2103 = vmatprep.subr.mxu0 0.0
        %2104 = vmatpush1.msra.mxu0 0.0
        %2105 = vmatprep.subr.mxu0 0.0
        %2106 = vmatpush1.msra.mxu0 0.0
        %2107 = vmatprep.subr.mxu0 0.0
        %2108 = vmatpush1.msra.mxu0 0.0
        %2109 = vmatprep.subr.mxu0 0.0
        %2110 = vmatpush1.msra.mxu0 0.0
        %2111 = vmatprep.subr.mxu0 0.0
        %2112 = vmatpush1.msra.mxu0 0.0
        %2113 = vmatprep.subr.mxu0 0.0
        %2114 = vmatpush1.msra.mxu0 0.0
        %2115 = vmatprep.subr.mxu0 0.0
        %2116 = vmatpush1.msra.mxu0 0.0
        %2117 = vmatprep.subr.mxu0 0.0
        %2118 = vmatpush1.msra.mxu0 0.0
        %2119 = vmatprep.subr.mxu0 0.0
        %2120 = vmatpush1.msra.mxu0 0.0
        %2121 = vmatprep.subr.mxu0 0.0
        %2122 = vmatpush1.msra.mxu0 0.0
        %2123 = vmatprep.subr.mxu0 0.0
        %2124 = vmatpush1.msra.mxu0 0.0
        %2125 = vmatprep.subr.mxu0 0.0
        %2126 = vmatpush1.msra.mxu0 0.0
        %2127 = vmatprep.subr.mxu0 0.0
        %2128 = vmatpush1.msra.mxu0 0.0
        %2129 = vmatprep.subr.mxu0 0.0
        %2130 = vmatpush1.msra.mxu0 0.0
        %2131 = vmatprep.subr.mxu0 0.0
        %2132 = vmatpush1.msra.mxu0 0.0
        %2133 = vmatprep.subr.mxu0 0.0
        %2134 = vmatpush1.msra.mxu0 0.0
        %2135 = vmatprep.subr.mxu0 0.0
        %2136 = vmatpush1.msra.mxu0 0.0
        %2137 = vmatprep.subr.mxu0 0.0
        %2138 = vmatpush1.msra.mxu0 0.0
        %2139 = vmatprep.subr.mxu0 0.0
        %2140 = vmatpush1.msra.mxu0 0.0
        %2141 = vmatprep.subr.mxu0 0.0
        %2142 = vmatpush1.msra.mxu0 0.0
        %2143 = vmatprep.subr.mxu0 0.0
        %2144 = vmatpush1.msra.mxu0 0.0
        %2145 = vmatprep.subr.mxu0 0.0
        %2146 = vmatpush1.msra.mxu0 0.0
        %2147 = vmatprep.subr.mxu0 0.0
        %2148 = vmatpush1.msra.mxu0 0.0
        %2149 = vmatprep.subr.mxu0 0.0
        %2150 = vmatpush1.msra.mxu0 0.0
        %2151 = vmatprep.subr.mxu0 0.0
        %2152 = vmatpush1.msra.mxu0 0.0
        %2153 = vmatprep.subr.mxu0 0.0
        %2154 = vmatpush1.msra.mxu0 0.0
        %2155 = vmatprep.subr.mxu0 0.0
        %2156 = vmatpush1.msra.mxu0 0.0
        %2157 = vmatprep.subr.mxu0 0.0
        %2158 = vmatpush1.msra.mxu0 0.0
        %2159 = vmatprep.subr.mxu0 0.0
        %2160 = vmatpush1.msra.mxu0 0.0
        %2161 = vmatprep.mubr.f32.mxu0 0.0
        %2162 = vmatmul.mubr.f32.gmra.mrb[0].mxu0 %v2008
        %v2163 = vpop.f32.mrb[0].mxu0
        %v2164 = vadd.f32 0.0, %v2163
        %v2165 = vpop.f32.mrb[0].mxu0
        %v2166 = vadd.f32 0.0, %v2165
        %2167 = vdwg.mxu0
        %2168 = vmatprep.subr.mxu0 %v2020
        %2169 = vmatpush1.msra.mxu0 %v2018
        %2170 = vmatprep.subr.mxu0 0.0
        %2171 = vmatpush1.msra.mxu0 0.0
        %2172 = vmatprep.subr.mxu0 0.0
        %2173 = vmatpush1.msra.mxu0 0.0
        %2174 = vmatprep.subr.mxu0 0.0
        %2175 = vmatpush1.msra.mxu0 0.0
        %2176 = vmatprep.subr.mxu0 0.0
        %2177 = vmatpush1.msra.mxu0 0.0
        %2178 = vmatprep.subr.mxu0 0.0
        %2179 = vmatpush1.msra.mxu0 0.0
        %2180 = vmatprep.subr.mxu0 0.0
        %2181 = vmatpush1.msra.mxu0 0.0
        %2182 = vmatprep.subr.mxu0 0.0
        %2183 = vmatpush1.msra.mxu0 0.0
        %2184 = vmatprep.subr.mxu0 0.0
        %2185 = vmatpush1.msra.mxu0 0.0
        %2186 = vmatprep.subr.mxu0 0.0
        %2187 = vmatpush1.msra.mxu0 0.0
        %2188 = vmatprep.subr.mxu0 0.0
        %2189 = vmatpush1.msra.mxu0 0.0
        %2190 = vmatprep.subr.mxu0 0.0
        %2191 = vmatpush1.msra.mxu0 0.0
        %2192 = vmatprep.subr.mxu0 0.0
        %2193 = vmatpush1.msra.mxu0 0.0
        %2194 = vmatprep.subr.mxu0 0.0
        %2195 = vmatpush1.msra.mxu0 0.0
        %2196 = vmatprep.subr.mxu0 0.0
        %2197 = vmatpush1.msra.mxu0 0.0
        %2198 = vmatprep.subr.mxu0 0.0
        %2199 = vmatpush1.msra.mxu0 0.0
        %2200 = vmatprep.subr.mxu0 0.0
        %2201 = vmatpush1.msra.mxu0 0.0
        %2202 = vmatprep.subr.mxu0 0.0
        %2203 = vmatpush1.msra.mxu0 0.0
        %2204 = vmatprep.subr.mxu0 0.0
        %2205 = vmatpush1.msra.mxu0 0.0
        %2206 = vmatprep.subr.mxu0 0.0
        %2207 = vmatpush1.msra.mxu0 0.0
        %2208 = vmatprep.subr.mxu0 0.0
        %2209 = vmatpush1.msra.mxu0 0.0
        %2210 = vmatprep.subr.mxu0 0.0
        %2211 = vmatpush1.msra.mxu0 0.0
        %2212 = vmatprep.subr.mxu0 0.0
        %2213 = vmatpush1.msra.mxu0 0.0
        %2214 = vmatprep.subr.mxu0 0.0
        %2215 = vmatpush1.msra.mxu0 0.0
        %2216 = vmatprep.subr.mxu0 0.0
        %2217 = vmatpush1.msra.mxu0 0.0
        %2218 = vmatprep.subr.mxu0 0.0
        %2219 = vmatpush1.msra.mxu0 0.0
        %2220 = vmatprep.subr.mxu0 0.0
        %2221 = vmatpush1.msra.mxu0 0.0
        %2222 = vmatprep.subr.mxu0 0.0
        %2223 = vmatpush1.msra.mxu0 0.0
        %2224 = vmatprep.subr.mxu0 0.0
        %2225 = vmatpush1.msra.mxu0 0.0
        %2226 = vmatprep.subr.mxu0 0.0
        %2227 = vmatpush1.msra.mxu0 0.0
        %2228 = vmatprep.subr.mxu0 0.0
        %2229 = vmatpush1.msra.mxu0 0.0
        %2230 = vmatprep.subr.mxu0 0.0
        %2231 = vmatpush1.msra.mxu0 0.0
        %2232 = vmatprep.mubr.f32.mxu0 0.0
        %2233 = vmatmul.mubr.f32.gmra.mrb[0].mxu0 %v2008
        %v2234 = vpop.f32.mrb[0].mxu0
        %v2235 = vadd.f32 0.0, %v2234
        %v2236 = vpop.f32.mrb[0].mxu0
        %v2237 = vadd.f32 0.0, %v2236
        %2238 = vdwg.mxu0
        %2239 = vmatprep.subr.mxu0 %v2024
        %2240 = vmatpush1.msra.mxu0 %v2022
        %2241 = vmatprep.subr.mxu0 0.0
        %2242 = vmatpush1.msra.mxu0 0.0
        %2243 = vmatprep.subr.mxu0 0.0
        %2244 = vmatpush1.msra.mxu0 0.0
        %2245 = vmatprep.subr.mxu0 0.0
        %2246 = vmatpush1.msra.mxu0 0.0
        %2247 = vmatprep.subr.mxu0 0.0
        %2248 = vmatpush1.msra.mxu0 0.0
        %2249 = vmatprep.subr.mxu0 0.0
        %2250 = vmatpush1.msra.mxu0 0.0
        %2251 = vmatprep.subr.mxu0 0.0
        %2252 = vmatpush1.msra.mxu0 0.0
        %2253 = vmatprep.subr.mxu0 0.0
        %2254 = vmatpush1.msra.mxu0 0.0
        %2255 = vmatprep.subr.mxu0 0.0
        %2256 = vmatpush1.msra.mxu0 0.0
        %2257 = vmatprep.subr.mxu0 0.0
        %2258 = vmatpush1.msra.mxu0 0.0
        %2259 = vmatprep.subr.mxu0 0.0
        %2260 = vmatpush1.msra.mxu0 0.0
        %2261 = vmatprep.subr.mxu0 0.0
        %2262 = vmatpush1.msra.mxu0 0.0
        %2263 = vmatprep.subr.mxu0 0.0
        %2264 = vmatpush1.msra.mxu0 0.0
        %2265 = vmatprep.subr.mxu0 0.0
        %2266 = vmatpush1.msra.mxu0 0.0
        %2267 = vmatprep.subr.mxu0 0.0
        %2268 = vmatpush1.msra.mxu0 0.0
        %2269 = vmatprep.subr.mxu0 0.0
        %2270 = vmatpush1.msra.mxu0 0.0
        %2271 = vmatprep.subr.mxu0 0.0
        %2272 = vmatpush1.msra.mxu0 0.0
        %2273 = vmatprep.subr.mxu0 0.0
        %2274 = vmatpush1.msra.mxu0 0.0
        %2275 = vmatprep.subr.mxu0 0.0
        %2276 = vmatpush1.msra.mxu0 0.0
        %2277 = vmatprep.subr.mxu0 0.0
        %2278 = vmatpush1.msra.mxu0 0.0
        %2279 = vmatprep.subr.mxu0 0.0
        %2280 = vmatpush1.msra.mxu0 0.0
        %2281 = vmatprep.subr.mxu0 0.0
        %2282 = vmatpush1.msra.mxu0 0.0
        %2283 = vmatprep.subr.mxu0 0.0
        %2284 = vmatpush1.msra.mxu0 0.0
        %2285 = vmatprep.subr.mxu0 0.0
        %2286 = vmatpush1.msra.mxu0 0.0
        %2287 = vmatprep.subr.mxu0 0.0
        %2288 = vmatpush1.msra.mxu0 0.0
        %2289 = vmatprep.subr.mxu0 0.0
        %2290 = vmatpush1.msra.mxu0 0.0
        %2291 = vmatprep.subr.mxu0 0.0
        %2292 = vmatpush1.msra.mxu0 0.0
        %2293 = vmatprep.subr.mxu0 0.0
        %2294 = vmatpush1.msra.mxu0 0.0
        %2295 = vmatprep.subr.mxu0 0.0
        %2296 = vmatpush1.msra.mxu0 0.0
        %2297 = vmatprep.subr.mxu0 0.0
        %2298 = vmatpush1.msra.mxu0 0.0
        %2299 = vmatprep.subr.mxu0 0.0
        %2300 = vmatpush1.msra.mxu0 0.0
        %2301 = vmatprep.subr.mxu0 0.0
        %2302 = vmatpush1.msra.mxu0 0.0
        %2303 = vmatprep.mubr.f32.mxu0 0.0
        %2304 = vmatmul.mubr.f32.gmra.mrb[0].mxu0 %v2008
        %v2305 = vpop.f32.mrb[0].mxu0
        %v2306 = vadd.f32 0.0, %v2305
        %v2307 = vpop.f32.mrb[0].mxu0
        %v2308 = vadd.f32 0.0, %v2307
        %2309 = vdwg.mxu0
        %v2310 = vadd.f32 %v1839, %v2093
        %v2311 = vadd.f32 %v1840, %v2095
        %v2312 = vadd.f32 %v1841, %v2164
        %v2313 = vadd.f32 %v1842, %v2166
        %v2314 = vadd.f32 %v1843, %v2235
        %v2315 = vadd.f32 %v1844, %v2237
        %v2316 = vadd.f32 %v1845, %v2306
        %v2317 = vadd.f32 %v1846, %v2308
        %2318 = vrot.lane.b32.xlu0 %v1069, 127
        %v2319 = vpop.permute.xlu0 %2318
        %2320 = vrot.lane.b32.xlu0 %v1073, 127
        %v2321 = vpop.permute.xlu0 %2320
        %2322 = vrot.lane.b32.xlu0 %v1077, 127
        %v2323 = vpop.permute.xlu0 %2322
        %2324 = vrot.lane.b32.xlu0 %v1081, 127
        %v2325 = vpop.permute.xlu0 %2324
        %2326 = vrot.lane.b32.xlu0 %v1085, 127
        %v2327 = vpop.permute.xlu0 %2326
        %2328 = vrot.lane.b32.xlu0 %v1089, 127
        %v2329 = vpop.permute.xlu0 %2328
        %2330 = vrot.lane.b32.xlu0 %v1093, 127
        %v2331 = vpop.permute.xlu0 %2330
        %2332 = vrot.lane.b32.xlu0 %v1097, 127
        %v2333 = vpop.permute.xlu0 %2332
        %vm2334 = vcmask 1039360
        %v2335 = vsel %vm2334, %v2319, %v2321
        %v2336 = vsel %vm2334, %v2321, %v2323
        %v2337 = vsel %vm2334, %v2323, %v2325
        %v2338 = vsel %vm2334, %v2325, %v2327
        %v2339 = vsel %vm2334, %v2327, %v2329
        %v2340 = vsel %vm2334, %v2329, %v2331
        %v2341 = vsel %vm2334, %v2331, %v2333
        %v2351 = vmul.f32 %v730, %v2319
        %v2352 = vmul.f32 %v732, %v2335
        %v2353 = vmul.f32 %v801, %v2336
        %v2354 = vmul.f32 %v803, %v2337
        %v2355 = vmul.f32 %v872, %v2338
        %v2356 = vmul.f32 %v874, %v2339
        %v2357 = vmul.f32 %v943, %v2340
        %v2358 = vmul.f32 %v945, %v2341
        %v2359 = vmul.f32 %v1014, %v2333
        %s2360 = scalar_lea.vmem %s3, 24
        %v2361 = vld [vmem:[%s2360] sm:$0xff]
        %2371 = vrot.lane.b32.xlu0 %v2351, 1
        %v2372 = vpop.permute.xlu0 %2371
        %2373 = vrot.lane.b32.xlu0 %v2352, 1
        %v2374 = vpop.permute.xlu0 %2373
        %2375 = vrot.lane.b32.xlu0 %v2353, 1
        %v2376 = vpop.permute.xlu0 %2375
        %2377 = vrot.lane.b32.xlu0 %v2354, 1
        %v2378 = vpop.permute.xlu0 %2377
        %2379 = vrot.lane.b32.xlu0 %v2355, 1
        %v2380 = vpop.permute.xlu0 %2379
        %2381 = vrot.lane.b32.xlu0 %v2356, 1
        %v2382 = vpop.permute.xlu0 %2381
        %2383 = vrot.lane.b32.xlu0 %v2357, 1
        %v2384 = vpop.permute.xlu0 %2383
        %2385 = vrot.lane.b32.xlu0 %v2358, 1
        %v2386 = vpop.permute.xlu0 %2385
        %2387 = vrot.lane.b32.xlu0 %v2359, 1
        %v2388 = vpop.permute.xlu0 %2387
        %vm2389 = vcmask 7168
        %v2390 = vsel %vm2389, %v2372, %v2374
        %v2391 = vsel %vm2389, %v2374, %v2376
        %v2392 = vsel %vm2389, %v2376, %v2378
        %v2393 = vsel %vm2389, %v2378, %v2380
        %v2394 = vsel %vm2389, %v2380, %v2382
        %v2395 = vsel %vm2389, %v2382, %v2384
        %v2396 = vsel %vm2389, %v2384, %v2386
        %v2397 = vsel %vm2389, %v2386, %v2388
        %v2399 = vsel %vm1185, %v2361, 0
        %v2401 = vsel %vm1189, %v2390, 0
        %v2403 = vsel %vm1189, %v2391, 0
        %v2405 = vsel %vm1189, %v2392, 0
        %v2407 = vsel %vm1189, %v2393, 0
        %v2409 = vsel %vm1189, %v2394, 0
        %v2411 = vsel %vm1189, %v2395, 0
        %v2413 = vsel %vm1189, %v2396, 0
        %v2415 = vsel %vm1189, %v2397, 0
        %2417 = vmatprep.subr.mxu0 %v2403
        %2418 = vmatpush1.msra.mxu0 %v2401
        %2419 = vmatprep.subr.mxu0 0.0
        %2420 = vmatpush1.msra.mxu0 0.0
        %2421 = vmatprep.subr.mxu0 0.0
        %2422 = vmatpush1.msra.mxu0 0.0
        %2423 = vmatprep.subr.mxu0 0.0
        %2424 = vmatpush1.msra.mxu0 0.0
        %2425 = vmatprep.subr.mxu0 0.0
        %2426 = vmatpush1.msra.mxu0 0.0
        %2427 = vmatprep.subr.mxu0 0.0
        %2428 = vmatpush1.msra.mxu0 0.0
        %2429 = vmatprep.subr.mxu0 0.0
        %2430 = vmatpush1.msra.mxu0 0.0
        %2431 = vmatprep.subr.mxu0 0.0
        %2432 = vmatpush1.msra.mxu0 0.0
        %2433 = vmatprep.subr.mxu0 0.0
        %2434 = vmatpush1.msra.mxu0 0.0
        %2435 = vmatprep.subr.mxu0 0.0
        %2436 = vmatpush1.msra.mxu0 0.0
        %2437 = vmatprep.subr.mxu0 0.0
        %2438 = vmatpush1.msra.mxu0 0.0
        %2439 = vmatprep.subr.mxu0 0.0
        %2440 = vmatpush1.msra.mxu0 0.0
        %2441 = vmatprep.subr.mxu0 0.0
        %2442 = vmatpush1.msra.mxu0 0.0
        %2443 = vmatprep.subr.mxu0 0.0
        %2444 = vmatpush1.msra.mxu0 0.0
        %2445 = vmatprep.subr.mxu0 0.0
        %2446 = vmatpush1.msra.mxu0 0.0
        %2447 = vmatprep.subr.mxu0 0.0
        %2448 = vmatpush1.msra.mxu0 0.0
        %2449 = vmatprep.subr.mxu0 0.0
        %2450 = vmatpush1.msra.mxu0 0.0
        %2451 = vmatprep.subr.mxu0 0.0
        %2452 = vmatpush1.msra.mxu0 0.0
        %2453 = vmatprep.subr.mxu0 0.0
        %2454 = vmatpush1.msra.mxu0 0.0
        %2455 = vmatprep.subr.mxu0 0.0
        %2456 = vmatpush1.msra.mxu0 0.0
        %2457 = vmatprep.subr.mxu0 0.0
        %2458 = vmatpush1.msra.mxu0 0.0
        %2459 = vmatprep.subr.mxu0 0.0
        %2460 = vmatpush1.msra.mxu0 0.0
        %2461 = vmatprep.subr.mxu0 0.0
        %2462 = vmatpush1.msra.mxu0 0.0
        %2463 = vmatprep.subr.mxu0 0.0
        %2464 = vmatpush1.msra.mxu0 0.0
        %2465 = vmatprep.subr.mxu0 0.0
        %2466 = vmatpush1.msra.mxu0 0.0
        %2467 = vmatprep.subr.mxu0 0.0
        %2468 = vmatpush1.msra.mxu0 0.0
        %2469 = vmatprep.subr.mxu0 0.0
        %2470 = vmatpush1.msra.mxu0 0.0
        %2471 = vmatprep.subr.mxu0 0.0
        %2472 = vmatpush1.msra.mxu0 0.0
        %2473 = vmatprep.subr.mxu0 0.0
        %2474 = vmatpush1.msra.mxu0 0.0
        %2475 = vmatprep.subr.mxu0 0.0
        %2476 = vmatpush1.msra.mxu0 0.0
        %2477 = vmatprep.subr.mxu0 0.0
        %2478 = vmatpush1.msra.mxu0 0.0
        %2479 = vmatprep.subr.mxu0 0.0
        %2480 = vmatpush1.msra.mxu0 0.0
        %2481 = vmatprep.mubr.f32.mxu0 0.0
        %2482 = vmatmul.mubr.f32.gmra.mrb[0].mxu0 %v2399
        %v2483 = vpop.f32.mrb[0].mxu0
        %v2484 = vadd.f32 0.0, %v2483
        %v2485 = vpop.f32.mrb[0].mxu0
        %v2486 = vadd.f32 0.0, %v2485
        %2487 = vdwg.mxu0
        %2488 = vmatprep.subr.mxu0 %v2407
        %2489 = vmatpush1.msra.mxu0 %v2405
        %2490 = vmatprep.subr.mxu0 0.0
        %2491 = vmatpush1.msra.mxu0 0.0
        %2492 = vmatprep.subr.mxu0 0.0
        %2493 = vmatpush1.msra.mxu0 0.0
        %2494 = vmatprep.subr.mxu0 0.0
        %2495 = vmatpush1.msra.mxu0 0.0
        %2496 = vmatprep.subr.mxu0 0.0
        %2497 = vmatpush1.msra.mxu0 0.0
        %2498 = vmatprep.subr.mxu0 0.0
        %2499 = vmatpush1.msra.mxu0 0.0
        %2500 = vmatprep.subr.mxu0 0.0
        %2501 = vmatpush1.msra.mxu0 0.0
        %2502 = vmatprep.subr.mxu0 0.0
        %2503 = vmatpush1.msra.mxu0 0.0
        %2504 = vmatprep.subr.mxu0 0.0
        %2505 = vmatpush1.msra.mxu0 0.0
        %2506 = vmatprep.subr.mxu0 0.0
        %2507 = vmatpush1.msra.mxu0 0.0
        %2508 = vmatprep.subr.mxu0 0.0
        %2509 = vmatpush1.msra.mxu0 0.0
        %2510 = vmatprep.subr.mxu0 0.0
        %2511 = vmatpush1.msra.mxu0 0.0
        %2512 = vmatprep.subr.mxu0 0.0
        %2513 = vmatpush1.msra.mxu0 0.0
        %2514 = vmatprep.subr.mxu0 0.0
        %2515 = vmatpush1.msra.mxu0 0.0
        %2516 = vmatprep.subr.mxu0 0.0
        %2517 = vmatpush1.msra.mxu0 0.0
        %2518 = vmatprep.subr.mxu0 0.0
        %2519 = vmatpush1.msra.mxu0 0.0
        %2520 = vmatprep.subr.mxu0 0.0
        %2521 = vmatpush1.msra.mxu0 0.0
        %2522 = vmatprep.subr.mxu0 0.0
        %2523 = vmatpush1.msra.mxu0 0.0
        %2524 = vmatprep.subr.mxu0 0.0
        %2525 = vmatpush1.msra.mxu0 0.0
        %2526 = vmatprep.subr.mxu0 0.0
        %2527 = vmatpush1.msra.mxu0 0.0
        %2528 = vmatprep.subr.mxu0 0.0
        %2529 = vmatpush1.msra.mxu0 0.0
        %2530 = vmatprep.subr.mxu0 0.0
        %2531 = vmatpush1.msra.mxu0 0.0
        %2532 = vmatprep.subr.mxu0 0.0
        %2533 = vmatpush1.msra.mxu0 0.0
        %2534 = vmatprep.subr.mxu0 0.0
        %2535 = vmatpush1.msra.mxu0 0.0
        %2536 = vmatprep.subr.mxu0 0.0
        %2537 = vmatpush1.msra.mxu0 0.0
        %2538 = vmatprep.subr.mxu0 0.0
        %2539 = vmatpush1.msra.mxu0 0.0
        %2540 = vmatprep.subr.mxu0 0.0
        %2541 = vmatpush1.msra.mxu0 0.0
        %2542 = vmatprep.subr.mxu0 0.0
        %2543 = vmatpush1.msra.mxu0 0.0
        %2544 = vmatprep.subr.mxu0 0.0
        %2545 = vmatpush1.msra.mxu0 0.0
        %2546 = vmatprep.subr.mxu0 0.0
        %2547 = vmatpush1.msra.mxu0 0.0
        %2548 = vmatprep.subr.mxu0 0.0
        %2549 = vmatpush1.msra.mxu0 0.0
        %2550 = vmatprep.subr.mxu0 0.0
        %2551 = vmatpush1.msra.mxu0 0.0
        %2552 = vmatprep.mubr.f32.mxu0 0.0
        %2553 = vmatmul.mubr.f32.gmra.mrb[0].mxu0 %v2399
        %v2554 = vpop.f32.mrb[0].mxu0
        %v2555 = vadd.f32 0.0, %v2554
        %v2556 = vpop.f32.mrb[0].mxu0
        %v2557 = vadd.f32 0.0, %v2556
        %2558 = vdwg.mxu0
        %2559 = vmatprep.subr.mxu0 %v2411
        %2560 = vmatpush1.msra.mxu0 %v2409
        %2561 = vmatprep.subr.mxu0 0.0
        %2562 = vmatpush1.msra.mxu0 0.0
        %2563 = vmatprep.subr.mxu0 0.0
        %2564 = vmatpush1.msra.mxu0 0.0
        %2565 = vmatprep.subr.mxu0 0.0
        %2566 = vmatpush1.msra.mxu0 0.0
        %2567 = vmatprep.subr.mxu0 0.0
        %2568 = vmatpush1.msra.mxu0 0.0
        %2569 = vmatprep.subr.mxu0 0.0
        %2570 = vmatpush1.msra.mxu0 0.0
        %2571 = vmatprep.subr.mxu0 0.0
        %2572 = vmatpush1.msra.mxu0 0.0
        %2573 = vmatprep.subr.mxu0 0.0
        %2574 = vmatpush1.msra.mxu0 0.0
        %2575 = vmatprep.subr.mxu0 0.0
        %2576 = vmatpush1.msra.mxu0 0.0
        %2577 = vmatprep.subr.mxu0 0.0
        %2578 = vmatpush1.msra.mxu0 0.0
        %2579 = vmatprep.subr.mxu0 0.0
        %2580 = vmatpush1.msra.mxu0 0.0
        %2581 = vmatprep.subr.mxu0 0.0
        %2582 = vmatpush1.msra.mxu0 0.0
        %2583 = vmatprep.subr.mxu0 0.0
        %2584 = vmatpush1.msra.mxu0 0.0
        %2585 = vmatprep.subr.mxu0 0.0
        %2586 = vmatpush1.msra.mxu0 0.0
        %2587 = vmatprep.subr.mxu0 0.0
        %2588 = vmatpush1.msra.mxu0 0.0
        %2589 = vmatprep.subr.mxu0 0.0
        %2590 = vmatpush1.msra.mxu0 0.0
        %2591 = vmatprep.subr.mxu0 0.0
        %2592 = vmatpush1.msra.mxu0 0.0
        %2593 = vmatprep.subr.mxu0 0.0
        %2594 = vmatpush1.msra.mxu0 0.0
        %2595 = vmatprep.subr.mxu0 0.0
        %2596 = vmatpush1.msra.mxu0 0.0
        %2597 = vmatprep.subr.mxu0 0.0
        %2598 = vmatpush1.msra.mxu0 0.0
        %2599 = vmatprep.subr.mxu0 0.0
        %2600 = vmatpush1.msra.mxu0 0.0
        %2601 = vmatprep.subr.mxu0 0.0
        %2602 = vmatpush1.msra.mxu0 0.0
        %2603 = vmatprep.subr.mxu0 0.0
        %2604 = vmatpush1.msra.mxu0 0.0
        %2605 = vmatprep.subr.mxu0 0.0
        %2606 = vmatpush1.msra.mxu0 0.0
        %2607 = vmatprep.subr.mxu0 0.0
        %2608 = vmatpush1.msra.mxu0 0.0
        %2609 = vmatprep.subr.mxu0 0.0
        %2610 = vmatpush1.msra.mxu0 0.0
        %2611 = vmatprep.subr.mxu0 0.0
        %2612 = vmatpush1.msra.mxu0 0.0
        %2613 = vmatprep.subr.mxu0 0.0
        %2614 = vmatpush1.msra.mxu0 0.0
        %2615 = vmatprep.subr.mxu0 0.0
        %2616 = vmatpush1.msra.mxu0 0.0
        %2617 = vmatprep.subr.mxu0 0.0
        %2618 = vmatpush1.msra.mxu0 0.0
        %2619 = vmatprep.subr.mxu0 0.0
        %2620 = vmatpush1.msra.mxu0 0.0
        %2621 = vmatprep.subr.mxu0 0.0
        %2622 = vmatpush1.msra.mxu0 0.0
        %2623 = vmatprep.mubr.f32.mxu0 0.0
        %2624 = vmatmul.mubr.f32.gmra.mrb[0].mxu0 %v2399
        %v2625 = vpop.f32.mrb[0].mxu0
        %v2626 = vadd.f32 0.0, %v2625
        %v2627 = vpop.f32.mrb[0].mxu0
        %v2628 = vadd.f32 0.0, %v2627
        %2629 = vdwg.mxu0
        %2630 = vmatprep.subr.mxu0 %v2415
        %2631 = vmatpush1.msra.mxu0 %v2413
        %2632 = vmatprep.subr.mxu0 0.0
        %2633 = vmatpush1.msra.mxu0 0.0
        %2634 = vmatprep.subr.mxu0 0.0
        %2635 = vmatpush1.msra.mxu0 0.0
        %2636 = vmatprep.subr.mxu0 0.0
        %2637 = vmatpush1.msra.mxu0 0.0
        %2638 = vmatprep.subr.mxu0 0.0
        %2639 = vmatpush1.msra.mxu0 0.0
        %2640 = vmatprep.subr.mxu0 0.0
        %2641 = vmatpush1.msra.mxu0 0.0
        %2642 = vmatprep.subr.mxu0 0.0
        %2643 = vmatpush1.msra.mxu0 0.0
        %2644 = vmatprep.subr.mxu0 0.0
        %2645 = vmatpush1.msra.mxu0 0.0
        %2646 = vmatprep.subr.mxu0 0.0
        %2647 = vmatpush1.msra.mxu0 0.0
        %2648 = vmatprep.subr.mxu0 0.0
        %2649 = vmatpush1.msra.mxu0 0.0
        %2650 = vmatprep.subr.mxu0 0.0
        %2651 = vmatpush1.msra.mxu0 0.0
        %2652 = vmatprep.subr.mxu0 0.0
        %2653 = vmatpush1.msra.mxu0 0.0
        %2654 = vmatprep.subr.mxu0 0.0
        %2655 = vmatpush1.msra.mxu0 0.0
        %2656 = vmatprep.subr.mxu0 0.0
        %2657 = vmatpush1.msra.mxu0 0.0
        %2658 = vmatprep.subr.mxu0 0.0
        %2659 = vmatpush1.msra.mxu0 0.0
        %2660 = vmatprep.subr.mxu0 0.0
        %2661 = vmatpush1.msra.mxu0 0.0
        %2662 = vmatprep.subr.mxu0 0.0
        %2663 = vmatpush1.msra.mxu0 0.0
        %2664 = vmatprep.subr.mxu0 0.0
        %2665 = vmatpush1.msra.mxu0 0.0
        %2666 = vmatprep.subr.mxu0 0.0
        %2667 = vmatpush1.msra.mxu0 0.0
        %2668 = vmatprep.subr.mxu0 0.0
        %2669 = vmatpush1.msra.mxu0 0.0
        %2670 = vmatprep.subr.mxu0 0.0
        %2671 = vmatpush1.msra.mxu0 0.0
        %2672 = vmatprep.subr.mxu0 0.0
        %2673 = vmatpush1.msra.mxu0 0.0
        %2674 = vmatprep.subr.mxu0 0.0
        %2675 = vmatpush1.msra.mxu0 0.0
        %2676 = vmatprep.subr.mxu0 0.0
        %2677 = vmatpush1.msra.mxu0 0.0
        %2678 = vmatprep.subr.mxu0 0.0
        %2679 = vmatpush1.msra.mxu0 0.0
        %2680 = vmatprep.subr.mxu0 0.0
        %2681 = vmatpush1.msra.mxu0 0.0
        %2682 = vmatprep.subr.mxu0 0.0
        %2683 = vmatpush1.msra.mxu0 0.0
        %2684 = vmatprep.subr.mxu0 0.0
        %2685 = vmatpush1.msra.mxu0 0.0
        %2686 = vmatprep.subr.mxu0 0.0
        %2687 = vmatpush1.msra.mxu0 0.0
        %2688 = vmatprep.subr.mxu0 0.0
        %2689 = vmatpush1.msra.mxu0 0.0
        %2690 = vmatprep.subr.mxu0 0.0
        %2691 = vmatpush1.msra.mxu0 0.0
        %2692 = vmatprep.subr.mxu0 0.0
        %2693 = vmatpush1.msra.mxu0 0.0
        %2694 = vmatprep.mubr.f32.mxu0 0.0
        %2695 = vmatmul.mubr.f32.gmra.mrb[0].mxu0 %v2399
        %v2696 = vpop.f32.mrb[0].mxu0
        %v2697 = vadd.f32 0.0, %v2696
        %v2698 = vpop.f32.mrb[0].mxu0
        %v2699 = vadd.f32 0.0, %v2698
        %2700 = vdwg.mxu0
        %v2701 = vadd.f32 %v2310, %v2484
        %v2702 = vadd.f32 %v2311, %v2486
        %v2703 = vadd.f32 %v2312, %v2555
        %v2704 = vadd.f32 %v2313, %v2557
        %v2705 = vadd.f32 %v2314, %v2626
        %v2706 = vadd.f32 %v2315, %v2628
        %v2707 = vadd.f32 %v2316, %v2697
        %v2708 = vadd.f32 %v2317, %v2699
        %s2709 = scalar_lea.vmem %s3, 32
        %v2710 = vld [vmem:[%s2709] sm:$0xff]
        %v2712 = vsel %vm1185, %v2710, 0
        %v2714 = vsel %vm1189, %v732, 0
        %v2716 = vsel %vm1189, %v801, 0
        %v2718 = vsel %vm1189, %v803, 0
        %v2720 = vsel %vm1189, %v872, 0
        %v2722 = vsel %vm1189, %v874, 0
        %v2724 = vsel %vm1189, %v943, 0
        %v2726 = vsel %vm1189, %v945, 0
        %v2728 = vsel %vm1189, %v1014, 0
        %2730 = vmatprep.subr.mxu0 %v2716
        %2731 = vmatpush1.msra.mxu0 %v2714
        %2732 = vmatprep.subr.mxu0 0.0
        %2733 = vmatpush1.msra.mxu0 0.0
        %2734 = vmatprep.subr.mxu0 0.0
        %2735 = vmatpush1.msra.mxu0 0.0
        %2736 = vmatprep.subr.mxu0 0.0
        %2737 = vmatpush1.msra.mxu0 0.0
        %2738 = vmatprep.subr.mxu0 0.0
        %2739 = vmatpush1.msra.mxu0 0.0
        %2740 = vmatprep.subr.mxu0 0.0
        %2741 = vmatpush1.msra.mxu0 0.0
        %2742 = vmatprep.subr.mxu0 0.0
        %2743 = vmatpush1.msra.mxu0 0.0
        %2744 = vmatprep.subr.mxu0 0.0
        %2745 = vmatpush1.msra.mxu0 0.0
        %2746 = vmatprep.subr.mxu0 0.0
        %2747 = vmatpush1.msra.mxu0 0.0
        %2748 = vmatprep.subr.mxu0 0.0
        %2749 = vmatpush1.msra.mxu0 0.0
        %2750 = vmatprep.subr.mxu0 0.0
        %2751 = vmatpush1.msra.mxu0 0.0
        %2752 = vmatprep.subr.mxu0 0.0
        %2753 = vmatpush1.msra.mxu0 0.0
        %2754 = vmatprep.subr.mxu0 0.0
        %2755 = vmatpush1.msra.mxu0 0.0
        %2756 = vmatprep.subr.mxu0 0.0
        %2757 = vmatpush1.msra.mxu0 0.0
        %2758 = vmatprep.subr.mxu0 0.0
        %2759 = vmatpush1.msra.mxu0 0.0
        %2760 = vmatprep.subr.mxu0 0.0
        %2761 = vmatpush1.msra.mxu0 0.0
        %2762 = vmatprep.subr.mxu0 0.0
        %2763 = vmatpush1.msra.mxu0 0.0
        %2764 = vmatprep.subr.mxu0 0.0
        %2765 = vmatpush1.msra.mxu0 0.0
        %2766 = vmatprep.subr.mxu0 0.0
        %2767 = vmatpush1.msra.mxu0 0.0
        %2768 = vmatprep.subr.mxu0 0.0
        %2769 = vmatpush1.msra.mxu0 0.0
        %2770 = vmatprep.subr.mxu0 0.0
        %2771 = vmatpush1.msra.mxu0 0.0
        %2772 = vmatprep.subr.mxu0 0.0
        %2773 = vmatpush1.msra.mxu0 0.0
        %2774 = vmatprep.subr.mxu0 0.0
        %2775 = vmatpush1.msra.mxu0 0.0
        %2776 = vmatprep.subr.mxu0 0.0
        %2777 = vmatpush1.msra.mxu0 0.0
        %2778 = vmatprep.subr.mxu0 0.0
        %2779 = vmatpush1.msra.mxu0 0.0
        %2780 = vmatprep.subr.mxu0 0.0
        %2781 = vmatpush1.msra.mxu0 0.0
        %2782 = vmatprep.subr.mxu0 0.0
        %2783 = vmatpush1.msra.mxu0 0.0
        %2784 = vmatprep.subr.mxu0 0.0
        %2785 = vmatpush1.msra.mxu0 0.0
        %2786 = vmatprep.subr.mxu0 0.0
        %2787 = vmatpush1.msra.mxu0 0.0
        %2788 = vmatprep.subr.mxu0 0.0
        %2789 = vmatpush1.msra.mxu0 0.0
        %2790 = vmatprep.subr.mxu0 0.0
        %2791 = vmatpush1.msra.mxu0 0.0
        %2792 = vmatprep.subr.mxu0 0.0
        %2793 = vmatpush1.msra.mxu0 0.0
        %2794 = vmatprep.mubr.f32.mxu0 0.0
        %2795 = vmatmul.mubr.f32.gmra.mrb[0].mxu0 %v2712
        %v2796 = vpop.f32.mrb[0].mxu0
        %v2797 = vadd.f32 0.0, %v2796
        %v2798 = vpop.f32.mrb[0].mxu0
        %v2799 = vadd.f32 0.0, %v2798
        %2800 = vdwg.mxu0
        %2801 = vmatprep.subr.mxu0 %v2720
        %2802 = vmatpush1.msra.mxu0 %v2718
        %2803 = vmatprep.subr.mxu0 0.0
        %2804 = vmatpush1.msra.mxu0 0.0
        %2805 = vmatprep.subr.mxu0 0.0
        %2806 = vmatpush1.msra.mxu0 0.0
        %2807 = vmatprep.subr.mxu0 0.0
        %2808 = vmatpush1.msra.mxu0 0.0
        %2809 = vmatprep.subr.mxu0 0.0
        %2810 = vmatpush1.msra.mxu0 0.0
        %2811 = vmatprep.subr.mxu0 0.0
        %2812 = vmatpush1.msra.mxu0 0.0
        %2813 = vmatprep.subr.mxu0 0.0
        %2814 = vmatpush1.msra.mxu0 0.0
        %2815 = vmatprep.subr.mxu0 0.0
        %2816 = vmatpush1.msra.mxu0 0.0
        %2817 = vmatprep.subr.mxu0 0.0
        %2818 = vmatpush1.msra.mxu0 0.0
        %2819 = vmatprep.subr.mxu0 0.0
        %2820 = vmatpush1.msra.mxu0 0.0
        %2821 = vmatprep.subr.mxu0 0.0
        %2822 = vmatpush1.msra.mxu0 0.0
        %2823 = vmatprep.subr.mxu0 0.0
        %2824 = vmatpush1.msra.mxu0 0.0
        %2825 = vmatprep.subr.mxu0 0.0
        %2826 = vmatpush1.msra.mxu0 0.0
        %2827 = vmatprep.subr.mxu0 0.0
        %2828 = vmatpush1.msra.mxu0 0.0
        %2829 = vmatprep.subr.mxu0 0.0
        %2830 = vmatpush1.msra.mxu0 0.0
        %2831 = vmatprep.subr.mxu0 0.0
        %2832 = vmatpush1.msra.mxu0 0.0
        %2833 = vmatprep.subr.mxu0 0.0
        %2834 = vmatpush1.msra.mxu0 0.0
        %2835 = vmatprep.subr.mxu0 0.0
        %2836 = vmatpush1.msra.mxu0 0.0
        %2837 = vmatprep.subr.mxu0 0.0
        %2838 = vmatpush1.msra.mxu0 0.0
        %2839 = vmatprep.subr.mxu0 0.0
        %2840 = vmatpush1.msra.mxu0 0.0
        %2841 = vmatprep.subr.mxu0 0.0
        %2842 = vmatpush1.msra.mxu0 0.0
        %2843 = vmatprep.subr.mxu0 0.0
        %2844 = vmatpush1.msra.mxu0 0.0
        %2845 = vmatprep.subr.mxu0 0.0
        %2846 = vmatpush1.msra.mxu0 0.0
        %2847 = vmatprep.subr.mxu0 0.0
        %2848 = vmatpush1.msra.mxu0 0.0
        %2849 = vmatprep.subr.mxu0 0.0
        %2850 = vmatpush1.msra.mxu0 0.0
        %2851 = vmatprep.subr.mxu0 0.0
        %2852 = vmatpush1.msra.mxu0 0.0
        %2853 = vmatprep.subr.mxu0 0.0
        %2854 = vmatpush1.msra.mxu0 0.0
        %2855 = vmatprep.subr.mxu0 0.0
        %2856 = vmatpush1.msra.mxu0 0.0
        %2857 = vmatprep.subr.mxu0 0.0
        %2858 = vmatpush1.msra.mxu0 0.0
        %2859 = vmatprep.subr.mxu0 0.0
        %2860 = vmatpush1.msra.mxu0 0.0
        %2861 = vmatprep.subr.mxu0 0.0
        %2862 = vmatpush1.msra.mxu0 0.0
        %2863 = vmatprep.subr.mxu0 0.0
        %2864 = vmatpush1.msra.mxu0 0.0
        %2865 = vmatprep.mubr.f32.mxu0 0.0
        %2866 = vmatmul.mubr.f32.gmra.mrb[0].mxu0 %v2712
        %v2867 = vpop.f32.mrb[0].mxu0
        %v2868 = vadd.f32 0.0, %v2867
        %v2869 = vpop.f32.mrb[0].mxu0
        %v2870 = vadd.f32 0.0, %v2869
        %2871 = vdwg.mxu0
        %2872 = vmatprep.subr.mxu0 %v2724
        %2873 = vmatpush1.msra.mxu0 %v2722
        %2874 = vmatprep.subr.mxu0 0.0
        %2875 = vmatpush1.msra.mxu0 0.0
        %2876 = vmatprep.subr.mxu0 0.0
        %2877 = vmatpush1.msra.mxu0 0.0
        %2878 = vmatprep.subr.mxu0 0.0
        %2879 = vmatpush1.msra.mxu0 0.0
        %2880 = vmatprep.subr.mxu0 0.0
        %2881 = vmatpush1.msra.mxu0 0.0
        %2882 = vmatprep.subr.mxu0 0.0
        %2883 = vmatpush1.msra.mxu0 0.0
        %2884 = vmatprep.subr.mxu0 0.0
        %2885 = vmatpush1.msra.mxu0 0.0
        %2886 = vmatprep.subr.mxu0 0.0
        %2887 = vmatpush1.msra.mxu0 0.0
        %2888 = vmatprep.subr.mxu0 0.0
        %2889 = vmatpush1.msra.mxu0 0.0
        %2890 = vmatprep.subr.mxu0 0.0
        %2891 = vmatpush1.msra.mxu0 0.0
        %2892 = vmatprep.subr.mxu0 0.0
        %2893 = vmatpush1.msra.mxu0 0.0
        %2894 = vmatprep.subr.mxu0 0.0
        %2895 = vmatpush1.msra.mxu0 0.0
        %2896 = vmatprep.subr.mxu0 0.0
        %2897 = vmatpush1.msra.mxu0 0.0
        %2898 = vmatprep.subr.mxu0 0.0
        %2899 = vmatpush1.msra.mxu0 0.0
        %2900 = vmatprep.subr.mxu0 0.0
        %2901 = vmatpush1.msra.mxu0 0.0
        %2902 = vmatprep.subr.mxu0 0.0
        %2903 = vmatpush1.msra.mxu0 0.0
        %2904 = vmatprep.subr.mxu0 0.0
        %2905 = vmatpush1.msra.mxu0 0.0
        %2906 = vmatprep.subr.mxu0 0.0
        %2907 = vmatpush1.msra.mxu0 0.0
        %2908 = vmatprep.subr.mxu0 0.0
        %2909 = vmatpush1.msra.mxu0 0.0
        %2910 = vmatprep.subr.mxu0 0.0
        %2911 = vmatpush1.msra.mxu0 0.0
        %2912 = vmatprep.subr.mxu0 0.0
        %2913 = vmatpush1.msra.mxu0 0.0
        %2914 = vmatprep.subr.mxu0 0.0
        %2915 = vmatpush1.msra.mxu0 0.0
        %2916 = vmatprep.subr.mxu0 0.0
        %2917 = vmatpush1.msra.mxu0 0.0
        %2918 = vmatprep.subr.mxu0 0.0
        %2919 = vmatpush1.msra.mxu0 0.0
        %2920 = vmatprep.subr.mxu0 0.0
        %2921 = vmatpush1.msra.mxu0 0.0
        %2922 = vmatprep.subr.mxu0 0.0
        %2923 = vmatpush1.msra.mxu0 0.0
        %2924 = vmatprep.subr.mxu0 0.0
        %2925 = vmatpush1.msra.mxu0 0.0
        %2926 = vmatprep.subr.mxu0 0.0
        %2927 = vmatpush1.msra.mxu0 0.0
        %2928 = vmatprep.subr.mxu0 0.0
        %2929 = vmatpush1.msra.mxu0 0.0
        %2930 = vmatprep.subr.mxu0 0.0
        %2931 = vmatpush1.msra.mxu0 0.0
        %2932 = vmatprep.subr.mxu0 0.0
        %2933 = vmatpush1.msra.mxu0 0.0
        %2934 = vmatprep.subr.mxu0 0.0
        %2935 = vmatpush1.msra.mxu0 0.0
        %2936 = vmatprep.mubr.f32.mxu0 0.0
        %2937 = vmatmul.mubr.f32.gmra.mrb[0].mxu0 %v2712
        %v2938 = vpop.f32.mrb[0].mxu0
        %v2939 = vadd.f32 0.0, %v2938
        %v2940 = vpop.f32.mrb[0].mxu0
        %v2941 = vadd.f32 0.0, %v2940
        %2942 = vdwg.mxu0
        %2943 = vmatprep.subr.mxu0 %v2728
        %2944 = vmatpush1.msra.mxu0 %v2726
        %2945 = vmatprep.subr.mxu0 0.0
        %2946 = vmatpush1.msra.mxu0 0.0
        %2947 = vmatprep.subr.mxu0 0.0
        %2948 = vmatpush1.msra.mxu0 0.0
        %2949 = vmatprep.subr.mxu0 0.0
        %2950 = vmatpush1.msra.mxu0 0.0
        %2951 = vmatprep.subr.mxu0 0.0
        %2952 = vmatpush1.msra.mxu0 0.0
        %2953 = vmatprep.subr.mxu0 0.0
        %2954 = vmatpush1.msra.mxu0 0.0
        %2955 = vmatprep.subr.mxu0 0.0
        %2956 = vmatpush1.msra.mxu0 0.0
        %2957 = vmatprep.subr.mxu0 0.0
        %2958 = vmatpush1.msra.mxu0 0.0
        %2959 = vmatprep.subr.mxu0 0.0
        %2960 = vmatpush1.msra.mxu0 0.0
        %2961 = vmatprep.subr.mxu0 0.0
        %2962 = vmatpush1.msra.mxu0 0.0
        %2963 = vmatprep.subr.mxu0 0.0
        %2964 = vmatpush1.msra.mxu0 0.0
        %2965 = vmatprep.subr.mxu0 0.0
        %2966 = vmatpush1.msra.mxu0 0.0
        %2967 = vmatprep.subr.mxu0 0.0
        %2968 = vmatpush1.msra.mxu0 0.0
        %2969 = vmatprep.subr.mxu0 0.0
        %2970 = vmatpush1.msra.mxu0 0.0
        %2971 = vmatprep.subr.mxu0 0.0
        %2972 = vmatpush1.msra.mxu0 0.0
        %2973 = vmatprep.subr.mxu0 0.0
        %2974 = vmatpush1.msra.mxu0 0.0
        %2975 = vmatprep.subr.mxu0 0.0
        %2976 = vmatpush1.msra.mxu0 0.0
        %2977 = vmatprep.subr.mxu0 0.0
        %2978 = vmatpush1.msra.mxu0 0.0
        %2979 = vmatprep.subr.mxu0 0.0
        %2980 = vmatpush1.msra.mxu0 0.0
        %2981 = vmatprep.subr.mxu0 0.0
        %2982 = vmatpush1.msra.mxu0 0.0
        %2983 = vmatprep.subr.mxu0 0.0
        %2984 = vmatpush1.msra.mxu0 0.0
        %2985 = vmatprep.subr.mxu0 0.0
        %2986 = vmatpush1.msra.mxu0 0.0
        %2987 = vmatprep.subr.mxu0 0.0
        %2988 = vmatpush1.msra.mxu0 0.0
        %2989 = vmatprep.subr.mxu0 0.0
        %2990 = vmatpush1.msra.mxu0 0.0
        %2991 = vmatprep.subr.mxu0 0.0
        %2992 = vmatpush1.msra.mxu0 0.0
        %2993 = vmatprep.subr.mxu0 0.0
        %2994 = vmatpush1.msra.mxu0 0.0
        %2995 = vmatprep.subr.mxu0 0.0
        %2996 = vmatpush1.msra.mxu0 0.0
        %2997 = vmatprep.subr.mxu0 0.0
        %2998 = vmatpush1.msra.mxu0 0.0
        %2999 = vmatprep.subr.mxu0 0.0
        %3000 = vmatpush1.msra.mxu0 0.0
        %3001 = vmatprep.subr.mxu0 0.0
        %3002 = vmatpush1.msra.mxu0 0.0
        %3003 = vmatprep.subr.mxu0 0.0
        %3004 = vmatpush1.msra.mxu0 0.0
        %3005 = vmatprep.subr.mxu0 0.0
        %3006 = vmatpush1.msra.mxu0 0.0
        %3007 = vmatprep.mubr.f32.mxu0 0.0
        %3008 = vmatmul.mubr.f32.gmra.mrb[0].mxu0 %v2712
        %v3009 = vpop.f32.mrb[0].mxu0
        %v3010 = vadd.f32 0.0, %v3009
        %v3011 = vpop.f32.mrb[0].mxu0
        %v3012 = vadd.f32 0.0, %v3011
        %3013 = vdwg.mxu0
        %v3014 = vadd.f32 %v2701, %v2797
        %v3015 = vadd.f32 %v2702, %v2799
        %v3016 = vadd.f32 %v2703, %v2868
        %v3017 = vadd.f32 %v2704, %v2870
        %v3018 = vadd.f32 %v2705, %v2939
        %v3019 = vadd.f32 %v2706, %v2941
        %v3020 = vadd.f32 %v2707, %v3010
        %v3021 = vadd.f32 %v2708, %v3012
        %3022 = vrot.lane.b32.xlu0 %v1890, 1
        %v3023 = vpop.permute.xlu0 %3022
        %3024 = vrot.lane.b32.xlu0 %v1894, 1
        %v3025 = vpop.permute.xlu0 %3024
        %3026 = vrot.lane.b32.xlu0 %v1898, 1
        %v3027 = vpop.permute.xlu0 %3026
        %3028 = vrot.lane.b32.xlu0 %v1902, 1
        %v3029 = vpop.permute.xlu0 %3028
        %3030 = vrot.lane.b32.xlu0 %v1906, 1
        %v3031 = vpop.permute.xlu0 %3030
        %3032 = vrot.lane.b32.xlu0 %v1910, 1
        %v3033 = vpop.permute.xlu0 %3032
        %3034 = vrot.lane.b32.xlu0 %v1914, 1
        %v3035 = vpop.permute.xlu0 %3034
        %3036 = vrot.lane.b32.xlu0 %v1918, 1
        %v3037 = vpop.permute.xlu0 %3036
        %v3038 = vsel %vm2389, %v3023, %v3025
        %v3039 = vsel %vm2389, %v3025, %v3027
        %v3040 = vsel %vm2389, %v3027, %v3029
        %v3041 = vsel %vm2389, %v3029, %v3031
        %v3042 = vsel %vm2389, %v3031, %v3033
        %v3043 = vsel %vm2389, %v3033, %v3035
        %v3044 = vsel %vm2389, %v3035, %v3037
        %v3054 = vmul.f32 %v732, %v3023
        %v3055 = vmul.f32 %v801, %v3038
        %v3056 = vmul.f32 %v803, %v3039
        %v3057 = vmul.f32 %v872, %v3040
        %v3058 = vmul.f32 %v874, %v3041
        %v3059 = vmul.f32 %v943, %v3042
        %v3060 = vmul.f32 %v945, %v3043
        %v3061 = vmul.f32 %v1014, %v3044
        %v3062 = vmul.f32 %v1016, %v3037
        %s3063 = scalar_lea.vmem %s3, 40
        %v3064 = vld [vmem:[%s3063] sm:$0xff]
        %3074 = vrot.lane.b32.xlu0 %v3054, 127
        %v3075 = vpop.permute.xlu0 %3074
        %3076 = vrot.lane.b32.xlu0 %v3055, 127
        %v3077 = vpop.permute.xlu0 %3076
        %3078 = vrot.lane.b32.xlu0 %v3056, 127
        %v3079 = vpop.permute.xlu0 %3078
        %3080 = vrot.lane.b32.xlu0 %v3057, 127
        %v3081 = vpop.permute.xlu0 %3080
        %3082 = vrot.lane.b32.xlu0 %v3058, 127
        %v3083 = vpop.permute.xlu0 %3082
        %3084 = vrot.lane.b32.xlu0 %v3059, 127
        %v3085 = vpop.permute.xlu0 %3084
        %3086 = vrot.lane.b32.xlu0 %v3060, 127
        %v3087 = vpop.permute.xlu0 %3086
        %3088 = vrot.lane.b32.xlu0 %v3061, 127
        %v3089 = vpop.permute.xlu0 %3088
        %3090 = vrot.lane.b32.xlu0 %v3062, 127
        %v3091 = vpop.permute.xlu0 %3090
        %v3092 = vsel %vm2334, %v3075, %v3077
        %v3093 = vsel %vm2334, %v3077, %v3079
        %v3094 = vsel %vm2334, %v3079, %v3081
        %v3095 = vsel %vm2334, %v3081, %v3083
        %v3096 = vsel %vm2334, %v3083, %v3085
        %v3097 = vsel %vm2334, %v3085, %v3087
        %v3098 = vsel %vm2334, %v3087, %v3089
        %v3099 = vsel %vm2334, %v3089, %v3091
        %v3101 = vsel %vm1185, %v3064, 0
        %v3103 = vsel %vm1189, %v3092, 0
        %v3105 = vsel %vm1189, %v3093, 0
        %v3107 = vsel %vm1189, %v3094, 0
        %v3109 = vsel %vm1189, %v3095, 0
        %v3111 = vsel %vm1189, %v3096, 0
        %v3113 = vsel %vm1189, %v3097, 0
        %v3115 = vsel %vm1189, %v3098, 0
        %v3117 = vsel %vm1189, %v3099, 0
        %3119 = vmatprep.subr.mxu0 %v3105
        %3120 = vmatpush1.msra.mxu0 %v3103
        %3121 = vmatprep.subr.mxu0 0.0
        %3122 = vmatpush1.msra.mxu0 0.0
        %3123 = vmatprep.subr.mxu0 0.0
        %3124 = vmatpush1.msra.mxu0 0.0
        %3125 = vmatprep.subr.mxu0 0.0
        %3126 = vmatpush1.msra.mxu0 0.0
        %3127 = vmatprep.subr.mxu0 0.0
        %3128 = vmatpush1.msra.mxu0 0.0
        %3129 = vmatprep.subr.mxu0 0.0
        %3130 = vmatpush1.msra.mxu0 0.0
        %3131 = vmatprep.subr.mxu0 0.0
        %3132 = vmatpush1.msra.mxu0 0.0
        %3133 = vmatprep.subr.mxu0 0.0
        %3134 = vmatpush1.msra.mxu0 0.0
        %3135 = vmatprep.subr.mxu0 0.0
        %3136 = vmatpush1.msra.mxu0 0.0
        %3137 = vmatprep.subr.mxu0 0.0
        %3138 = vmatpush1.msra.mxu0 0.0
        %3139 = vmatprep.subr.mxu0 0.0
        %3140 = vmatpush1.msra.mxu0 0.0
        %3141 = vmatprep.subr.mxu0 0.0
        %3142 = vmatpush1.msra.mxu0 0.0
        %3143 = vmatprep.subr.mxu0 0.0
        %3144 = vmatpush1.msra.mxu0 0.0
        %3145 = vmatprep.subr.mxu0 0.0
        %3146 = vmatpush1.msra.mxu0 0.0
        %3147 = vmatprep.subr.mxu0 0.0
        %3148 = vmatpush1.msra.mxu0 0.0
        %3149 = vmatprep.subr.mxu0 0.0
        %3150 = vmatpush1.msra.mxu0 0.0
        %3151 = vmatprep.subr.mxu0 0.0
        %3152 = vmatpush1.msra.mxu0 0.0
        %3153 = vmatprep.subr.mxu0 0.0
        %3154 = vmatpush1.msra.mxu0 0.0
        %3155 = vmatprep.subr.mxu0 0.0
        %3156 = vmatpush1.msra.mxu0 0.0
        %3157 = vmatprep.subr.mxu0 0.0
        %3158 = vmatpush1.msra.mxu0 0.0
        %3159 = vmatprep.subr.mxu0 0.0
        %3160 = vmatpush1.msra.mxu0 0.0
        %3161 = vmatprep.subr.mxu0 0.0
        %3162 = vmatpush1.msra.mxu0 0.0
        %3163 = vmatprep.subr.mxu0 0.0
        %3164 = vmatpush1.msra.mxu0 0.0
        %3165 = vmatprep.subr.mxu0 0.0
        %3166 = vmatpush1.msra.mxu0 0.0
        %3167 = vmatprep.subr.mxu0 0.0
        %3168 = vmatpush1.msra.mxu0 0.0
        %3169 = vmatprep.subr.mxu0 0.0
        %3170 = vmatpush1.msra.mxu0 0.0
        %3171 = vmatprep.subr.mxu0 0.0
        %3172 = vmatpush1.msra.mxu0 0.0
        %3173 = vmatprep.subr.mxu0 0.0
        %3174 = vmatpush1.msra.mxu0 0.0
        %3175 = vmatprep.subr.mxu0 0.0
        %3176 = vmatpush1.msra.mxu0 0.0
        %3177 = vmatprep.subr.mxu0 0.0
        %3178 = vmatpush1.msra.mxu0 0.0
        %3179 = vmatprep.subr.mxu0 0.0
        %3180 = vmatpush1.msra.mxu0 0.0
        %3181 = vmatprep.subr.mxu0 0.0
        %3182 = vmatpush1.msra.mxu0 0.0
        %3183 = vmatprep.mubr.f32.mxu0 0.0
        %3184 = vmatmul.mubr.f32.gmra.mrb[0].mxu0 %v3101
        %v3185 = vpop.f32.mrb[0].mxu0
        %v3186 = vadd.f32 0.0, %v3185
        %v3187 = vpop.f32.mrb[0].mxu0
        %v3188 = vadd.f32 0.0, %v3187
        %3189 = vdwg.mxu0
        %3190 = vmatprep.subr.mxu0 %v3109
        %3191 = vmatpush1.msra.mxu0 %v3107
        %3192 = vmatprep.subr.mxu0 0.0
        %3193 = vmatpush1.msra.mxu0 0.0
        %3194 = vmatprep.subr.mxu0 0.0
        %3195 = vmatpush1.msra.mxu0 0.0
        %3196 = vmatprep.subr.mxu0 0.0
        %3197 = vmatpush1.msra.mxu0 0.0
        %3198 = vmatprep.subr.mxu0 0.0
        %3199 = vmatpush1.msra.mxu0 0.0
        %3200 = vmatprep.subr.mxu0 0.0
        %3201 = vmatpush1.msra.mxu0 0.0
        %3202 = vmatprep.subr.mxu0 0.0
        %3203 = vmatpush1.msra.mxu0 0.0
        %3204 = vmatprep.subr.mxu0 0.0
        %3205 = vmatpush1.msra.mxu0 0.0
        %3206 = vmatprep.subr.mxu0 0.0
        %3207 = vmatpush1.msra.mxu0 0.0
        %3208 = vmatprep.subr.mxu0 0.0
        %3209 = vmatpush1.msra.mxu0 0.0
        %3210 = vmatprep.subr.mxu0 0.0
        %3211 = vmatpush1.msra.mxu0 0.0
        %3212 = vmatprep.subr.mxu0 0.0
        %3213 = vmatpush1.msra.mxu0 0.0
        %3214 = vmatprep.subr.mxu0 0.0
        %3215 = vmatpush1.msra.mxu0 0.0
        %3216 = vmatprep.subr.mxu0 0.0
        %3217 = vmatpush1.msra.mxu0 0.0
        %3218 = vmatprep.subr.mxu0 0.0
        %3219 = vmatpush1.msra.mxu0 0.0
        %3220 = vmatprep.subr.mxu0 0.0
        %3221 = vmatpush1.msra.mxu0 0.0
        %3222 = vmatprep.subr.mxu0 0.0
        %3223 = vmatpush1.msra.mxu0 0.0
        %3224 = vmatprep.subr.mxu0 0.0
        %3225 = vmatpush1.msra.mxu0 0.0
        %3226 = vmatprep.subr.mxu0 0.0
        %3227 = vmatpush1.msra.mxu0 0.0
        %3228 = vmatprep.subr.mxu0 0.0
        %3229 = vmatpush1.msra.mxu0 0.0
        %3230 = vmatprep.subr.mxu0 0.0
        %3231 = vmatpush1.msra.mxu0 0.0
        %3232 = vmatprep.subr.mxu0 0.0
        %3233 = vmatpush1.msra.mxu0 0.0
        %3234 = vmatprep.subr.mxu0 0.0
        %3235 = vmatpush1.msra.mxu0 0.0
        %3236 = vmatprep.subr.mxu0 0.0
        %3237 = vmatpush1.msra.mxu0 0.0
        %3238 = vmatprep.subr.mxu0 0.0
        %3239 = vmatpush1.msra.mxu0 0.0
        %3240 = vmatprep.subr.mxu0 0.0
        %3241 = vmatpush1.msra.mxu0 0.0
        %3242 = vmatprep.subr.mxu0 0.0
        %3243 = vmatpush1.msra.mxu0 0.0
        %3244 = vmatprep.subr.mxu0 0.0
        %3245 = vmatpush1.msra.mxu0 0.0
        %3246 = vmatprep.subr.mxu0 0.0
        %3247 = vmatpush1.msra.mxu0 0.0
        %3248 = vmatprep.subr.mxu0 0.0
        %3249 = vmatpush1.msra.mxu0 0.0
        %3250 = vmatprep.subr.mxu0 0.0
        %3251 = vmatpush1.msra.mxu0 0.0
        %3252 = vmatprep.subr.mxu0 0.0
        %3253 = vmatpush1.msra.mxu0 0.0
        %3254 = vmatprep.mubr.f32.mxu0 0.0
        %3255 = vmatmul.mubr.f32.gmra.mrb[0].mxu0 %v3101
        %v3256 = vpop.f32.mrb[0].mxu0
        %v3257 = vadd.f32 0.0, %v3256
        %v3258 = vpop.f32.mrb[0].mxu0
        %v3259 = vadd.f32 0.0, %v3258
        %3260 = vdwg.mxu0
        %3261 = vmatprep.subr.mxu0 %v3113
        %3262 = vmatpush1.msra.mxu0 %v3111
        %3263 = vmatprep.subr.mxu0 0.0
        %3264 = vmatpush1.msra.mxu0 0.0
        %3265 = vmatprep.subr.mxu0 0.0
        %3266 = vmatpush1.msra.mxu0 0.0
        %3267 = vmatprep.subr.mxu0 0.0
        %3268 = vmatpush1.msra.mxu0 0.0
        %3269 = vmatprep.subr.mxu0 0.0
        %3270 = vmatpush1.msra.mxu0 0.0
        %3271 = vmatprep.subr.mxu0 0.0
        %3272 = vmatpush1.msra.mxu0 0.0
        %3273 = vmatprep.subr.mxu0 0.0
        %3274 = vmatpush1.msra.mxu0 0.0
        %3275 = vmatprep.subr.mxu0 0.0
        %3276 = vmatpush1.msra.mxu0 0.0
        %3277 = vmatprep.subr.mxu0 0.0
        %3278 = vmatpush1.msra.mxu0 0.0
        %3279 = vmatprep.subr.mxu0 0.0
        %3280 = vmatpush1.msra.mxu0 0.0
        %3281 = vmatprep.subr.mxu0 0.0
        %3282 = vmatpush1.msra.mxu0 0.0
        %3283 = vmatprep.subr.mxu0 0.0
        %3284 = vmatpush1.msra.mxu0 0.0
        %3285 = vmatprep.subr.mxu0 0.0
        %3286 = vmatpush1.msra.mxu0 0.0
        %3287 = vmatprep.subr.mxu0 0.0
        %3288 = vmatpush1.msra.mxu0 0.0
        %3289 = vmatprep.subr.mxu0 0.0
        %3290 = vmatpush1.msra.mxu0 0.0
        %3291 = vmatprep.subr.mxu0 0.0
        %3292 = vmatpush1.msra.mxu0 0.0
        %3293 = vmatprep.subr.mxu0 0.0
        %3294 = vmatpush1.msra.mxu0 0.0
        %3295 = vmatprep.subr.mxu0 0.0
        %3296 = vmatpush1.msra.mxu0 0.0
        %3297 = vmatprep.subr.mxu0 0.0
        %3298 = vmatpush1.msra.mxu0 0.0
        %3299 = vmatprep.subr.mxu0 0.0
        %3300 = vmatpush1.msra.mxu0 0.0
        %3301 = vmatprep.subr.mxu0 0.0
        %3302 = vmatpush1.msra.mxu0 0.0
        %3303 = vmatprep.subr.mxu0 0.0
        %3304 = vmatpush1.msra.mxu0 0.0
        %3305 = vmatprep.subr.mxu0 0.0
        %3306 = vmatpush1.msra.mxu0 0.0
        %3307 = vmatprep.subr.mxu0 0.0
        %3308 = vmatpush1.msra.mxu0 0.0
        %3309 = vmatprep.subr.mxu0 0.0
        %3310 = vmatpush1.msra.mxu0 0.0
        %3311 = vmatprep.subr.mxu0 0.0
        %3312 = vmatpush1.msra.mxu0 0.0
        %3313 = vmatprep.subr.mxu0 0.0
        %3314 = vmatpush1.msra.mxu0 0.0
        %3315 = vmatprep.subr.mxu0 0.0
        %3316 = vmatpush1.msra.mxu0 0.0
        %3317 = vmatprep.subr.mxu0 0.0
        %3318 = vmatpush1.msra.mxu0 0.0
        %3319 = vmatprep.subr.mxu0 0.0
        %3320 = vmatpush1.msra.mxu0 0.0
        %3321 = vmatprep.subr.mxu0 0.0
        %3322 = vmatpush1.msra.mxu0 0.0
        %3323 = vmatprep.subr.mxu0 0.0
        %3324 = vmatpush1.msra.mxu0 0.0
        %3325 = vmatprep.mubr.f32.mxu0 0.0
        %3326 = vmatmul.mubr.f32.gmra.mrb[0].mxu0 %v3101
        %v3327 = vpop.f32.mrb[0].mxu0
        %v3328 = vadd.f32 0.0, %v3327
        %v3329 = vpop.f32.mrb[0].mxu0
        %v3330 = vadd.f32 0.0, %v3329
        %3331 = vdwg.mxu0
        %3332 = vmatprep.subr.mxu0 %v3117
        %3333 = vmatpush1.msra.mxu0 %v3115
        %3334 = vmatprep.subr.mxu0 0.0
        %3335 = vmatpush1.msra.mxu0 0.0
        %3336 = vmatprep.subr.mxu0 0.0
        %3337 = vmatpush1.msra.mxu0 0.0
        %3338 = vmatprep.subr.mxu0 0.0
        %3339 = vmatpush1.msra.mxu0 0.0
        %3340 = vmatprep.subr.mxu0 0.0
        %3341 = vmatpush1.msra.mxu0 0.0
        %3342 = vmatprep.subr.mxu0 0.0
        %3343 = vmatpush1.msra.mxu0 0.0
        %3344 = vmatprep.subr.mxu0 0.0
        %3345 = vmatpush1.msra.mxu0 0.0
        %3346 = vmatprep.subr.mxu0 0.0
        %3347 = vmatpush1.msra.mxu0 0.0
        %3348 = vmatprep.subr.mxu0 0.0
        %3349 = vmatpush1.msra.mxu0 0.0
        %3350 = vmatprep.subr.mxu0 0.0
        %3351 = vmatpush1.msra.mxu0 0.0
        %3352 = vmatprep.subr.mxu0 0.0
        %3353 = vmatpush1.msra.mxu0 0.0
        %3354 = vmatprep.subr.mxu0 0.0
        %3355 = vmatpush1.msra.mxu0 0.0
        %3356 = vmatprep.subr.mxu0 0.0
        %3357 = vmatpush1.msra.mxu0 0.0
        %3358 = vmatprep.subr.mxu0 0.0
        %3359 = vmatpush1.msra.mxu0 0.0
        %3360 = vmatprep.subr.mxu0 0.0
        %3361 = vmatpush1.msra.mxu0 0.0
        %3362 = vmatprep.subr.mxu0 0.0
        %3363 = vmatpush1.msra.mxu0 0.0
        %3364 = vmatprep.subr.mxu0 0.0
        %3365 = vmatpush1.msra.mxu0 0.0
        %3366 = vmatprep.subr.mxu0 0.0
        %3367 = vmatpush1.msra.mxu0 0.0
        %3368 = vmatprep.subr.mxu0 0.0
        %3369 = vmatpush1.msra.mxu0 0.0
        %3370 = vmatprep.subr.mxu0 0.0
        %3371 = vmatpush1.msra.mxu0 0.0
        %3372 = vmatprep.subr.mxu0 0.0
        %3373 = vmatpush1.msra.mxu0 0.0
        %3374 = vmatprep.subr.mxu0 0.0
        %3375 = vmatpush1.msra.mxu0 0.0
        %3376 = vmatprep.subr.mxu0 0.0
        %3377 = vmatpush1.msra.mxu0 0.0
        %3378 = vmatprep.subr.mxu0 0.0
        %3379 = vmatpush1.msra.mxu0 0.0
        %3380 = vmatprep.subr.mxu0 0.0
        %3381 = vmatpush1.msra.mxu0 0.0
        %3382 = vmatprep.subr.mxu0 0.0
        %3383 = vmatpush1.msra.mxu0 0.0
        %3384 = vmatprep.subr.mxu0 0.0
        %3385 = vmatpush1.msra.mxu0 0.0
        %3386 = vmatprep.subr.mxu0 0.0
        %3387 = vmatpush1.msra.mxu0 0.0
        %3388 = vmatprep.subr.mxu0 0.0
        %3389 = vmatpush1.msra.mxu0 0.0
        %3390 = vmatprep.subr.mxu0 0.0
        %3391 = vmatpush1.msra.mxu0 0.0
        %3392 = vmatprep.subr.mxu0 0.0
        %3393 = vmatpush1.msra.mxu0 0.0
        %3394 = vmatprep.subr.mxu0 0.0
        %3395 = vmatpush1.msra.mxu0 0.0
        %3396 = vmatprep.mubr.f32.mxu0 0.0
        %3397 = vmatmul.mubr.f32.gmra.mrb[0].mxu0 %v3101
        %v3398 = vpop.f32.mrb[0].mxu0
        %v3399 = vadd.f32 0.0, %v3398
        %v3400 = vpop.f32.mrb[0].mxu0
        %v3401 = vadd.f32 0.0, %v3400
        %3402 = vdwg.mxu0
        %v3403 = vadd.f32 %v3014, %v3186
        %v3404 = vadd.f32 %v3015, %v3188
        %v3405 = vadd.f32 %v3016, %v3257
        %v3406 = vadd.f32 %v3017, %v3259
        %v3407 = vadd.f32 %v3018, %v3328
        %v3408 = vadd.f32 %v3019, %v3330
        %v3409 = vadd.f32 %v3020, %v3399
        %v3410 = vadd.f32 %v3021, %v3401
        %3411 = vrot.lane.b32.xlu0 %v1069, 31
        %v3412 = vpop.permute.xlu0 %3411
        %3413 = vrot.lane.b32.xlu0 %v1073, 31
        %v3414 = vpop.permute.xlu0 %3413
        %3415 = vrot.lane.b32.xlu0 %v1077, 31
        %v3416 = vpop.permute.xlu0 %3415
        %3417 = vrot.lane.b32.xlu0 %v1081, 31
        %v3418 = vpop.permute.xlu0 %3417
        %3419 = vrot.lane.b32.xlu0 %v1085, 31
        %v3420 = vpop.permute.xlu0 %3419
        %3421 = vrot.lane.b32.xlu0 %v1089, 31
        %v3422 = vpop.permute.xlu0 %3421
        %3423 = vrot.lane.b32.xlu0 %v1093, 31
        %v3424 = vpop.permute.xlu0 %3423
        %3425 = vrot.lane.b32.xlu0 %v1097, 31
        %v3426 = vpop.permute.xlu0 %3425
        %v3427 = vsel %vm1998, %v3412, %v3414
        %v3428 = vsel %vm1998, %v3414, %v3416
        %v3429 = vsel %vm1998, %v3416, %v3418
        %v3430 = vsel %vm1998, %v3418, %v3420
        %v3431 = vsel %vm1998, %v3420, %v3422
        %v3432 = vsel %vm1998, %v3422, %v3424
        %v3433 = vsel %vm1998, %v3424, %v3426
        %v3443 = vmul.f32 %v732, %v3412
        %v3444 = vmul.f32 %v801, %v3427
        %v3445 = vmul.f32 %v803, %v3428
        %v3446 = vmul.f32 %v872, %v3429
        %v3447 = vmul.f32 %v874, %v3430
        %v3448 = vmul.f32 %v943, %v3431
        %v3449 = vmul.f32 %v945, %v3432
        %v3450 = vmul.f32 %v1014, %v3433
        %v3451 = vmul.f32 %v1016, %v3426
        %s3452 = scalar_lea.vmem %s3, 48
        %v3453 = vld [vmem:[%s3452] sm:$0xff]
        %3463 = vrot.lane.b32.xlu0 %v3443, 97
        %v3464 = vpop.permute.xlu0 %3463
        %3465 = vrot.lane.b32.xlu0 %v3444, 97
        %v3466 = vpop.permute.xlu0 %3465
        %3467 = vrot.lane.b32.xlu0 %v3445, 97
        %v3468 = vpop.permute.xlu0 %3467
        %3469 = vrot.lane.b32.xlu0 %v3446, 97
        %v3470 = vpop.permute.xlu0 %3469
        %3471 = vrot.lane.b32.xlu0 %v3447, 97
        %v3472 = vpop.permute.xlu0 %3471
        %3473 = vrot.lane.b32.xlu0 %v3448, 97
        %v3474 = vpop.permute.xlu0 %3473
        %3475 = vrot.lane.b32.xlu0 %v3449, 97
        %v3476 = vpop.permute.xlu0 %3475
        %3477 = vrot.lane.b32.xlu0 %v3450, 97
        %v3478 = vpop.permute.xlu0 %3477
        %3479 = vrot.lane.b32.xlu0 %v3451, 97
        %v3480 = vpop.permute.xlu0 %3479
        %v3481 = vsel %vm1943, %v3464, %v3466
        %v3482 = vsel %vm1943, %v3466, %v3468
        %v3483 = vsel %vm1943, %v3468, %v3470
        %v3484 = vsel %vm1943, %v3470, %v3472
        %v3485 = vsel %vm1943, %v3472, %v3474
        %v3486 = vsel %vm1943, %v3474, %v3476
        %v3487 = vsel %vm1943, %v3476, %v3478
        %v3488 = vsel %vm1943, %v3478, %v3480
        %v3490 = vsel %vm1185, %v3453, 0
        %v3492 = vsel %vm1189, %v3481, 0
        %v3494 = vsel %vm1189, %v3482, 0
        %v3496 = vsel %vm1189, %v3483, 0
        %v3498 = vsel %vm1189, %v3484, 0
        %v3500 = vsel %vm1189, %v3485, 0
        %v3502 = vsel %vm1189, %v3486, 0
        %v3504 = vsel %vm1189, %v3487, 0
        %v3506 = vsel %vm1189, %v3488, 0
        %3508 = vmatprep.subr.mxu0 %v3494
        %3509 = vmatpush1.msra.mxu0 %v3492
        %3510 = vmatprep.subr.mxu0 0.0
        %3511 = vmatpush1.msra.mxu0 0.0
        %3512 = vmatprep.subr.mxu0 0.0
        %3513 = vmatpush1.msra.mxu0 0.0
        %3514 = vmatprep.subr.mxu0 0.0
        %3515 = vmatpush1.msra.mxu0 0.0
        %3516 = vmatprep.subr.mxu0 0.0
        %3517 = vmatpush1.msra.mxu0 0.0
        %3518 = vmatprep.subr.mxu0 0.0
        %3519 = vmatpush1.msra.mxu0 0.0
        %3520 = vmatprep.subr.mxu0 0.0
        %3521 = vmatpush1.msra.mxu0 0.0
        %3522 = vmatprep.subr.mxu0 0.0
        %3523 = vmatpush1.msra.mxu0 0.0
        %3524 = vmatprep.subr.mxu0 0.0
        %3525 = vmatpush1.msra.mxu0 0.0
        %3526 = vmatprep.subr.mxu0 0.0
        %3527 = vmatpush1.msra.mxu0 0.0
        %3528 = vmatprep.subr.mxu0 0.0
        %3529 = vmatpush1.msra.mxu0 0.0
        %3530 = vmatprep.subr.mxu0 0.0
        %3531 = vmatpush1.msra.mxu0 0.0
        %3532 = vmatprep.subr.mxu0 0.0
        %3533 = vmatpush1.msra.mxu0 0.0
        %3534 = vmatprep.subr.mxu0 0.0
        %3535 = vmatpush1.msra.mxu0 0.0
        %3536 = vmatprep.subr.mxu0 0.0
        %3537 = vmatpush1.msra.mxu0 0.0
        %3538 = vmatprep.subr.mxu0 0.0
        %3539 = vmatpush1.msra.mxu0 0.0
        %3540 = vmatprep.subr.mxu0 0.0
        %3541 = vmatpush1.msra.mxu0 0.0
        %3542 = vmatprep.subr.mxu0 0.0
        %3543 = vmatpush1.msra.mxu0 0.0
        %3544 = vmatprep.subr.mxu0 0.0
        %3545 = vmatpush1.msra.mxu0 0.0
        %3546 = vmatprep.subr.mxu0 0.0
        %3547 = vmatpush1.msra.mxu0 0.0
        %3548 = vmatprep.subr.mxu0 0.0
        %3549 = vmatpush1.msra.mxu0 0.0
        %3550 = vmatprep.subr.mxu0 0.0
        %3551 = vmatpush1.msra.mxu0 0.0
        %3552 = vmatprep.subr.mxu0 0.0
        %3553 = vmatpush1.msra.mxu0 0.0
        %3554 = vmatprep.subr.mxu0 0.0
        %3555 = vmatpush1.msra.mxu0 0.0
        %3556 = vmatprep.subr.mxu0 0.0
        %3557 = vmatpush1.msra.mxu0 0.0
        %3558 = vmatprep.subr.mxu0 0.0
        %3559 = vmatpush1.msra.mxu0 0.0
        %3560 = vmatprep.subr.mxu0 0.0
        %3561 = vmatpush1.msra.mxu0 0.0
        %3562 = vmatprep.subr.mxu0 0.0
        %3563 = vmatpush1.msra.mxu0 0.0
        %3564 = vmatprep.subr.mxu0 0.0
        %3565 = vmatpush1.msra.mxu0 0.0
        %3566 = vmatprep.subr.mxu0 0.0
        %3567 = vmatpush1.msra.mxu0 0.0
        %3568 = vmatprep.subr.mxu0 0.0
        %3569 = vmatpush1.msra.mxu0 0.0
        %3570 = vmatprep.subr.mxu0 0.0
        %3571 = vmatpush1.msra.mxu0 0.0
        %3572 = vmatprep.mubr.f32.mxu0 0.0
        %3573 = vmatmul.mubr.f32.gmra.mrb[0].mxu0 %v3490
        %v3574 = vpop.f32.mrb[0].mxu0
        %v3575 = vadd.f32 0.0, %v3574
        %v3576 = vpop.f32.mrb[0].mxu0
        %v3577 = vadd.f32 0.0, %v3576
        %3578 = vdwg.mxu0
        %3579 = vmatprep.subr.mxu0 %v3498
        %3580 = vmatpush1.msra.mxu0 %v3496
        %3581 = vmatprep.subr.mxu0 0.0
        %3582 = vmatpush1.msra.mxu0 0.0
        %3583 = vmatprep.subr.mxu0 0.0
        %3584 = vmatpush1.msra.mxu0 0.0
        %3585 = vmatprep.subr.mxu0 0.0
        %3586 = vmatpush1.msra.mxu0 0.0
        %3587 = vmatprep.subr.mxu0 0.0
        %3588 = vmatpush1.msra.mxu0 0.0
        %3589 = vmatprep.subr.mxu0 0.0
        %3590 = vmatpush1.msra.mxu0 0.0
        %3591 = vmatprep.subr.mxu0 0.0
        %3592 = vmatpush1.msra.mxu0 0.0
        %3593 = vmatprep.subr.mxu0 0.0
        %3594 = vmatpush1.msra.mxu0 0.0
        %3595 = vmatprep.subr.mxu0 0.0
        %3596 = vmatpush1.msra.mxu0 0.0
        %3597 = vmatprep.subr.mxu0 0.0
        %3598 = vmatpush1.msra.mxu0 0.0
        %3599 = vmatprep.subr.mxu0 0.0
        %3600 = vmatpush1.msra.mxu0 0.0
        %3601 = vmatprep.subr.mxu0 0.0
        %3602 = vmatpush1.msra.mxu0 0.0
        %3603 = vmatprep.subr.mxu0 0.0
        %3604 = vmatpush1.msra.mxu0 0.0
        %3605 = vmatprep.subr.mxu0 0.0
        %3606 = vmatpush1.msra.mxu0 0.0
        %3607 = vmatprep.subr.mxu0 0.0
        %3608 = vmatpush1.msra.mxu0 0.0
        %3609 = vmatprep.subr.mxu0 0.0
        %3610 = vmatpush1.msra.mxu0 0.0
        %3611 = vmatprep.subr.mxu0 0.0
        %3612 = vmatpush1.msra.mxu0 0.0
        %3613 = vmatprep.subr.mxu0 0.0
        %3614 = vmatpush1.msra.mxu0 0.0
        %3615 = vmatprep.subr.mxu0 0.0
        %3616 = vmatpush1.msra.mxu0 0.0
        %3617 = vmatprep.subr.mxu0 0.0
        %3618 = vmatpush1.msra.mxu0 0.0
        %3619 = vmatprep.subr.mxu0 0.0
        %3620 = vmatpush1.msra.mxu0 0.0
        %3621 = vmatprep.subr.mxu0 0.0
        %3622 = vmatpush1.msra.mxu0 0.0
        %3623 = vmatprep.subr.mxu0 0.0
        %3624 = vmatpush1.msra.mxu0 0.0
        %3625 = vmatprep.subr.mxu0 0.0
        %3626 = vmatpush1.msra.mxu0 0.0
        %3627 = vmatprep.subr.mxu0 0.0
        %3628 = vmatpush1.msra.mxu0 0.0
        %3629 = vmatprep.subr.mxu0 0.0
        %3630 = vmatpush1.msra.mxu0 0.0
        %3631 = vmatprep.subr.mxu0 0.0
        %3632 = vmatpush1.msra.mxu0 0.0
        %3633 = vmatprep.subr.mxu0 0.0
        %3634 = vmatpush1.msra.mxu0 0.0
        %3635 = vmatprep.subr.mxu0 0.0
        %3636 = vmatpush1.msra.mxu0 0.0
        %3637 = vmatprep.subr.mxu0 0.0
        %3638 = vmatpush1.msra.mxu0 0.0
        %3639 = vmatprep.subr.mxu0 0.0
        %3640 = vmatpush1.msra.mxu0 0.0
        %3641 = vmatprep.subr.mxu0 0.0
        %3642 = vmatpush1.msra.mxu0 0.0
        %3643 = vmatprep.mubr.f32.mxu0 0.0
        %3644 = vmatmul.mubr.f32.gmra.mrb[0].mxu0 %v3490
        %v3645 = vpop.f32.mrb[0].mxu0
        %v3646 = vadd.f32 0.0, %v3645
        %v3647 = vpop.f32.mrb[0].mxu0
        %v3648 = vadd.f32 0.0, %v3647
        %3649 = vdwg.mxu0
        %3650 = vmatprep.subr.mxu0 %v3502
        %3651 = vmatpush1.msra.mxu0 %v3500
        %3652 = vmatprep.subr.mxu0 0.0
        %3653 = vmatpush1.msra.mxu0 0.0
        %3654 = vmatprep.subr.mxu0 0.0
        %3655 = vmatpush1.msra.mxu0 0.0
        %3656 = vmatprep.subr.mxu0 0.0
        %3657 = vmatpush1.msra.mxu0 0.0
        %3658 = vmatprep.subr.mxu0 0.0
        %3659 = vmatpush1.msra.mxu0 0.0
        %3660 = vmatprep.subr.mxu0 0.0
        %3661 = vmatpush1.msra.mxu0 0.0
        %3662 = vmatprep.subr.mxu0 0.0
        %3663 = vmatpush1.msra.mxu0 0.0
        %3664 = vmatprep.subr.mxu0 0.0
        %3665 = vmatpush1.msra.mxu0 0.0
        %3666 = vmatprep.subr.mxu0 0.0
        %3667 = vmatpush1.msra.mxu0 0.0
        %3668 = vmatprep.subr.mxu0 0.0
        %3669 = vmatpush1.msra.mxu0 0.0
        %3670 = vmatprep.subr.mxu0 0.0
        %3671 = vmatpush1.msra.mxu0 0.0
        %3672 = vmatprep.subr.mxu0 0.0
        %3673 = vmatpush1.msra.mxu0 0.0
        %3674 = vmatprep.subr.mxu0 0.0
        %3675 = vmatpush1.msra.mxu0 0.0
        %3676 = vmatprep.subr.mxu0 0.0
        %3677 = vmatpush1.msra.mxu0 0.0
        %3678 = vmatprep.subr.mxu0 0.0
        %3679 = vmatpush1.msra.mxu0 0.0
        %3680 = vmatprep.subr.mxu0 0.0
        %3681 = vmatpush1.msra.mxu0 0.0
        %3682 = vmatprep.subr.mxu0 0.0
        %3683 = vmatpush1.msra.mxu0 0.0
        %3684 = vmatprep.subr.mxu0 0.0
        %3685 = vmatpush1.msra.mxu0 0.0
        %3686 = vmatprep.subr.mxu0 0.0
        %3687 = vmatpush1.msra.mxu0 0.0
        %3688 = vmatprep.subr.mxu0 0.0
        %3689 = vmatpush1.msra.mxu0 0.0
        %3690 = vmatprep.subr.mxu0 0.0
        %3691 = vmatpush1.msra.mxu0 0.0
        %3692 = vmatprep.subr.mxu0 0.0
        %3693 = vmatpush1.msra.mxu0 0.0
        %3694 = vmatprep.subr.mxu0 0.0
        %3695 = vmatpush1.msra.mxu0 0.0
        %3696 = vmatprep.subr.mxu0 0.0
        %3697 = vmatpush1.msra.mxu0 0.0
        %3698 = vmatprep.subr.mxu0 0.0
        %3699 = vmatpush1.msra.mxu0 0.0
        %3700 = vmatprep.subr.mxu0 0.0
        %3701 = vmatpush1.msra.mxu0 0.0
        %3702 = vmatprep.subr.mxu0 0.0
        %3703 = vmatpush1.msra.mxu0 0.0
        %3704 = vmatprep.subr.mxu0 0.0
        %3705 = vmatpush1.msra.mxu0 0.0
        %3706 = vmatprep.subr.mxu0 0.0
        %3707 = vmatpush1.msra.mxu0 0.0
        %3708 = vmatprep.subr.mxu0 0.0
        %3709 = vmatpush1.msra.mxu0 0.0
        %3710 = vmatprep.subr.mxu0 0.0
        %3711 = vmatpush1.msra.mxu0 0.0
        %3712 = vmatprep.subr.mxu0 0.0
        %3713 = vmatpush1.msra.mxu0 0.0
        %3714 = vmatprep.mubr.f32.mxu0 0.0
        %3715 = vmatmul.mubr.f32.gmra.mrb[0].mxu0 %v3490
        %v3716 = vpop.f32.mrb[0].mxu0
        %v3717 = vadd.f32 0.0, %v3716
        %v3718 = vpop.f32.mrb[0].mxu0
        %v3719 = vadd.f32 0.0, %v3718
        %3720 = vdwg.mxu0
        %3721 = vmatprep.subr.mxu0 %v3506
        %3722 = vmatpush1.msra.mxu0 %v3504
        %3723 = vmatprep.subr.mxu0 0.0
        %3724 = vmatpush1.msra.mxu0 0.0
        %3725 = vmatprep.subr.mxu0 0.0
        %3726 = vmatpush1.msra.mxu0 0.0
        %3727 = vmatprep.subr.mxu0 0.0
        %3728 = vmatpush1.msra.mxu0 0.0
        %3729 = vmatprep.subr.mxu0 0.0
        %3730 = vmatpush1.msra.mxu0 0.0
        %3731 = vmatprep.subr.mxu0 0.0
        %3732 = vmatpush1.msra.mxu0 0.0
        %3733 = vmatprep.subr.mxu0 0.0
        %3734 = vmatpush1.msra.mxu0 0.0
        %3735 = vmatprep.subr.mxu0 0.0
        %3736 = vmatpush1.msra.mxu0 0.0
        %3737 = vmatprep.subr.mxu0 0.0
        %3738 = vmatpush1.msra.mxu0 0.0
        %3739 = vmatprep.subr.mxu0 0.0
        %3740 = vmatpush1.msra.mxu0 0.0
        %3741 = vmatprep.subr.mxu0 0.0
        %3742 = vmatpush1.msra.mxu0 0.0
        %3743 = vmatprep.subr.mxu0 0.0
        %3744 = vmatpush1.msra.mxu0 0.0
        %3745 = vmatprep.subr.mxu0 0.0
        %3746 = vmatpush1.msra.mxu0 0.0
        %3747 = vmatprep.subr.mxu0 0.0
        %3748 = vmatpush1.msra.mxu0 0.0
        %3749 = vmatprep.subr.mxu0 0.0
        %3750 = vmatpush1.msra.mxu0 0.0
        %3751 = vmatprep.subr.mxu0 0.0
        %3752 = vmatpush1.msra.mxu0 0.0
        %3753 = vmatprep.subr.mxu0 0.0
        %3754 = vmatpush1.msra.mxu0 0.0
        %3755 = vmatprep.subr.mxu0 0.0
        %3756 = vmatpush1.msra.mxu0 0.0
        %3757 = vmatprep.subr.mxu0 0.0
        %3758 = vmatpush1.msra.mxu0 0.0
        %3759 = vmatprep.subr.mxu0 0.0
        %3760 = vmatpush1.msra.mxu0 0.0
        %3761 = vmatprep.subr.mxu0 0.0
        %3762 = vmatpush1.msra.mxu0 0.0
        %3763 = vmatprep.subr.mxu0 0.0
        %3764 = vmatpush1.msra.mxu0 0.0
        %3765 = vmatprep.subr.mxu0 0.0
        %3766 = vmatpush1.msra.mxu0 0.0
        %3767 = vmatprep.subr.mxu0 0.0
        %3768 = vmatpush1.msra.mxu0 0.0
        %3769 = vmatprep.subr.mxu0 0.0
        %3770 = vmatpush1.msra.mxu0 0.0
        %3771 = vmatprep.subr.mxu0 0.0
        %3772 = vmatpush1.msra.mxu0 0.0
        %3773 = vmatprep.subr.mxu0 0.0
        %3774 = vmatpush1.msra.mxu0 0.0
        %3775 = vmatprep.subr.mxu0 0.0
        %3776 = vmatpush1.msra.mxu0 0.0
        %3777 = vmatprep.subr.mxu0 0.0
        %3778 = vmatpush1.msra.mxu0 0.0
        %3779 = vmatprep.subr.mxu0 0.0
        %3780 = vmatpush1.msra.mxu0 0.0
        %3781 = vmatprep.subr.mxu0 0.0
        %3782 = vmatpush1.msra.mxu0 0.0
        %3783 = vmatprep.subr.mxu0 0.0
        %3784 = vmatpush1.msra.mxu0 0.0
        %3785 = vmatprep.mubr.f32.mxu0 0.0
        %3786 = vmatmul.mubr.f32.gmra.mrb[0].mxu0 %v3490
        %v3787 = vpop.f32.mrb[0].mxu0
        %v3788 = vadd.f32 0.0, %v3787
        %v3789 = vpop.f32.mrb[0].mxu0
        %v3790 = vadd.f32 0.0, %v3789
        %3791 = vdwg.mxu0
        %v3792 = vadd.f32 %v3403, %v3575
        %v3793 = vadd.f32 %v3404, %v3577
        %v3794 = vadd.f32 %v3405, %v3646
        %v3795 = vadd.f32 %v3406, %v3648
        %v3796 = vadd.f32 %v3407, %v3717
        %v3797 = vadd.f32 %v3408, %v3719
        %v3798 = vadd.f32 %v3409, %v3788
        %v3799 = vadd.f32 %v3410, %v3790
        %s3800 = scalar_lea.vmem %s3, 56
        %v3801 = vld [vmem:[%s3800] sm:$0xff]
        %3803 = vrot.lane.b32.xlu0 %v732, 96
        %v3804 = vpop.permute.xlu0 %3803
        %3805 = vrot.lane.b32.xlu0 %v801, 96
        %v3806 = vpop.permute.xlu0 %3805
        %3807 = vrot.lane.b32.xlu0 %v803, 96
        %v3808 = vpop.permute.xlu0 %3807
        %3809 = vrot.lane.b32.xlu0 %v872, 96
        %v3810 = vpop.permute.xlu0 %3809
        %3811 = vrot.lane.b32.xlu0 %v874, 96
        %v3812 = vpop.permute.xlu0 %3811
        %3813 = vrot.lane.b32.xlu0 %v943, 96
        %v3814 = vpop.permute.xlu0 %3813
        %3815 = vrot.lane.b32.xlu0 %v945, 96
        %v3816 = vpop.permute.xlu0 %3815
        %3817 = vrot.lane.b32.xlu0 %v1014, 96
        %v3818 = vpop.permute.xlu0 %3817
        %3819 = vrot.lane.b32.xlu0 %v1016, 96
        %v3820 = vpop.permute.xlu0 %3819
        %vm3821 = vcmask 785408
        %v3822 = vsel %vm3821, %v3804, %v3806
        %v3823 = vsel %vm3821, %v3806, %v3808
        %v3824 = vsel %vm3821, %v3808, %v3810
        %v3825 = vsel %vm3821, %v3810, %v3812
        %v3826 = vsel %vm3821, %v3812, %v3814
        %v3827 = vsel %vm3821, %v3814, %v3816
        %v3828 = vsel %vm3821, %v3816, %v3818
        %v3829 = vsel %vm3821, %v3818, %v3820
        %v3831 = vsel %vm1185, %v3801, 0
        %v3833 = vsel %vm1189, %v3822, 0
        %v3835 = vsel %vm1189, %v3823, 0
        %v3837 = vsel %vm1189, %v3824, 0
        %v3839 = vsel %vm1189, %v3825, 0
        %v3841 = vsel %vm1189, %v3826, 0
        %v3843 = vsel %vm1189, %v3827, 0
        %v3845 = vsel %vm1189, %v3828, 0
        %v3847 = vsel %vm1189, %v3829, 0
        %3849 = vmatprep.subr.mxu0 %v3835
        %3850 = vmatpush1.msra.mxu0 %v3833
        %3851 = vmatprep.subr.mxu0 0.0
        %3852 = vmatpush1.msra.mxu0 0.0
        %3853 = vmatprep.subr.mxu0 0.0
        %3854 = vmatpush1.msra.mxu0 0.0
        %3855 = vmatprep.subr.mxu0 0.0
        %3856 = vmatpush1.msra.mxu0 0.0
        %3857 = vmatprep.subr.mxu0 0.0
        %3858 = vmatpush1.msra.mxu0 0.0
        %3859 = vmatprep.subr.mxu0 0.0
        %3860 = vmatpush1.msra.mxu0 0.0
        %3861 = vmatprep.subr.mxu0 0.0
        %3862 = vmatpush1.msra.mxu0 0.0
        %3863 = vmatprep.subr.mxu0 0.0
        %3864 = vmatpush1.msra.mxu0 0.0
        %3865 = vmatprep.subr.mxu0 0.0
        %3866 = vmatpush1.msra.mxu0 0.0
        %3867 = vmatprep.subr.mxu0 0.0
        %3868 = vmatpush1.msra.mxu0 0.0
        %3869 = vmatprep.subr.mxu0 0.0
        %3870 = vmatpush1.msra.mxu0 0.0
        %3871 = vmatprep.subr.mxu0 0.0
        %3872 = vmatpush1.msra.mxu0 0.0
        %3873 = vmatprep.subr.mxu0 0.0
        %3874 = vmatpush1.msra.mxu0 0.0
        %3875 = vmatprep.subr.mxu0 0.0
        %3876 = vmatpush1.msra.mxu0 0.0
        %3877 = vmatprep.subr.mxu0 0.0
        %3878 = vmatpush1.msra.mxu0 0.0
        %3879 = vmatprep.subr.mxu0 0.0
        %3880 = vmatpush1.msra.mxu0 0.0
        %3881 = vmatprep.subr.mxu0 0.0
        %3882 = vmatpush1.msra.mxu0 0.0
        %3883 = vmatprep.subr.mxu0 0.0
        %3884 = vmatpush1.msra.mxu0 0.0
        %3885 = vmatprep.subr.mxu0 0.0
        %3886 = vmatpush1.msra.mxu0 0.0
        %3887 = vmatprep.subr.mxu0 0.0
        %3888 = vmatpush1.msra.mxu0 0.0
        %3889 = vmatprep.subr.mxu0 0.0
        %3890 = vmatpush1.msra.mxu0 0.0
        %3891 = vmatprep.subr.mxu0 0.0
        %3892 = vmatpush1.msra.mxu0 0.0
        %3893 = vmatprep.subr.mxu0 0.0
        %3894 = vmatpush1.msra.mxu0 0.0
        %3895 = vmatprep.subr.mxu0 0.0
        %3896 = vmatpush1.msra.mxu0 0.0
        %3897 = vmatprep.subr.mxu0 0.0
        %3898 = vmatpush1.msra.mxu0 0.0
        %3899 = vmatprep.subr.mxu0 0.0
        %3900 = vmatpush1.msra.mxu0 0.0
        %3901 = vmatprep.subr.mxu0 0.0
        %3902 = vmatpush1.msra.mxu0 0.0
        %3903 = vmatprep.subr.mxu0 0.0
        %3904 = vmatpush1.msra.mxu0 0.0
        %3905 = vmatprep.subr.mxu0 0.0
        %3906 = vmatpush1.msra.mxu0 0.0
        %3907 = vmatprep.subr.mxu0 0.0
        %3908 = vmatpush1.msra.mxu0 0.0
        %3909 = vmatprep.subr.mxu0 0.0
        %3910 = vmatpush1.msra.mxu0 0.0
        %3911 = vmatprep.subr.mxu0 0.0
        %3912 = vmatpush1.msra.mxu0 0.0
        %3913 = vmatprep.mubr.f32.mxu0 0.0
        %3914 = vmatmul.mubr.f32.gmra.mrb[0].mxu0 %v3831
        %v3915 = vpop.f32.mrb[0].mxu0
        %v3916 = vadd.f32 0.0, %v3915
        %v3917 = vpop.f32.mrb[0].mxu0
        %v3918 = vadd.f32 0.0, %v3917
        %3919 = vdwg.mxu0
        %3920 = vmatprep.subr.mxu0 %v3839
        %3921 = vmatpush1.msra.mxu0 %v3837
        %3922 = vmatprep.subr.mxu0 0.0
        %3923 = vmatpush1.msra.mxu0 0.0
        %3924 = vmatprep.subr.mxu0 0.0
        %3925 = vmatpush1.msra.mxu0 0.0
        %3926 = vmatprep.subr.mxu0 0.0
        %3927 = vmatpush1.msra.mxu0 0.0
        %3928 = vmatprep.subr.mxu0 0.0
        %3929 = vmatpush1.msra.mxu0 0.0
        %3930 = vmatprep.subr.mxu0 0.0
        %3931 = vmatpush1.msra.mxu0 0.0
        %3932 = vmatprep.subr.mxu0 0.0
        %3933 = vmatpush1.msra.mxu0 0.0
        %3934 = vmatprep.subr.mxu0 0.0
        %3935 = vmatpush1.msra.mxu0 0.0
        %3936 = vmatprep.subr.mxu0 0.0
        %3937 = vmatpush1.msra.mxu0 0.0
        %3938 = vmatprep.subr.mxu0 0.0
        %3939 = vmatpush1.msra.mxu0 0.0
        %3940 = vmatprep.subr.mxu0 0.0
        %3941 = vmatpush1.msra.mxu0 0.0
        %3942 = vmatprep.subr.mxu0 0.0
        %3943 = vmatpush1.msra.mxu0 0.0
        %3944 = vmatprep.subr.mxu0 0.0
        %3945 = vmatpush1.msra.mxu0 0.0
        %3946 = vmatprep.subr.mxu0 0.0
        %3947 = vmatpush1.msra.mxu0 0.0
        %3948 = vmatprep.subr.mxu0 0.0
        %3949 = vmatpush1.msra.mxu0 0.0
        %3950 = vmatprep.subr.mxu0 0.0
        %3951 = vmatpush1.msra.mxu0 0.0
        %3952 = vmatprep.subr.mxu0 0.0
        %3953 = vmatpush1.msra.mxu0 0.0
        %3954 = vmatprep.subr.mxu0 0.0
        %3955 = vmatpush1.msra.mxu0 0.0
        %3956 = vmatprep.subr.mxu0 0.0
        %3957 = vmatpush1.msra.mxu0 0.0
        %3958 = vmatprep.subr.mxu0 0.0
        %3959 = vmatpush1.msra.mxu0 0.0
        %3960 = vmatprep.subr.mxu0 0.0
        %3961 = vmatpush1.msra.mxu0 0.0
        %3962 = vmatprep.subr.mxu0 0.0
        %3963 = vmatpush1.msra.mxu0 0.0
        %3964 = vmatprep.subr.mxu0 0.0
        %3965 = vmatpush1.msra.mxu0 0.0
        %3966 = vmatprep.subr.mxu0 0.0
        %3967 = vmatpush1.msra.mxu0 0.0
        %3968 = vmatprep.subr.mxu0 0.0
        %3969 = vmatpush1.msra.mxu0 0.0
        %3970 = vmatprep.subr.mxu0 0.0
        %3971 = vmatpush1.msra.mxu0 0.0
        %3972 = vmatprep.subr.mxu0 0.0
        %3973 = vmatpush1.msra.mxu0 0.0
        %3974 = vmatprep.subr.mxu0 0.0
        %3975 = vmatpush1.msra.mxu0 0.0
        %3976 = vmatprep.subr.mxu0 0.0
        %3977 = vmatpush1.msra.mxu0 0.0
        %3978 = vmatprep.subr.mxu0 0.0
        %3979 = vmatpush1.msra.mxu0 0.0
        %3980 = vmatprep.subr.mxu0 0.0
        %3981 = vmatpush1.msra.mxu0 0.0
        %3982 = vmatprep.subr.mxu0 0.0
        %3983 = vmatpush1.msra.mxu0 0.0
        %3984 = vmatprep.mubr.f32.mxu0 0.0
        %3985 = vmatmul.mubr.f32.gmra.mrb[0].mxu0 %v3831
        %v3986 = vpop.f32.mrb[0].mxu0
        %v3987 = vadd.f32 0.0, %v3986
        %v3988 = vpop.f32.mrb[0].mxu0
        %v3989 = vadd.f32 0.0, %v3988
        %3990 = vdwg.mxu0
        %3991 = vmatprep.subr.mxu0 %v3843
        %3992 = vmatpush1.msra.mxu0 %v3841
        %3993 = vmatprep.subr.mxu0 0.0
        %3994 = vmatpush1.msra.mxu0 0.0
        %3995 = vmatprep.subr.mxu0 0.0
        %3996 = vmatpush1.msra.mxu0 0.0
        %3997 = vmatprep.subr.mxu0 0.0
        %3998 = vmatpush1.msra.mxu0 0.0
        %3999 = vmatprep.subr.mxu0 0.0
        %4000 = vmatpush1.msra.mxu0 0.0
        %4001 = vmatprep.subr.mxu0 0.0
        %4002 = vmatpush1.msra.mxu0 0.0
        %4003 = vmatprep.subr.mxu0 0.0
        %4004 = vmatpush1.msra.mxu0 0.0
        %4005 = vmatprep.subr.mxu0 0.0
        %4006 = vmatpush1.msra.mxu0 0.0
        %4007 = vmatprep.subr.mxu0 0.0
        %4008 = vmatpush1.msra.mxu0 0.0
        %4009 = vmatprep.subr.mxu0 0.0
        %4010 = vmatpush1.msra.mxu0 0.0
        %4011 = vmatprep.subr.mxu0 0.0
        %4012 = vmatpush1.msra.mxu0 0.0
        %4013 = vmatprep.subr.mxu0 0.0
        %4014 = vmatpush1.msra.mxu0 0.0
        %4015 = vmatprep.subr.mxu0 0.0
        %4016 = vmatpush1.msra.mxu0 0.0
        %4017 = vmatprep.subr.mxu0 0.0
        %4018 = vmatpush1.msra.mxu0 0.0
        %4019 = vmatprep.subr.mxu0 0.0
        %4020 = vmatpush1.msra.mxu0 0.0
        %4021 = vmatprep.subr.mxu0 0.0
        %4022 = vmatpush1.msra.mxu0 0.0
        %4023 = vmatprep.subr.mxu0 0.0
        %4024 = vmatpush1.msra.mxu0 0.0
        %4025 = vmatprep.subr.mxu0 0.0
        %4026 = vmatpush1.msra.mxu0 0.0
        %4027 = vmatprep.subr.mxu0 0.0
        %4028 = vmatpush1.msra.mxu0 0.0
        %4029 = vmatprep.subr.mxu0 0.0
        %4030 = vmatpush1.msra.mxu0 0.0
        %4031 = vmatprep.subr.mxu0 0.0
        %4032 = vmatpush1.msra.mxu0 0.0
        %4033 = vmatprep.subr.mxu0 0.0
        %4034 = vmatpush1.msra.mxu0 0.0
        %4035 = vmatprep.subr.mxu0 0.0
        %4036 = vmatpush1.msra.mxu0 0.0
        %4037 = vmatprep.subr.mxu0 0.0
        %4038 = vmatpush1.msra.mxu0 0.0
        %4039 = vmatprep.subr.mxu0 0.0
        %4040 = vmatpush1.msra.mxu0 0.0
        %4041 = vmatprep.subr.mxu0 0.0
        %4042 = vmatpush1.msra.mxu0 0.0
        %4043 = vmatprep.subr.mxu0 0.0
        %4044 = vmatpush1.msra.mxu0 0.0
        %4045 = vmatprep.subr.mxu0 0.0
        %4046 = vmatpush1.msra.mxu0 0.0
        %4047 = vmatprep.subr.mxu0 0.0
        %4048 = vmatpush1.msra.mxu0 0.0
        %4049 = vmatprep.subr.mxu0 0.0
        %4050 = vmatpush1.msra.mxu0 0.0
        %4051 = vmatprep.subr.mxu0 0.0
        %4052 = vmatpush1.msra.mxu0 0.0
        %4053 = vmatprep.subr.mxu0 0.0
        %4054 = vmatpush1.msra.mxu0 0.0
        %4055 = vmatprep.mubr.f32.mxu0 0.0
        %4056 = vmatmul.mubr.f32.gmra.mrb[0].mxu0 %v3831
        %v4057 = vpop.f32.mrb[0].mxu0
        %v4058 = vadd.f32 0.0, %v4057
        %v4059 = vpop.f32.mrb[0].mxu0
        %v4060 = vadd.f32 0.0, %v4059
        %4061 = vdwg.mxu0
        %4062 = vmatprep.subr.mxu0 %v3847
        %4063 = vmatpush1.msra.mxu0 %v3845
        %4064 = vmatprep.subr.mxu0 0.0
        %4065 = vmatpush1.msra.mxu0 0.0
        %4066 = vmatprep.subr.mxu0 0.0
        %4067 = vmatpush1.msra.mxu0 0.0
        %4068 = vmatprep.subr.mxu0 0.0
        %4069 = vmatpush1.msra.mxu0 0.0
        %4070 = vmatprep.subr.mxu0 0.0
        %4071 = vmatpush1.msra.mxu0 0.0
        %4072 = vmatprep.subr.mxu0 0.0
        %4073 = vmatpush1.msra.mxu0 0.0
        %4074 = vmatprep.subr.mxu0 0.0
        %4075 = vmatpush1.msra.mxu0 0.0
        %4076 = vmatprep.subr.mxu0 0.0
        %4077 = vmatpush1.msra.mxu0 0.0
        %4078 = vmatprep.subr.mxu0 0.0
        %4079 = vmatpush1.msra.mxu0 0.0
        %4080 = vmatprep.subr.mxu0 0.0
        %4081 = vmatpush1.msra.mxu0 0.0
        %4082 = vmatprep.subr.mxu0 0.0
        %4083 = vmatpush1.msra.mxu0 0.0
        %4084 = vmatprep.subr.mxu0 0.0
        %4085 = vmatpush1.msra.mxu0 0.0
        %4086 = vmatprep.subr.mxu0 0.0
        %4087 = vmatpush1.msra.mxu0 0.0
        %4088 = vmatprep.subr.mxu0 0.0
        %4089 = vmatpush1.msra.mxu0 0.0
        %4090 = vmatprep.subr.mxu0 0.0
        %4091 = vmatpush1.msra.mxu0 0.0
        %4092 = vmatprep.subr.mxu0 0.0
        %4093 = vmatpush1.msra.mxu0 0.0
        %4094 = vmatprep.subr.mxu0 0.0
        %4095 = vmatpush1.msra.mxu0 0.0
        %4096 = vmatprep.subr.mxu0 0.0
        %4097 = vmatpush1.msra.mxu0 0.0
        %4098 = vmatprep.subr.mxu0 0.0
        %4099 = vmatpush1.msra.mxu0 0.0
        %4100 = vmatprep.subr.mxu0 0.0
        %4101 = vmatpush1.msra.mxu0 0.0
        %4102 = vmatprep.subr.mxu0 0.0
        %4103 = vmatpush1.msra.mxu0 0.0
        %4104 = vmatprep.subr.mxu0 0.0
        %4105 = vmatpush1.msra.mxu0 0.0
        %4106 = vmatprep.subr.mxu0 0.0
        %4107 = vmatpush1.msra.mxu0 0.0
        %4108 = vmatprep.subr.mxu0 0.0
        %4109 = vmatpush1.msra.mxu0 0.0
        %4110 = vmatprep.subr.mxu0 0.0
        %4111 = vmatpush1.msra.mxu0 0.0
        %4112 = vmatprep.subr.mxu0 0.0
        %4113 = vmatpush1.msra.mxu0 0.0
        %4114 = vmatprep.subr.mxu0 0.0
        %4115 = vmatpush1.msra.mxu0 0.0
        %4116 = vmatprep.subr.mxu0 0.0
        %4117 = vmatpush1.msra.mxu0 0.0
        %4118 = vmatprep.subr.mxu0 0.0
        %4119 = vmatpush1.msra.mxu0 0.0
        %4120 = vmatprep.subr.mxu0 0.0
        %4121 = vmatpush1.msra.mxu0 0.0
        %4122 = vmatprep.subr.mxu0 0.0
        %4123 = vmatpush1.msra.mxu0 0.0
        %4124 = vmatprep.subr.mxu0 0.0
        %4125 = vmatpush1.msra.mxu0 0.0
        %4126 = vmatprep.mubr.f32.mxu0 0.0
        %4127 = vmatmul.mubr.f32.gmra.mrb[0].mxu0 %v3831
        %v4128 = vpop.f32.mrb[0].mxu0
        %v4129 = vadd.f32 0.0, %v4128
        %v4130 = vpop.f32.mrb[0].mxu0
        %v4131 = vadd.f32 0.0, %v4130
        %4132 = vdwg.mxu0
        %v4133 = vadd.f32 %v3792, %v3916
        %v4134 = vadd.f32 %v3793, %v3918
        %v4135 = vadd.f32 %v3794, %v3987
        %v4136 = vadd.f32 %v3795, %v3989
        %v4137 = vadd.f32 %v3796, %v4058
        %v4138 = vadd.f32 %v3797, %v4060
        %v4139 = vadd.f32 %v3798, %v4129
        %v4140 = vadd.f32 %v3799, %v4131
        %4141 = vrot.lane.b32.xlu0 %v1890, 33
        %v4142 = vpop.permute.xlu0 %4141
        %4143 = vrot.lane.b32.xlu0 %v1894, 33
        %v4144 = vpop.permute.xlu0 %4143
        %4145 = vrot.lane.b32.xlu0 %v1898, 33
        %v4146 = vpop.permute.xlu0 %4145
        %4147 = vrot.lane.b32.xlu0 %v1902, 33
        %v4148 = vpop.permute.xlu0 %4147
        %4149 = vrot.lane.b32.xlu0 %v1906, 33
        %v4150 = vpop.permute.xlu0 %4149
        %4151 = vrot.lane.b32.xlu0 %v1910, 33
        %v4152 = vpop.permute.xlu0 %4151
        %4153 = vrot.lane.b32.xlu0 %v1914, 33
        %v4154 = vpop.permute.xlu0 %4153
        %4155 = vrot.lane.b32.xlu0 %v1918, 33
        %v4156 = vpop.permute.xlu0 %4155
        %v4157 = vsel %vm1176, %v4142, %v4144
        %v4158 = vsel %vm1176, %v4144, %v4146
        %v4159 = vsel %vm1176, %v4146, %v4148
        %v4160 = vsel %vm1176, %v4148, %v4150
        %v4161 = vsel %vm1176, %v4150, %v4152
        %v4162 = vsel %vm1176, %v4152, %v4154
        %v4163 = vsel %vm1176, %v4154, %v4156
        %v4173 = vmul.f32 %v732, %v4142
        %v4174 = vmul.f32 %v801, %v4157
        %v4175 = vmul.f32 %v803, %v4158
        %v4176 = vmul.f32 %v872, %v4159
        %v4177 = vmul.f32 %v874, %v4160
        %v4178 = vmul.f32 %v943, %v4161
        %v4179 = vmul.f32 %v945, %v4162
        %v4180 = vmul.f32 %v1014, %v4163
        %v4181 = vmul.f32 %v1016, %v4156
        %s4182 = scalar_lea.vmem %s3, 64
        %v4183 = vld [vmem:[%s4182] sm:$0xff]
        %4193 = vrot.lane.b32.xlu0 %v4173, 95
        %v4194 = vpop.permute.xlu0 %4193
        %4195 = vrot.lane.b32.xlu0 %v4174, 95
        %v4196 = vpop.permute.xlu0 %4195
        %4197 = vrot.lane.b32.xlu0 %v4175, 95
        %v4198 = vpop.permute.xlu0 %4197
        %4199 = vrot.lane.b32.xlu0 %v4176, 95
        %v4200 = vpop.permute.xlu0 %4199
        %4201 = vrot.lane.b32.xlu0 %v4177, 95
        %v4202 = vpop.permute.xlu0 %4201
        %4203 = vrot.lane.b32.xlu0 %v4178, 95
        %v4204 = vpop.permute.xlu0 %4203
        %4205 = vrot.lane.b32.xlu0 %v4179, 95
        %v4206 = vpop.permute.xlu0 %4205
        %4207 = vrot.lane.b32.xlu0 %v4180, 95
        %v4208 = vpop.permute.xlu0 %4207
        %4209 = vrot.lane.b32.xlu0 %v4181, 95
        %v4210 = vpop.permute.xlu0 %4209
        %v4211 = vsel %vm1122, %v4194, %v4196
        %v4212 = vsel %vm1122, %v4196, %v4198
        %v4213 = vsel %vm1122, %v4198, %v4200
        %v4214 = vsel %vm1122, %v4200, %v4202
        %v4215 = vsel %vm1122, %v4202, %v4204
        %v4216 = vsel %vm1122, %v4204, %v4206
        %v4217 = vsel %vm1122, %v4206, %v4208
        %v4218 = vsel %vm1122, %v4208, %v4210
        %v4220 = vsel %vm1185, %v4183, 0
        %v4222 = vsel %vm1189, %v4211, 0
        %v4224 = vsel %vm1189, %v4212, 0
        %v4226 = vsel %vm1189, %v4213, 0
        %v4228 = vsel %vm1189, %v4214, 0
        %v4230 = vsel %vm1189, %v4215, 0
        %v4232 = vsel %vm1189, %v4216, 0
        %v4234 = vsel %vm1189, %v4217, 0
        %v4236 = vsel %vm1189, %v4218, 0
        %4238 = vmatprep.subr.mxu0 %v4224
        %4239 = vmatpush1.msra.mxu0 %v4222
        %4240 = vmatprep.subr.mxu0 0.0
        %4241 = vmatpush1.msra.mxu0 0.0
        %4242 = vmatprep.subr.mxu0 0.0
        %4243 = vmatpush1.msra.mxu0 0.0
        %4244 = vmatprep.subr.mxu0 0.0
        %4245 = vmatpush1.msra.mxu0 0.0
        %4246 = vmatprep.subr.mxu0 0.0
        %4247 = vmatpush1.msra.mxu0 0.0
        %4248 = vmatprep.subr.mxu0 0.0
        %4249 = vmatpush1.msra.mxu0 0.0
        %4250 = vmatprep.subr.mxu0 0.0
        %4251 = vmatpush1.msra.mxu0 0.0
        %4252 = vmatprep.subr.mxu0 0.0
        %4253 = vmatpush1.msra.mxu0 0.0
        %4254 = vmatprep.subr.mxu0 0.0
        %4255 = vmatpush1.msra.mxu0 0.0
        %4256 = vmatprep.subr.mxu0 0.0
        %4257 = vmatpush1.msra.mxu0 0.0
        %4258 = vmatprep.subr.mxu0 0.0
        %4259 = vmatpush1.msra.mxu0 0.0
        %4260 = vmatprep.subr.mxu0 0.0
        %4261 = vmatpush1.msra.mxu0 0.0
        %4262 = vmatprep.subr.mxu0 0.0
        %4263 = vmatpush1.msra.mxu0 0.0
        %4264 = vmatprep.subr.mxu0 0.0
        %4265 = vmatpush1.msra.mxu0 0.0
        %4266 = vmatprep.subr.mxu0 0.0
        %4267 = vmatpush1.msra.mxu0 0.0
        %4268 = vmatprep.subr.mxu0 0.0
        %4269 = vmatpush1.msra.mxu0 0.0
        %4270 = vmatprep.subr.mxu0 0.0
        %4271 = vmatpush1.msra.mxu0 0.0
        %4272 = vmatprep.subr.mxu0 0.0
        %4273 = vmatpush1.msra.mxu0 0.0
        %4274 = vmatprep.subr.mxu0 0.0
        %4275 = vmatpush1.msra.mxu0 0.0
        %4276 = vmatprep.subr.mxu0 0.0
        %4277 = vmatpush1.msra.mxu0 0.0
        %4278 = vmatprep.subr.mxu0 0.0
        %4279 = vmatpush1.msra.mxu0 0.0
        %4280 = vmatprep.subr.mxu0 0.0
        %4281 = vmatpush1.msra.mxu0 0.0
        %4282 = vmatprep.subr.mxu0 0.0
        %4283 = vmatpush1.msra.mxu0 0.0
        %4284 = vmatprep.subr.mxu0 0.0
        %4285 = vmatpush1.msra.mxu0 0.0
        %4286 = vmatprep.subr.mxu0 0.0
        %4287 = vmatpush1.msra.mxu0 0.0
        %4288 = vmatprep.subr.mxu0 0.0
        %4289 = vmatpush1.msra.mxu0 0.0
        %4290 = vmatprep.subr.mxu0 0.0
        %4291 = vmatpush1.msra.mxu0 0.0
        %4292 = vmatprep.subr.mxu0 0.0
        %4293 = vmatpush1.msra.mxu0 0.0
        %4294 = vmatprep.subr.mxu0 0.0
        %4295 = vmatpush1.msra.mxu0 0.0
        %4296 = vmatprep.subr.mxu0 0.0
        %4297 = vmatpush1.msra.mxu0 0.0
        %4298 = vmatprep.subr.mxu0 0.0
        %4299 = vmatpush1.msra.mxu0 0.0
        %4300 = vmatprep.subr.mxu0 0.0
        %4301 = vmatpush1.msra.mxu0 0.0
        %4302 = vmatprep.mubr.f32.mxu0 0.0
        %4303 = vmatmul.mubr.f32.gmra.mrb[0].mxu0 %v4220
        %v4304 = vpop.f32.mrb[0].mxu0
        %v4305 = vadd.f32 0.0, %v4304
        %v4306 = vpop.f32.mrb[0].mxu0
        %v4307 = vadd.f32 0.0, %v4306
        %4308 = vdwg.mxu0
        %4309 = vmatprep.subr.mxu0 %v4228
        %4310 = vmatpush1.msra.mxu0 %v4226
        %4311 = vmatprep.subr.mxu0 0.0
        %4312 = vmatpush1.msra.mxu0 0.0
        %4313 = vmatprep.subr.mxu0 0.0
        %4314 = vmatpush1.msra.mxu0 0.0
        %4315 = vmatprep.subr.mxu0 0.0
        %4316 = vmatpush1.msra.mxu0 0.0
        %4317 = vmatprep.subr.mxu0 0.0
        %4318 = vmatpush1.msra.mxu0 0.0
        %4319 = vmatprep.subr.mxu0 0.0
        %4320 = vmatpush1.msra.mxu0 0.0
        %4321 = vmatprep.subr.mxu0 0.0
        %4322 = vmatpush1.msra.mxu0 0.0
        %4323 = vmatprep.subr.mxu0 0.0
        %4324 = vmatpush1.msra.mxu0 0.0
        %4325 = vmatprep.subr.mxu0 0.0
        %4326 = vmatpush1.msra.mxu0 0.0
        %4327 = vmatprep.subr.mxu0 0.0
        %4328 = vmatpush1.msra.mxu0 0.0
        %4329 = vmatprep.subr.mxu0 0.0
        %4330 = vmatpush1.msra.mxu0 0.0
        %4331 = vmatprep.subr.mxu0 0.0
        %4332 = vmatpush1.msra.mxu0 0.0
        %4333 = vmatprep.subr.mxu0 0.0
        %4334 = vmatpush1.msra.mxu0 0.0
        %4335 = vmatprep.subr.mxu0 0.0
        %4336 = vmatpush1.msra.mxu0 0.0
        %4337 = vmatprep.subr.mxu0 0.0
        %4338 = vmatpush1.msra.mxu0 0.0
        %4339 = vmatprep.subr.mxu0 0.0
        %4340 = vmatpush1.msra.mxu0 0.0
        %4341 = vmatprep.subr.mxu0 0.0
        %4342 = vmatpush1.msra.mxu0 0.0
        %4343 = vmatprep.subr.mxu0 0.0
        %4344 = vmatpush1.msra.mxu0 0.0
        %4345 = vmatprep.subr.mxu0 0.0
        %4346 = vmatpush1.msra.mxu0 0.0
        %4347 = vmatprep.subr.mxu0 0.0
        %4348 = vmatpush1.msra.mxu0 0.0
        %4349 = vmatprep.subr.mxu0 0.0
        %4350 = vmatpush1.msra.mxu0 0.0
        %4351 = vmatprep.subr.mxu0 0.0
        %4352 = vmatpush1.msra.mxu0 0.0
        %4353 = vmatprep.subr.mxu0 0.0
        %4354 = vmatpush1.msra.mxu0 0.0
        %4355 = vmatprep.subr.mxu0 0.0
        %4356 = vmatpush1.msra.mxu0 0.0
        %4357 = vmatprep.subr.mxu0 0.0
        %4358 = vmatpush1.msra.mxu0 0.0
        %4359 = vmatprep.subr.mxu0 0.0
        %4360 = vmatpush1.msra.mxu0 0.0
        %4361 = vmatprep.subr.mxu0 0.0
        %4362 = vmatpush1.msra.mxu0 0.0
        %4363 = vmatprep.subr.mxu0 0.0
        %4364 = vmatpush1.msra.mxu0 0.0
        %4365 = vmatprep.subr.mxu0 0.0
        %4366 = vmatpush1.msra.mxu0 0.0
        %4367 = vmatprep.subr.mxu0 0.0
        %4368 = vmatpush1.msra.mxu0 0.0
        %4369 = vmatprep.subr.mxu0 0.0
        %4370 = vmatpush1.msra.mxu0 0.0
        %4371 = vmatprep.subr.mxu0 0.0
        %4372 = vmatpush1.msra.mxu0 0.0
        %4373 = vmatprep.mubr.f32.mxu0 0.0
        %4374 = vmatmul.mubr.f32.gmra.mrb[0].mxu0 %v4220
        %v4375 = vpop.f32.mrb[0].mxu0
        %v4376 = vadd.f32 0.0, %v4375
        %v4377 = vpop.f32.mrb[0].mxu0
        %v4378 = vadd.f32 0.0, %v4377
        %4379 = vdwg.mxu0
        %4380 = vmatprep.subr.mxu0 %v4232
        %4381 = vmatpush1.msra.mxu0 %v4230
        %4382 = vmatprep.subr.mxu0 0.0
        %4383 = vmatpush1.msra.mxu0 0.0
        %4384 = vmatprep.subr.mxu0 0.0
        %4385 = vmatpush1.msra.mxu0 0.0
        %4386 = vmatprep.subr.mxu0 0.0
        %4387 = vmatpush1.msra.mxu0 0.0
        %4388 = vmatprep.subr.mxu0 0.0
        %4389 = vmatpush1.msra.mxu0 0.0
        %4390 = vmatprep.subr.mxu0 0.0
        %4391 = vmatpush1.msra.mxu0 0.0
        %4392 = vmatprep.subr.mxu0 0.0
        %4393 = vmatpush1.msra.mxu0 0.0
        %4394 = vmatprep.subr.mxu0 0.0
        %4395 = vmatpush1.msra.mxu0 0.0
        %4396 = vmatprep.subr.mxu0 0.0
        %4397 = vmatpush1.msra.mxu0 0.0
        %4398 = vmatprep.subr.mxu0 0.0
        %4399 = vmatpush1.msra.mxu0 0.0
        %4400 = vmatprep.subr.mxu0 0.0
        %4401 = vmatpush1.msra.mxu0 0.0
        %4402 = vmatprep.subr.mxu0 0.0
        %4403 = vmatpush1.msra.mxu0 0.0
        %4404 = vmatprep.subr.mxu0 0.0
        %4405 = vmatpush1.msra.mxu0 0.0
        %4406 = vmatprep.subr.mxu0 0.0
        %4407 = vmatpush1.msra.mxu0 0.0
        %4408 = vmatprep.subr.mxu0 0.0
        %4409 = vmatpush1.msra.mxu0 0.0
        %4410 = vmatprep.subr.mxu0 0.0
        %4411 = vmatpush1.msra.mxu0 0.0
        %4412 = vmatprep.subr.mxu0 0.0
        %4413 = vmatpush1.msra.mxu0 0.0
        %4414 = vmatprep.subr.mxu0 0.0
        %4415 = vmatpush1.msra.mxu0 0.0
        %4416 = vmatprep.subr.mxu0 0.0
        %4417 = vmatpush1.msra.mxu0 0.0
        %4418 = vmatprep.subr.mxu0 0.0
        %4419 = vmatpush1.msra.mxu0 0.0
        %4420 = vmatprep.subr.mxu0 0.0
        %4421 = vmatpush1.msra.mxu0 0.0
        %4422 = vmatprep.subr.mxu0 0.0
        %4423 = vmatpush1.msra.mxu0 0.0
        %4424 = vmatprep.subr.mxu0 0.0
        %4425 = vmatpush1.msra.mxu0 0.0
        %4426 = vmatprep.subr.mxu0 0.0
        %4427 = vmatpush1.msra.mxu0 0.0
        %4428 = vmatprep.subr.mxu0 0.0
        %4429 = vmatpush1.msra.mxu0 0.0
        %4430 = vmatprep.subr.mxu0 0.0
        %4431 = vmatpush1.msra.mxu0 0.0
        %4432 = vmatprep.subr.mxu0 0.0
        %4433 = vmatpush1.msra.mxu0 0.0
        %4434 = vmatprep.subr.mxu0 0.0
        %4435 = vmatpush1.msra.mxu0 0.0
        %4436 = vmatprep.subr.mxu0 0.0
        %4437 = vmatpush1.msra.mxu0 0.0
        %4438 = vmatprep.subr.mxu0 0.0
        %4439 = vmatpush1.msra.mxu0 0.0
        %4440 = vmatprep.subr.mxu0 0.0
        %4441 = vmatpush1.msra.mxu0 0.0
        %4442 = vmatprep.subr.mxu0 0.0
        %4443 = vmatpush1.msra.mxu0 0.0
        %4444 = vmatprep.mubr.f32.mxu0 0.0
        %4445 = vmatmul.mubr.f32.gmra.mrb[0].mxu0 %v4220
        %v4446 = vpop.f32.mrb[0].mxu0
        %v4447 = vadd.f32 0.0, %v4446
        %v4448 = vpop.f32.mrb[0].mxu0
        %v4449 = vadd.f32 0.0, %v4448
        %4450 = vdwg.mxu0
        %4451 = vmatprep.subr.mxu0 %v4236
        %4452 = vmatpush1.msra.mxu0 %v4234
        %4453 = vmatprep.subr.mxu0 0.0
        %4454 = vmatpush1.msra.mxu0 0.0
        %4455 = vmatprep.subr.mxu0 0.0
        %4456 = vmatpush1.msra.mxu0 0.0
        %4457 = vmatprep.subr.mxu0 0.0
        %4458 = vmatpush1.msra.mxu0 0.0
        %4459 = vmatprep.subr.mxu0 0.0
        %4460 = vmatpush1.msra.mxu0 0.0
        %4461 = vmatprep.subr.mxu0 0.0
        %4462 = vmatpush1.msra.mxu0 0.0
        %4463 = vmatprep.subr.mxu0 0.0
        %4464 = vmatpush1.msra.mxu0 0.0
        %4465 = vmatprep.subr.mxu0 0.0
        %4466 = vmatpush1.msra.mxu0 0.0
        %4467 = vmatprep.subr.mxu0 0.0
        %4468 = vmatpush1.msra.mxu0 0.0
        %4469 = vmatprep.subr.mxu0 0.0
        %4470 = vmatpush1.msra.mxu0 0.0
        %4471 = vmatprep.subr.mxu0 0.0
        %4472 = vmatpush1.msra.mxu0 0.0
        %4473 = vmatprep.subr.mxu0 0.0
        %4474 = vmatpush1.msra.mxu0 0.0
        %4475 = vmatprep.subr.mxu0 0.0
        %4476 = vmatpush1.msra.mxu0 0.0
        %4477 = vmatprep.subr.mxu0 0.0
        %4478 = vmatpush1.msra.mxu0 0.0
        %4479 = vmatprep.subr.mxu0 0.0
        %4480 = vmatpush1.msra.mxu0 0.0
        %4481 = vmatprep.subr.mxu0 0.0
        %4482 = vmatpush1.msra.mxu0 0.0
        %4483 = vmatprep.subr.mxu0 0.0
        %4484 = vmatpush1.msra.mxu0 0.0
        %4485 = vmatprep.subr.mxu0 0.0
        %4486 = vmatpush1.msra.mxu0 0.0
        %4487 = vmatprep.subr.mxu0 0.0
        %4488 = vmatpush1.msra.mxu0 0.0
        %4489 = vmatprep.subr.mxu0 0.0
        %4490 = vmatpush1.msra.mxu0 0.0
        %4491 = vmatprep.subr.mxu0 0.0
        %4492 = vmatpush1.msra.mxu0 0.0
        %4493 = vmatprep.subr.mxu0 0.0
        %4494 = vmatpush1.msra.mxu0 0.0
        %4495 = vmatprep.subr.mxu0 0.0
        %4496 = vmatpush1.msra.mxu0 0.0
        %4497 = vmatprep.subr.mxu0 0.0
        %4498 = vmatpush1.msra.mxu0 0.0
        %4499 = vmatprep.subr.mxu0 0.0
        %4500 = vmatpush1.msra.mxu0 0.0
        %4501 = vmatprep.subr.mxu0 0.0
        %4502 = vmatpush1.msra.mxu0 0.0
        %4503 = vmatprep.subr.mxu0 0.0
        %4504 = vmatpush1.msra.mxu0 0.0
        %4505 = vmatprep.subr.mxu0 0.0
        %4506 = vmatpush1.msra.mxu0 0.0
        %4507 = vmatprep.subr.mxu0 0.0
        %4508 = vmatpush1.msra.mxu0 0.0
        %4509 = vmatprep.subr.mxu0 0.0
        %4510 = vmatpush1.msra.mxu0 0.0
        %4511 = vmatprep.subr.mxu0 0.0
        %4512 = vmatpush1.msra.mxu0 0.0
        %4513 = vmatprep.subr.mxu0 0.0
        %4514 = vmatpush1.msra.mxu0 0.0
        %4515 = vmatprep.mubr.f32.mxu0 0.0
        %4516 = vmatmul.mubr.f32.gmra.mrb[0].mxu0 %v4220
        %v4517 = vpop.f32.mrb[0].mxu0
        %v4518 = vadd.f32 0.0, %v4517
        %v4519 = vpop.f32.mrb[0].mxu0
        %v4520 = vadd.f32 0.0, %v4519
        %4521 = vdwg.mxu0
        %v4522 = vadd.f32 %v4133, %v4305
        %v4523 = vadd.f32 %v4134, %v4307
        %v4524 = vadd.f32 %v4135, %v4376
        %v4525 = vadd.f32 %v4136, %v4378
        %v4526 = vadd.f32 %v4137, %v4447
        %v4527 = vadd.f32 %v4138, %v4449
        %v4528 = vadd.f32 %v4139, %v4518
        %v4529 = vadd.f32 %v4140, %v4520
        %v4530 = vmul.f32 %v4522, %v4522
        %v4531 = vmul.f32 %v4523, %v4523
        %v4532 = vmul.f32 %v4524, %v4524
        %v4533 = vmul.f32 %v4525, %v4525
        %v4534 = vmul.f32 %v4526, %v4526
        %v4535 = vmul.f32 %v4527, %v4527
        %v4536 = vmul.f32 %v4528, %v4528
        %v4537 = vmul.f32 %v4529, %v4529
        %vm4538 = vcmask 64512
        %v4540 = vsel %vm4538, 1.0, 0
        %4542 = vmatprep.subr.mxu0 %v4531
        %4543 = vmatpush1.msra.mxu0 %v4530
        %4544 = vmatprep.subr.mxu0 0.0
        %4545 = vmatpush1.msra.mxu0 0.0
        %4546 = vmatprep.subr.mxu0 0.0
        %4547 = vmatpush1.msra.mxu0 0.0
        %4548 = vmatprep.subr.mxu0 0.0
        %4549 = vmatpush1.msra.mxu0 0.0
        %4550 = vmatprep.subr.mxu0 0.0
        %4551 = vmatpush1.msra.mxu0 0.0
        %4552 = vmatprep.subr.mxu0 0.0
        %4553 = vmatpush1.msra.mxu0 0.0
        %4554 = vmatprep.subr.mxu0 0.0
        %4555 = vmatpush1.msra.mxu0 0.0
        %4556 = vmatprep.subr.mxu0 0.0
        %4557 = vmatpush1.msra.mxu0 0.0
        %4558 = vmatprep.subr.mxu0 0.0
        %4559 = vmatpush1.msra.mxu0 0.0
        %4560 = vmatprep.subr.mxu0 0.0
        %4561 = vmatpush1.msra.mxu0 0.0
        %4562 = vmatprep.subr.mxu0 0.0
        %4563 = vmatpush1.msra.mxu0 0.0
        %4564 = vmatprep.subr.mxu0 0.0
        %4565 = vmatpush1.msra.mxu0 0.0
        %4566 = vmatprep.subr.mxu0 0.0
        %4567 = vmatpush1.msra.mxu0 0.0
        %4568 = vmatprep.subr.mxu0 0.0
        %4569 = vmatpush1.msra.mxu0 0.0
        %4570 = vmatprep.subr.mxu0 0.0
        %4571 = vmatpush1.msra.mxu0 0.0
        %4572 = vmatprep.subr.mxu0 0.0
        %4573 = vmatpush1.msra.mxu0 0.0
        %4574 = vmatprep.subr.mxu0 0.0
        %4575 = vmatpush1.msra.mxu0 0.0
        %4576 = vmatprep.subr.mxu0 0.0
        %4577 = vmatpush1.msra.mxu0 0.0
        %4578 = vmatprep.subr.mxu0 0.0
        %4579 = vmatpush1.msra.mxu0 0.0
        %4580 = vmatprep.subr.mxu0 0.0
        %4581 = vmatpush1.msra.mxu0 0.0
        %4582 = vmatprep.subr.mxu0 0.0
        %4583 = vmatpush1.msra.mxu0 0.0
        %4584 = vmatprep.subr.mxu0 0.0
        %4585 = vmatpush1.msra.mxu0 0.0
        %4586 = vmatprep.subr.mxu0 0.0
        %4587 = vmatpush1.msra.mxu0 0.0
        %4588 = vmatprep.subr.mxu0 0.0
        %4589 = vmatpush1.msra.mxu0 0.0
        %4590 = vmatprep.subr.mxu0 0.0
        %4591 = vmatpush1.msra.mxu0 0.0
        %4592 = vmatprep.subr.mxu0 0.0
        %4593 = vmatpush1.msra.mxu0 0.0
        %4594 = vmatprep.subr.mxu0 0.0
        %4595 = vmatpush1.msra.mxu0 0.0
        %4596 = vmatprep.subr.mxu0 0.0
        %4597 = vmatpush1.msra.mxu0 0.0
        %4598 = vmatprep.subr.mxu0 0.0
        %4599 = vmatpush1.msra.mxu0 0.0
        %4600 = vmatprep.subr.mxu0 0.0
        %4601 = vmatpush1.msra.mxu0 0.0
        %4602 = vmatprep.subr.mxu0 0.0
        %4603 = vmatpush1.msra.mxu0 0.0
        %4604 = vmatprep.subr.mxu0 0.0
        %4605 = vmatpush1.msra.mxu0 0.0
        %4606 = vmatprep.mubr.f32.mxu0 0.0
        %4607 = vmatmul.mubr.f32.gmra.mrb[0].mxu0 %v4540
        %v4608 = vpop.f32.mrb[0].mxu0
        %v4609 = vadd.f32 0.0, %v4608
        %v4610 = vpop.f32.mrb[0].mxu0
        %v4611 = vadd.f32 0.0, %v4610
        %4612 = vdwg.mxu0
        %4613 = vmatprep.subr.mxu0 %v4533
        %4614 = vmatpush1.msra.mxu0 %v4532
        %4615 = vmatprep.subr.mxu0 0.0
        %4616 = vmatpush1.msra.mxu0 0.0
        %4617 = vmatprep.subr.mxu0 0.0
        %4618 = vmatpush1.msra.mxu0 0.0
        %4619 = vmatprep.subr.mxu0 0.0
        %4620 = vmatpush1.msra.mxu0 0.0
        %4621 = vmatprep.subr.mxu0 0.0
        %4622 = vmatpush1.msra.mxu0 0.0
        %4623 = vmatprep.subr.mxu0 0.0
        %4624 = vmatpush1.msra.mxu0 0.0
        %4625 = vmatprep.subr.mxu0 0.0
        %4626 = vmatpush1.msra.mxu0 0.0
        %4627 = vmatprep.subr.mxu0 0.0
        %4628 = vmatpush1.msra.mxu0 0.0
        %4629 = vmatprep.subr.mxu0 0.0
        %4630 = vmatpush1.msra.mxu0 0.0
        %4631 = vmatprep.subr.mxu0 0.0
        %4632 = vmatpush1.msra.mxu0 0.0
        %4633 = vmatprep.subr.mxu0 0.0
        %4634 = vmatpush1.msra.mxu0 0.0
        %4635 = vmatprep.subr.mxu0 0.0
        %4636 = vmatpush1.msra.mxu0 0.0
        %4637 = vmatprep.subr.mxu0 0.0
        %4638 = vmatpush1.msra.mxu0 0.0
        %4639 = vmatprep.subr.mxu0 0.0
        %4640 = vmatpush1.msra.mxu0 0.0
        %4641 = vmatprep.subr.mxu0 0.0
        %4642 = vmatpush1.msra.mxu0 0.0
        %4643 = vmatprep.subr.mxu0 0.0
        %4644 = vmatpush1.msra.mxu0 0.0
        %4645 = vmatprep.subr.mxu0 0.0
        %4646 = vmatpush1.msra.mxu0 0.0
        %4647 = vmatprep.subr.mxu0 0.0
        %4648 = vmatpush1.msra.mxu0 0.0
        %4649 = vmatprep.subr.mxu0 0.0
        %4650 = vmatpush1.msra.mxu0 0.0
        %4651 = vmatprep.subr.mxu0 0.0
        %4652 = vmatpush1.msra.mxu0 0.0
        %4653 = vmatprep.subr.mxu0 0.0
        %4654 = vmatpush1.msra.mxu0 0.0
        %4655 = vmatprep.subr.mxu0 0.0
        %4656 = vmatpush1.msra.mxu0 0.0
        %4657 = vmatprep.subr.mxu0 0.0
        %4658 = vmatpush1.msra.mxu0 0.0
        %4659 = vmatprep.subr.mxu0 0.0
        %4660 = vmatpush1.msra.mxu0 0.0
        %4661 = vmatprep.subr.mxu0 0.0
        %4662 = vmatpush1.msra.mxu0 0.0
        %4663 = vmatprep.subr.mxu0 0.0
        %4664 = vmatpush1.msra.mxu0 0.0
        %4665 = vmatprep.subr.mxu0 0.0
        %4666 = vmatpush1.msra.mxu0 0.0
        %4667 = vmatprep.subr.mxu0 0.0
        %4668 = vmatpush1.msra.mxu0 0.0
        %4669 = vmatprep.subr.mxu0 0.0
        %4670 = vmatpush1.msra.mxu0 0.0
        %4671 = vmatprep.subr.mxu0 0.0
        %4672 = vmatpush1.msra.mxu0 0.0
        %4673 = vmatprep.subr.mxu0 0.0
        %4674 = vmatpush1.msra.mxu0 0.0
        %4675 = vmatprep.subr.mxu0 0.0
        %4676 = vmatpush1.msra.mxu0 0.0
        %4677 = vmatprep.mubr.f32.mxu0 0.0
        %4678 = vmatmul.mubr.f32.gmra.mrb[0].mxu0 %v4540
        %v4679 = vpop.f32.mrb[0].mxu0
        %v4680 = vadd.f32 0.0, %v4679
        %v4681 = vpop.f32.mrb[0].mxu0
        %v4682 = vadd.f32 0.0, %v4681
        %4683 = vdwg.mxu0
        %4684 = vmatprep.subr.mxu0 %v4535
        %4685 = vmatpush1.msra.mxu0 %v4534
        %4686 = vmatprep.subr.mxu0 0.0
        %4687 = vmatpush1.msra.mxu0 0.0
        %4688 = vmatprep.subr.mxu0 0.0
        %4689 = vmatpush1.msra.mxu0 0.0
        %4690 = vmatprep.subr.mxu0 0.0
        %4691 = vmatpush1.msra.mxu0 0.0
        %4692 = vmatprep.subr.mxu0 0.0
        %4693 = vmatpush1.msra.mxu0 0.0
        %4694 = vmatprep.subr.mxu0 0.0
        %4695 = vmatpush1.msra.mxu0 0.0
        %4696 = vmatprep.subr.mxu0 0.0
        %4697 = vmatpush1.msra.mxu0 0.0
        %4698 = vmatprep.subr.mxu0 0.0
        %4699 = vmatpush1.msra.mxu0 0.0
        %4700 = vmatprep.subr.mxu0 0.0
        %4701 = vmatpush1.msra.mxu0 0.0
        %4702 = vmatprep.subr.mxu0 0.0
        %4703 = vmatpush1.msra.mxu0 0.0
        %4704 = vmatprep.subr.mxu0 0.0
        %4705 = vmatpush1.msra.mxu0 0.0
        %4706 = vmatprep.subr.mxu0 0.0
        %4707 = vmatpush1.msra.mxu0 0.0
        %4708 = vmatprep.subr.mxu0 0.0
        %4709 = vmatpush1.msra.mxu0 0.0
        %4710 = vmatprep.subr.mxu0 0.0
        %4711 = vmatpush1.msra.mxu0 0.0
        %4712 = vmatprep.subr.mxu0 0.0
        %4713 = vmatpush1.msra.mxu0 0.0
        %4714 = vmatprep.subr.mxu0 0.0
        %4715 = vmatpush1.msra.mxu0 0.0
        %4716 = vmatprep.subr.mxu0 0.0
        %4717 = vmatpush1.msra.mxu0 0.0
        %4718 = vmatprep.subr.mxu0 0.0
        %4719 = vmatpush1.msra.mxu0 0.0
        %4720 = vmatprep.subr.mxu0 0.0
        %4721 = vmatpush1.msra.mxu0 0.0
        %4722 = vmatprep.subr.mxu0 0.0
        %4723 = vmatpush1.msra.mxu0 0.0
        %4724 = vmatprep.subr.mxu0 0.0
        %4725 = vmatpush1.msra.mxu0 0.0
        %4726 = vmatprep.subr.mxu0 0.0
        %4727 = vmatpush1.msra.mxu0 0.0
        %4728 = vmatprep.subr.mxu0 0.0
        %4729 = vmatpush1.msra.mxu0 0.0
        %4730 = vmatprep.subr.mxu0 0.0
        %4731 = vmatpush1.msra.mxu0 0.0
        %4732 = vmatprep.subr.mxu0 0.0
        %4733 = vmatpush1.msra.mxu0 0.0
        %4734 = vmatprep.subr.mxu0 0.0
        %4735 = vmatpush1.msra.mxu0 0.0
        %4736 = vmatprep.subr.mxu0 0.0
        %4737 = vmatpush1.msra.mxu0 0.0
        %4738 = vmatprep.subr.mxu0 0.0
        %4739 = vmatpush1.msra.mxu0 0.0
        %4740 = vmatprep.subr.mxu0 0.0
        %4741 = vmatpush1.msra.mxu0 0.0
        %4742 = vmatprep.subr.mxu0 0.0
        %4743 = vmatpush1.msra.mxu0 0.0
        %4744 = vmatprep.subr.mxu0 0.0
        %4745 = vmatpush1.msra.mxu0 0.0
        %4746 = vmatprep.subr.mxu0 0.0
        %4747 = vmatpush1.msra.mxu0 0.0
        %4748 = vmatprep.mubr.f32.mxu0 0.0
        %4749 = vmatmul.mubr.f32.gmra.mrb[0].mxu0 %v4540
        %v4750 = vpop.f32.mrb[0].mxu0
        %v4751 = vadd.f32 0.0, %v4750
        %v4752 = vpop.f32.mrb[0].mxu0
        %v4753 = vadd.f32 0.0, %v4752
        %4754 = vdwg.mxu0
        %4755 = vmatprep.subr.mxu0 %v4537
        %4756 = vmatpush1.msra.mxu0 %v4536
        %4757 = vmatprep.subr.mxu0 0.0
        %4758 = vmatpush1.msra.mxu0 0.0
        %4759 = vmatprep.subr.mxu0 0.0
        %4760 = vmatpush1.msra.mxu0 0.0
        %4761 = vmatprep.subr.mxu0 0.0
        %4762 = vmatpush1.msra.mxu0 0.0
        %4763 = vmatprep.subr.mxu0 0.0
        %4764 = vmatpush1.msra.mxu0 0.0
        %4765 = vmatprep.subr.mxu0 0.0
        %4766 = vmatpush1.msra.mxu0 0.0
        %4767 = vmatprep.subr.mxu0 0.0
        %4768 = vmatpush1.msra.mxu0 0.0
        %4769 = vmatprep.subr.mxu0 0.0
        %4770 = vmatpush1.msra.mxu0 0.0
        %4771 = vmatprep.subr.mxu0 0.0
        %4772 = vmatpush1.msra.mxu0 0.0
        %4773 = vmatprep.subr.mxu0 0.0
        %4774 = vmatpush1.msra.mxu0 0.0
        %4775 = vmatprep.subr.mxu0 0.0
        %4776 = vmatpush1.msra.mxu0 0.0
        %4777 = vmatprep.subr.mxu0 0.0
        %4778 = vmatpush1.msra.mxu0 0.0
        %4779 = vmatprep.subr.mxu0 0.0
        %4780 = vmatpush1.msra.mxu0 0.0
        %4781 = vmatprep.subr.mxu0 0.0
        %4782 = vmatpush1.msra.mxu0 0.0
        %4783 = vmatprep.subr.mxu0 0.0
        %4784 = vmatpush1.msra.mxu0 0.0
        %4785 = vmatprep.subr.mxu0 0.0
        %4786 = vmatpush1.msra.mxu0 0.0
        %4787 = vmatprep.subr.mxu0 0.0
        %4788 = vmatpush1.msra.mxu0 0.0
        %4789 = vmatprep.subr.mxu0 0.0
        %4790 = vmatpush1.msra.mxu0 0.0
        %4791 = vmatprep.subr.mxu0 0.0
        %4792 = vmatpush1.msra.mxu0 0.0
        %4793 = vmatprep.subr.mxu0 0.0
        %4794 = vmatpush1.msra.mxu0 0.0
        %4795 = vmatprep.subr.mxu0 0.0
        %4796 = vmatpush1.msra.mxu0 0.0
        %4797 = vmatprep.subr.mxu0 0.0
        %4798 = vmatpush1.msra.mxu0 0.0
        %4799 = vmatprep.subr.mxu0 0.0
        %4800 = vmatpush1.msra.mxu0 0.0
        %4801 = vmatprep.subr.mxu0 0.0
        %4802 = vmatpush1.msra.mxu0 0.0
        %4803 = vmatprep.subr.mxu0 0.0
        %4804 = vmatpush1.msra.mxu0 0.0
        %4805 = vmatprep.subr.mxu0 0.0
        %4806 = vmatpush1.msra.mxu0 0.0
        %4807 = vmatprep.subr.mxu0 0.0
        %4808 = vmatpush1.msra.mxu0 0.0
        %4809 = vmatprep.subr.mxu0 0.0
        %4810 = vmatpush1.msra.mxu0 0.0
        %4811 = vmatprep.subr.mxu0 0.0
        %4812 = vmatpush1.msra.mxu0 0.0
        %4813 = vmatprep.subr.mxu0 0.0
        %4814 = vmatpush1.msra.mxu0 0.0
        %4815 = vmatprep.subr.mxu0 0.0
        %4816 = vmatpush1.msra.mxu0 0.0
        %4817 = vmatprep.subr.mxu0 0.0
        %4818 = vmatpush1.msra.mxu0 0.0
        %4819 = vmatprep.mubr.f32.mxu0 0.0
        %4820 = vmatmul.mubr.f32.gmra.mrb[0].mxu0 %v4540
        %v4821 = vpop.f32.mrb[0].mxu0
        %v4822 = vadd.f32 0.0, %v4821
        %v4823 = vpop.f32.mrb[0].mxu0
        %v4824 = vadd.f32 0.0, %v4823
        %4825 = vdwg.mxu0
        %v4826 = vmul.f32 %v4609, 0.125
        %v4827 = vmul.f32 %v4611, 0.125
        %v4828 = vmul.f32 %v4680, 0.125
        %v4829 = vmul.f32 %v4682, 0.125
        %v4830 = vmul.f32 %v4751, 0.125
        %v4831 = vmul.f32 %v4753, 0.125
        %v4832 = vmul.f32 %v4822, 0.125
        %v4833 = vmul.f32 %v4824, 0.125
        %v4834 = vadd.f32 %v4826, 1e-08
        %v4835 = vadd.f32 %v4827, 1e-08
        %v4836 = vadd.f32 %v4828, 1e-08
        %v4837 = vadd.f32 %v4829, 1e-08
        %v4838 = vadd.f32 %v4830, 1e-08
        %v4839 = vadd.f32 %v4831, 1e-08
        %v4840 = vadd.f32 %v4832, 1e-08
        %v4841 = vadd.f32 %v4833, 1e-08
        %v4842 = vrsqrt.pop %v4834
        %v4843 = vrsqrt.pop %v4835
        %v4844 = vrsqrt.pop %v4836
        %v4845 = vrsqrt.pop %v4837
        %v4846 = vrsqrt.pop %v4838
        %v4847 = vrsqrt.pop %v4839
        %v4848 = vrsqrt.pop %v4840
        %v4849 = vrsqrt.pop %v4841
        %v4850 = vlaneseq
        %v4851 = vshrl.u32 %v4850, 7
        %v4852 = vsub.s32 0, %v4851
        %v4853 = vrot.slane %v4842, %v4852
        %v4854 = vlaneseq
        %v4855 = vshrl.u32 %v4854, 7
        %v4856 = vsub.s32 0, %v4855
        %v4857 = vrot.slane %v4843, %v4856
        %v4858 = vlaneseq
        %v4859 = vshrl.u32 %v4858, 7
        %v4860 = vsub.s32 0, %v4859
        %v4861 = vrot.slane %v4844, %v4860
        %v4862 = vlaneseq
        %v4863 = vshrl.u32 %v4862, 7
        %v4864 = vsub.s32 0, %v4863
        %v4865 = vrot.slane %v4845, %v4864
        %v4866 = vlaneseq
        %v4867 = vshrl.u32 %v4866, 7
        %v4868 = vsub.s32 0, %v4867
        %v4869 = vrot.slane %v4846, %v4868
        %v4870 = vlaneseq
        %v4871 = vshrl.u32 %v4870, 7
        %v4872 = vsub.s32 0, %v4871
        %v4873 = vrot.slane %v4847, %v4872
        %v4874 = vlaneseq
        %v4875 = vshrl.u32 %v4874, 7
        %v4876 = vsub.s32 0, %v4875
        %v4877 = vrot.slane %v4848, %v4876
        %v4878 = vlaneseq
        %v4879 = vshrl.u32 %v4878, 7
        %v4880 = vsub.s32 0, %v4879
        %v4881 = vrot.slane %v4849, %v4880
        %v4882 = vmul.f32 %v4522, %v4853
        %v4883 = vmul.f32 %v4523, %v4857
        %v4884 = vmul.f32 %v4524, %v4861
        %v4885 = vmul.f32 %v4525, %v4865
        %v4886 = vmul.f32 %v4526, %v4869
        %v4887 = vmul.f32 %v4527, %v4873
        %v4888 = vmul.f32 %v4528, %v4877
        %v4889 = vmul.f32 %v4529, %v4881
        %vm4890 = vcmp.gt.f32.partialorder %v4882, 0.0
        %vm4891 = vcmp.gt.f32.partialorder %v4883, 0.0
        %vm4892 = vcmp.gt.f32.partialorder %v4884, 0.0
        %vm4893 = vcmp.gt.f32.partialorder %v4885, 0.0
        %vm4894 = vcmp.gt.f32.partialorder %v4886, 0.0
        %vm4895 = vcmp.gt.f32.partialorder %v4887, 0.0
        %vm4896 = vcmp.gt.f32.partialorder %v4888, 0.0
        %vm4897 = vcmp.gt.f32.partialorder %v4889, 0.0
        %v4898 = vmul.f32 %v4882, 0.2
        %v4899 = vmul.f32 %v4883, 0.2
        %v4900 = vmul.f32 %v4884, 0.2
        %v4901 = vmul.f32 %v4885, 0.2
        %v4902 = vmul.f32 %v4886, 0.2
        %v4903 = vmul.f32 %v4887, 0.2
        %v4904 = vmul.f32 %v4888, 0.2
        %v4905 = vmul.f32 %v4889, 0.2
        %v4906 = vsel %vm4890, %v4882, %v4898
        %v4907 = vsel %vm4891, %v4883, %v4899
        %v4908 = vsel %vm4892, %v4884, %v4900
        %v4909 = vsel %vm4893, %v4885, %v4901
        %v4910 = vsel %vm4894, %v4886, %v4902
        %v4911 = vsel %vm4895, %v4887, %v4903
        %v4912 = vsel %vm4896, %v4888, %v4904
        %v4913 = vsel %vm4897, %v4889, %v4905
        %4914 = vst [vmem:[#allocation2] sm:$0xff] 0.0
        %4915 = vst [vmem:[#allocation2 + $0x48] sm:$0xff] 0.0
        %4916 = vst [vmem:[#allocation2 + $0x8] sm:$0xff] %v4906
        %4917 = vst [vmem:[#allocation2 + $0x10] sm:$0xff] %v4907
        %4918 = vst [vmem:[#allocation2 + $0x18] sm:$0xff] %v4908
        %4919 = vst [vmem:[#allocation2 + $0x20] sm:$0xff] %v4909
        %4920 = vst [vmem:[#allocation2 + $0x28] sm:$0xff] %v4910
        %4921 = vst [vmem:[#allocation2 + $0x30] sm:$0xff] %v4911
        %4922 = vst [vmem:[#allocation2 + $0x38] sm:$0xff] %v4912
        %4923 = vst [vmem:[#allocation2 + $0x40] sm:$0xff] %v4913
        %v4924 = vld [vmem:[%s6] sm:$0xff]
        %4926 = vset.pattern.permute.xlu0 0
        %4927 = vperm.xlu0 %4926, %v4924
        %v4928 = vpop.permute.xlu0 %4927
        %v4930 = vld [vmem:[#allocation2] sm:$0xff]
        %v4931 = vld [vmem:[#allocation2 + $0x8] sm:$0xff]
        %v4932 = vld [vmem:[#allocation2 + $0x10] sm:$0xff]
        %v4933 = vld [vmem:[#allocation2 + $0x18] sm:$0xff]
        %v4934 = vld [vmem:[#allocation2 + $0x20] sm:$0xff]
        %v4935 = vld [vmem:[#allocation2 + $0x28] sm:$0xff]
        %v4936 = vld [vmem:[#allocation2 + $0x30] sm:$0xff]
        %v4937 = vld [vmem:[#allocation2 + $0x38] sm:$0xff]
        %v4938 = vld [vmem:[#allocation2 + $0x40] sm:$0xff]
        %v4939 = vmul.f32 %v4930, %v1107
        %v4940 = vmul.f32 %v4931, %v1123
        %v4941 = vmul.f32 %v4932, %v1124
        %v4942 = vmul.f32 %v4933, %v1125
        %v4943 = vmul.f32 %v4934, %v1126
        %v4944 = vmul.f32 %v4935, %v1127
        %v4945 = vmul.f32 %v4936, %v1128
        %v4946 = vmul.f32 %v4937, %v1129
        %v4947 = vmul.f32 %v4938, %v1121
        %v4948 = vld [vmem:[#allocation9] sm:$0xff]
        %4958 = vrot.lane.b32.xlu0 %v4939, 33
        %v4959 = vpop.permute.xlu0 %4958
        %4960 = vrot.lane.b32.xlu0 %v4940, 33
        %v4961 = vpop.permute.xlu0 %4960
        %4962 = vrot.lane.b32.xlu0 %v4941, 33
        %v4963 = vpop.permute.xlu0 %4962
        %4964 = vrot.lane.b32.xlu0 %v4942, 33
        %v4965 = vpop.permute.xlu0 %4964
        %4966 = vrot.lane.b32.xlu0 %v4943, 33
        %v4967 = vpop.permute.xlu0 %4966
        %4968 = vrot.lane.b32.xlu0 %v4944, 33
        %v4969 = vpop.permute.xlu0 %4968
        %4970 = vrot.lane.b32.xlu0 %v4945, 33
        %v4971 = vpop.permute.xlu0 %4970
        %4972 = vrot.lane.b32.xlu0 %v4946, 33
        %v4973 = vpop.permute.xlu0 %4972
        %4974 = vrot.lane.b32.xlu0 %v4947, 33
        %v4975 = vpop.permute.xlu0 %4974
        %v4976 = vsel %vm1176, %v4959, %v4961
        %v4977 = vsel %vm1176, %v4961, %v4963
        %v4978 = vsel %vm1176, %v4963, %v4965
        %v4979 = vsel %vm1176, %v4965, %v4967
        %v4980 = vsel %vm1176, %v4967, %v4969
        %v4981 = vsel %vm1176, %v4969, %v4971
        %v4982 = vsel %vm1176, %v4971, %v4973
        %v4983 = vsel %vm1176, %v4973, %v4975
        %v4993 = vsel %vm4538, %v4948, 0
        %4995 = vmatprep.subr.mxu0 %v4977
        %4996 = vmatpush1.msra.mxu0 %v4976
        %4997 = vmatprep.subr.mxu0 0.0
        %4998 = vmatpush1.msra.mxu0 0.0
        %4999 = vmatprep.subr.mxu0 0.0
        %5000 = vmatpush1.msra.mxu0 0.0
        %5001 = vmatprep.subr.mxu0 0.0
        %5002 = vmatpush1.msra.mxu0 0.0
        %5003 = vmatprep.subr.mxu0 0.0
        %5004 = vmatpush1.msra.mxu0 0.0
        %5005 = vmatprep.subr.mxu0 0.0
        %5006 = vmatpush1.msra.mxu0 0.0
        %5007 = vmatprep.subr.mxu0 0.0
        %5008 = vmatpush1.msra.mxu0 0.0
        %5009 = vmatprep.subr.mxu0 0.0
        %5010 = vmatpush1.msra.mxu0 0.0
        %5011 = vmatprep.subr.mxu0 0.0
        %5012 = vmatpush1.msra.mxu0 0.0
        %5013 = vmatprep.subr.mxu0 0.0
        %5014 = vmatpush1.msra.mxu0 0.0
        %5015 = vmatprep.subr.mxu0 0.0
        %5016 = vmatpush1.msra.mxu0 0.0
        %5017 = vmatprep.subr.mxu0 0.0
        %5018 = vmatpush1.msra.mxu0 0.0
        %5019 = vmatprep.subr.mxu0 0.0
        %5020 = vmatpush1.msra.mxu0 0.0
        %5021 = vmatprep.subr.mxu0 0.0
        %5022 = vmatpush1.msra.mxu0 0.0
        %5023 = vmatprep.subr.mxu0 0.0
        %5024 = vmatpush1.msra.mxu0 0.0
        %5025 = vmatprep.subr.mxu0 0.0
        %5026 = vmatpush1.msra.mxu0 0.0
        %5027 = vmatprep.subr.mxu0 0.0
        %5028 = vmatpush1.msra.mxu0 0.0
        %5029 = vmatprep.subr.mxu0 0.0
        %5030 = vmatpush1.msra.mxu0 0.0
        %5031 = vmatprep.subr.mxu0 0.0
        %5032 = vmatpush1.msra.mxu0 0.0
        %5033 = vmatprep.subr.mxu0 0.0
        %5034 = vmatpush1.msra.mxu0 0.0
        %5035 = vmatprep.subr.mxu0 0.0
        %5036 = vmatpush1.msra.mxu0 0.0
        %5037 = vmatprep.subr.mxu0 0.0
        %5038 = vmatpush1.msra.mxu0 0.0
        %5039 = vmatprep.subr.mxu0 0.0
        %5040 = vmatpush1.msra.mxu0 0.0
        %5041 = vmatprep.subr.mxu0 0.0
        %5042 = vmatpush1.msra.mxu0 0.0
        %5043 = vmatprep.subr.mxu0 0.0
        %5044 = vmatpush1.msra.mxu0 0.0
        %5045 = vmatprep.subr.mxu0 0.0
        %5046 = vmatpush1.msra.mxu0 0.0
        %5047 = vmatprep.subr.mxu0 0.0
        %5048 = vmatpush1.msra.mxu0 0.0
        %5049 = vmatprep.subr.mxu0 0.0
        %5050 = vmatpush1.msra.mxu0 0.0
        %5051 = vmatprep.subr.mxu0 0.0
        %5052 = vmatpush1.msra.mxu0 0.0
        %5053 = vmatprep.subr.mxu0 0.0
        %5054 = vmatpush1.msra.mxu0 0.0
        %5055 = vmatprep.subr.mxu0 0.0
        %5056 = vmatpush1.msra.mxu0 0.0
        %5057 = vmatprep.subr.mxu0 0.0
        %5058 = vmatpush1.msra.mxu0 0.0
        %5059 = vmatprep.mubr.f32.mxu0 0.0
        %5060 = vmatmul.mubr.f32.gmra.mrb[0].mxu0 %v4993
        %v5061 = vpop.f32.mrb[0].mxu0
        %v5062 = vadd.f32 0.0, %v5061
        %v5063 = vpop.f32.mrb[0].mxu0
        %v5064 = vadd.f32 0.0, %v5063
        %5065 = vdwg.mxu0
        %5066 = vmatprep.subr.mxu0 %v4979
        %5067 = vmatpush1.msra.mxu0 %v4978
        %5068 = vmatprep.subr.mxu0 0.0
        %5069 = vmatpush1.msra.mxu0 0.0
        %5070 = vmatprep.subr.mxu0 0.0
        %5071 = vmatpush1.msra.mxu0 0.0
        %5072 = vmatprep.subr.mxu0 0.0
        %5073 = vmatpush1.msra.mxu0 0.0
        %5074 = vmatprep.subr.mxu0 0.0
        %5075 = vmatpush1.msra.mxu0 0.0
        %5076 = vmatprep.subr.mxu0 0.0
        %5077 = vmatpush1.msra.mxu0 0.0
        %5078 = vmatprep.subr.mxu0 0.0
        %5079 = vmatpush1.msra.mxu0 0.0
        %5080 = vmatprep.subr.mxu0 0.0
        %5081 = vmatpush1.msra.mxu0 0.0
        %5082 = vmatprep.subr.mxu0 0.0
        %5083 = vmatpush1.msra.mxu0 0.0
        %5084 = vmatprep.subr.mxu0 0.0
        %5085 = vmatpush1.msra.mxu0 0.0
        %5086 = vmatprep.subr.mxu0 0.0
        %5087 = vmatpush1.msra.mxu0 0.0
        %5088 = vmatprep.subr.mxu0 0.0
        %5089 = vmatpush1.msra.mxu0 0.0
        %5090 = vmatprep.subr.mxu0 0.0
        %5091 = vmatpush1.msra.mxu0 0.0
        %5092 = vmatprep.subr.mxu0 0.0
        %5093 = vmatpush1.msra.mxu0 0.0
        %5094 = vmatprep.subr.mxu0 0.0
        %5095 = vmatpush1.msra.mxu0 0.0
        %5096 = vmatprep.subr.mxu0 0.0
        %5097 = vmatpush1.msra.mxu0 0.0
        %5098 = vmatprep.subr.mxu0 0.0
        %5099 = vmatpush1.msra.mxu0 0.0
        %5100 = vmatprep.subr.mxu0 0.0
        %5101 = vmatpush1.msra.mxu0 0.0
        %5102 = vmatprep.subr.mxu0 0.0
        %5103 = vmatpush1.msra.mxu0 0.0
        %5104 = vmatprep.subr.mxu0 0.0
        %5105 = vmatpush1.msra.mxu0 0.0
        %5106 = vmatprep.subr.mxu0 0.0
        %5107 = vmatpush1.msra.mxu0 0.0
        %5108 = vmatprep.subr.mxu0 0.0
        %5109 = vmatpush1.msra.mxu0 0.0
        %5110 = vmatprep.subr.mxu0 0.0
        %5111 = vmatpush1.msra.mxu0 0.0
        %5112 = vmatprep.subr.mxu0 0.0
        %5113 = vmatpush1.msra.mxu0 0.0
        %5114 = vmatprep.subr.mxu0 0.0
        %5115 = vmatpush1.msra.mxu0 0.0
        %5116 = vmatprep.subr.mxu0 0.0
        %5117 = vmatpush1.msra.mxu0 0.0
        %5118 = vmatprep.subr.mxu0 0.0
        %5119 = vmatpush1.msra.mxu0 0.0
        %5120 = vmatprep.subr.mxu0 0.0
        %5121 = vmatpush1.msra.mxu0 0.0
        %5122 = vmatprep.subr.mxu0 0.0
        %5123 = vmatpush1.msra.mxu0 0.0
        %5124 = vmatprep.subr.mxu0 0.0
        %5125 = vmatpush1.msra.mxu0 0.0
        %5126 = vmatprep.subr.mxu0 0.0
        %5127 = vmatpush1.msra.mxu0 0.0
        %5128 = vmatprep.subr.mxu0 0.0
        %5129 = vmatpush1.msra.mxu0 0.0
        %5130 = vmatprep.mubr.f32.mxu0 0.0
        %5131 = vmatmul.mubr.f32.gmra.mrb[0].mxu0 %v4993
        %v5132 = vpop.f32.mrb[0].mxu0
        %v5133 = vadd.f32 0.0, %v5132
        %v5134 = vpop.f32.mrb[0].mxu0
        %v5135 = vadd.f32 0.0, %v5134
        %5136 = vdwg.mxu0
        %5137 = vmatprep.subr.mxu0 %v4981
        %5138 = vmatpush1.msra.mxu0 %v4980
        %5139 = vmatprep.subr.mxu0 0.0
        %5140 = vmatpush1.msra.mxu0 0.0
        %5141 = vmatprep.subr.mxu0 0.0
        %5142 = vmatpush1.msra.mxu0 0.0
        %5143 = vmatprep.subr.mxu0 0.0
        %5144 = vmatpush1.msra.mxu0 0.0
        %5145 = vmatprep.subr.mxu0 0.0
        %5146 = vmatpush1.msra.mxu0 0.0
        %5147 = vmatprep.subr.mxu0 0.0
        %5148 = vmatpush1.msra.mxu0 0.0
        %5149 = vmatprep.subr.mxu0 0.0
        %5150 = vmatpush1.msra.mxu0 0.0
        %5151 = vmatprep.subr.mxu0 0.0
        %5152 = vmatpush1.msra.mxu0 0.0
        %5153 = vmatprep.subr.mxu0 0.0
        %5154 = vmatpush1.msra.mxu0 0.0
        %5155 = vmatprep.subr.mxu0 0.0
        %5156 = vmatpush1.msra.mxu0 0.0
        %5157 = vmatprep.subr.mxu0 0.0
        %5158 = vmatpush1.msra.mxu0 0.0
        %5159 = vmatprep.subr.mxu0 0.0
        %5160 = vmatpush1.msra.mxu0 0.0
        %5161 = vmatprep.subr.mxu0 0.0
        %5162 = vmatpush1.msra.mxu0 0.0
        %5163 = vmatprep.subr.mxu0 0.0
        %5164 = vmatpush1.msra.mxu0 0.0
        %5165 = vmatprep.subr.mxu0 0.0
        %5166 = vmatpush1.msra.mxu0 0.0
        %5167 = vmatprep.subr.mxu0 0.0
        %5168 = vmatpush1.msra.mxu0 0.0
        %5169 = vmatprep.subr.mxu0 0.0
        %5170 = vmatpush1.msra.mxu0 0.0
        %5171 = vmatprep.subr.mxu0 0.0
        %5172 = vmatpush1.msra.mxu0 0.0
        %5173 = vmatprep.subr.mxu0 0.0
        %5174 = vmatpush1.msra.mxu0 0.0
        %5175 = vmatprep.subr.mxu0 0.0
        %5176 = vmatpush1.msra.mxu0 0.0
        %5177 = vmatprep.subr.mxu0 0.0
        %5178 = vmatpush1.msra.mxu0 0.0
        %5179 = vmatprep.subr.mxu0 0.0
        %5180 = vmatpush1.msra.mxu0 0.0
        %5181 = vmatprep.subr.mxu0 0.0
        %5182 = vmatpush1.msra.mxu0 0.0
        %5183 = vmatprep.subr.mxu0 0.0
        %5184 = vmatpush1.msra.mxu0 0.0
        %5185 = vmatprep.subr.mxu0 0.0
        %5186 = vmatpush1.msra.mxu0 0.0
        %5187 = vmatprep.subr.mxu0 0.0
        %5188 = vmatpush1.msra.mxu0 0.0
        %5189 = vmatprep.subr.mxu0 0.0
        %5190 = vmatpush1.msra.mxu0 0.0
        %5191 = vmatprep.subr.mxu0 0.0
        %5192 = vmatpush1.msra.mxu0 0.0
        %5193 = vmatprep.subr.mxu0 0.0
        %5194 = vmatpush1.msra.mxu0 0.0
        %5195 = vmatprep.subr.mxu0 0.0
        %5196 = vmatpush1.msra.mxu0 0.0
        %5197 = vmatprep.subr.mxu0 0.0
        %5198 = vmatpush1.msra.mxu0 0.0
        %5199 = vmatprep.subr.mxu0 0.0
        %5200 = vmatpush1.msra.mxu0 0.0
        %5201 = vmatprep.mubr.f32.mxu0 0.0
        %5202 = vmatmul.mubr.f32.gmra.mrb[0].mxu0 %v4993
        %v5203 = vpop.f32.mrb[0].mxu0
        %v5204 = vadd.f32 0.0, %v5203
        %v5205 = vpop.f32.mrb[0].mxu0
        %v5206 = vadd.f32 0.0, %v5205
        %5207 = vdwg.mxu0
        %5208 = vmatprep.subr.mxu0 %v4983
        %5209 = vmatpush1.msra.mxu0 %v4982
        %5210 = vmatprep.subr.mxu0 0.0
        %5211 = vmatpush1.msra.mxu0 0.0
        %5212 = vmatprep.subr.mxu0 0.0
        %5213 = vmatpush1.msra.mxu0 0.0
        %5214 = vmatprep.subr.mxu0 0.0
        %5215 = vmatpush1.msra.mxu0 0.0
        %5216 = vmatprep.subr.mxu0 0.0
        %5217 = vmatpush1.msra.mxu0 0.0
        %5218 = vmatprep.subr.mxu0 0.0
        %5219 = vmatpush1.msra.mxu0 0.0
        %5220 = vmatprep.subr.mxu0 0.0
        %5221 = vmatpush1.msra.mxu0 0.0
        %5222 = vmatprep.subr.mxu0 0.0
        %5223 = vmatpush1.msra.mxu0 0.0
        %5224 = vmatprep.subr.mxu0 0.0
        %5225 = vmatpush1.msra.mxu0 0.0
        %5226 = vmatprep.subr.mxu0 0.0
        %5227 = vmatpush1.msra.mxu0 0.0
        %5228 = vmatprep.subr.mxu0 0.0
        %5229 = vmatpush1.msra.mxu0 0.0
        %5230 = vmatprep.subr.mxu0 0.0
        %5231 = vmatpush1.msra.mxu0 0.0
        %5232 = vmatprep.subr.mxu0 0.0
        %5233 = vmatpush1.msra.mxu0 0.0
        %5234 = vmatprep.subr.mxu0 0.0
        %5235 = vmatpush1.msra.mxu0 0.0
        %5236 = vmatprep.subr.mxu0 0.0
        %5237 = vmatpush1.msra.mxu0 0.0
        %5238 = vmatprep.subr.mxu0 0.0
        %5239 = vmatpush1.msra.mxu0 0.0
        %5240 = vmatprep.subr.mxu0 0.0
        %5241 = vmatpush1.msra.mxu0 0.0
        %5242 = vmatprep.subr.mxu0 0.0
        %5243 = vmatpush1.msra.mxu0 0.0
        %5244 = vmatprep.subr.mxu0 0.0
        %5245 = vmatpush1.msra.mxu0 0.0
        %5246 = vmatprep.subr.mxu0 0.0
        %5247 = vmatpush1.msra.mxu0 0.0
        %5248 = vmatprep.subr.mxu0 0.0
        %5249 = vmatpush1.msra.mxu0 0.0
        %5250 = vmatprep.subr.mxu0 0.0
        %5251 = vmatpush1.msra.mxu0 0.0
        %5252 = vmatprep.subr.mxu0 0.0
        %5253 = vmatpush1.msra.mxu0 0.0
        %5254 = vmatprep.subr.mxu0 0.0
        %5255 = vmatpush1.msra.mxu0 0.0
        %5256 = vmatprep.subr.mxu0 0.0
        %5257 = vmatpush1.msra.mxu0 0.0
        %5258 = vmatprep.subr.mxu0 0.0
        %5259 = vmatpush1.msra.mxu0 0.0
        %5260 = vmatprep.subr.mxu0 0.0
        %5261 = vmatpush1.msra.mxu0 0.0
        %5262 = vmatprep.subr.mxu0 0.0
        %5263 = vmatpush1.msra.mxu0 0.0
        %5264 = vmatprep.subr.mxu0 0.0
        %5265 = vmatpush1.msra.mxu0 0.0
        %5266 = vmatprep.subr.mxu0 0.0
        %5267 = vmatpush1.msra.mxu0 0.0
        %5268 = vmatprep.subr.mxu0 0.0
        %5269 = vmatpush1.msra.mxu0 0.0
        %5270 = vmatprep.subr.mxu0 0.0
        %5271 = vmatpush1.msra.mxu0 0.0
        %5272 = vmatprep.mubr.f32.mxu0 0.0
        %5273 = vmatmul.mubr.f32.gmra.mrb[0].mxu0 %v4993
        %v5274 = vpop.f32.mrb[0].mxu0
        %v5275 = vadd.f32 0.0, %v5274
        %v5276 = vpop.f32.mrb[0].mxu0
        %v5277 = vadd.f32 0.0, %v5276
        %5278 = vdwg.mxu0
        %v5279 = vadd.f32 %v4928, %v5062
        %v5280 = vadd.f32 %v4928, %v5064
        %v5281 = vadd.f32 %v4928, %v5133
        %v5282 = vadd.f32 %v4928, %v5135
        %v5283 = vadd.f32 %v4928, %v5204
        %v5284 = vadd.f32 %v4928, %v5206
        %v5285 = vadd.f32 %v4928, %v5275
        %v5286 = vadd.f32 %v4928, %v5277
        %s5287 = scalar_lea.vmem [#allocation9], 8
        %v5288 = vld [vmem:[%s5287] sm:$0xff]
        %5298 = vrot.lane.b32.xlu0 %v4930, 32
        %v5299 = vpop.permute.xlu0 %5298
        %5300 = vrot.lane.b32.xlu0 %v4931, 32
        %v5301 = vpop.permute.xlu0 %5300
        %5302 = vrot.lane.b32.xlu0 %v4932, 32
        %v5303 = vpop.permute.xlu0 %5302
        %5304 = vrot.lane.b32.xlu0 %v4933, 32
        %v5305 = vpop.permute.xlu0 %5304
        %5306 = vrot.lane.b32.xlu0 %v4934, 32
        %v5307 = vpop.permute.xlu0 %5306
        %5308 = vrot.lane.b32.xlu0 %v4935, 32
        %v5309 = vpop.permute.xlu0 %5308
        %5310 = vrot.lane.b32.xlu0 %v4936, 32
        %v5311 = vpop.permute.xlu0 %5310
        %5312 = vrot.lane.b32.xlu0 %v4937, 32
        %v5313 = vpop.permute.xlu0 %5312
        %5314 = vrot.lane.b32.xlu0 %v4938, 32
        %v5315 = vpop.permute.xlu0 %5314
        %v5316 = vsel %vm1527, %v5299, %v5301
        %v5317 = vsel %vm1527, %v5301, %v5303
        %v5318 = vsel %vm1527, %v5303, %v5305
        %v5319 = vsel %vm1527, %v5305, %v5307
        %v5320 = vsel %vm1527, %v5307, %v5309
        %v5321 = vsel %vm1527, %v5309, %v5311
        %v5322 = vsel %vm1527, %v5311, %v5313
        %v5323 = vsel %vm1527, %v5313, %v5315
        %v5333 = vsel %vm4538, %v5288, 0
        %5335 = vmatprep.subr.mxu0 %v5317
        %5336 = vmatpush1.msra.mxu0 %v5316
        %5337 = vmatprep.subr.mxu0 0.0
        %5338 = vmatpush1.msra.mxu0 0.0
        %5339 = vmatprep.subr.mxu0 0.0
        %5340 = vmatpush1.msra.mxu0 0.0
        %5341 = vmatprep.subr.mxu0 0.0
        %5342 = vmatpush1.msra.mxu0 0.0
        %5343 = vmatprep.subr.mxu0 0.0
        %5344 = vmatpush1.msra.mxu0 0.0
        %5345 = vmatprep.subr.mxu0 0.0
        %5346 = vmatpush1.msra.mxu0 0.0
        %5347 = vmatprep.subr.mxu0 0.0
        %5348 = vmatpush1.msra.mxu0 0.0
        %5349 = vmatprep.subr.mxu0 0.0
        %5350 = vmatpush1.msra.mxu0 0.0
        %5351 = vmatprep.subr.mxu0 0.0
        %5352 = vmatpush1.msra.mxu0 0.0
        %5353 = vmatprep.subr.mxu0 0.0
        %5354 = vmatpush1.msra.mxu0 0.0
        %5355 = vmatprep.subr.mxu0 0.0
        %5356 = vmatpush1.msra.mxu0 0.0
        %5357 = vmatprep.subr.mxu0 0.0
        %5358 = vmatpush1.msra.mxu0 0.0
        %5359 = vmatprep.subr.mxu0 0.0
        %5360 = vmatpush1.msra.mxu0 0.0
        %5361 = vmatprep.subr.mxu0 0.0
        %5362 = vmatpush1.msra.mxu0 0.0
        %5363 = vmatprep.subr.mxu0 0.0
        %5364 = vmatpush1.msra.mxu0 0.0
        %5365 = vmatprep.subr.mxu0 0.0
        %5366 = vmatpush1.msra.mxu0 0.0
        %5367 = vmatprep.subr.mxu0 0.0
        %5368 = vmatpush1.msra.mxu0 0.0
        %5369 = vmatprep.subr.mxu0 0.0
        %5370 = vmatpush1.msra.mxu0 0.0
        %5371 = vmatprep.subr.mxu0 0.0
        %5372 = vmatpush1.msra.mxu0 0.0
        %5373 = vmatprep.subr.mxu0 0.0
        %5374 = vmatpush1.msra.mxu0 0.0
        %5375 = vmatprep.subr.mxu0 0.0
        %5376 = vmatpush1.msra.mxu0 0.0
        %5377 = vmatprep.subr.mxu0 0.0
        %5378 = vmatpush1.msra.mxu0 0.0
        %5379 = vmatprep.subr.mxu0 0.0
        %5380 = vmatpush1.msra.mxu0 0.0
        %5381 = vmatprep.subr.mxu0 0.0
        %5382 = vmatpush1.msra.mxu0 0.0
        %5383 = vmatprep.subr.mxu0 0.0
        %5384 = vmatpush1.msra.mxu0 0.0
        %5385 = vmatprep.subr.mxu0 0.0
        %5386 = vmatpush1.msra.mxu0 0.0
        %5387 = vmatprep.subr.mxu0 0.0
        %5388 = vmatpush1.msra.mxu0 0.0
        %5389 = vmatprep.subr.mxu0 0.0
        %5390 = vmatpush1.msra.mxu0 0.0
        %5391 = vmatprep.subr.mxu0 0.0
        %5392 = vmatpush1.msra.mxu0 0.0
        %5393 = vmatprep.subr.mxu0 0.0
        %5394 = vmatpush1.msra.mxu0 0.0
        %5395 = vmatprep.subr.mxu0 0.0
        %5396 = vmatpush1.msra.mxu0 0.0
        %5397 = vmatprep.subr.mxu0 0.0
        %5398 = vmatpush1.msra.mxu0 0.0
        %5399 = vmatprep.mubr.f32.mxu0 0.0
        %5400 = vmatmul.mubr.f32.gmra.mrb[0].mxu0 %v5333
        %v5401 = vpop.f32.mrb[0].mxu0
        %v5402 = vadd.f32 0.0, %v5401
        %v5403 = vpop.f32.mrb[0].mxu0
        %v5404 = vadd.f32 0.0, %v5403
        %5405 = vdwg.mxu0
        %5406 = vmatprep.subr.mxu0 %v5319
        %5407 = vmatpush1.msra.mxu0 %v5318
        %5408 = vmatprep.subr.mxu0 0.0
        %5409 = vmatpush1.msra.mxu0 0.0
        %5410 = vmatprep.subr.mxu0 0.0
        %5411 = vmatpush1.msra.mxu0 0.0
        %5412 = vmatprep.subr.mxu0 0.0
        %5413 = vmatpush1.msra.mxu0 0.0
        %5414 = vmatprep.subr.mxu0 0.0
        %5415 = vmatpush1.msra.mxu0 0.0
        %5416 = vmatprep.subr.mxu0 0.0
        %5417 = vmatpush1.msra.mxu0 0.0
        %5418 = vmatprep.subr.mxu0 0.0
        %5419 = vmatpush1.msra.mxu0 0.0
        %5420 = vmatprep.subr.mxu0 0.0
        %5421 = vmatpush1.msra.mxu0 0.0
        %5422 = vmatprep.subr.mxu0 0.0
        %5423 = vmatpush1.msra.mxu0 0.0
        %5424 = vmatprep.subr.mxu0 0.0
        %5425 = vmatpush1.msra.mxu0 0.0
        %5426 = vmatprep.subr.mxu0 0.0
        %5427 = vmatpush1.msra.mxu0 0.0
        %5428 = vmatprep.subr.mxu0 0.0
        %5429 = vmatpush1.msra.mxu0 0.0
        %5430 = vmatprep.subr.mxu0 0.0
        %5431 = vmatpush1.msra.mxu0 0.0
        %5432 = vmatprep.subr.mxu0 0.0
        %5433 = vmatpush1.msra.mxu0 0.0
        %5434 = vmatprep.subr.mxu0 0.0
        %5435 = vmatpush1.msra.mxu0 0.0
        %5436 = vmatprep.subr.mxu0 0.0
        %5437 = vmatpush1.msra.mxu0 0.0
        %5438 = vmatprep.subr.mxu0 0.0
        %5439 = vmatpush1.msra.mxu0 0.0
        %5440 = vmatprep.subr.mxu0 0.0
        %5441 = vmatpush1.msra.mxu0 0.0
        %5442 = vmatprep.subr.mxu0 0.0
        %5443 = vmatpush1.msra.mxu0 0.0
        %5444 = vmatprep.subr.mxu0 0.0
        %5445 = vmatpush1.msra.mxu0 0.0
        %5446 = vmatprep.subr.mxu0 0.0
        %5447 = vmatpush1.msra.mxu0 0.0
        %5448 = vmatprep.subr.mxu0 0.0
        %5449 = vmatpush1.msra.mxu0 0.0
        %5450 = vmatprep.subr.mxu0 0.0
        %5451 = vmatpush1.msra.mxu0 0.0
        %5452 = vmatprep.subr.mxu0 0.0
        %5453 = vmatpush1.msra.mxu0 0.0
        %5454 = vmatprep.subr.mxu0 0.0
        %5455 = vmatpush1.msra.mxu0 0.0
        %5456 = vmatprep.subr.mxu0 0.0
        %5457 = vmatpush1.msra.mxu0 0.0
        %5458 = vmatprep.subr.mxu0 0.0
        %5459 = vmatpush1.msra.mxu0 0.0
        %5460 = vmatprep.subr.mxu0 0.0
        %5461 = vmatpush1.msra.mxu0 0.0
        %5462 = vmatprep.subr.mxu0 0.0
        %5463 = vmatpush1.msra.mxu0 0.0
        %5464 = vmatprep.subr.mxu0 0.0
        %5465 = vmatpush1.msra.mxu0 0.0
        %5466 = vmatprep.subr.mxu0 0.0
        %5467 = vmatpush1.msra.mxu0 0.0
        %5468 = vmatprep.subr.mxu0 0.0
        %5469 = vmatpush1.msra.mxu0 0.0
        %5470 = vmatprep.mubr.f32.mxu0 0.0
        %5471 = vmatmul.mubr.f32.gmra.mrb[0].mxu0 %v5333
        %v5472 = vpop.f32.mrb[0].mxu0
        %v5473 = vadd.f32 0.0, %v5472
        %v5474 = vpop.f32.mrb[0].mxu0
        %v5475 = vadd.f32 0.0, %v5474
        %5476 = vdwg.mxu0
        %5477 = vmatprep.subr.mxu0 %v5321
        %5478 = vmatpush1.msra.mxu0 %v5320
        %5479 = vmatprep.subr.mxu0 0.0
        %5480 = vmatpush1.msra.mxu0 0.0
        %5481 = vmatprep.subr.mxu0 0.0
        %5482 = vmatpush1.msra.mxu0 0.0
        %5483 = vmatprep.subr.mxu0 0.0
        %5484 = vmatpush1.msra.mxu0 0.0
        %5485 = vmatprep.subr.mxu0 0.0
        %5486 = vmatpush1.msra.mxu0 0.0
        %5487 = vmatprep.subr.mxu0 0.0
        %5488 = vmatpush1.msra.mxu0 0.0
        %5489 = vmatprep.subr.mxu0 0.0
        %5490 = vmatpush1.msra.mxu0 0.0
        %5491 = vmatprep.subr.mxu0 0.0
        %5492 = vmatpush1.msra.mxu0 0.0
        %5493 = vmatprep.subr.mxu0 0.0
        %5494 = vmatpush1.msra.mxu0 0.0
        %5495 = vmatprep.subr.mxu0 0.0
        %5496 = vmatpush1.msra.mxu0 0.0
        %5497 = vmatprep.subr.mxu0 0.0
        %5498 = vmatpush1.msra.mxu0 0.0
        %5499 = vmatprep.subr.mxu0 0.0
        %5500 = vmatpush1.msra.mxu0 0.0
        %5501 = vmatprep.subr.mxu0 0.0
        %5502 = vmatpush1.msra.mxu0 0.0
        %5503 = vmatprep.subr.mxu0 0.0
        %5504 = vmatpush1.msra.mxu0 0.0
        %5505 = vmatprep.subr.mxu0 0.0
        %5506 = vmatpush1.msra.mxu0 0.0
        %5507 = vmatprep.subr.mxu0 0.0
        %5508 = vmatpush1.msra.mxu0 0.0
        %5509 = vmatprep.subr.mxu0 0.0
        %5510 = vmatpush1.msra.mxu0 0.0
        %5511 = vmatprep.subr.mxu0 0.0
        %5512 = vmatpush1.msra.mxu0 0.0
        %5513 = vmatprep.subr.mxu0 0.0
        %5514 = vmatpush1.msra.mxu0 0.0
        %5515 = vmatprep.subr.mxu0 0.0
        %5516 = vmatpush1.msra.mxu0 0.0
        %5517 = vmatprep.subr.mxu0 0.0
        %5518 = vmatpush1.msra.mxu0 0.0
        %5519 = vmatprep.subr.mxu0 0.0
        %5520 = vmatpush1.msra.mxu0 0.0
        %5521 = vmatprep.subr.mxu0 0.0
        %5522 = vmatpush1.msra.mxu0 0.0
        %5523 = vmatprep.subr.mxu0 0.0
        %5524 = vmatpush1.msra.mxu0 0.0
        %5525 = vmatprep.subr.mxu0 0.0
        %5526 = vmatpush1.msra.mxu0 0.0
        %5527 = vmatprep.subr.mxu0 0.0
        %5528 = vmatpush1.msra.mxu0 0.0
        %5529 = vmatprep.subr.mxu0 0.0
        %5530 = vmatpush1.msra.mxu0 0.0
        %5531 = vmatprep.subr.mxu0 0.0
        %5532 = vmatpush1.msra.mxu0 0.0
        %5533 = vmatprep.subr.mxu0 0.0
        %5534 = vmatpush1.msra.mxu0 0.0
        %5535 = vmatprep.subr.mxu0 0.0
        %5536 = vmatpush1.msra.mxu0 0.0
        %5537 = vmatprep.subr.mxu0 0.0
        %5538 = vmatpush1.msra.mxu0 0.0
        %5539 = vmatprep.subr.mxu0 0.0
        %5540 = vmatpush1.msra.mxu0 0.0
        %5541 = vmatprep.mubr.f32.mxu0 0.0
        %5542 = vmatmul.mubr.f32.gmra.mrb[0].mxu0 %v5333
        %v5543 = vpop.f32.mrb[0].mxu0
        %v5544 = vadd.f32 0.0, %v5543
        %v5545 = vpop.f32.mrb[0].mxu0
        %v5546 = vadd.f32 0.0, %v5545
        %5547 = vdwg.mxu0
        %5548 = vmatprep.subr.mxu0 %v5323
        %5549 = vmatpush1.msra.mxu0 %v5322
        %5550 = vmatprep.subr.mxu0 0.0
        %5551 = vmatpush1.msra.mxu0 0.0
        %5552 = vmatprep.subr.mxu0 0.0
        %5553 = vmatpush1.msra.mxu0 0.0
        %5554 = vmatprep.subr.mxu0 0.0
        %5555 = vmatpush1.msra.mxu0 0.0
        %5556 = vmatprep.subr.mxu0 0.0
        %5557 = vmatpush1.msra.mxu0 0.0
        %5558 = vmatprep.subr.mxu0 0.0
        %5559 = vmatpush1.msra.mxu0 0.0
        %5560 = vmatprep.subr.mxu0 0.0
        %5561 = vmatpush1.msra.mxu0 0.0
        %5562 = vmatprep.subr.mxu0 0.0
        %5563 = vmatpush1.msra.mxu0 0.0
        %5564 = vmatprep.subr.mxu0 0.0
        %5565 = vmatpush1.msra.mxu0 0.0
        %5566 = vmatprep.subr.mxu0 0.0
        %5567 = vmatpush1.msra.mxu0 0.0
        %5568 = vmatprep.subr.mxu0 0.0
        %5569 = vmatpush1.msra.mxu0 0.0
        %5570 = vmatprep.subr.mxu0 0.0
        %5571 = vmatpush1.msra.mxu0 0.0
        %5572 = vmatprep.subr.mxu0 0.0
        %5573 = vmatpush1.msra.mxu0 0.0
        %5574 = vmatprep.subr.mxu0 0.0
        %5575 = vmatpush1.msra.mxu0 0.0
        %5576 = vmatprep.subr.mxu0 0.0
        %5577 = vmatpush1.msra.mxu0 0.0
        %5578 = vmatprep.subr.mxu0 0.0
        %5579 = vmatpush1.msra.mxu0 0.0
        %5580 = vmatprep.subr.mxu0 0.0
        %5581 = vmatpush1.msra.mxu0 0.0
        %5582 = vmatprep.subr.mxu0 0.0
        %5583 = vmatpush1.msra.mxu0 0.0
        %5584 = vmatprep.subr.mxu0 0.0
        %5585 = vmatpush1.msra.mxu0 0.0
        %5586 = vmatprep.subr.mxu0 0.0
        %5587 = vmatpush1.msra.mxu0 0.0
        %5588 = vmatprep.subr.mxu0 0.0
        %5589 = vmatpush1.msra.mxu0 0.0
        %5590 = vmatprep.subr.mxu0 0.0
        %5591 = vmatpush1.msra.mxu0 0.0
        %5592 = vmatprep.subr.mxu0 0.0
        %5593 = vmatpush1.msra.mxu0 0.0
        %5594 = vmatprep.subr.mxu0 0.0
        %5595 = vmatpush1.msra.mxu0 0.0
        %5596 = vmatprep.subr.mxu0 0.0
        %5597 = vmatpush1.msra.mxu0 0.0
        %5598 = vmatprep.subr.mxu0 0.0
        %5599 = vmatpush1.msra.mxu0 0.0
        %5600 = vmatprep.subr.mxu0 0.0
        %5601 = vmatpush1.msra.mxu0 0.0
        %5602 = vmatprep.subr.mxu0 0.0
        %5603 = vmatpush1.msra.mxu0 0.0
        %5604 = vmatprep.subr.mxu0 0.0
        %5605 = vmatpush1.msra.mxu0 0.0
        %5606 = vmatprep.subr.mxu0 0.0
        %5607 = vmatpush1.msra.mxu0 0.0
        %5608 = vmatprep.subr.mxu0 0.0
        %5609 = vmatpush1.msra.mxu0 0.0
        %5610 = vmatprep.subr.mxu0 0.0
        %5611 = vmatpush1.msra.mxu0 0.0
        %5612 = vmatprep.mubr.f32.mxu0 0.0
        %5613 = vmatmul.mubr.f32.gmra.mrb[0].mxu0 %v5333
        %v5614 = vpop.f32.mrb[0].mxu0
        %v5615 = vadd.f32 0.0, %v5614
        %v5616 = vpop.f32.mrb[0].mxu0
        %v5617 = vadd.f32 0.0, %v5616
        %5618 = vdwg.mxu0
        %v5619 = vadd.f32 %v5279, %v5402
        %v5620 = vadd.f32 %v5280, %v5404
        %v5621 = vadd.f32 %v5281, %v5473
        %v5622 = vadd.f32 %v5282, %v5475
        %v5623 = vadd.f32 %v5283, %v5544
        %v5624 = vadd.f32 %v5284, %v5546
        %v5625 = vadd.f32 %v5285, %v5615
        %v5626 = vadd.f32 %v5286, %v5617
        %v5627 = vmul.f32 %v4930, %v1928
        %v5628 = vmul.f32 %v4931, %v1944
        %v5629 = vmul.f32 %v4932, %v1945
        %v5630 = vmul.f32 %v4933, %v1946
        %v5631 = vmul.f32 %v4934, %v1947
        %v5632 = vmul.f32 %v4935, %v1948
        %v5633 = vmul.f32 %v4936, %v1949
        %v5634 = vmul.f32 %v4937, %v1950
        %v5635 = vmul.f32 %v4938, %v1942
        %s5636 = scalar_lea.vmem [#allocation9], 16
        %v5637 = vld [vmem:[%s5636] sm:$0xff]
        %5647 = vrot.lane.b32.xlu0 %v5627, 31
        %v5648 = vpop.permute.xlu0 %5647
        %5649 = vrot.lane.b32.xlu0 %v5628, 31
        %v5650 = vpop.permute.xlu0 %5649
        %5651 = vrot.lane.b32.xlu0 %v5629, 31
        %v5652 = vpop.permute.xlu0 %5651
        %5653 = vrot.lane.b32.xlu0 %v5630, 31
        %v5654 = vpop.permute.xlu0 %5653
        %5655 = vrot.lane.b32.xlu0 %v5631, 31
        %v5656 = vpop.permute.xlu0 %5655
        %5657 = vrot.lane.b32.xlu0 %v5632, 31
        %v5658 = vpop.permute.xlu0 %5657
        %5659 = vrot.lane.b32.xlu0 %v5633, 31
        %v5660 = vpop.permute.xlu0 %5659
        %5661 = vrot.lane.b32.xlu0 %v5634, 31
        %v5662 = vpop.permute.xlu0 %5661
        %5663 = vrot.lane.b32.xlu0 %v5635, 31
        %v5664 = vpop.permute.xlu0 %5663
        %v5665 = vsel %vm1998, %v5648, %v5650
        %v5666 = vsel %vm1998, %v5650, %v5652
        %v5667 = vsel %vm1998, %v5652, %v5654
        %v5668 = vsel %vm1998, %v5654, %v5656
        %v5669 = vsel %vm1998, %v5656, %v5658
        %v5670 = vsel %vm1998, %v5658, %v5660
        %v5671 = vsel %vm1998, %v5660, %v5662
        %v5672 = vsel %vm1998, %v5662, %v5664
        %v5682 = vsel %vm4538, %v5637, 0
        %5684 = vmatprep.subr.mxu0 %v5666
        %5685 = vmatpush1.msra.mxu0 %v5665
        %5686 = vmatprep.subr.mxu0 0.0
        %5687 = vmatpush1.msra.mxu0 0.0
        %5688 = vmatprep.subr.mxu0 0.0
        %5689 = vmatpush1.msra.mxu0 0.0
        %5690 = vmatprep.subr.mxu0 0.0
        %5691 = vmatpush1.msra.mxu0 0.0
        %5692 = vmatprep.subr.mxu0 0.0
        %5693 = vmatpush1.msra.mxu0 0.0
        %5694 = vmatprep.subr.mxu0 0.0
        %5695 = vmatpush1.msra.mxu0 0.0
        %5696 = vmatprep.subr.mxu0 0.0
        %5697 = vmatpush1.msra.mxu0 0.0
        %5698 = vmatprep.subr.mxu0 0.0
        %5699 = vmatpush1.msra.mxu0 0.0
        %5700 = vmatprep.subr.mxu0 0.0
        %5701 = vmatpush1.msra.mxu0 0.0
        %5702 = vmatprep.subr.mxu0 0.0
        %5703 = vmatpush1.msra.mxu0 0.0
        %5704 = vmatprep.subr.mxu0 0.0
        %5705 = vmatpush1.msra.mxu0 0.0
        %5706 = vmatprep.subr.mxu0 0.0
        %5707 = vmatpush1.msra.mxu0 0.0
        %5708 = vmatprep.subr.mxu0 0.0
        %5709 = vmatpush1.msra.mxu0 0.0
        %5710 = vmatprep.subr.mxu0 0.0
        %5711 = vmatpush1.msra.mxu0 0.0
        %5712 = vmatprep.subr.mxu0 0.0
        %5713 = vmatpush1.msra.mxu0 0.0
        %5714 = vmatprep.subr.mxu0 0.0
        %5715 = vmatpush1.msra.mxu0 0.0
        %5716 = vmatprep.subr.mxu0 0.0
        %5717 = vmatpush1.msra.mxu0 0.0
        %5718 = vmatprep.subr.mxu0 0.0
        %5719 = vmatpush1.msra.mxu0 0.0
        %5720 = vmatprep.subr.mxu0 0.0
        %5721 = vmatpush1.msra.mxu0 0.0
        %5722 = vmatprep.subr.mxu0 0.0
        %5723 = vmatpush1.msra.mxu0 0.0
        %5724 = vmatprep.subr.mxu0 0.0
        %5725 = vmatpush1.msra.mxu0 0.0
        %5726 = vmatprep.subr.mxu0 0.0
        %5727 = vmatpush1.msra.mxu0 0.0
        %5728 = vmatprep.subr.mxu0 0.0
        %5729 = vmatpush1.msra.mxu0 0.0
        %5730 = vmatprep.subr.mxu0 0.0
        %5731 = vmatpush1.msra.mxu0 0.0
        %5732 = vmatprep.subr.mxu0 0.0
        %5733 = vmatpush1.msra.mxu0 0.0
        %5734 = vmatprep.subr.mxu0 0.0
        %5735 = vmatpush1.msra.mxu0 0.0
        %5736 = vmatprep.subr.mxu0 0.0
        %5737 = vmatpush1.msra.mxu0 0.0
        %5738 = vmatprep.subr.mxu0 0.0
        %5739 = vmatpush1.msra.mxu0 0.0
        %5740 = vmatprep.subr.mxu0 0.0
        %5741 = vmatpush1.msra.mxu0 0.0
        %5742 = vmatprep.subr.mxu0 0.0
        %5743 = vmatpush1.msra.mxu0 0.0
        %5744 = vmatprep.subr.mxu0 0.0
        %5745 = vmatpush1.msra.mxu0 0.0
        %5746 = vmatprep.subr.mxu0 0.0
        %5747 = vmatpush1.msra.mxu0 0.0
        %5748 = vmatprep.mubr.f32.mxu0 0.0
        %5749 = vmatmul.mubr.f32.gmra.mrb[0].mxu0 %v5682
        %v5750 = vpop.f32.mrb[0].mxu0
        %v5751 = vadd.f32 0.0, %v5750
        %v5752 = vpop.f32.mrb[0].mxu0
        %v5753 = vadd.f32 0.0, %v5752
        %5754 = vdwg.mxu0
        %5755 = vmatprep.subr.mxu0 %v5668
        %5756 = vmatpush1.msra.mxu0 %v5667
        %5757 = vmatprep.subr.mxu0 0.0
        %5758 = vmatpush1.msra.mxu0 0.0
        %5759 = vmatprep.subr.mxu0 0.0
        %5760 = vmatpush1.msra.mxu0 0.0
        %5761 = vmatprep.subr.mxu0 0.0
        %5762 = vmatpush1.msra.mxu0 0.0
        %5763 = vmatprep.subr.mxu0 0.0
        %5764 = vmatpush1.msra.mxu0 0.0
        %5765 = vmatprep.subr.mxu0 0.0
        %5766 = vmatpush1.msra.mxu0 0.0
        %5767 = vmatprep.subr.mxu0 0.0
        %5768 = vmatpush1.msra.mxu0 0.0
        %5769 = vmatprep.subr.mxu0 0.0
        %5770 = vmatpush1.msra.mxu0 0.0
        %5771 = vmatprep.subr.mxu0 0.0
        %5772 = vmatpush1.msra.mxu0 0.0
        %5773 = vmatprep.subr.mxu0 0.0
        %5774 = vmatpush1.msra.mxu0 0.0
        %5775 = vmatprep.subr.mxu0 0.0
        %5776 = vmatpush1.msra.mxu0 0.0
        %5777 = vmatprep.subr.mxu0 0.0
        %5778 = vmatpush1.msra.mxu0 0.0
        %5779 = vmatprep.subr.mxu0 0.0
        %5780 = vmatpush1.msra.mxu0 0.0
        %5781 = vmatprep.subr.mxu0 0.0
        %5782 = vmatpush1.msra.mxu0 0.0
        %5783 = vmatprep.subr.mxu0 0.0
        %5784 = vmatpush1.msra.mxu0 0.0
        %5785 = vmatprep.subr.mxu0 0.0
        %5786 = vmatpush1.msra.mxu0 0.0
        %5787 = vmatprep.subr.mxu0 0.0
        %5788 = vmatpush1.msra.mxu0 0.0
        %5789 = vmatprep.subr.mxu0 0.0
        %5790 = vmatpush1.msra.mxu0 0.0
        %5791 = vmatprep.subr.mxu0 0.0
        %5792 = vmatpush1.msra.mxu0 0.0
        %5793 = vmatprep.subr.mxu0 0.0
        %5794 = vmatpush1.msra.mxu0 0.0
        %5795 = vmatprep.subr.mxu0 0.0
        %5796 = vmatpush1.msra.mxu0 0.0
        %5797 = vmatprep.subr.mxu0 0.0
        %5798 = vmatpush1.msra.mxu0 0.0
        %5799 = vmatprep.subr.mxu0 0.0
        %5800 = vmatpush1.msra.mxu0 0.0
        %5801 = vmatprep.subr.mxu0 0.0
        %5802 = vmatpush1.msra.mxu0 0.0
        %5803 = vmatprep.subr.mxu0 0.0
        %5804 = vmatpush1.msra.mxu0 0.0
        %5805 = vmatprep.subr.mxu0 0.0
        %5806 = vmatpush1.msra.mxu0 0.0
        %5807 = vmatprep.subr.mxu0 0.0
        %5808 = vmatpush1.msra.mxu0 0.0
        %5809 = vmatprep.subr.mxu0 0.0
        %5810 = vmatpush1.msra.mxu0 0.0
        %5811 = vmatprep.subr.mxu0 0.0
        %5812 = vmatpush1.msra.mxu0 0.0
        %5813 = vmatprep.subr.mxu0 0.0
        %5814 = vmatpush1.msra.mxu0 0.0
        %5815 = vmatprep.subr.mxu0 0.0
        %5816 = vmatpush1.msra.mxu0 0.0
        %5817 = vmatprep.subr.mxu0 0.0
        %5818 = vmatpush1.msra.mxu0 0.0
        %5819 = vmatprep.mubr.f32.mxu0 0.0
        %5820 = vmatmul.mubr.f32.gmra.mrb[0].mxu0 %v5682
        %v5821 = vpop.f32.mrb[0].mxu0
        %v5822 = vadd.f32 0.0, %v5821
        %v5823 = vpop.f32.mrb[0].mxu0
        %v5824 = vadd.f32 0.0, %v5823
        %5825 = vdwg.mxu0
        %5826 = vmatprep.subr.mxu0 %v5670
        %5827 = vmatpush1.msra.mxu0 %v5669
        %5828 = vmatprep.subr.mxu0 0.0
        %5829 = vmatpush1.msra.mxu0 0.0
        %5830 = vmatprep.subr.mxu0 0.0
        %5831 = vmatpush1.msra.mxu0 0.0
        %5832 = vmatprep.subr.mxu0 0.0
        %5833 = vmatpush1.msra.mxu0 0.0
        %5834 = vmatprep.subr.mxu0 0.0
        %5835 = vmatpush1.msra.mxu0 0.0
        %5836 = vmatprep.subr.mxu0 0.0
        %5837 = vmatpush1.msra.mxu0 0.0
        %5838 = vmatprep.subr.mxu0 0.0
        %5839 = vmatpush1.msra.mxu0 0.0
        %5840 = vmatprep.subr.mxu0 0.0
        %5841 = vmatpush1.msra.mxu0 0.0
        %5842 = vmatprep.subr.mxu0 0.0
        %5843 = vmatpush1.msra.mxu0 0.0
        %5844 = vmatprep.subr.mxu0 0.0
        %5845 = vmatpush1.msra.mxu0 0.0
        %5846 = vmatprep.subr.mxu0 0.0
        %5847 = vmatpush1.msra.mxu0 0.0
        %5848 = vmatprep.subr.mxu0 0.0
        %5849 = vmatpush1.msra.mxu0 0.0
        %5850 = vmatprep.subr.mxu0 0.0
        %5851 = vmatpush1.msra.mxu0 0.0
        %5852 = vmatprep.subr.mxu0 0.0
        %5853 = vmatpush1.msra.mxu0 0.0
        %5854 = vmatprep.subr.mxu0 0.0
        %5855 = vmatpush1.msra.mxu0 0.0
        %5856 = vmatprep.subr.mxu0 0.0
        %5857 = vmatpush1.msra.mxu0 0.0
        %5858 = vmatprep.subr.mxu0 0.0
        %5859 = vmatpush1.msra.mxu0 0.0
        %5860 = vmatprep.subr.mxu0 0.0
        %5861 = vmatpush1.msra.mxu0 0.0
        %5862 = vmatprep.subr.mxu0 0.0
        %5863 = vmatpush1.msra.mxu0 0.0
        %5864 = vmatprep.subr.mxu0 0.0
        %5865 = vmatpush1.msra.mxu0 0.0
        %5866 = vmatprep.subr.mxu0 0.0
        %5867 = vmatpush1.msra.mxu0 0.0
        %5868 = vmatprep.subr.mxu0 0.0
        %5869 = vmatpush1.msra.mxu0 0.0
        %5870 = vmatprep.subr.mxu0 0.0
        %5871 = vmatpush1.msra.mxu0 0.0
        %5872 = vmatprep.subr.mxu0 0.0
        %5873 = vmatpush1.msra.mxu0 0.0
        %5874 = vmatprep.subr.mxu0 0.0
        %5875 = vmatpush1.msra.mxu0 0.0
        %5876 = vmatprep.subr.mxu0 0.0
        %5877 = vmatpush1.msra.mxu0 0.0
        %5878 = vmatprep.subr.mxu0 0.0
        %5879 = vmatpush1.msra.mxu0 0.0
        %5880 = vmatprep.subr.mxu0 0.0
        %5881 = vmatpush1.msra.mxu0 0.0
        %5882 = vmatprep.subr.mxu0 0.0
        %5883 = vmatpush1.msra.mxu0 0.0
        %5884 = vmatprep.subr.mxu0 0.0
        %5885 = vmatpush1.msra.mxu0 0.0
        %5886 = vmatprep.subr.mxu0 0.0
        %5887 = vmatpush1.msra.mxu0 0.0
        %5888 = vmatprep.subr.mxu0 0.0
        %5889 = vmatpush1.msra.mxu0 0.0
        %5890 = vmatprep.mubr.f32.mxu0 0.0
        %5891 = vmatmul.mubr.f32.gmra.mrb[0].mxu0 %v5682
        %v5892 = vpop.f32.mrb[0].mxu0
        %v5893 = vadd.f32 0.0, %v5892
        %v5894 = vpop.f32.mrb[0].mxu0
        %v5895 = vadd.f32 0.0, %v5894
        %5896 = vdwg.mxu0
        %5897 = vmatprep.subr.mxu0 %v5672
        %5898 = vmatpush1.msra.mxu0 %v5671
        %5899 = vmatprep.subr.mxu0 0.0
        %5900 = vmatpush1.msra.mxu0 0.0
        %5901 = vmatprep.subr.mxu0 0.0
        %5902 = vmatpush1.msra.mxu0 0.0
        %5903 = vmatprep.subr.mxu0 0.0
        %5904 = vmatpush1.msra.mxu0 0.0
        %5905 = vmatprep.subr.mxu0 0.0
        %5906 = vmatpush1.msra.mxu0 0.0
        %5907 = vmatprep.subr.mxu0 0.0
        %5908 = vmatpush1.msra.mxu0 0.0
        %5909 = vmatprep.subr.mxu0 0.0
        %5910 = vmatpush1.msra.mxu0 0.0
        %5911 = vmatprep.subr.mxu0 0.0
        %5912 = vmatpush1.msra.mxu0 0.0
        %5913 = vmatprep.subr.mxu0 0.0
        %5914 = vmatpush1.msra.mxu0 0.0
        %5915 = vmatprep.subr.mxu0 0.0
        %5916 = vmatpush1.msra.mxu0 0.0
        %5917 = vmatprep.subr.mxu0 0.0
        %5918 = vmatpush1.msra.mxu0 0.0
        %5919 = vmatprep.subr.mxu0 0.0
        %5920 = vmatpush1.msra.mxu0 0.0
        %5921 = vmatprep.subr.mxu0 0.0
        %5922 = vmatpush1.msra.mxu0 0.0
        %5923 = vmatprep.subr.mxu0 0.0
        %5924 = vmatpush1.msra.mxu0 0.0
        %5925 = vmatprep.subr.mxu0 0.0
        %5926 = vmatpush1.msra.mxu0 0.0
        %5927 = vmatprep.subr.mxu0 0.0
        %5928 = vmatpush1.msra.mxu0 0.0
        %5929 = vmatprep.subr.mxu0 0.0
        %5930 = vmatpush1.msra.mxu0 0.0
        %5931 = vmatprep.subr.mxu0 0.0
        %5932 = vmatpush1.msra.mxu0 0.0
        %5933 = vmatprep.subr.mxu0 0.0
        %5934 = vmatpush1.msra.mxu0 0.0
        %5935 = vmatprep.subr.mxu0 0.0
        %5936 = vmatpush1.msra.mxu0 0.0
        %5937 = vmatprep.subr.mxu0 0.0
        %5938 = vmatpush1.msra.mxu0 0.0
        %5939 = vmatprep.subr.mxu0 0.0
        %5940 = vmatpush1.msra.mxu0 0.0
        %5941 = vmatprep.subr.mxu0 0.0
        %5942 = vmatpush1.msra.mxu0 0.0
        %5943 = vmatprep.subr.mxu0 0.0
        %5944 = vmatpush1.msra.mxu0 0.0
        %5945 = vmatprep.subr.mxu0 0.0
        %5946 = vmatpush1.msra.mxu0 0.0
        %5947 = vmatprep.subr.mxu0 0.0
        %5948 = vmatpush1.msra.mxu0 0.0
        %5949 = vmatprep.subr.mxu0 0.0
        %5950 = vmatpush1.msra.mxu0 0.0
        %5951 = vmatprep.subr.mxu0 0.0
        %5952 = vmatpush1.msra.mxu0 0.0
        %5953 = vmatprep.subr.mxu0 0.0
        %5954 = vmatpush1.msra.mxu0 0.0
        %5955 = vmatprep.subr.mxu0 0.0
        %5956 = vmatpush1.msra.mxu0 0.0
        %5957 = vmatprep.subr.mxu0 0.0
        %5958 = vmatpush1.msra.mxu0 0.0
        %5959 = vmatprep.subr.mxu0 0.0
        %5960 = vmatpush1.msra.mxu0 0.0
        %5961 = vmatprep.mubr.f32.mxu0 0.0
        %5962 = vmatmul.mubr.f32.gmra.mrb[0].mxu0 %v5682
        %v5963 = vpop.f32.mrb[0].mxu0
        %v5964 = vadd.f32 0.0, %v5963
        %v5965 = vpop.f32.mrb[0].mxu0
        %v5966 = vadd.f32 0.0, %v5965
        %5967 = vdwg.mxu0
        %v5968 = vadd.f32 %v5619, %v5751
        %v5969 = vadd.f32 %v5620, %v5753
        %v5970 = vadd.f32 %v5621, %v5822
        %v5971 = vadd.f32 %v5622, %v5824
        %v5972 = vadd.f32 %v5623, %v5893
        %v5973 = vadd.f32 %v5624, %v5895
        %v5974 = vadd.f32 %v5625, %v5964
        %v5975 = vadd.f32 %v5626, %v5966
        %v5976 = vmul.f32 %v4930, %v2319
        %v5977 = vmul.f32 %v4931, %v2335
        %v5978 = vmul.f32 %v4932, %v2336
        %v5979 = vmul.f32 %v4933, %v2337
        %v5980 = vmul.f32 %v4934, %v2338
        %v5981 = vmul.f32 %v4935, %v2339
        %v5982 = vmul.f32 %v4936, %v2340
        %v5983 = vmul.f32 %v4937, %v2341
        %v5984 = vmul.f32 %v4938, %v2333
        %s5985 = scalar_lea.vmem [#allocation9], 24
        %v5986 = vld [vmem:[%s5985] sm:$0xff]
        %5996 = vrot.lane.b32.xlu0 %v5976, 1
        %v5997 = vpop.permute.xlu0 %5996
        %5998 = vrot.lane.b32.xlu0 %v5977, 1
        %v5999 = vpop.permute.xlu0 %5998
        %6000 = vrot.lane.b32.xlu0 %v5978, 1
        %v6001 = vpop.permute.xlu0 %6000
        %6002 = vrot.lane.b32.xlu0 %v5979, 1
        %v6003 = vpop.permute.xlu0 %6002
        %6004 = vrot.lane.b32.xlu0 %v5980, 1
        %v6005 = vpop.permute.xlu0 %6004
        %6006 = vrot.lane.b32.xlu0 %v5981, 1
        %v6007 = vpop.permute.xlu0 %6006
        %6008 = vrot.lane.b32.xlu0 %v5982, 1
        %v6009 = vpop.permute.xlu0 %6008
        %6010 = vrot.lane.b32.xlu0 %v5983, 1
        %v6011 = vpop.permute.xlu0 %6010
        %6012 = vrot.lane.b32.xlu0 %v5984, 1
        %v6013 = vpop.permute.xlu0 %6012
        %v6014 = vsel %vm2389, %v5997, %v5999
        %v6015 = vsel %vm2389, %v5999, %v6001
        %v6016 = vsel %vm2389, %v6001, %v6003
        %v6017 = vsel %vm2389, %v6003, %v6005
        %v6018 = vsel %vm2389, %v6005, %v6007
        %v6019 = vsel %vm2389, %v6007, %v6009
        %v6020 = vsel %vm2389, %v6009, %v6011
        %v6021 = vsel %vm2389, %v6011, %v6013
        %v6031 = vsel %vm4538, %v5986, 0
        %6033 = vmatprep.subr.mxu0 %v6015
        %6034 = vmatpush1.msra.mxu0 %v6014
        %6035 = vmatprep.subr.mxu0 0.0
        %6036 = vmatpush1.msra.mxu0 0.0
        %6037 = vmatprep.subr.mxu0 0.0
        %6038 = vmatpush1.msra.mxu0 0.0
        %6039 = vmatprep.subr.mxu0 0.0
        %6040 = vmatpush1.msra.mxu0 0.0
        %6041 = vmatprep.subr.mxu0 0.0
        %6042 = vmatpush1.msra.mxu0 0.0
        %6043 = vmatprep.subr.mxu0 0.0
        %6044 = vmatpush1.msra.mxu0 0.0
        %6045 = vmatprep.subr.mxu0 0.0
        %6046 = vmatpush1.msra.mxu0 0.0
        %6047 = vmatprep.subr.mxu0 0.0
        %6048 = vmatpush1.msra.mxu0 0.0
        %6049 = vmatprep.subr.mxu0 0.0
        %6050 = vmatpush1.msra.mxu0 0.0
        %6051 = vmatprep.subr.mxu0 0.0
        %6052 = vmatpush1.msra.mxu0 0.0
        %6053 = vmatprep.subr.mxu0 0.0
        %6054 = vmatpush1.msra.mxu0 0.0
        %6055 = vmatprep.subr.mxu0 0.0
        %6056 = vmatpush1.msra.mxu0 0.0
        %6057 = vmatprep.subr.mxu0 0.0
        %6058 = vmatpush1.msra.mxu0 0.0
        %6059 = vmatprep.subr.mxu0 0.0
        %6060 = vmatpush1.msra.mxu0 0.0
        %6061 = vmatprep.subr.mxu0 0.0
        %6062 = vmatpush1.msra.mxu0 0.0
        %6063 = vmatprep.subr.mxu0 0.0
        %6064 = vmatpush1.msra.mxu0 0.0
        %6065 = vmatprep.subr.mxu0 0.0
        %6066 = vmatpush1.msra.mxu0 0.0
        %6067 = vmatprep.subr.mxu0 0.0
        %6068 = vmatpush1.msra.mxu0 0.0
        %6069 = vmatprep.subr.mxu0 0.0
        %6070 = vmatpush1.msra.mxu0 0.0
        %6071 = vmatprep.subr.mxu0 0.0
        %6072 = vmatpush1.msra.mxu0 0.0
        %6073 = vmatprep.subr.mxu0 0.0
        %6074 = vmatpush1.msra.mxu0 0.0
        %6075 = vmatprep.subr.mxu0 0.0
        %6076 = vmatpush1.msra.mxu0 0.0
        %6077 = vmatprep.subr.mxu0 0.0
        %6078 = vmatpush1.msra.mxu0 0.0
        %6079 = vmatprep.subr.mxu0 0.0
        %6080 = vmatpush1.msra.mxu0 0.0
        %6081 = vmatprep.subr.mxu0 0.0
        %6082 = vmatpush1.msra.mxu0 0.0
        %6083 = vmatprep.subr.mxu0 0.0
        %6084 = vmatpush1.msra.mxu0 0.0
        %6085 = vmatprep.subr.mxu0 0.0
        %6086 = vmatpush1.msra.mxu0 0.0
        %6087 = vmatprep.subr.mxu0 0.0
        %6088 = vmatpush1.msra.mxu0 0.0
        %6089 = vmatprep.subr.mxu0 0.0
        %6090 = vmatpush1.msra.mxu0 0.0
        %6091 = vmatprep.subr.mxu0 0.0
        %6092 = vmatpush1.msra.mxu0 0.0
        %6093 = vmatprep.subr.mxu0 0.0
        %6094 = vmatpush1.msra.mxu0 0.0
        %6095 = vmatprep.subr.mxu0 0.0
        %6096 = vmatpush1.msra.mxu0 0.0
        %6097 = vmatprep.mubr.f32.mxu0 0.0
        %6098 = vmatmul.mubr.f32.gmra.mrb[0].mxu0 %v6031
        %v6099 = vpop.f32.mrb[0].mxu0
        %v6100 = vadd.f32 0.0, %v6099
        %v6101 = vpop.f32.mrb[0].mxu0
        %v6102 = vadd.f32 0.0, %v6101
        %6103 = vdwg.mxu0
        %6104 = vmatprep.subr.mxu0 %v6017
        %6105 = vmatpush1.msra.mxu0 %v6016
        %6106 = vmatprep.subr.mxu0 0.0
        %6107 = vmatpush1.msra.mxu0 0.0
        %6108 = vmatprep.subr.mxu0 0.0
        %6109 = vmatpush1.msra.mxu0 0.0
        %6110 = vmatprep.subr.mxu0 0.0
        %6111 = vmatpush1.msra.mxu0 0.0
        %6112 = vmatprep.subr.mxu0 0.0
        %6113 = vmatpush1.msra.mxu0 0.0
        %6114 = vmatprep.subr.mxu0 0.0
        %6115 = vmatpush1.msra.mxu0 0.0
        %6116 = vmatprep.subr.mxu0 0.0
        %6117 = vmatpush1.msra.mxu0 0.0
        %6118 = vmatprep.subr.mxu0 0.0
        %6119 = vmatpush1.msra.mxu0 0.0
        %6120 = vmatprep.subr.mxu0 0.0
        %6121 = vmatpush1.msra.mxu0 0.0
        %6122 = vmatprep.subr.mxu0 0.0
        %6123 = vmatpush1.msra.mxu0 0.0
        %6124 = vmatprep.subr.mxu0 0.0
        %6125 = vmatpush1.msra.mxu0 0.0
        %6126 = vmatprep.subr.mxu0 0.0
        %6127 = vmatpush1.msra.mxu0 0.0
        %6128 = vmatprep.subr.mxu0 0.0
        %6129 = vmatpush1.msra.mxu0 0.0
        %6130 = vmatprep.subr.mxu0 0.0
        %6131 = vmatpush1.msra.mxu0 0.0
        %6132 = vmatprep.subr.mxu0 0.0
        %6133 = vmatpush1.msra.mxu0 0.0
        %6134 = vmatprep.subr.mxu0 0.0
        %6135 = vmatpush1.msra.mxu0 0.0
        %6136 = vmatprep.subr.mxu0 0.0
        %6137 = vmatpush1.msra.mxu0 0.0
        %6138 = vmatprep.subr.mxu0 0.0
        %6139 = vmatpush1.msra.mxu0 0.0
        %6140 = vmatprep.subr.mxu0 0.0
        %6141 = vmatpush1.msra.mxu0 0.0
        %6142 = vmatprep.subr.mxu0 0.0
        %6143 = vmatpush1.msra.mxu0 0.0
        %6144 = vmatprep.subr.mxu0 0.0
        %6145 = vmatpush1.msra.mxu0 0.0
        %6146 = vmatprep.subr.mxu0 0.0
        %6147 = vmatpush1.msra.mxu0 0.0
        %6148 = vmatprep.subr.mxu0 0.0
        %6149 = vmatpush1.msra.mxu0 0.0
        %6150 = vmatprep.subr.mxu0 0.0
        %6151 = vmatpush1.msra.mxu0 0.0
        %6152 = vmatprep.subr.mxu0 0.0
        %6153 = vmatpush1.msra.mxu0 0.0
        %6154 = vmatprep.subr.mxu0 0.0
        %6155 = vmatpush1.msra.mxu0 0.0
        %6156 = vmatprep.subr.mxu0 0.0
        %6157 = vmatpush1.msra.mxu0 0.0
        %6158 = vmatprep.subr.mxu0 0.0
        %6159 = vmatpush1.msra.mxu0 0.0
        %6160 = vmatprep.subr.mxu0 0.0
        %6161 = vmatpush1.msra.mxu0 0.0
        %6162 = vmatprep.subr.mxu0 0.0
        %6163 = vmatpush1.msra.mxu0 0.0
        %6164 = vmatprep.subr.mxu0 0.0
        %6165 = vmatpush1.msra.mxu0 0.0
        %6166 = vmatprep.subr.mxu0 0.0
        %6167 = vmatpush1.msra.mxu0 0.0
        %6168 = vmatprep.mubr.f32.mxu0 0.0
        %6169 = vmatmul.mubr.f32.gmra.mrb[0].mxu0 %v6031
        %v6170 = vpop.f32.mrb[0].mxu0
        %v6171 = vadd.f32 0.0, %v6170
        %v6172 = vpop.f32.mrb[0].mxu0
        %v6173 = vadd.f32 0.0, %v6172
        %6174 = vdwg.mxu0
        %6175 = vmatprep.subr.mxu0 %v6019
        %6176 = vmatpush1.msra.mxu0 %v6018
        %6177 = vmatprep.subr.mxu0 0.0
        %6178 = vmatpush1.msra.mxu0 0.0
        %6179 = vmatprep.subr.mxu0 0.0
        %6180 = vmatpush1.msra.mxu0 0.0
        %6181 = vmatprep.subr.mxu0 0.0
        %6182 = vmatpush1.msra.mxu0 0.0
        %6183 = vmatprep.subr.mxu0 0.0
        %6184 = vmatpush1.msra.mxu0 0.0
        %6185 = vmatprep.subr.mxu0 0.0
        %6186 = vmatpush1.msra.mxu0 0.0
        %6187 = vmatprep.subr.mxu0 0.0
        %6188 = vmatpush1.msra.mxu0 0.0
        %6189 = vmatprep.subr.mxu0 0.0
        %6190 = vmatpush1.msra.mxu0 0.0
        %6191 = vmatprep.subr.mxu0 0.0
        %6192 = vmatpush1.msra.mxu0 0.0
        %6193 = vmatprep.subr.mxu0 0.0
        %6194 = vmatpush1.msra.mxu0 0.0
        %6195 = vmatprep.subr.mxu0 0.0
        %6196 = vmatpush1.msra.mxu0 0.0
        %6197 = vmatprep.subr.mxu0 0.0
        %6198 = vmatpush1.msra.mxu0 0.0
        %6199 = vmatprep.subr.mxu0 0.0
        %6200 = vmatpush1.msra.mxu0 0.0
        %6201 = vmatprep.subr.mxu0 0.0
        %6202 = vmatpush1.msra.mxu0 0.0
        %6203 = vmatprep.subr.mxu0 0.0
        %6204 = vmatpush1.msra.mxu0 0.0
        %6205 = vmatprep.subr.mxu0 0.0
        %6206 = vmatpush1.msra.mxu0 0.0
        %6207 = vmatprep.subr.mxu0 0.0
        %6208 = vmatpush1.msra.mxu0 0.0
        %6209 = vmatprep.subr.mxu0 0.0
        %6210 = vmatpush1.msra.mxu0 0.0
        %6211 = vmatprep.subr.mxu0 0.0
        %6212 = vmatpush1.msra.mxu0 0.0
        %6213 = vmatprep.subr.mxu0 0.0
        %6214 = vmatpush1.msra.mxu0 0.0
        %6215 = vmatprep.subr.mxu0 0.0
        %6216 = vmatpush1.msra.mxu0 0.0
        %6217 = vmatprep.subr.mxu0 0.0
        %6218 = vmatpush1.msra.mxu0 0.0
        %6219 = vmatprep.subr.mxu0 0.0
        %6220 = vmatpush1.msra.mxu0 0.0
        %6221 = vmatprep.subr.mxu0 0.0
        %6222 = vmatpush1.msra.mxu0 0.0
        %6223 = vmatprep.subr.mxu0 0.0
        %6224 = vmatpush1.msra.mxu0 0.0
        %6225 = vmatprep.subr.mxu0 0.0
        %6226 = vmatpush1.msra.mxu0 0.0
        %6227 = vmatprep.subr.mxu0 0.0
        %6228 = vmatpush1.msra.mxu0 0.0
        %6229 = vmatprep.subr.mxu0 0.0
        %6230 = vmatpush1.msra.mxu0 0.0
        %6231 = vmatprep.subr.mxu0 0.0
        %6232 = vmatpush1.msra.mxu0 0.0
        %6233 = vmatprep.subr.mxu0 0.0
        %6234 = vmatpush1.msra.mxu0 0.0
        %6235 = vmatprep.subr.mxu0 0.0
        %6236 = vmatpush1.msra.mxu0 0.0
        %6237 = vmatprep.subr.mxu0 0.0
        %6238 = vmatpush1.msra.mxu0 0.0
        %6239 = vmatprep.mubr.f32.mxu0 0.0
        %6240 = vmatmul.mubr.f32.gmra.mrb[0].mxu0 %v6031
        %v6241 = vpop.f32.mrb[0].mxu0
        %v6242 = vadd.f32 0.0, %v6241
        %v6243 = vpop.f32.mrb[0].mxu0
        %v6244 = vadd.f32 0.0, %v6243
        %6245 = vdwg.mxu0
        %6246 = vmatprep.subr.mxu0 %v6021
        %6247 = vmatpush1.msra.mxu0 %v6020
        %6248 = vmatprep.subr.mxu0 0.0
        %6249 = vmatpush1.msra.mxu0 0.0
        %6250 = vmatprep.subr.mxu0 0.0
        %6251 = vmatpush1.msra.mxu0 0.0
        %6252 = vmatprep.subr.mxu0 0.0
        %6253 = vmatpush1.msra.mxu0 0.0
        %6254 = vmatprep.subr.mxu0 0.0
        %6255 = vmatpush1.msra.mxu0 0.0
        %6256 = vmatprep.subr.mxu0 0.0
        %6257 = vmatpush1.msra.mxu0 0.0
        %6258 = vmatprep.subr.mxu0 0.0
        %6259 = vmatpush1.msra.mxu0 0.0
        %6260 = vmatprep.subr.mxu0 0.0
        %6261 = vmatpush1.msra.mxu0 0.0
        %6262 = vmatprep.subr.mxu0 0.0
        %6263 = vmatpush1.msra.mxu0 0.0
        %6264 = vmatprep.subr.mxu0 0.0
        %6265 = vmatpush1.msra.mxu0 0.0
        %6266 = vmatprep.subr.mxu0 0.0
        %6267 = vmatpush1.msra.mxu0 0.0
        %6268 = vmatprep.subr.mxu0 0.0
        %6269 = vmatpush1.msra.mxu0 0.0
        %6270 = vmatprep.subr.mxu0 0.0
        %6271 = vmatpush1.msra.mxu0 0.0
        %6272 = vmatprep.subr.mxu0 0.0
        %6273 = vmatpush1.msra.mxu0 0.0
        %6274 = vmatprep.subr.mxu0 0.0
        %6275 = vmatpush1.msra.mxu0 0.0
        %6276 = vmatprep.subr.mxu0 0.0
        %6277 = vmatpush1.msra.mxu0 0.0
        %6278 = vmatprep.subr.mxu0 0.0
        %6279 = vmatpush1.msra.mxu0 0.0
        %6280 = vmatprep.subr.mxu0 0.0
        %6281 = vmatpush1.msra.mxu0 0.0
        %6282 = vmatprep.subr.mxu0 0.0
        %6283 = vmatpush1.msra.mxu0 0.0
        %6284 = vmatprep.subr.mxu0 0.0
        %6285 = vmatpush1.msra.mxu0 0.0
        %6286 = vmatprep.subr.mxu0 0.0
        %6287 = vmatpush1.msra.mxu0 0.0
        %6288 = vmatprep.subr.mxu0 0.0
        %6289 = vmatpush1.msra.mxu0 0.0
        %6290 = vmatprep.subr.mxu0 0.0
        %6291 = vmatpush1.msra.mxu0 0.0
        %6292 = vmatprep.subr.mxu0 0.0
        %6293 = vmatpush1.msra.mxu0 0.0
        %6294 = vmatprep.subr.mxu0 0.0
        %6295 = vmatpush1.msra.mxu0 0.0
        %6296 = vmatprep.subr.mxu0 0.0
        %6297 = vmatpush1.msra.mxu0 0.0
        %6298 = vmatprep.subr.mxu0 0.0
        %6299 = vmatpush1.msra.mxu0 0.0
        %6300 = vmatprep.subr.mxu0 0.0
        %6301 = vmatpush1.msra.mxu0 0.0
        %6302 = vmatprep.subr.mxu0 0.0
        %6303 = vmatpush1.msra.mxu0 0.0
        %6304 = vmatprep.subr.mxu0 0.0
        %6305 = vmatpush1.msra.mxu0 0.0
        %6306 = vmatprep.subr.mxu0 0.0
        %6307 = vmatpush1.msra.mxu0 0.0
        %6308 = vmatprep.subr.mxu0 0.0
        %6309 = vmatpush1.msra.mxu0 0.0
        %6310 = vmatprep.mubr.f32.mxu0 0.0
        %6311 = vmatmul.mubr.f32.gmra.mrb[0].mxu0 %v6031
        %v6312 = vpop.f32.mrb[0].mxu0
        %v6313 = vadd.f32 0.0, %v6312
        %v6314 = vpop.f32.mrb[0].mxu0
        %v6315 = vadd.f32 0.0, %v6314
        %6316 = vdwg.mxu0
        %v6317 = vadd.f32 %v5968, %v6100
        %v6318 = vadd.f32 %v5969, %v6102
        %v6319 = vadd.f32 %v5970, %v6171
        %v6320 = vadd.f32 %v5971, %v6173
        %v6321 = vadd.f32 %v5972, %v6242
        %v6322 = vadd.f32 %v5973, %v6244
        %v6323 = vadd.f32 %v5974, %v6313
        %v6324 = vadd.f32 %v5975, %v6315
        %s6325 = scalar_lea.vmem [#allocation9], 32
        %v6326 = vld [vmem:[%s6325] sm:$0xff]
        %v6328 = vsel %vm4538, %v6326, 0
        %6330 = vmatprep.subr.mxu0 %v4932
        %6331 = vmatpush1.msra.mxu0 %v4931
        %6332 = vmatprep.subr.mxu0 0.0
        %6333 = vmatpush1.msra.mxu0 0.0
        %6334 = vmatprep.subr.mxu0 0.0
        %6335 = vmatpush1.msra.mxu0 0.0
        %6336 = vmatprep.subr.mxu0 0.0
        %6337 = vmatpush1.msra.mxu0 0.0
        %6338 = vmatprep.subr.mxu0 0.0
        %6339 = vmatpush1.msra.mxu0 0.0
        %6340 = vmatprep.subr.mxu0 0.0
        %6341 = vmatpush1.msra.mxu0 0.0
        %6342 = vmatprep.subr.mxu0 0.0
        %6343 = vmatpush1.msra.mxu0 0.0
        %6344 = vmatprep.subr.mxu0 0.0
        %6345 = vmatpush1.msra.mxu0 0.0
        %6346 = vmatprep.subr.mxu0 0.0
        %6347 = vmatpush1.msra.mxu0 0.0
        %6348 = vmatprep.subr.mxu0 0.0
        %6349 = vmatpush1.msra.mxu0 0.0
        %6350 = vmatprep.subr.mxu0 0.0
        %6351 = vmatpush1.msra.mxu0 0.0
        %6352 = vmatprep.subr.mxu0 0.0
        %6353 = vmatpush1.msra.mxu0 0.0
        %6354 = vmatprep.subr.mxu0 0.0
        %6355 = vmatpush1.msra.mxu0 0.0
        %6356 = vmatprep.subr.mxu0 0.0
        %6357 = vmatpush1.msra.mxu0 0.0
        %6358 = vmatprep.subr.mxu0 0.0
        %6359 = vmatpush1.msra.mxu0 0.0
        %6360 = vmatprep.subr.mxu0 0.0
        %6361 = vmatpush1.msra.mxu0 0.0
        %6362 = vmatprep.subr.mxu0 0.0
        %6363 = vmatpush1.msra.mxu0 0.0
        %6364 = vmatprep.subr.mxu0 0.0
        %6365 = vmatpush1.msra.mxu0 0.0
        %6366 = vmatprep.subr.mxu0 0.0
        %6367 = vmatpush1.msra.mxu0 0.0
        %6368 = vmatprep.subr.mxu0 0.0
        %6369 = vmatpush1.msra.mxu0 0.0
        %6370 = vmatprep.subr.mxu0 0.0
        %6371 = vmatpush1.msra.mxu0 0.0
        %6372 = vmatprep.subr.mxu0 0.0
        %6373 = vmatpush1.msra.mxu0 0.0
        %6374 = vmatprep.subr.mxu0 0.0
        %6375 = vmatpush1.msra.mxu0 0.0
        %6376 = vmatprep.subr.mxu0 0.0
        %6377 = vmatpush1.msra.mxu0 0.0
        %6378 = vmatprep.subr.mxu0 0.0
        %6379 = vmatpush1.msra.mxu0 0.0
        %6380 = vmatprep.subr.mxu0 0.0
        %6381 = vmatpush1.msra.mxu0 0.0
        %6382 = vmatprep.subr.mxu0 0.0
        %6383 = vmatpush1.msra.mxu0 0.0
        %6384 = vmatprep.subr.mxu0 0.0
        %6385 = vmatpush1.msra.mxu0 0.0
        %6386 = vmatprep.subr.mxu0 0.0
        %6387 = vmatpush1.msra.mxu0 0.0
        %6388 = vmatprep.subr.mxu0 0.0
        %6389 = vmatpush1.msra.mxu0 0.0
        %6390 = vmatprep.subr.mxu0 0.0
        %6391 = vmatpush1.msra.mxu0 0.0
        %6392 = vmatprep.subr.mxu0 0.0
        %6393 = vmatpush1.msra.mxu0 0.0
        %6394 = vmatprep.mubr.f32.mxu0 0.0
        %6395 = vmatmul.mubr.f32.gmra.mrb[0].mxu0 %v6328
        %v6396 = vpop.f32.mrb[0].mxu0
        %v6397 = vadd.f32 0.0, %v6396
        %v6398 = vpop.f32.mrb[0].mxu0
        %v6399 = vadd.f32 0.0, %v6398
        %6400 = vdwg.mxu0
        %6401 = vmatprep.subr.mxu0 %v4934
        %6402 = vmatpush1.msra.mxu0 %v4933
        %6403 = vmatprep.subr.mxu0 0.0
        %6404 = vmatpush1.msra.mxu0 0.0
        %6405 = vmatprep.subr.mxu0 0.0
        %6406 = vmatpush1.msra.mxu0 0.0
        %6407 = vmatprep.subr.mxu0 0.0
        %6408 = vmatpush1.msra.mxu0 0.0
        %6409 = vmatprep.subr.mxu0 0.0
        %6410 = vmatpush1.msra.mxu0 0.0
        %6411 = vmatprep.subr.mxu0 0.0
        %6412 = vmatpush1.msra.mxu0 0.0
        %6413 = vmatprep.subr.mxu0 0.0
        %6414 = vmatpush1.msra.mxu0 0.0
        %6415 = vmatprep.subr.mxu0 0.0
        %6416 = vmatpush1.msra.mxu0 0.0
        %6417 = vmatprep.subr.mxu0 0.0
        %6418 = vmatpush1.msra.mxu0 0.0
        %6419 = vmatprep.subr.mxu0 0.0
        %6420 = vmatpush1.msra.mxu0 0.0
        %6421 = vmatprep.subr.mxu0 0.0
        %6422 = vmatpush1.msra.mxu0 0.0
        %6423 = vmatprep.subr.mxu0 0.0
        %6424 = vmatpush1.msra.mxu0 0.0
        %6425 = vmatprep.subr.mxu0 0.0
        %6426 = vmatpush1.msra.mxu0 0.0
        %6427 = vmatprep.subr.mxu0 0.0
        %6428 = vmatpush1.msra.mxu0 0.0
        %6429 = vmatprep.subr.mxu0 0.0
        %6430 = vmatpush1.msra.mxu0 0.0
        %6431 = vmatprep.subr.mxu0 0.0
        %6432 = vmatpush1.msra.mxu0 0.0
        %6433 = vmatprep.subr.mxu0 0.0
        %6434 = vmatpush1.msra.mxu0 0.0
        %6435 = vmatprep.subr.mxu0 0.0
        %6436 = vmatpush1.msra.mxu0 0.0
        %6437 = vmatprep.subr.mxu0 0.0
        %6438 = vmatpush1.msra.mxu0 0.0
        %6439 = vmatprep.subr.mxu0 0.0
        %6440 = vmatpush1.msra.mxu0 0.0
        %6441 = vmatprep.subr.mxu0 0.0
        %6442 = vmatpush1.msra.mxu0 0.0
        %6443 = vmatprep.subr.mxu0 0.0
        %6444 = vmatpush1.msra.mxu0 0.0
        %6445 = vmatprep.subr.mxu0 0.0
        %6446 = vmatpush1.msra.mxu0 0.0
        %6447 = vmatprep.subr.mxu0 0.0
        %6448 = vmatpush1.msra.mxu0 0.0
        %6449 = vmatprep.subr.mxu0 0.0
        %6450 = vmatpush1.msra.mxu0 0.0
        %6451 = vmatprep.subr.mxu0 0.0
        %6452 = vmatpush1.msra.mxu0 0.0
        %6453 = vmatprep.subr.mxu0 0.0
        %6454 = vmatpush1.msra.mxu0 0.0
        %6455 = vmatprep.subr.mxu0 0.0
        %6456 = vmatpush1.msra.mxu0 0.0
        %6457 = vmatprep.subr.mxu0 0.0
        %6458 = vmatpush1.msra.mxu0 0.0
        %6459 = vmatprep.subr.mxu0 0.0
        %6460 = vmatpush1.msra.mxu0 0.0
        %6461 = vmatprep.subr.mxu0 0.0
        %6462 = vmatpush1.msra.mxu0 0.0
        %6463 = vmatprep.subr.mxu0 0.0
        %6464 = vmatpush1.msra.mxu0 0.0
        %6465 = vmatprep.mubr.f32.mxu0 0.0
        %6466 = vmatmul.mubr.f32.gmra.mrb[0].mxu0 %v6328
        %v6467 = vpop.f32.mrb[0].mxu0
        %v6468 = vadd.f32 0.0, %v6467
        %v6469 = vpop.f32.mrb[0].mxu0
        %v6470 = vadd.f32 0.0, %v6469
        %6471 = vdwg.mxu0
        %6472 = vmatprep.subr.mxu0 %v4936
        %6473 = vmatpush1.msra.mxu0 %v4935
        %6474 = vmatprep.subr.mxu0 0.0
        %6475 = vmatpush1.msra.mxu0 0.0
        %6476 = vmatprep.subr.mxu0 0.0
        %6477 = vmatpush1.msra.mxu0 0.0
        %6478 = vmatprep.subr.mxu0 0.0
        %6479 = vmatpush1.msra.mxu0 0.0
        %6480 = vmatprep.subr.mxu0 0.0
        %6481 = vmatpush1.msra.mxu0 0.0
        %6482 = vmatprep.subr.mxu0 0.0
        %6483 = vmatpush1.msra.mxu0 0.0
        %6484 = vmatprep.subr.mxu0 0.0
        %6485 = vmatpush1.msra.mxu0 0.0
        %6486 = vmatprep.subr.mxu0 0.0
        %6487 = vmatpush1.msra.mxu0 0.0
        %6488 = vmatprep.subr.mxu0 0.0
        %6489 = vmatpush1.msra.mxu0 0.0
        %6490 = vmatprep.subr.mxu0 0.0
        %6491 = vmatpush1.msra.mxu0 0.0
        %6492 = vmatprep.subr.mxu0 0.0
        %6493 = vmatpush1.msra.mxu0 0.0
        %6494 = vmatprep.subr.mxu0 0.0
        %6495 = vmatpush1.msra.mxu0 0.0
        %6496 = vmatprep.subr.mxu0 0.0
        %6497 = vmatpush1.msra.mxu0 0.0
        %6498 = vmatprep.subr.mxu0 0.0
        %6499 = vmatpush1.msra.mxu0 0.0
        %6500 = vmatprep.subr.mxu0 0.0
        %6501 = vmatpush1.msra.mxu0 0.0
        %6502 = vmatprep.subr.mxu0 0.0
        %6503 = vmatpush1.msra.mxu0 0.0
        %6504 = vmatprep.subr.mxu0 0.0
        %6505 = vmatpush1.msra.mxu0 0.0
        %6506 = vmatprep.subr.mxu0 0.0
        %6507 = vmatpush1.msra.mxu0 0.0
        %6508 = vmatprep.subr.mxu0 0.0
        %6509 = vmatpush1.msra.mxu0 0.0
        %6510 = vmatprep.subr.mxu0 0.0
        %6511 = vmatpush1.msra.mxu0 0.0
        %6512 = vmatprep.subr.mxu0 0.0
        %6513 = vmatpush1.msra.mxu0 0.0
        %6514 = vmatprep.subr.mxu0 0.0
        %6515 = vmatpush1.msra.mxu0 0.0
        %6516 = vmatprep.subr.mxu0 0.0
        %6517 = vmatpush1.msra.mxu0 0.0
        %6518 = vmatprep.subr.mxu0 0.0
        %6519 = vmatpush1.msra.mxu0 0.0
        %6520 = vmatprep.subr.mxu0 0.0
        %6521 = vmatpush1.msra.mxu0 0.0
        %6522 = vmatprep.subr.mxu0 0.0
        %6523 = vmatpush1.msra.mxu0 0.0
        %6524 = vmatprep.subr.mxu0 0.0
        %6525 = vmatpush1.msra.mxu0 0.0
        %6526 = vmatprep.subr.mxu0 0.0
        %6527 = vmatpush1.msra.mxu0 0.0
        %6528 = vmatprep.subr.mxu0 0.0
        %6529 = vmatpush1.msra.mxu0 0.0
        %6530 = vmatprep.subr.mxu0 0.0
        %6531 = vmatpush1.msra.mxu0 0.0
        %6532 = vmatprep.subr.mxu0 0.0
        %6533 = vmatpush1.msra.mxu0 0.0
        %6534 = vmatprep.subr.mxu0 0.0
        %6535 = vmatpush1.msra.mxu0 0.0
        %6536 = vmatprep.mubr.f32.mxu0 0.0
        %6537 = vmatmul.mubr.f32.gmra.mrb[0].mxu0 %v6328
        %v6538 = vpop.f32.mrb[0].mxu0
        %v6539 = vadd.f32 0.0, %v6538
        %v6540 = vpop.f32.mrb[0].mxu0
        %v6541 = vadd.f32 0.0, %v6540
        %6542 = vdwg.mxu0
        %6543 = vmatprep.subr.mxu0 %v4938
        %6544 = vmatpush1.msra.mxu0 %v4937
        %6545 = vmatprep.subr.mxu0 0.0
        %6546 = vmatpush1.msra.mxu0 0.0
        %6547 = vmatprep.subr.mxu0 0.0
        %6548 = vmatpush1.msra.mxu0 0.0
        %6549 = vmatprep.subr.mxu0 0.0
        %6550 = vmatpush1.msra.mxu0 0.0
        %6551 = vmatprep.subr.mxu0 0.0
        %6552 = vmatpush1.msra.mxu0 0.0
        %6553 = vmatprep.subr.mxu0 0.0
        %6554 = vmatpush1.msra.mxu0 0.0
        %6555 = vmatprep.subr.mxu0 0.0
        %6556 = vmatpush1.msra.mxu0 0.0
        %6557 = vmatprep.subr.mxu0 0.0
        %6558 = vmatpush1.msra.mxu0 0.0
        %6559 = vmatprep.subr.mxu0 0.0
        %6560 = vmatpush1.msra.mxu0 0.0
        %6561 = vmatprep.subr.mxu0 0.0
        %6562 = vmatpush1.msra.mxu0 0.0
        %6563 = vmatprep.subr.mxu0 0.0
        %6564 = vmatpush1.msra.mxu0 0.0
        %6565 = vmatprep.subr.mxu0 0.0
        %6566 = vmatpush1.msra.mxu0 0.0
        %6567 = vmatprep.subr.mxu0 0.0
        %6568 = vmatpush1.msra.mxu0 0.0
        %6569 = vmatprep.subr.mxu0 0.0
        %6570 = vmatpush1.msra.mxu0 0.0
        %6571 = vmatprep.subr.mxu0 0.0
        %6572 = vmatpush1.msra.mxu0 0.0
        %6573 = vmatprep.subr.mxu0 0.0
        %6574 = vmatpush1.msra.mxu0 0.0
        %6575 = vmatprep.subr.mxu0 0.0
        %6576 = vmatpush1.msra.mxu0 0.0
        %6577 = vmatprep.subr.mxu0 0.0
        %6578 = vmatpush1.msra.mxu0 0.0
        %6579 = vmatprep.subr.mxu0 0.0
        %6580 = vmatpush1.msra.mxu0 0.0
        %6581 = vmatprep.subr.mxu0 0.0
        %6582 = vmatpush1.msra.mxu0 0.0
        %6583 = vmatprep.subr.mxu0 0.0
        %6584 = vmatpush1.msra.mxu0 0.0
        %6585 = vmatprep.subr.mxu0 0.0
        %6586 = vmatpush1.msra.mxu0 0.0
        %6587 = vmatprep.subr.mxu0 0.0
        %6588 = vmatpush1.msra.mxu0 0.0
        %6589 = vmatprep.subr.mxu0 0.0
        %6590 = vmatpush1.msra.mxu0 0.0
        %6591 = vmatprep.subr.mxu0 0.0
        %6592 = vmatpush1.msra.mxu0 0.0
        %6593 = vmatprep.subr.mxu0 0.0
        %6594 = vmatpush1.msra.mxu0 0.0
        %6595 = vmatprep.subr.mxu0 0.0
        %6596 = vmatpush1.msra.mxu0 0.0
        %6597 = vmatprep.subr.mxu0 0.0
        %6598 = vmatpush1.msra.mxu0 0.0
        %6599 = vmatprep.subr.mxu0 0.0
        %6600 = vmatpush1.msra.mxu0 0.0
        %6601 = vmatprep.subr.mxu0 0.0
        %6602 = vmatpush1.msra.mxu0 0.0
        %6603 = vmatprep.subr.mxu0 0.0
        %6604 = vmatpush1.msra.mxu0 0.0
        %6605 = vmatprep.subr.mxu0 0.0
        %6606 = vmatpush1.msra.mxu0 0.0
        %6607 = vmatprep.mubr.f32.mxu0 0.0
        %6608 = vmatmul.mubr.f32.gmra.mrb[0].mxu0 %v6328
        %v6609 = vpop.f32.mrb[0].mxu0
        %v6610 = vadd.f32 0.0, %v6609
        %v6611 = vpop.f32.mrb[0].mxu0
        %v6612 = vadd.f32 0.0, %v6611
        %6613 = vdwg.mxu0
        %v6614 = vadd.f32 %v6317, %v6397
        %v6615 = vadd.f32 %v6318, %v6399
        %v6616 = vadd.f32 %v6319, %v6468
        %v6617 = vadd.f32 %v6320, %v6470
        %v6618 = vadd.f32 %v6321, %v6539
        %v6619 = vadd.f32 %v6322, %v6541
        %v6620 = vadd.f32 %v6323, %v6610
        %v6621 = vadd.f32 %v6324, %v6612
        %v6622 = vld [vmem:[#allocation2 + $0x8] sm:$0xff]
        %v6623 = vld [vmem:[#allocation2 + $0x10] sm:$0xff]
        %v6624 = vld [vmem:[#allocation2 + $0x18] sm:$0xff]
        %v6625 = vld [vmem:[#allocation2 + $0x20] sm:$0xff]
        %v6626 = vld [vmem:[#allocation2 + $0x28] sm:$0xff]
        %v6627 = vld [vmem:[#allocation2 + $0x30] sm:$0xff]
        %v6628 = vld [vmem:[#allocation2 + $0x38] sm:$0xff]
        %v6629 = vld [vmem:[#allocation2 + $0x40] sm:$0xff]
        %v6630 = vld [vmem:[#allocation2 + $0x48] sm:$0xff]
        %v6631 = vmul.f32 %v6622, %v3023
        %v6632 = vmul.f32 %v6623, %v3038
        %v6633 = vmul.f32 %v6624, %v3039
        %v6634 = vmul.f32 %v6625, %v3040
        %v6635 = vmul.f32 %v6626, %v3041
        %v6636 = vmul.f32 %v6627, %v3042
        %v6637 = vmul.f32 %v6628, %v3043
        %v6638 = vmul.f32 %v6629, %v3044
        %v6639 = vmul.f32 %v6630, %v3037
        %s6640 = scalar_lea.vmem [#allocation9], 40
        %v6641 = vld [vmem:[%s6640] sm:$0xff]
        %6651 = vrot.lane.b32.xlu0 %v6631, 127
        %v6652 = vpop.permute.xlu0 %6651
        %6653 = vrot.lane.b32.xlu0 %v6632, 127
        %v6654 = vpop.permute.xlu0 %6653
        %6655 = vrot.lane.b32.xlu0 %v6633, 127
        %v6656 = vpop.permute.xlu0 %6655
        %6657 = vrot.lane.b32.xlu0 %v6634, 127
        %v6658 = vpop.permute.xlu0 %6657
        %6659 = vrot.lane.b32.xlu0 %v6635, 127
        %v6660 = vpop.permute.xlu0 %6659
        %6661 = vrot.lane.b32.xlu0 %v6636, 127
        %v6662 = vpop.permute.xlu0 %6661
        %6663 = vrot.lane.b32.xlu0 %v6637, 127
        %v6664 = vpop.permute.xlu0 %6663
        %6665 = vrot.lane.b32.xlu0 %v6638, 127
        %v6666 = vpop.permute.xlu0 %6665
        %6667 = vrot.lane.b32.xlu0 %v6639, 127
        %v6668 = vpop.permute.xlu0 %6667
        %v6669 = vsel %vm2334, %v6652, %v6654
        %v6670 = vsel %vm2334, %v6654, %v6656
        %v6671 = vsel %vm2334, %v6656, %v6658
        %v6672 = vsel %vm2334, %v6658, %v6660
        %v6673 = vsel %vm2334, %v6660, %v6662
        %v6674 = vsel %vm2334, %v6662, %v6664
        %v6675 = vsel %vm2334, %v6664, %v6666
        %v6676 = vsel %vm2334, %v6666, %v6668
        %v6686 = vsel %vm4538, %v6641, 0
        %6688 = vmatprep.subr.mxu0 %v6670
        %6689 = vmatpush1.msra.mxu0 %v6669
        %6690 = vmatprep.subr.mxu0 0.0
        %6691 = vmatpush1.msra.mxu0 0.0
        %6692 = vmatprep.subr.mxu0 0.0
        %6693 = vmatpush1.msra.mxu0 0.0
        %6694 = vmatprep.subr.mxu0 0.0
        %6695 = vmatpush1.msra.mxu0 0.0
        %6696 = vmatprep.subr.mxu0 0.0
        %6697 = vmatpush1.msra.mxu0 0.0
        %6698 = vmatprep.subr.mxu0 0.0
        %6699 = vmatpush1.msra.mxu0 0.0
        %6700 = vmatprep.subr.mxu0 0.0
        %6701 = vmatpush1.msra.mxu0 0.0
        %6702 = vmatprep.subr.mxu0 0.0
        %6703 = vmatpush1.msra.mxu0 0.0
        %6704 = vmatprep.subr.mxu0 0.0
        %6705 = vmatpush1.msra.mxu0 0.0
        %6706 = vmatprep.subr.mxu0 0.0
        %6707 = vmatpush1.msra.mxu0 0.0
        %6708 = vmatprep.subr.mxu0 0.0
        %6709 = vmatpush1.msra.mxu0 0.0
        %6710 = vmatprep.subr.mxu0 0.0
        %6711 = vmatpush1.msra.mxu0 0.0
        %6712 = vmatprep.subr.mxu0 0.0
        %6713 = vmatpush1.msra.mxu0 0.0
        %6714 = vmatprep.subr.mxu0 0.0
        %6715 = vmatpush1.msra.mxu0 0.0
        %6716 = vmatprep.subr.mxu0 0.0
        %6717 = vmatpush1.msra.mxu0 0.0
        %6718 = vmatprep.subr.mxu0 0.0
        %6719 = vmatpush1.msra.mxu0 0.0
        %6720 = vmatprep.subr.mxu0 0.0
        %6721 = vmatpush1.msra.mxu0 0.0
        %6722 = vmatprep.subr.mxu0 0.0
        %6723 = vmatpush1.msra.mxu0 0.0
        %6724 = vmatprep.subr.mxu0 0.0
        %6725 = vmatpush1.msra.mxu0 0.0
        %6726 = vmatprep.subr.mxu0 0.0
        %6727 = vmatpush1.msra.mxu0 0.0
        %6728 = vmatprep.subr.mxu0 0.0
        %6729 = vmatpush1.msra.mxu0 0.0
        %6730 = vmatprep.subr.mxu0 0.0
        %6731 = vmatpush1.msra.mxu0 0.0
        %6732 = vmatprep.subr.mxu0 0.0
        %6733 = vmatpush1.msra.mxu0 0.0
        %6734 = vmatprep.subr.mxu0 0.0
        %6735 = vmatpush1.msra.mxu0 0.0
        %6736 = vmatprep.subr.mxu0 0.0
        %6737 = vmatpush1.msra.mxu0 0.0
        %6738 = vmatprep.subr.mxu0 0.0
        %6739 = vmatpush1.msra.mxu0 0.0
        %6740 = vmatprep.subr.mxu0 0.0
        %6741 = vmatpush1.msra.mxu0 0.0
        %6742 = vmatprep.subr.mxu0 0.0
        %6743 = vmatpush1.msra.mxu0 0.0
        %6744 = vmatprep.subr.mxu0 0.0
        %6745 = vmatpush1.msra.mxu0 0.0
        %6746 = vmatprep.subr.mxu0 0.0
        %6747 = vmatpush1.msra.mxu0 0.0
        %6748 = vmatprep.subr.mxu0 0.0
        %6749 = vmatpush1.msra.mxu0 0.0
        %6750 = vmatprep.subr.mxu0 0.0
        %6751 = vmatpush1.msra.mxu0 0.0
        %6752 = vmatprep.mubr.f32.mxu0 0.0
        %6753 = vmatmul.mubr.f32.gmra.mrb[0].mxu0 %v6686
        %v6754 = vpop.f32.mrb[0].mxu0
        %v6755 = vadd.f32 0.0, %v6754
        %v6756 = vpop.f32.mrb[0].mxu0
        %v6757 = vadd.f32 0.0, %v6756
        %6758 = vdwg.mxu0
        %6759 = vmatprep.subr.mxu0 %v6672
        %6760 = vmatpush1.msra.mxu0 %v6671
        %6761 = vmatprep.subr.mxu0 0.0
        %6762 = vmatpush1.msra.mxu0 0.0
        %6763 = vmatprep.subr.mxu0 0.0
        %6764 = vmatpush1.msra.mxu0 0.0
        %6765 = vmatprep.subr.mxu0 0.0
        %6766 = vmatpush1.msra.mxu0 0.0
        %6767 = vmatprep.subr.mxu0 0.0
        %6768 = vmatpush1.msra.mxu0 0.0
        %6769 = vmatprep.subr.mxu0 0.0
        %6770 = vmatpush1.msra.mxu0 0.0
        %6771 = vmatprep.subr.mxu0 0.0
        %6772 = vmatpush1.msra.mxu0 0.0
        %6773 = vmatprep.subr.mxu0 0.0
        %6774 = vmatpush1.msra.mxu0 0.0
        %6775 = vmatprep.subr.mxu0 0.0
        %6776 = vmatpush1.msra.mxu0 0.0
        %6777 = vmatprep.subr.mxu0 0.0
        %6778 = vmatpush1.msra.mxu0 0.0
        %6779 = vmatprep.subr.mxu0 0.0
        %6780 = vmatpush1.msra.mxu0 0.0
        %6781 = vmatprep.subr.mxu0 0.0
        %6782 = vmatpush1.msra.mxu0 0.0
        %6783 = vmatprep.subr.mxu0 0.0
        %6784 = vmatpush1.msra.mxu0 0.0
        %6785 = vmatprep.subr.mxu0 0.0
        %6786 = vmatpush1.msra.mxu0 0.0
        %6787 = vmatprep.subr.mxu0 0.0
        %6788 = vmatpush1.msra.mxu0 0.0
        %6789 = vmatprep.subr.mxu0 0.0
        %6790 = vmatpush1.msra.mxu0 0.0
        %6791 = vmatprep.subr.mxu0 0.0
        %6792 = vmatpush1.msra.mxu0 0.0
        %6793 = vmatprep.subr.mxu0 0.0
        %6794 = vmatpush1.msra.mxu0 0.0
        %6795 = vmatprep.subr.mxu0 0.0
        %6796 = vmatpush1.msra.mxu0 0.0
        %6797 = vmatprep.subr.mxu0 0.0
        %6798 = vmatpush1.msra.mxu0 0.0
        %6799 = vmatprep.subr.mxu0 0.0
        %6800 = vmatpush1.msra.mxu0 0.0
        %6801 = vmatprep.subr.mxu0 0.0
        %6802 = vmatpush1.msra.mxu0 0.0
        %6803 = vmatprep.subr.mxu0 0.0
        %6804 = vmatpush1.msra.mxu0 0.0
        %6805 = vmatprep.subr.mxu0 0.0
        %6806 = vmatpush1.msra.mxu0 0.0
        %6807 = vmatprep.subr.mxu0 0.0
        %6808 = vmatpush1.msra.mxu0 0.0
        %6809 = vmatprep.subr.mxu0 0.0
        %6810 = vmatpush1.msra.mxu0 0.0
        %6811 = vmatprep.subr.mxu0 0.0
        %6812 = vmatpush1.msra.mxu0 0.0
        %6813 = vmatprep.subr.mxu0 0.0
        %6814 = vmatpush1.msra.mxu0 0.0
        %6815 = vmatprep.subr.mxu0 0.0
        %6816 = vmatpush1.msra.mxu0 0.0
        %6817 = vmatprep.subr.mxu0 0.0
        %6818 = vmatpush1.msra.mxu0 0.0
        %6819 = vmatprep.subr.mxu0 0.0
        %6820 = vmatpush1.msra.mxu0 0.0
        %6821 = vmatprep.subr.mxu0 0.0
        %6822 = vmatpush1.msra.mxu0 0.0
        %6823 = vmatprep.mubr.f32.mxu0 0.0
        %6824 = vmatmul.mubr.f32.gmra.mrb[0].mxu0 %v6686
        %v6825 = vpop.f32.mrb[0].mxu0
        %v6826 = vadd.f32 0.0, %v6825
        %v6827 = vpop.f32.mrb[0].mxu0
        %v6828 = vadd.f32 0.0, %v6827
        %6829 = vdwg.mxu0
        %6830 = vmatprep.subr.mxu0 %v6674
        %6831 = vmatpush1.msra.mxu0 %v6673
        %6832 = vmatprep.subr.mxu0 0.0
        %6833 = vmatpush1.msra.mxu0 0.0
        %6834 = vmatprep.subr.mxu0 0.0
        %6835 = vmatpush1.msra.mxu0 0.0
        %6836 = vmatprep.subr.mxu0 0.0
        %6837 = vmatpush1.msra.mxu0 0.0
        %6838 = vmatprep.subr.mxu0 0.0
        %6839 = vmatpush1.msra.mxu0 0.0
        %6840 = vmatprep.subr.mxu0 0.0
        %6841 = vmatpush1.msra.mxu0 0.0
        %6842 = vmatprep.subr.mxu0 0.0
        %6843 = vmatpush1.msra.mxu0 0.0
        %6844 = vmatprep.subr.mxu0 0.0
        %6845 = vmatpush1.msra.mxu0 0.0
        %6846 = vmatprep.subr.mxu0 0.0
        %6847 = vmatpush1.msra.mxu0 0.0
        %6848 = vmatprep.subr.mxu0 0.0
        %6849 = vmatpush1.msra.mxu0 0.0
        %6850 = vmatprep.subr.mxu0 0.0
        %6851 = vmatpush1.msra.mxu0 0.0
        %6852 = vmatprep.subr.mxu0 0.0
        %6853 = vmatpush1.msra.mxu0 0.0
        %6854 = vmatprep.subr.mxu0 0.0
        %6855 = vmatpush1.msra.mxu0 0.0
        %6856 = vmatprep.subr.mxu0 0.0
        %6857 = vmatpush1.msra.mxu0 0.0
        %6858 = vmatprep.subr.mxu0 0.0
        %6859 = vmatpush1.msra.mxu0 0.0
        %6860 = vmatprep.subr.mxu0 0.0
        %6861 = vmatpush1.msra.mxu0 0.0
        %6862 = vmatprep.subr.mxu0 0.0
        %6863 = vmatpush1.msra.mxu0 0.0
        %6864 = vmatprep.subr.mxu0 0.0
        %6865 = vmatpush1.msra.mxu0 0.0
        %6866 = vmatprep.subr.mxu0 0.0
        %6867 = vmatpush1.msra.mxu0 0.0
        %6868 = vmatprep.subr.mxu0 0.0
        %6869 = vmatpush1.msra.mxu0 0.0
        %6870 = vmatprep.subr.mxu0 0.0
        %6871 = vmatpush1.msra.mxu0 0.0
        %6872 = vmatprep.subr.mxu0 0.0
        %6873 = vmatpush1.msra.mxu0 0.0
        %6874 = vmatprep.subr.mxu0 0.0
        %6875 = vmatpush1.msra.mxu0 0.0
        %6876 = vmatprep.subr.mxu0 0.0
        %6877 = vmatpush1.msra.mxu0 0.0
        %6878 = vmatprep.subr.mxu0 0.0
        %6879 = vmatpush1.msra.mxu0 0.0
        %6880 = vmatprep.subr.mxu0 0.0
        %6881 = vmatpush1.msra.mxu0 0.0
        %6882 = vmatprep.subr.mxu0 0.0
        %6883 = vmatpush1.msra.mxu0 0.0
        %6884 = vmatprep.subr.mxu0 0.0
        %6885 = vmatpush1.msra.mxu0 0.0
        %6886 = vmatprep.subr.mxu0 0.0
        %6887 = vmatpush1.msra.mxu0 0.0
        %6888 = vmatprep.subr.mxu0 0.0
        %6889 = vmatpush1.msra.mxu0 0.0
        %6890 = vmatprep.subr.mxu0 0.0
        %6891 = vmatpush1.msra.mxu0 0.0
        %6892 = vmatprep.subr.mxu0 0.0
        %6893 = vmatpush1.msra.mxu0 0.0
        %6894 = vmatprep.mubr.f32.mxu0 0.0
        %6895 = vmatmul.mubr.f32.gmra.mrb[0].mxu0 %v6686
        %v6896 = vpop.f32.mrb[0].mxu0
        %v6897 = vadd.f32 0.0, %v6896
        %v6898 = vpop.f32.mrb[0].mxu0
        %v6899 = vadd.f32 0.0, %v6898
        %6900 = vdwg.mxu0
        %6901 = vmatprep.subr.mxu0 %v6676
        %6902 = vmatpush1.msra.mxu0 %v6675
        %6903 = vmatprep.subr.mxu0 0.0
        %6904 = vmatpush1.msra.mxu0 0.0
        %6905 = vmatprep.subr.mxu0 0.0
        %6906 = vmatpush1.msra.mxu0 0.0
        %6907 = vmatprep.subr.mxu0 0.0
        %6908 = vmatpush1.msra.mxu0 0.0
        %6909 = vmatprep.subr.mxu0 0.0
        %6910 = vmatpush1.msra.mxu0 0.0
        %6911 = vmatprep.subr.mxu0 0.0
        %6912 = vmatpush1.msra.mxu0 0.0
        %6913 = vmatprep.subr.mxu0 0.0
        %6914 = vmatpush1.msra.mxu0 0.0
        %6915 = vmatprep.subr.mxu0 0.0
        %6916 = vmatpush1.msra.mxu0 0.0
        %6917 = vmatprep.subr.mxu0 0.0
        %6918 = vmatpush1.msra.mxu0 0.0
        %6919 = vmatprep.subr.mxu0 0.0
        %6920 = vmatpush1.msra.mxu0 0.0
        %6921 = vmatprep.subr.mxu0 0.0
        %6922 = vmatpush1.msra.mxu0 0.0
        %6923 = vmatprep.subr.mxu0 0.0
        %6924 = vmatpush1.msra.mxu0 0.0
        %6925 = vmatprep.subr.mxu0 0.0
        %6926 = vmatpush1.msra.mxu0 0.0
        %6927 = vmatprep.subr.mxu0 0.0
        %6928 = vmatpush1.msra.mxu0 0.0
        %6929 = vmatprep.subr.mxu0 0.0
        %6930 = vmatpush1.msra.mxu0 0.0
        %6931 = vmatprep.subr.mxu0 0.0
        %6932 = vmatpush1.msra.mxu0 0.0
        %6933 = vmatprep.subr.mxu0 0.0
        %6934 = vmatpush1.msra.mxu0 0.0
        %6935 = vmatprep.subr.mxu0 0.0
        %6936 = vmatpush1.msra.mxu0 0.0
        %6937 = vmatprep.subr.mxu0 0.0
        %6938 = vmatpush1.msra.mxu0 0.0
        %6939 = vmatprep.subr.mxu0 0.0
        %6940 = vmatpush1.msra.mxu0 0.0
        %6941 = vmatprep.subr.mxu0 0.0
        %6942 = vmatpush1.msra.mxu0 0.0
        %6943 = vmatprep.subr.mxu0 0.0
        %6944 = vmatpush1.msra.mxu0 0.0
        %6945 = vmatprep.subr.mxu0 0.0
        %6946 = vmatpush1.msra.mxu0 0.0
        %6947 = vmatprep.subr.mxu0 0.0
        %6948 = vmatpush1.msra.mxu0 0.0
        %6949 = vmatprep.subr.mxu0 0.0
        %6950 = vmatpush1.msra.mxu0 0.0
        %6951 = vmatprep.subr.mxu0 0.0
        %6952 = vmatpush1.msra.mxu0 0.0
        %6953 = vmatprep.subr.mxu0 0.0
        %6954 = vmatpush1.msra.mxu0 0.0
        %6955 = vmatprep.subr.mxu0 0.0
        %6956 = vmatpush1.msra.mxu0 0.0
        %6957 = vmatprep.subr.mxu0 0.0
        %6958 = vmatpush1.msra.mxu0 0.0
        %6959 = vmatprep.subr.mxu0 0.0
        %6960 = vmatpush1.msra.mxu0 0.0
        %6961 = vmatprep.subr.mxu0 0.0
        %6962 = vmatpush1.msra.mxu0 0.0
        %6963 = vmatprep.subr.mxu0 0.0
        %6964 = vmatpush1.msra.mxu0 0.0
        %6965 = vmatprep.mubr.f32.mxu0 0.0
        %6966 = vmatmul.mubr.f32.gmra.mrb[0].mxu0 %v6686
        %v6967 = vpop.f32.mrb[0].mxu0
        %v6968 = vadd.f32 0.0, %v6967
        %v6969 = vpop.f32.mrb[0].mxu0
        %v6970 = vadd.f32 0.0, %v6969
        %6971 = vdwg.mxu0
        %v6972 = vadd.f32 %v6614, %v6755
        %v6973 = vadd.f32 %v6615, %v6757
        %v6974 = vadd.f32 %v6616, %v6826
        %v6975 = vadd.f32 %v6617, %v6828
        %v6976 = vadd.f32 %v6618, %v6897
        %v6977 = vadd.f32 %v6619, %v6899
        %v6978 = vadd.f32 %v6620, %v6968
        %v6979 = vadd.f32 %v6621, %v6970
        %v6980 = vmul.f32 %v6622, %v3412
        %v6981 = vmul.f32 %v6623, %v3427
        %v6982 = vmul.f32 %v6624, %v3428
        %v6983 = vmul.f32 %v6625, %v3429
        %v6984 = vmul.f32 %v6626, %v3430
        %v6985 = vmul.f32 %v6627, %v3431
        %v6986 = vmul.f32 %v6628, %v3432
        %v6987 = vmul.f32 %v6629, %v3433
        %v6988 = vmul.f32 %v6630, %v3426
        %s6989 = scalar_lea.vmem [#allocation9], 48
        %v6990 = vld [vmem:[%s6989] sm:$0xff]
        %7000 = vrot.lane.b32.xlu0 %v6980, 97
        %v7001 = vpop.permute.xlu0 %7000
        %7002 = vrot.lane.b32.xlu0 %v6981, 97
        %v7003 = vpop.permute.xlu0 %7002
        %7004 = vrot.lane.b32.xlu0 %v6982, 97
        %v7005 = vpop.permute.xlu0 %7004
        %7006 = vrot.lane.b32.xlu0 %v6983, 97
        %v7007 = vpop.permute.xlu0 %7006
        %7008 = vrot.lane.b32.xlu0 %v6984, 97
        %v7009 = vpop.permute.xlu0 %7008
        %7010 = vrot.lane.b32.xlu0 %v6985, 97
        %v7011 = vpop.permute.xlu0 %7010
        %7012 = vrot.lane.b32.xlu0 %v6986, 97
        %v7013 = vpop.permute.xlu0 %7012
        %7014 = vrot.lane.b32.xlu0 %v6987, 97
        %v7015 = vpop.permute.xlu0 %7014
        %7016 = vrot.lane.b32.xlu0 %v6988, 97
        %v7017 = vpop.permute.xlu0 %7016
        %v7018 = vsel %vm1943, %v7001, %v7003
        %v7019 = vsel %vm1943, %v7003, %v7005
        %v7020 = vsel %vm1943, %v7005, %v7007
        %v7021 = vsel %vm1943, %v7007, %v7009
        %v7022 = vsel %vm1943, %v7009, %v7011
        %v7023 = vsel %vm1943, %v7011, %v7013
        %v7024 = vsel %vm1943, %v7013, %v7015
        %v7025 = vsel %vm1943, %v7015, %v7017
        %v7035 = vsel %vm4538, %v6990, 0
        %7037 = vmatprep.subr.mxu0 %v7019
        %7038 = vmatpush1.msra.mxu0 %v7018
        %7039 = vmatprep.subr.mxu0 0.0
        %7040 = vmatpush1.msra.mxu0 0.0
        %7041 = vmatprep.subr.mxu0 0.0
        %7042 = vmatpush1.msra.mxu0 0.0
        %7043 = vmatprep.subr.mxu0 0.0
        %7044 = vmatpush1.msra.mxu0 0.0
        %7045 = vmatprep.subr.mxu0 0.0
        %7046 = vmatpush1.msra.mxu0 0.0
        %7047 = vmatprep.subr.mxu0 0.0
        %7048 = vmatpush1.msra.mxu0 0.0
        %7049 = vmatprep.subr.mxu0 0.0
        %7050 = vmatpush1.msra.mxu0 0.0
        %7051 = vmatprep.subr.mxu0 0.0
        %7052 = vmatpush1.msra.mxu0 0.0
        %7053 = vmatprep.subr.mxu0 0.0
        %7054 = vmatpush1.msra.mxu0 0.0
        %7055 = vmatprep.subr.mxu0 0.0
        %7056 = vmatpush1.msra.mxu0 0.0
        %7057 = vmatprep.subr.mxu0 0.0
        %7058 = vmatpush1.msra.mxu0 0.0
        %7059 = vmatprep.subr.mxu0 0.0
        %7060 = vmatpush1.msra.mxu0 0.0
        %7061 = vmatprep.subr.mxu0 0.0
        %7062 = vmatpush1.msra.mxu0 0.0
        %7063 = vmatprep.subr.mxu0 0.0
        %7064 = vmatpush1.msra.mxu0 0.0
        %7065 = vmatprep.subr.mxu0 0.0
        %7066 = vmatpush1.msra.mxu0 0.0
        %7067 = vmatprep.subr.mxu0 0.0
        %7068 = vmatpush1.msra.mxu0 0.0
        %7069 = vmatprep.subr.mxu0 0.0
        %7070 = vmatpush1.msra.mxu0 0.0
        %7071 = vmatprep.subr.mxu0 0.0
        %7072 = vmatpush1.msra.mxu0 0.0
        %7073 = vmatprep.subr.mxu0 0.0
        %7074 = vmatpush1.msra.mxu0 0.0
        %7075 = vmatprep.subr.mxu0 0.0
        %7076 = vmatpush1.msra.mxu0 0.0
        %7077 = vmatprep.subr.mxu0 0.0
        %7078 = vmatpush1.msra.mxu0 0.0
        %7079 = vmatprep.subr.mxu0 0.0
        %7080 = vmatpush1.msra.mxu0 0.0
        %7081 = vmatprep.subr.mxu0 0.0
        %7082 = vmatpush1.msra.mxu0 0.0
        %7083 = vmatprep.subr.mxu0 0.0
        %7084 = vmatpush1.msra.mxu0 0.0
        %7085 = vmatprep.subr.mxu0 0.0
        %7086 = vmatpush1.msra.mxu0 0.0
        %7087 = vmatprep.subr.mxu0 0.0
        %7088 = vmatpush1.msra.mxu0 0.0
        %7089 = vmatprep.subr.mxu0 0.0
        %7090 = vmatpush1.msra.mxu0 0.0
        %7091 = vmatprep.subr.mxu0 0.0
        %7092 = vmatpush1.msra.mxu0 0.0
        %7093 = vmatprep.subr.mxu0 0.0
        %7094 = vmatpush1.msra.mxu0 0.0
        %7095 = vmatprep.subr.mxu0 0.0
        %7096 = vmatpush1.msra.mxu0 0.0
        %7097 = vmatprep.subr.mxu0 0.0
        %7098 = vmatpush1.msra.mxu0 0.0
        %7099 = vmatprep.subr.mxu0 0.0
        %7100 = vmatpush1.msra.mxu0 0.0
        %7101 = vmatprep.mubr.f32.mxu0 0.0
        %7102 = vmatmul.mubr.f32.gmra.mrb[0].mxu0 %v7035
        %v7103 = vpop.f32.mrb[0].mxu0
        %v7104 = vadd.f32 0.0, %v7103
        %v7105 = vpop.f32.mrb[0].mxu0
        %v7106 = vadd.f32 0.0, %v7105
        %7107 = vdwg.mxu0
        %7108 = vmatprep.subr.mxu0 %v7021
        %7109 = vmatpush1.msra.mxu0 %v7020
        %7110 = vmatprep.subr.mxu0 0.0
        %7111 = vmatpush1.msra.mxu0 0.0
        %7112 = vmatprep.subr.mxu0 0.0
        %7113 = vmatpush1.msra.mxu0 0.0
        %7114 = vmatprep.subr.mxu0 0.0
        %7115 = vmatpush1.msra.mxu0 0.0
        %7116 = vmatprep.subr.mxu0 0.0
        %7117 = vmatpush1.msra.mxu0 0.0
        %7118 = vmatprep.subr.mxu0 0.0
        %7119 = vmatpush1.msra.mxu0 0.0
        %7120 = vmatprep.subr.mxu0 0.0
        %7121 = vmatpush1.msra.mxu0 0.0
        %7122 = vmatprep.subr.mxu0 0.0
        %7123 = vmatpush1.msra.mxu0 0.0
        %7124 = vmatprep.subr.mxu0 0.0
        %7125 = vmatpush1.msra.mxu0 0.0
        %7126 = vmatprep.subr.mxu0 0.0
        %7127 = vmatpush1.msra.mxu0 0.0
        %7128 = vmatprep.subr.mxu0 0.0
        %7129 = vmatpush1.msra.mxu0 0.0
        %7130 = vmatprep.subr.mxu0 0.0
        %7131 = vmatpush1.msra.mxu0 0.0
        %7132 = vmatprep.subr.mxu0 0.0
        %7133 = vmatpush1.msra.mxu0 0.0
        %7134 = vmatprep.subr.mxu0 0.0
        %7135 = vmatpush1.msra.mxu0 0.0
        %7136 = vmatprep.subr.mxu0 0.0
        %7137 = vmatpush1.msra.mxu0 0.0
        %7138 = vmatprep.subr.mxu0 0.0
        %7139 = vmatpush1.msra.mxu0 0.0
        %7140 = vmatprep.subr.mxu0 0.0
        %7141 = vmatpush1.msra.mxu0 0.0
        %7142 = vmatprep.subr.mxu0 0.0
        %7143 = vmatpush1.msra.mxu0 0.0
        %7144 = vmatprep.subr.mxu0 0.0
        %7145 = vmatpush1.msra.mxu0 0.0
        %7146 = vmatprep.subr.mxu0 0.0
        %7147 = vmatpush1.msra.mxu0 0.0
        %7148 = vmatprep.subr.mxu0 0.0
        %7149 = vmatpush1.msra.mxu0 0.0
        %7150 = vmatprep.subr.mxu0 0.0
        %7151 = vmatpush1.msra.mxu0 0.0
        %7152 = vmatprep.subr.mxu0 0.0
        %7153 = vmatpush1.msra.mxu0 0.0
        %7154 = vmatprep.subr.mxu0 0.0
        %7155 = vmatpush1.msra.mxu0 0.0
        %7156 = vmatprep.subr.mxu0 0.0
        %7157 = vmatpush1.msra.mxu0 0.0
        %7158 = vmatprep.subr.mxu0 0.0
        %7159 = vmatpush1.msra.mxu0 0.0
        %7160 = vmatprep.subr.mxu0 0.0
        %7161 = vmatpush1.msra.mxu0 0.0
        %7162 = vmatprep.subr.mxu0 0.0
        %7163 = vmatpush1.msra.mxu0 0.0
        %7164 = vmatprep.subr.mxu0 0.0
        %7165 = vmatpush1.msra.mxu0 0.0
        %7166 = vmatprep.subr.mxu0 0.0
        %7167 = vmatpush1.msra.mxu0 0.0
        %7168 = vmatprep.subr.mxu0 0.0
        %7169 = vmatpush1.msra.mxu0 0.0
        %7170 = vmatprep.subr.mxu0 0.0
        %7171 = vmatpush1.msra.mxu0 0.0
        %7172 = vmatprep.mubr.f32.mxu0 0.0
        %7173 = vmatmul.mubr.f32.gmra.mrb[0].mxu0 %v7035
        %v7174 = vpop.f32.mrb[0].mxu0
        %v7175 = vadd.f32 0.0, %v7174
        %v7176 = vpop.f32.mrb[0].mxu0
        %v7177 = vadd.f32 0.0, %v7176
        %7178 = vdwg.mxu0
        %7179 = vmatprep.subr.mxu0 %v7023
        %7180 = vmatpush1.msra.mxu0 %v7022
        %7181 = vmatprep.subr.mxu0 0.0
        %7182 = vmatpush1.msra.mxu0 0.0
        %7183 = vmatprep.subr.mxu0 0.0
        %7184 = vmatpush1.msra.mxu0 0.0
        %7185 = vmatprep.subr.mxu0 0.0
        %7186 = vmatpush1.msra.mxu0 0.0
        %7187 = vmatprep.subr.mxu0 0.0
        %7188 = vmatpush1.msra.mxu0 0.0
        %7189 = vmatprep.subr.mxu0 0.0
        %7190 = vmatpush1.msra.mxu0 0.0
        %7191 = vmatprep.subr.mxu0 0.0
        %7192 = vmatpush1.msra.mxu0 0.0
        %7193 = vmatprep.subr.mxu0 0.0
        %7194 = vmatpush1.msra.mxu0 0.0
        %7195 = vmatprep.subr.mxu0 0.0
        %7196 = vmatpush1.msra.mxu0 0.0
        %7197 = vmatprep.subr.mxu0 0.0
        %7198 = vmatpush1.msra.mxu0 0.0
        %7199 = vmatprep.subr.mxu0 0.0
        %7200 = vmatpush1.msra.mxu0 0.0
        %7201 = vmatprep.subr.mxu0 0.0
        %7202 = vmatpush1.msra.mxu0 0.0
        %7203 = vmatprep.subr.mxu0 0.0
        %7204 = vmatpush1.msra.mxu0 0.0
        %7205 = vmatprep.subr.mxu0 0.0
        %7206 = vmatpush1.msra.mxu0 0.0
        %7207 = vmatprep.subr.mxu0 0.0
        %7208 = vmatpush1.msra.mxu0 0.0
        %7209 = vmatprep.subr.mxu0 0.0
        %7210 = vmatpush1.msra.mxu0 0.0
        %7211 = vmatprep.subr.mxu0 0.0
        %7212 = vmatpush1.msra.mxu0 0.0
        %7213 = vmatprep.subr.mxu0 0.0
        %7214 = vmatpush1.msra.mxu0 0.0
        %7215 = vmatprep.subr.mxu0 0.0
        %7216 = vmatpush1.msra.mxu0 0.0
        %7217 = vmatprep.subr.mxu0 0.0
        %7218 = vmatpush1.msra.mxu0 0.0
        %7219 = vmatprep.subr.mxu0 0.0
        %7220 = vmatpush1.msra.mxu0 0.0
        %7221 = vmatprep.subr.mxu0 0.0
        %7222 = vmatpush1.msra.mxu0 0.0
        %7223 = vmatprep.subr.mxu0 0.0
        %7224 = vmatpush1.msra.mxu0 0.0
        %7225 = vmatprep.subr.mxu0 0.0
        %7226 = vmatpush1.msra.mxu0 0.0
        %7227 = vmatprep.subr.mxu0 0.0
        %7228 = vmatpush1.msra.mxu0 0.0
        %7229 = vmatprep.subr.mxu0 0.0
        %7230 = vmatpush1.msra.mxu0 0.0
        %7231 = vmatprep.subr.mxu0 0.0
        %7232 = vmatpush1.msra.mxu0 0.0
        %7233 = vmatprep.subr.mxu0 0.0
        %7234 = vmatpush1.msra.mxu0 0.0
        %7235 = vmatprep.subr.mxu0 0.0
        %7236 = vmatpush1.msra.mxu0 0.0
        %7237 = vmatprep.subr.mxu0 0.0
        %7238 = vmatpush1.msra.mxu0 0.0
        %7239 = vmatprep.subr.mxu0 0.0
        %7240 = vmatpush1.msra.mxu0 0.0
        %7241 = vmatprep.subr.mxu0 0.0
        %7242 = vmatpush1.msra.mxu0 0.0
        %7243 = vmatprep.mubr.f32.mxu0 0.0
        %7244 = vmatmul.mubr.f32.gmra.mrb[0].mxu0 %v7035
        %v7245 = vpop.f32.mrb[0].mxu0
        %v7246 = vadd.f32 0.0, %v7245
        %v7247 = vpop.f32.mrb[0].mxu0
        %v7248 = vadd.f32 0.0, %v7247
        %7249 = vdwg.mxu0
        %7250 = vmatprep.subr.mxu0 %v7025
        %7251 = vmatpush1.msra.mxu0 %v7024
        %7252 = vmatprep.subr.mxu0 0.0
        %7253 = vmatpush1.msra.mxu0 0.0
        %7254 = vmatprep.subr.mxu0 0.0
        %7255 = vmatpush1.msra.mxu0 0.0
        %7256 = vmatprep.subr.mxu0 0.0
        %7257 = vmatpush1.msra.mxu0 0.0
        %7258 = vmatprep.subr.mxu0 0.0
        %7259 = vmatpush1.msra.mxu0 0.0
        %7260 = vmatprep.subr.mxu0 0.0
        %7261 = vmatpush1.msra.mxu0 0.0
        %7262 = vmatprep.subr.mxu0 0.0
        %7263 = vmatpush1.msra.mxu0 0.0
        %7264 = vmatprep.subr.mxu0 0.0
        %7265 = vmatpush1.msra.mxu0 0.0
        %7266 = vmatprep.subr.mxu0 0.0
        %7267 = vmatpush1.msra.mxu0 0.0
        %7268 = vmatprep.subr.mxu0 0.0
        %7269 = vmatpush1.msra.mxu0 0.0
        %7270 = vmatprep.subr.mxu0 0.0
        %7271 = vmatpush1.msra.mxu0 0.0
        %7272 = vmatprep.subr.mxu0 0.0
        %7273 = vmatpush1.msra.mxu0 0.0
        %7274 = vmatprep.subr.mxu0 0.0
        %7275 = vmatpush1.msra.mxu0 0.0
        %7276 = vmatprep.subr.mxu0 0.0
        %7277 = vmatpush1.msra.mxu0 0.0
        %7278 = vmatprep.subr.mxu0 0.0
        %7279 = vmatpush1.msra.mxu0 0.0
        %7280 = vmatprep.subr.mxu0 0.0
        %7281 = vmatpush1.msra.mxu0 0.0
        %7282 = vmatprep.subr.mxu0 0.0
        %7283 = vmatpush1.msra.mxu0 0.0
        %7284 = vmatprep.subr.mxu0 0.0
        %7285 = vmatpush1.msra.mxu0 0.0
        %7286 = vmatprep.subr.mxu0 0.0
        %7287 = vmatpush1.msra.mxu0 0.0
        %7288 = vmatprep.subr.mxu0 0.0
        %7289 = vmatpush1.msra.mxu0 0.0
        %7290 = vmatprep.subr.mxu0 0.0
        %7291 = vmatpush1.msra.mxu0 0.0
        %7292 = vmatprep.subr.mxu0 0.0
        %7293 = vmatpush1.msra.mxu0 0.0
        %7294 = vmatprep.subr.mxu0 0.0
        %7295 = vmatpush1.msra.mxu0 0.0
        %7296 = vmatprep.subr.mxu0 0.0
        %7297 = vmatpush1.msra.mxu0 0.0
        %7298 = vmatprep.subr.mxu0 0.0
        %7299 = vmatpush1.msra.mxu0 0.0
        %7300 = vmatprep.subr.mxu0 0.0
        %7301 = vmatpush1.msra.mxu0 0.0
        %7302 = vmatprep.subr.mxu0 0.0
        %7303 = vmatpush1.msra.mxu0 0.0
        %7304 = vmatprep.subr.mxu0 0.0
        %7305 = vmatpush1.msra.mxu0 0.0
        %7306 = vmatprep.subr.mxu0 0.0
        %7307 = vmatpush1.msra.mxu0 0.0
        %7308 = vmatprep.subr.mxu0 0.0
        %7309 = vmatpush1.msra.mxu0 0.0
        %7310 = vmatprep.subr.mxu0 0.0
        %7311 = vmatpush1.msra.mxu0 0.0
        %7312 = vmatprep.subr.mxu0 0.0
        %7313 = vmatpush1.msra.mxu0 0.0
        %7314 = vmatprep.mubr.f32.mxu0 0.0
        %7315 = vmatmul.mubr.f32.gmra.mrb[0].mxu0 %v7035
        %v7316 = vpop.f32.mrb[0].mxu0
        %v7317 = vadd.f32 0.0, %v7316
        %v7318 = vpop.f32.mrb[0].mxu0
        %v7319 = vadd.f32 0.0, %v7318
        %7320 = vdwg.mxu0
        %v7321 = vadd.f32 %v6972, %v7104
        %v7322 = vadd.f32 %v6973, %v7106
        %v7323 = vadd.f32 %v6974, %v7175
        %v7324 = vadd.f32 %v6975, %v7177
        %v7325 = vadd.f32 %v6976, %v7246
        %v7326 = vadd.f32 %v6977, %v7248
        %v7327 = vadd.f32 %v6978, %v7317
        %v7328 = vadd.f32 %v6979, %v7319
        %s7329 = scalar_lea.vmem [#allocation9], 56
        %v7330 = vld [vmem:[%s7329] sm:$0xff]
        %7340 = vrot.lane.b32.xlu0 %v6622, 96
        %v7341 = vpop.permute.xlu0 %7340
        %7342 = vrot.lane.b32.xlu0 %v6623, 96
        %v7343 = vpop.permute.xlu0 %7342
        %7344 = vrot.lane.b32.xlu0 %v6624, 96
        %v7345 = vpop.permute.xlu0 %7344
        %7346 = vrot.lane.b32.xlu0 %v6625, 96
        %v7347 = vpop.permute.xlu0 %7346
        %7348 = vrot.lane.b32.xlu0 %v6626, 96
        %v7349 = vpop.permute.xlu0 %7348
        %7350 = vrot.lane.b32.xlu0 %v6627, 96
        %v7351 = vpop.permute.xlu0 %7350
        %7352 = vrot.lane.b32.xlu0 %v6628, 96
        %v7353 = vpop.permute.xlu0 %7352
        %7354 = vrot.lane.b32.xlu0 %v6629, 96
        %v7355 = vpop.permute.xlu0 %7354
        %7356 = vrot.lane.b32.xlu0 %v6630, 96
        %v7357 = vpop.permute.xlu0 %7356
        %v7358 = vsel %vm3821, %v7341, %v7343
        %v7359 = vsel %vm3821, %v7343, %v7345
        %v7360 = vsel %vm3821, %v7345, %v7347
        %v7361 = vsel %vm3821, %v7347, %v7349
        %v7362 = vsel %vm3821, %v7349, %v7351
        %v7363 = vsel %vm3821, %v7351, %v7353
        %v7364 = vsel %vm3821, %v7353, %v7355
        %v7365 = vsel %vm3821, %v7355, %v7357
        %v7375 = vsel %vm4538, %v7330, 0
        %7377 = vmatprep.subr.mxu0 %v7359
        %7378 = vmatpush1.msra.mxu0 %v7358
        %7379 = vmatprep.subr.mxu0 0.0
        %7380 = vmatpush1.msra.mxu0 0.0
        %7381 = vmatprep.subr.mxu0 0.0
        %7382 = vmatpush1.msra.mxu0 0.0
        %7383 = vmatprep.subr.mxu0 0.0
        %7384 = vmatpush1.msra.mxu0 0.0
        %7385 = vmatprep.subr.mxu0 0.0
        %7386 = vmatpush1.msra.mxu0 0.0
        %7387 = vmatprep.subr.mxu0 0.0
        %7388 = vmatpush1.msra.mxu0 0.0
        %7389 = vmatprep.subr.mxu0 0.0
        %7390 = vmatpush1.msra.mxu0 0.0
        %7391 = vmatprep.subr.mxu0 0.0
        %7392 = vmatpush1.msra.mxu0 0.0
        %7393 = vmatprep.subr.mxu0 0.0
        %7394 = vmatpush1.msra.mxu0 0.0
        %7395 = vmatprep.subr.mxu0 0.0
        %7396 = vmatpush1.msra.mxu0 0.0
        %7397 = vmatprep.subr.mxu0 0.0
        %7398 = vmatpush1.msra.mxu0 0.0
        %7399 = vmatprep.subr.mxu0 0.0
        %7400 = vmatpush1.msra.mxu0 0.0
        %7401 = vmatprep.subr.mxu0 0.0
        %7402 = vmatpush1.msra.mxu0 0.0
        %7403 = vmatprep.subr.mxu0 0.0
        %7404 = vmatpush1.msra.mxu0 0.0
        %7405 = vmatprep.subr.mxu0 0.0
        %7406 = vmatpush1.msra.mxu0 0.0
        %7407 = vmatprep.subr.mxu0 0.0
        %7408 = vmatpush1.msra.mxu0 0.0
        %7409 = vmatprep.subr.mxu0 0.0
        %7410 = vmatpush1.msra.mxu0 0.0
        %7411 = vmatprep.subr.mxu0 0.0
        %7412 = vmatpush1.msra.mxu0 0.0
        %7413 = vmatprep.subr.mxu0 0.0
        %7414 = vmatpush1.msra.mxu0 0.0
        %7415 = vmatprep.subr.mxu0 0.0
        %7416 = vmatpush1.msra.mxu0 0.0
        %7417 = vmatprep.subr.mxu0 0.0
        %7418 = vmatpush1.msra.mxu0 0.0
        %7419 = vmatprep.subr.mxu0 0.0
        %7420 = vmatpush1.msra.mxu0 0.0
        %7421 = vmatprep.subr.mxu0 0.0
        %7422 = vmatpush1.msra.mxu0 0.0
        %7423 = vmatprep.subr.mxu0 0.0
        %7424 = vmatpush1.msra.mxu0 0.0
        %7425 = vmatprep.subr.mxu0 0.0
        %7426 = vmatpush1.msra.mxu0 0.0
        %7427 = vmatprep.subr.mxu0 0.0
        %7428 = vmatpush1.msra.mxu0 0.0
        %7429 = vmatprep.subr.mxu0 0.0
        %7430 = vmatpush1.msra.mxu0 0.0
        %7431 = vmatprep.subr.mxu0 0.0
        %7432 = vmatpush1.msra.mxu0 0.0
        %7433 = vmatprep.subr.mxu0 0.0
        %7434 = vmatpush1.msra.mxu0 0.0
        %7435 = vmatprep.subr.mxu0 0.0
        %7436 = vmatpush1.msra.mxu0 0.0
        %7437 = vmatprep.subr.mxu0 0.0
        %7438 = vmatpush1.msra.mxu0 0.0
        %7439 = vmatprep.subr.mxu0 0.0
        %7440 = vmatpush1.msra.mxu0 0.0
        %7441 = vmatprep.mubr.f32.mxu0 0.0
        %7442 = vmatmul.mubr.f32.gmra.mrb[0].mxu0 %v7375
        %v7443 = vpop.f32.mrb[0].mxu0
        %v7444 = vadd.f32 0.0, %v7443
        %v7445 = vpop.f32.mrb[0].mxu0
        %v7446 = vadd.f32 0.0, %v7445
        %7447 = vdwg.mxu0
        %7448 = vmatprep.subr.mxu0 %v7361
        %7449 = vmatpush1.msra.mxu0 %v7360
        %7450 = vmatprep.subr.mxu0 0.0
        %7451 = vmatpush1.msra.mxu0 0.0
        %7452 = vmatprep.subr.mxu0 0.0
        %7453 = vmatpush1.msra.mxu0 0.0
        %7454 = vmatprep.subr.mxu0 0.0
        %7455 = vmatpush1.msra.mxu0 0.0
        %7456 = vmatprep.subr.mxu0 0.0
        %7457 = vmatpush1.msra.mxu0 0.0
        %7458 = vmatprep.subr.mxu0 0.0
        %7459 = vmatpush1.msra.mxu0 0.0
        %7460 = vmatprep.subr.mxu0 0.0
        %7461 = vmatpush1.msra.mxu0 0.0
        %7462 = vmatprep.subr.mxu0 0.0
        %7463 = vmatpush1.msra.mxu0 0.0
        %7464 = vmatprep.subr.mxu0 0.0
        %7465 = vmatpush1.msra.mxu0 0.0
        %7466 = vmatprep.subr.mxu0 0.0
        %7467 = vmatpush1.msra.mxu0 0.0
        %7468 = vmatprep.subr.mxu0 0.0
        %7469 = vmatpush1.msra.mxu0 0.0
        %7470 = vmatprep.subr.mxu0 0.0
        %7471 = vmatpush1.msra.mxu0 0.0
        %7472 = vmatprep.subr.mxu0 0.0
        %7473 = vmatpush1.msra.mxu0 0.0
        %7474 = vmatprep.subr.mxu0 0.0
        %7475 = vmatpush1.msra.mxu0 0.0
        %7476 = vmatprep.subr.mxu0 0.0
        %7477 = vmatpush1.msra.mxu0 0.0
        %7478 = vmatprep.subr.mxu0 0.0
        %7479 = vmatpush1.msra.mxu0 0.0
        %7480 = vmatprep.subr.mxu0 0.0
        %7481 = vmatpush1.msra.mxu0 0.0
        %7482 = vmatprep.subr.mxu0 0.0
        %7483 = vmatpush1.msra.mxu0 0.0
        %7484 = vmatprep.subr.mxu0 0.0
        %7485 = vmatpush1.msra.mxu0 0.0
        %7486 = vmatprep.subr.mxu0 0.0
        %7487 = vmatpush1.msra.mxu0 0.0
        %7488 = vmatprep.subr.mxu0 0.0
        %7489 = vmatpush1.msra.mxu0 0.0
        %7490 = vmatprep.subr.mxu0 0.0
        %7491 = vmatpush1.msra.mxu0 0.0
        %7492 = vmatprep.subr.mxu0 0.0
        %7493 = vmatpush1.msra.mxu0 0.0
        %7494 = vmatprep.subr.mxu0 0.0
        %7495 = vmatpush1.msra.mxu0 0.0
        %7496 = vmatprep.subr.mxu0 0.0
        %7497 = vmatpush1.msra.mxu0 0.0
        %7498 = vmatprep.subr.mxu0 0.0
        %7499 = vmatpush1.msra.mxu0 0.0
        %7500 = vmatprep.subr.mxu0 0.0
        %7501 = vmatpush1.msra.mxu0 0.0
        %7502 = vmatprep.subr.mxu0 0.0
        %7503 = vmatpush1.msra.mxu0 0.0
        %7504 = vmatprep.subr.mxu0 0.0
        %7505 = vmatpush1.msra.mxu0 0.0
        %7506 = vmatprep.subr.mxu0 0.0
        %7507 = vmatpush1.msra.mxu0 0.0
        %7508 = vmatprep.subr.mxu0 0.0
        %7509 = vmatpush1.msra.mxu0 0.0
        %7510 = vmatprep.subr.mxu0 0.0
        %7511 = vmatpush1.msra.mxu0 0.0
        %7512 = vmatprep.mubr.f32.mxu0 0.0
        %7513 = vmatmul.mubr.f32.gmra.mrb[0].mxu0 %v7375
        %v7514 = vpop.f32.mrb[0].mxu0
        %v7515 = vadd.f32 0.0, %v7514
        %v7516 = vpop.f32.mrb[0].mxu0
        %v7517 = vadd.f32 0.0, %v7516
        %7518 = vdwg.mxu0
        %7519 = vmatprep.subr.mxu0 %v7363
        %7520 = vmatpush1.msra.mxu0 %v7362
        %7521 = vmatprep.subr.mxu0 0.0
        %7522 = vmatpush1.msra.mxu0 0.0
        %7523 = vmatprep.subr.mxu0 0.0
        %7524 = vmatpush1.msra.mxu0 0.0
        %7525 = vmatprep.subr.mxu0 0.0
        %7526 = vmatpush1.msra.mxu0 0.0
        %7527 = vmatprep.subr.mxu0 0.0
        %7528 = vmatpush1.msra.mxu0 0.0
        %7529 = vmatprep.subr.mxu0 0.0
        %7530 = vmatpush1.msra.mxu0 0.0
        %7531 = vmatprep.subr.mxu0 0.0
        %7532 = vmatpush1.msra.mxu0 0.0
        %7533 = vmatprep.subr.mxu0 0.0
        %7534 = vmatpush1.msra.mxu0 0.0
        %7535 = vmatprep.subr.mxu0 0.0
        %7536 = vmatpush1.msra.mxu0 0.0
        %7537 = vmatprep.subr.mxu0 0.0
        %7538 = vmatpush1.msra.mxu0 0.0
        %7539 = vmatprep.subr.mxu0 0.0
        %7540 = vmatpush1.msra.mxu0 0.0
        %7541 = vmatprep.subr.mxu0 0.0
        %7542 = vmatpush1.msra.mxu0 0.0
        %7543 = vmatprep.subr.mxu0 0.0
        %7544 = vmatpush1.msra.mxu0 0.0
        %7545 = vmatprep.subr.mxu0 0.0
        %7546 = vmatpush1.msra.mxu0 0.0
        %7547 = vmatprep.subr.mxu0 0.0
        %7548 = vmatpush1.msra.mxu0 0.0
        %7549 = vmatprep.subr.mxu0 0.0
        %7550 = vmatpush1.msra.mxu0 0.0
        %7551 = vmatprep.subr.mxu0 0.0
        %7552 = vmatpush1.msra.mxu0 0.0
        %7553 = vmatprep.subr.mxu0 0.0
        %7554 = vmatpush1.msra.mxu0 0.0
        %7555 = vmatprep.subr.mxu0 0.0
        %7556 = vmatpush1.msra.mxu0 0.0
        %7557 = vmatprep.subr.mxu0 0.0
        %7558 = vmatpush1.msra.mxu0 0.0
        %7559 = vmatprep.subr.mxu0 0.0
        %7560 = vmatpush1.msra.mxu0 0.0
        %7561 = vmatprep.subr.mxu0 0.0
        %7562 = vmatpush1.msra.mxu0 0.0
        %7563 = vmatprep.subr.mxu0 0.0
        %7564 = vmatpush1.msra.mxu0 0.0
        %7565 = vmatprep.subr.mxu0 0.0
        %7566 = vmatpush1.msra.mxu0 0.0
        %7567 = vmatprep.subr.mxu0 0.0
        %7568 = vmatpush1.msra.mxu0 0.0
        %7569 = vmatprep.subr.mxu0 0.0
        %7570 = vmatpush1.msra.mxu0 0.0
        %7571 = vmatprep.subr.mxu0 0.0
        %7572 = vmatpush1.msra.mxu0 0.0
        %7573 = vmatprep.subr.mxu0 0.0
        %7574 = vmatpush1.msra.mxu0 0.0
        %7575 = vmatprep.subr.mxu0 0.0
        %7576 = vmatpush1.msra.mxu0 0.0
        %7577 = vmatprep.subr.mxu0 0.0
        %7578 = vmatpush1.msra.mxu0 0.0
        %7579 = vmatprep.subr.mxu0 0.0
        %7580 = vmatpush1.msra.mxu0 0.0
        %7581 = vmatprep.subr.mxu0 0.0
        %7582 = vmatpush1.msra.mxu0 0.0
        %7583 = vmatprep.mubr.f32.mxu0 0.0
        %7584 = vmatmul.mubr.f32.gmra.mrb[0].mxu0 %v7375
        %v7585 = vpop.f32.mrb[0].mxu0
        %v7586 = vadd.f32 0.0, %v7585
        %v7587 = vpop.f32.mrb[0].mxu0
        %v7588 = vadd.f32 0.0, %v7587
        %7589 = vdwg.mxu0
        %7590 = vmatprep.subr.mxu0 %v7365
        %7591 = vmatpush1.msra.mxu0 %v7364
        %7592 = vmatprep.subr.mxu0 0.0
        %7593 = vmatpush1.msra.mxu0 0.0
        %7594 = vmatprep.subr.mxu0 0.0
        %7595 = vmatpush1.msra.mxu0 0.0
        %7596 = vmatprep.subr.mxu0 0.0
        %7597 = vmatpush1.msra.mxu0 0.0
        %7598 = vmatprep.subr.mxu0 0.0
        %7599 = vmatpush1.msra.mxu0 0.0
        %7600 = vmatprep.subr.mxu0 0.0
        %7601 = vmatpush1.msra.mxu0 0.0
        %7602 = vmatprep.subr.mxu0 0.0
        %7603 = vmatpush1.msra.mxu0 0.0
        %7604 = vmatprep.subr.mxu0 0.0
        %7605 = vmatpush1.msra.mxu0 0.0
        %7606 = vmatprep.subr.mxu0 0.0
        %7607 = vmatpush1.msra.mxu0 0.0
        %7608 = vmatprep.subr.mxu0 0.0
        %7609 = vmatpush1.msra.mxu0 0.0
        %7610 = vmatprep.subr.mxu0 0.0
        %7611 = vmatpush1.msra.mxu0 0.0
        %7612 = vmatprep.subr.mxu0 0.0
        %7613 = vmatpush1.msra.mxu0 0.0
        %7614 = vmatprep.subr.mxu0 0.0
        %7615 = vmatpush1.msra.mxu0 0.0
        %7616 = vmatprep.subr.mxu0 0.0
        %7617 = vmatpush1.msra.mxu0 0.0
        %7618 = vmatprep.subr.mxu0 0.0
        %7619 = vmatpush1.msra.mxu0 0.0
        %7620 = vmatprep.subr.mxu0 0.0
        %7621 = vmatpush1.msra.mxu0 0.0
        %7622 = vmatprep.subr.mxu0 0.0
        %7623 = vmatpush1.msra.mxu0 0.0
        %7624 = vmatprep.subr.mxu0 0.0
        %7625 = vmatpush1.msra.mxu0 0.0
        %7626 = vmatprep.subr.mxu0 0.0
        %7627 = vmatpush1.msra.mxu0 0.0
        %7628 = vmatprep.subr.mxu0 0.0
        %7629 = vmatpush1.msra.mxu0 0.0
        %7630 = vmatprep.subr.mxu0 0.0
        %7631 = vmatpush1.msra.mxu0 0.0
        %7632 = vmatprep.subr.mxu0 0.0
        %7633 = vmatpush1.msra.mxu0 0.0
        %7634 = vmatprep.subr.mxu0 0.0
        %7635 = vmatpush1.msra.mxu0 0.0
        %7636 = vmatprep.subr.mxu0 0.0
        %7637 = vmatpush1.msra.mxu0 0.0
        %7638 = vmatprep.subr.mxu0 0.0
        %7639 = vmatpush1.msra.mxu0 0.0
        %7640 = vmatprep.subr.mxu0 0.0
        %7641 = vmatpush1.msra.mxu0 0.0
        %7642 = vmatprep.subr.mxu0 0.0
        %7643 = vmatpush1.msra.mxu0 0.0
        %7644 = vmatprep.subr.mxu0 0.0
        %7645 = vmatpush1.msra.mxu0 0.0
        %7646 = vmatprep.subr.mxu0 0.0
        %7647 = vmatpush1.msra.mxu0 0.0
        %7648 = vmatprep.subr.mxu0 0.0
        %7649 = vmatpush1.msra.mxu0 0.0
        %7650 = vmatprep.subr.mxu0 0.0
        %7651 = vmatpush1.msra.mxu0 0.0
        %7652 = vmatprep.subr.mxu0 0.0
        %7653 = vmatpush1.msra.mxu0 0.0
        %7654 = vmatprep.mubr.f32.mxu0 0.0
        %7655 = vmatmul.mubr.f32.gmra.mrb[0].mxu0 %v7375
        %v7656 = vpop.f32.mrb[0].mxu0
        %v7657 = vadd.f32 0.0, %v7656
        %v7658 = vpop.f32.mrb[0].mxu0
        %v7659 = vadd.f32 0.0, %v7658
        %7660 = vdwg.mxu0
        %v7661 = vadd.f32 %v7321, %v7444
        %v7662 = vadd.f32 %v7322, %v7446
        %v7663 = vadd.f32 %v7323, %v7515
        %v7664 = vadd.f32 %v7324, %v7517
        %v7665 = vadd.f32 %v7325, %v7586
        %v7666 = vadd.f32 %v7326, %v7588
        %v7667 = vadd.f32 %v7327, %v7657
        %v7668 = vadd.f32 %v7328, %v7659
        %v7669 = vmul.f32 %v6622, %v4142
        %v7670 = vmul.f32 %v6623, %v4157
        %v7671 = vmul.f32 %v6624, %v4158
        %v7672 = vmul.f32 %v6625, %v4159
        %v7673 = vmul.f32 %v6626, %v4160
        %v7674 = vmul.f32 %v6627, %v4161
        %v7675 = vmul.f32 %v6628, %v4162
        %v7676 = vmul.f32 %v6629, %v4163
        %v7677 = vmul.f32 %v6630, %v4156
        %s7678 = scalar_lea.vmem [#allocation9], 64
        %v7679 = vld [vmem:[%s7678] sm:$0xff]
        %7689 = vrot.lane.b32.xlu0 %v7669, 95
        %v7690 = vpop.permute.xlu0 %7689
        %7691 = vrot.lane.b32.xlu0 %v7670, 95
        %v7692 = vpop.permute.xlu0 %7691
        %7693 = vrot.lane.b32.xlu0 %v7671, 95
        %v7694 = vpop.permute.xlu0 %7693
        %7695 = vrot.lane.b32.xlu0 %v7672, 95
        %v7696 = vpop.permute.xlu0 %7695
        %7697 = vrot.lane.b32.xlu0 %v7673, 95
        %v7698 = vpop.permute.xlu0 %7697
        %7699 = vrot.lane.b32.xlu0 %v7674, 95
        %v7700 = vpop.permute.xlu0 %7699
        %7701 = vrot.lane.b32.xlu0 %v7675, 95
        %v7702 = vpop.permute.xlu0 %7701
        %7703 = vrot.lane.b32.xlu0 %v7676, 95
        %v7704 = vpop.permute.xlu0 %7703
        %7705 = vrot.lane.b32.xlu0 %v7677, 95
        %v7706 = vpop.permute.xlu0 %7705
        %v7707 = vsel %vm1122, %v7690, %v7692
        %v7708 = vsel %vm1122, %v7692, %v7694
        %v7709 = vsel %vm1122, %v7694, %v7696
        %v7710 = vsel %vm1122, %v7696, %v7698
        %v7711 = vsel %vm1122, %v7698, %v7700
        %v7712 = vsel %vm1122, %v7700, %v7702
        %v7713 = vsel %vm1122, %v7702, %v7704
        %v7714 = vsel %vm1122, %v7704, %v7706
        %v7724 = vsel %vm4538, %v7679, 0
        %7726 = vmatprep.subr.mxu0 %v7708
        %7727 = vmatpush1.msra.mxu0 %v7707
        %7728 = vmatprep.subr.mxu0 0.0
        %7729 = vmatpush1.msra.mxu0 0.0
        %7730 = vmatprep.subr.mxu0 0.0
        %7731 = vmatpush1.msra.mxu0 0.0
        %7732 = vmatprep.subr.mxu0 0.0
        %7733 = vmatpush1.msra.mxu0 0.0
        %7734 = vmatprep.subr.mxu0 0.0
        %7735 = vmatpush1.msra.mxu0 0.0
        %7736 = vmatprep.subr.mxu0 0.0
        %7737 = vmatpush1.msra.mxu0 0.0
        %7738 = vmatprep.subr.mxu0 0.0
        %7739 = vmatpush1.msra.mxu0 0.0
        %7740 = vmatprep.subr.mxu0 0.0
        %7741 = vmatpush1.msra.mxu0 0.0
        %7742 = vmatprep.subr.mxu0 0.0
        %7743 = vmatpush1.msra.mxu0 0.0
        %7744 = vmatprep.subr.mxu0 0.0
        %7745 = vmatpush1.msra.mxu0 0.0
        %7746 = vmatprep.subr.mxu0 0.0
        %7747 = vmatpush1.msra.mxu0 0.0
        %7748 = vmatprep.subr.mxu0 0.0
        %7749 = vmatpush1.msra.mxu0 0.0
        %7750 = vmatprep.subr.mxu0 0.0
        %7751 = vmatpush1.msra.mxu0 0.0
        %7752 = vmatprep.subr.mxu0 0.0
        %7753 = vmatpush1.msra.mxu0 0.0
        %7754 = vmatprep.subr.mxu0 0.0
        %7755 = vmatpush1.msra.mxu0 0.0
        %7756 = vmatprep.subr.mxu0 0.0
        %7757 = vmatpush1.msra.mxu0 0.0
        %7758 = vmatprep.subr.mxu0 0.0
        %7759 = vmatpush1.msra.mxu0 0.0
        %7760 = vmatprep.subr.mxu0 0.0
        %7761 = vmatpush1.msra.mxu0 0.0
        %7762 = vmatprep.subr.mxu0 0.0
        %7763 = vmatpush1.msra.mxu0 0.0
        %7764 = vmatprep.subr.mxu0 0.0
        %7765 = vmatpush1.msra.mxu0 0.0
        %7766 = vmatprep.subr.mxu0 0.0
        %7767 = vmatpush1.msra.mxu0 0.0
        %7768 = vmatprep.subr.mxu0 0.0
        %7769 = vmatpush1.msra.mxu0 0.0
        %7770 = vmatprep.subr.mxu0 0.0
        %7771 = vmatpush1.msra.mxu0 0.0
        %7772 = vmatprep.subr.mxu0 0.0
        %7773 = vmatpush1.msra.mxu0 0.0
        %7774 = vmatprep.subr.mxu0 0.0
        %7775 = vmatpush1.msra.mxu0 0.0
        %7776 = vmatprep.subr.mxu0 0.0
        %7777 = vmatpush1.msra.mxu0 0.0
        %7778 = vmatprep.subr.mxu0 0.0
        %7779 = vmatpush1.msra.mxu0 0.0
        %7780 = vmatprep.subr.mxu0 0.0
        %7781 = vmatpush1.msra.mxu0 0.0
        %7782 = vmatprep.subr.mxu0 0.0
        %7783 = vmatpush1.msra.mxu0 0.0
        %7784 = vmatprep.subr.mxu0 0.0
        %7785 = vmatpush1.msra.mxu0 0.0
        %7786 = vmatprep.subr.mxu0 0.0
        %7787 = vmatpush1.msra.mxu0 0.0
        %7788 = vmatprep.subr.mxu0 0.0
        %7789 = vmatpush1.msra.mxu0 0.0
        %7790 = vmatprep.mubr.f32.mxu0 0.0
        %7791 = vmatmul.mubr.f32.gmra.mrb[0].mxu0 %v7724
        %v7792 = vpop.f32.mrb[0].mxu0
        %v7793 = vadd.f32 0.0, %v7792
        %v7794 = vpop.f32.mrb[0].mxu0
        %v7795 = vadd.f32 0.0, %v7794
        %7796 = vdwg.mxu0
        %7797 = vmatprep.subr.mxu0 %v7710
        %7798 = vmatpush1.msra.mxu0 %v7709
        %7799 = vmatprep.subr.mxu0 0.0
        %7800 = vmatpush1.msra.mxu0 0.0
        %7801 = vmatprep.subr.mxu0 0.0
        %7802 = vmatpush1.msra.mxu0 0.0
        %7803 = vmatprep.subr.mxu0 0.0
        %7804 = vmatpush1.msra.mxu0 0.0
        %7805 = vmatprep.subr.mxu0 0.0
        %7806 = vmatpush1.msra.mxu0 0.0
        %7807 = vmatprep.subr.mxu0 0.0
        %7808 = vmatpush1.msra.mxu0 0.0
        %7809 = vmatprep.subr.mxu0 0.0
        %7810 = vmatpush1.msra.mxu0 0.0
        %7811 = vmatprep.subr.mxu0 0.0
        %7812 = vmatpush1.msra.mxu0 0.0
        %7813 = vmatprep.subr.mxu0 0.0
        %7814 = vmatpush1.msra.mxu0 0.0
        %7815 = vmatprep.subr.mxu0 0.0
        %7816 = vmatpush1.msra.mxu0 0.0
        %7817 = vmatprep.subr.mxu0 0.0
        %7818 = vmatpush1.msra.mxu0 0.0
        %7819 = vmatprep.subr.mxu0 0.0
        %7820 = vmatpush1.msra.mxu0 0.0
        %7821 = vmatprep.subr.mxu0 0.0
        %7822 = vmatpush1.msra.mxu0 0.0
        %7823 = vmatprep.subr.mxu0 0.0
        %7824 = vmatpush1.msra.mxu0 0.0
        %7825 = vmatprep.subr.mxu0 0.0
        %7826 = vmatpush1.msra.mxu0 0.0
        %7827 = vmatprep.subr.mxu0 0.0
        %7828 = vmatpush1.msra.mxu0 0.0
        %7829 = vmatprep.subr.mxu0 0.0
        %7830 = vmatpush1.msra.mxu0 0.0
        %7831 = vmatprep.subr.mxu0 0.0
        %7832 = vmatpush1.msra.mxu0 0.0
        %7833 = vmatprep.subr.mxu0 0.0
        %7834 = vmatpush1.msra.mxu0 0.0
        %7835 = vmatprep.subr.mxu0 0.0
        %7836 = vmatpush1.msra.mxu0 0.0
        %7837 = vmatprep.subr.mxu0 0.0
        %7838 = vmatpush1.msra.mxu0 0.0
        %7839 = vmatprep.subr.mxu0 0.0
        %7840 = vmatpush1.msra.mxu0 0.0
        %7841 = vmatprep.subr.mxu0 0.0
        %7842 = vmatpush1.msra.mxu0 0.0
        %7843 = vmatprep.subr.mxu0 0.0
        %7844 = vmatpush1.msra.mxu0 0.0
        %7845 = vmatprep.subr.mxu0 0.0
        %7846 = vmatpush1.msra.mxu0 0.0
        %7847 = vmatprep.subr.mxu0 0.0
        %7848 = vmatpush1.msra.mxu0 0.0
        %7849 = vmatprep.subr.mxu0 0.0
        %7850 = vmatpush1.msra.mxu0 0.0
        %7851 = vmatprep.subr.mxu0 0.0
        %7852 = vmatpush1.msra.mxu0 0.0
        %7853 = vmatprep.subr.mxu0 0.0
        %7854 = vmatpush1.msra.mxu0 0.0
        %7855 = vmatprep.subr.mxu0 0.0
        %7856 = vmatpush1.msra.mxu0 0.0
        %7857 = vmatprep.subr.mxu0 0.0
        %7858 = vmatpush1.msra.mxu0 0.0
        %7859 = vmatprep.subr.mxu0 0.0
        %7860 = vmatpush1.msra.mxu0 0.0
        %7861 = vmatprep.mubr.f32.mxu0 0.0
        %7862 = vmatmul.mubr.f32.gmra.mrb[0].mxu0 %v7724
        %v7863 = vpop.f32.mrb[0].mxu0
        %v7864 = vadd.f32 0.0, %v7863
        %v7865 = vpop.f32.mrb[0].mxu0
        %v7866 = vadd.f32 0.0, %v7865
        %7867 = vdwg.mxu0
        %7868 = vmatprep.subr.mxu0 %v7712
        %7869 = vmatpush1.msra.mxu0 %v7711
        %7870 = vmatprep.subr.mxu0 0.0
        %7871 = vmatpush1.msra.mxu0 0.0
        %7872 = vmatprep.subr.mxu0 0.0
        %7873 = vmatpush1.msra.mxu0 0.0
        %7874 = vmatprep.subr.mxu0 0.0
        %7875 = vmatpush1.msra.mxu0 0.0
        %7876 = vmatprep.subr.mxu0 0.0
        %7877 = vmatpush1.msra.mxu0 0.0
        %7878 = vmatprep.subr.mxu0 0.0
        %7879 = vmatpush1.msra.mxu0 0.0
        %7880 = vmatprep.subr.mxu0 0.0
        %7881 = vmatpush1.msra.mxu0 0.0
        %7882 = vmatprep.subr.mxu0 0.0
        %7883 = vmatpush1.msra.mxu0 0.0
        %7884 = vmatprep.subr.mxu0 0.0
        %7885 = vmatpush1.msra.mxu0 0.0
        %7886 = vmatprep.subr.mxu0 0.0
        %7887 = vmatpush1.msra.mxu0 0.0
        %7888 = vmatprep.subr.mxu0 0.0
        %7889 = vmatpush1.msra.mxu0 0.0
        %7890 = vmatprep.subr.mxu0 0.0
        %7891 = vmatpush1.msra.mxu0 0.0
        %7892 = vmatprep.subr.mxu0 0.0
        %7893 = vmatpush1.msra.mxu0 0.0
        %7894 = vmatprep.subr.mxu0 0.0
        %7895 = vmatpush1.msra.mxu0 0.0
        %7896 = vmatprep.subr.mxu0 0.0
        %7897 = vmatpush1.msra.mxu0 0.0
        %7898 = vmatprep.subr.mxu0 0.0
        %7899 = vmatpush1.msra.mxu0 0.0
        %7900 = vmatprep.subr.mxu0 0.0
        %7901 = vmatpush1.msra.mxu0 0.0
        %7902 = vmatprep.subr.mxu0 0.0
        %7903 = vmatpush1.msra.mxu0 0.0
        %7904 = vmatprep.subr.mxu0 0.0
        %7905 = vmatpush1.msra.mxu0 0.0
        %7906 = vmatprep.subr.mxu0 0.0
        %7907 = vmatpush1.msra.mxu0 0.0
        %7908 = vmatprep.subr.mxu0 0.0
        %7909 = vmatpush1.msra.mxu0 0.0
        %7910 = vmatprep.subr.mxu0 0.0
        %7911 = vmatpush1.msra.mxu0 0.0
        %7912 = vmatprep.subr.mxu0 0.0
        %7913 = vmatpush1.msra.mxu0 0.0
        %7914 = vmatprep.subr.mxu0 0.0
        %7915 = vmatpush1.msra.mxu0 0.0
        %7916 = vmatprep.subr.mxu0 0.0
        %7917 = vmatpush1.msra.mxu0 0.0
        %7918 = vmatprep.subr.mxu0 0.0
        %7919 = vmatpush1.msra.mxu0 0.0
        %7920 = vmatprep.subr.mxu0 0.0
        %7921 = vmatpush1.msra.mxu0 0.0
        %7922 = vmatprep.subr.mxu0 0.0
        %7923 = vmatpush1.msra.mxu0 0.0
        %7924 = vmatprep.subr.mxu0 0.0
        %7925 = vmatpush1.msra.mxu0 0.0
        %7926 = vmatprep.subr.mxu0 0.0
        %7927 = vmatpush1.msra.mxu0 0.0
        %7928 = vmatprep.subr.mxu0 0.0
        %7929 = vmatpush1.msra.mxu0 0.0
        %7930 = vmatprep.subr.mxu0 0.0
        %7931 = vmatpush1.msra.mxu0 0.0
        %7932 = vmatprep.mubr.f32.mxu0 0.0
        %7933 = vmatmul.mubr.f32.gmra.mrb[0].mxu0 %v7724
        %v7934 = vpop.f32.mrb[0].mxu0
        %v7935 = vadd.f32 0.0, %v7934
        %v7936 = vpop.f32.mrb[0].mxu0
        %v7937 = vadd.f32 0.0, %v7936
        %7938 = vdwg.mxu0
        %7939 = vmatprep.subr.mxu0 %v7714
        %7940 = vmatpush1.msra.mxu0 %v7713
        %7941 = vmatprep.subr.mxu0 0.0
        %7942 = vmatpush1.msra.mxu0 0.0
        %7943 = vmatprep.subr.mxu0 0.0
        %7944 = vmatpush1.msra.mxu0 0.0
        %7945 = vmatprep.subr.mxu0 0.0
        %7946 = vmatpush1.msra.mxu0 0.0
        %7947 = vmatprep.subr.mxu0 0.0
        %7948 = vmatpush1.msra.mxu0 0.0
        %7949 = vmatprep.subr.mxu0 0.0
        %7950 = vmatpush1.msra.mxu0 0.0
        %7951 = vmatprep.subr.mxu0 0.0
        %7952 = vmatpush1.msra.mxu0 0.0
        %7953 = vmatprep.subr.mxu0 0.0
        %7954 = vmatpush1.msra.mxu0 0.0
        %7955 = vmatprep.subr.mxu0 0.0
        %7956 = vmatpush1.msra.mxu0 0.0
        %7957 = vmatprep.subr.mxu0 0.0
        %7958 = vmatpush1.msra.mxu0 0.0
        %7959 = vmatprep.subr.mxu0 0.0
        %7960 = vmatpush1.msra.mxu0 0.0
        %7961 = vmatprep.subr.mxu0 0.0
        %7962 = vmatpush1.msra.mxu0 0.0
        %7963 = vmatprep.subr.mxu0 0.0
        %7964 = vmatpush1.msra.mxu0 0.0
        %7965 = vmatprep.subr.mxu0 0.0
        %7966 = vmatpush1.msra.mxu0 0.0
        %7967 = vmatprep.subr.mxu0 0.0
        %7968 = vmatpush1.msra.mxu0 0.0
        %7969 = vmatprep.subr.mxu0 0.0
        %7970 = vmatpush1.msra.mxu0 0.0
        %7971 = vmatprep.subr.mxu0 0.0
        %7972 = vmatpush1.msra.mxu0 0.0
        %7973 = vmatprep.subr.mxu0 0.0
        %7974 = vmatpush1.msra.mxu0 0.0
        %7975 = vmatprep.subr.mxu0 0.0
        %7976 = vmatpush1.msra.mxu0 0.0
        %7977 = vmatprep.subr.mxu0 0.0
        %7978 = vmatpush1.msra.mxu0 0.0
        %7979 = vmatprep.subr.mxu0 0.0
        %7980 = vmatpush1.msra.mxu0 0.0
        %7981 = vmatprep.subr.mxu0 0.0
        %7982 = vmatpush1.msra.mxu0 0.0
        %7983 = vmatprep.subr.mxu0 0.0
        %7984 = vmatpush1.msra.mxu0 0.0
        %7985 = vmatprep.subr.mxu0 0.0
        %7986 = vmatpush1.msra.mxu0 0.0
        %7987 = vmatprep.subr.mxu0 0.0
        %7988 = vmatpush1.msra.mxu0 0.0
        %7989 = vmatprep.subr.mxu0 0.0
        %7990 = vmatpush1.msra.mxu0 0.0
        %7991 = vmatprep.subr.mxu0 0.0
        %7992 = vmatpush1.msra.mxu0 0.0
        %7993 = vmatprep.subr.mxu0 0.0
        %7994 = vmatpush1.msra.mxu0 0.0
        %7995 = vmatprep.subr.mxu0 0.0
        %7996 = vmatpush1.msra.mxu0 0.0
        %7997 = vmatprep.subr.mxu0 0.0
        %7998 = vmatpush1.msra.mxu0 0.0
        %7999 = vmatprep.subr.mxu0 0.0
        %8000 = vmatpush1.msra.mxu0 0.0
        %8001 = vmatprep.subr.mxu0 0.0
        %8002 = vmatpush1.msra.mxu0 0.0
        %8003 = vmatprep.mubr.f32.mxu0 0.0
        %8004 = vmatmul.mubr.f32.gmra.mrb[0].mxu0 %v7724
        %v8005 = vpop.f32.mrb[0].mxu0
        %v8006 = vadd.f32 0.0, %v8005
        %v8007 = vpop.f32.mrb[0].mxu0
        %v8008 = vadd.f32 0.0, %v8007
        %8009 = vdwg.mxu0
        %v8010 = vadd.f32 %v7661, %v7793
        %v8011 = vadd.f32 %v7662, %v7795
        %v8012 = vadd.f32 %v7663, %v7864
        %v8013 = vadd.f32 %v7664, %v7866
        %v8014 = vadd.f32 %v7665, %v7935
        %v8015 = vadd.f32 %v7666, %v7937
        %v8016 = vadd.f32 %v7667, %v8006
        %v8017 = vadd.f32 %v7668, %v8008
        %v8018 = vmul.f32 %v8010, %v8010
        %v8019 = vmul.f32 %v8011, %v8011
        %v8020 = vmul.f32 %v8012, %v8012
        %v8021 = vmul.f32 %v8013, %v8013
        %v8022 = vmul.f32 %v8014, %v8014
        %v8023 = vmul.f32 %v8015, %v8015
        %v8024 = vmul.f32 %v8016, %v8016
        %v8025 = vmul.f32 %v8017, %v8017
        %8026 = vmatprep.subr.mxu0 %v8019
        %8027 = vmatpush1.msra.mxu0 %v8018
        %8028 = vmatprep.subr.mxu0 0.0
        %8029 = vmatpush1.msra.mxu0 0.0
        %8030 = vmatprep.subr.mxu0 0.0
        %8031 = vmatpush1.msra.mxu0 0.0
        %8032 = vmatprep.subr.mxu0 0.0
        %8033 = vmatpush1.msra.mxu0 0.0
        %8034 = vmatprep.subr.mxu0 0.0
        %8035 = vmatpush1.msra.mxu0 0.0
        %8036 = vmatprep.subr.mxu0 0.0
        %8037 = vmatpush1.msra.mxu0 0.0
        %8038 = vmatprep.subr.mxu0 0.0
        %8039 = vmatpush1.msra.mxu0 0.0
        %8040 = vmatprep.subr.mxu0 0.0
        %8041 = vmatpush1.msra.mxu0 0.0
        %8042 = vmatprep.subr.mxu0 0.0
        %8043 = vmatpush1.msra.mxu0 0.0
        %8044 = vmatprep.subr.mxu0 0.0
        %8045 = vmatpush1.msra.mxu0 0.0
        %8046 = vmatprep.subr.mxu0 0.0
        %8047 = vmatpush1.msra.mxu0 0.0
        %8048 = vmatprep.subr.mxu0 0.0
        %8049 = vmatpush1.msra.mxu0 0.0
        %8050 = vmatprep.subr.mxu0 0.0
        %8051 = vmatpush1.msra.mxu0 0.0
        %8052 = vmatprep.subr.mxu0 0.0
        %8053 = vmatpush1.msra.mxu0 0.0
        %8054 = vmatprep.subr.mxu0 0.0
        %8055 = vmatpush1.msra.mxu0 0.0
        %8056 = vmatprep.subr.mxu0 0.0
        %8057 = vmatpush1.msra.mxu0 0.0
        %8058 = vmatprep.subr.mxu0 0.0
        %8059 = vmatpush1.msra.mxu0 0.0
        %8060 = vmatprep.subr.mxu0 0.0
        %8061 = vmatpush1.msra.mxu0 0.0
        %8062 = vmatprep.subr.mxu0 0.0
        %8063 = vmatpush1.msra.mxu0 0.0
        %8064 = vmatprep.subr.mxu0 0.0
        %8065 = vmatpush1.msra.mxu0 0.0
        %8066 = vmatprep.subr.mxu0 0.0
        %8067 = vmatpush1.msra.mxu0 0.0
        %8068 = vmatprep.subr.mxu0 0.0
        %8069 = vmatpush1.msra.mxu0 0.0
        %8070 = vmatprep.subr.mxu0 0.0
        %8071 = vmatpush1.msra.mxu0 0.0
        %8072 = vmatprep.subr.mxu0 0.0
        %8073 = vmatpush1.msra.mxu0 0.0
        %8074 = vmatprep.subr.mxu0 0.0
        %8075 = vmatpush1.msra.mxu0 0.0
        %8076 = vmatprep.subr.mxu0 0.0
        %8077 = vmatpush1.msra.mxu0 0.0
        %8078 = vmatprep.subr.mxu0 0.0
        %8079 = vmatpush1.msra.mxu0 0.0
        %8080 = vmatprep.subr.mxu0 0.0
        %8081 = vmatpush1.msra.mxu0 0.0
        %8082 = vmatprep.subr.mxu0 0.0
        %8083 = vmatpush1.msra.mxu0 0.0
        %8084 = vmatprep.subr.mxu0 0.0
        %8085 = vmatpush1.msra.mxu0 0.0
        %8086 = vmatprep.subr.mxu0 0.0
        %8087 = vmatpush1.msra.mxu0 0.0
        %8088 = vmatprep.subr.mxu0 0.0
        %8089 = vmatpush1.msra.mxu0 0.0
        %8090 = vmatprep.mubr.f32.mxu0 0.0
        %8091 = vmatmul.mubr.f32.gmra.mrb[0].mxu0 %v4540
        %v8092 = vpop.f32.mrb[0].mxu0
        %v8093 = vadd.f32 0.0, %v8092
        %v8094 = vpop.f32.mrb[0].mxu0
        %v8095 = vadd.f32 0.0, %v8094
        %8096 = vdwg.mxu0
        %8097 = vmatprep.subr.mxu0 %v8021
        %8098 = vmatpush1.msra.mxu0 %v8020
        %8099 = vmatprep.subr.mxu0 0.0
        %8100 = vmatpush1.msra.mxu0 0.0
        %8101 = vmatprep.subr.mxu0 0.0
        %8102 = vmatpush1.msra.mxu0 0.0
        %8103 = vmatprep.subr.mxu0 0.0
        %8104 = vmatpush1.msra.mxu0 0.0
        %8105 = vmatprep.subr.mxu0 0.0
        %8106 = vmatpush1.msra.mxu0 0.0
        %8107 = vmatprep.subr.mxu0 0.0
        %8108 = vmatpush1.msra.mxu0 0.0
        %8109 = vmatprep.subr.mxu0 0.0
        %8110 = vmatpush1.msra.mxu0 0.0
        %8111 = vmatprep.subr.mxu0 0.0
        %8112 = vmatpush1.msra.mxu0 0.0
        %8113 = vmatprep.subr.mxu0 0.0
        %8114 = vmatpush1.msra.mxu0 0.0
        %8115 = vmatprep.subr.mxu0 0.0
        %8116 = vmatpush1.msra.mxu0 0.0
        %8117 = vmatprep.subr.mxu0 0.0
        %8118 = vmatpush1.msra.mxu0 0.0
        %8119 = vmatprep.subr.mxu0 0.0
        %8120 = vmatpush1.msra.mxu0 0.0
        %8121 = vmatprep.subr.mxu0 0.0
        %8122 = vmatpush1.msra.mxu0 0.0
        %8123 = vmatprep.subr.mxu0 0.0
        %8124 = vmatpush1.msra.mxu0 0.0
        %8125 = vmatprep.subr.mxu0 0.0
        %8126 = vmatpush1.msra.mxu0 0.0
        %8127 = vmatprep.subr.mxu0 0.0
        %8128 = vmatpush1.msra.mxu0 0.0
        %8129 = vmatprep.subr.mxu0 0.0
        %8130 = vmatpush1.msra.mxu0 0.0
        %8131 = vmatprep.subr.mxu0 0.0
        %8132 = vmatpush1.msra.mxu0 0.0
        %8133 = vmatprep.subr.mxu0 0.0
        %8134 = vmatpush1.msra.mxu0 0.0
        %8135 = vmatprep.subr.mxu0 0.0
        %8136 = vmatpush1.msra.mxu0 0.0
        %8137 = vmatprep.subr.mxu0 0.0
        %8138 = vmatpush1.msra.mxu0 0.0
        %8139 = vmatprep.subr.mxu0 0.0
        %8140 = vmatpush1.msra.mxu0 0.0
        %8141 = vmatprep.subr.mxu0 0.0
        %8142 = vmatpush1.msra.mxu0 0.0
        %8143 = vmatprep.subr.mxu0 0.0
        %8144 = vmatpush1.msra.mxu0 0.0
        %8145 = vmatprep.subr.mxu0 0.0
        %8146 = vmatpush1.msra.mxu0 0.0
        %8147 = vmatprep.subr.mxu0 0.0
        %8148 = vmatpush1.msra.mxu0 0.0
        %8149 = vmatprep.subr.mxu0 0.0
        %8150 = vmatpush1.msra.mxu0 0.0
        %8151 = vmatprep.subr.mxu0 0.0
        %8152 = vmatpush1.msra.mxu0 0.0
        %8153 = vmatprep.subr.mxu0 0.0
        %8154 = vmatpush1.msra.mxu0 0.0
        %8155 = vmatprep.subr.mxu0 0.0
        %8156 = vmatpush1.msra.mxu0 0.0
        %8157 = vmatprep.subr.mxu0 0.0
        %8158 = vmatpush1.msra.mxu0 0.0
        %8159 = vmatprep.subr.mxu0 0.0
        %8160 = vmatpush1.msra.mxu0 0.0
        %8161 = vmatprep.mubr.f32.mxu0 0.0
        %8162 = vmatmul.mubr.f32.gmra.mrb[0].mxu0 %v4540
        %v8163 = vpop.f32.mrb[0].mxu0
        %v8164 = vadd.f32 0.0, %v8163
        %v8165 = vpop.f32.mrb[0].mxu0
        %v8166 = vadd.f32 0.0, %v8165
        %8167 = vdwg.mxu0
        %8168 = vmatprep.subr.mxu0 %v8023
        %8169 = vmatpush1.msra.mxu0 %v8022
        %8170 = vmatprep.subr.mxu0 0.0
        %8171 = vmatpush1.msra.mxu0 0.0
        %8172 = vmatprep.subr.mxu0 0.0
        %8173 = vmatpush1.msra.mxu0 0.0
        %8174 = vmatprep.subr.mxu0 0.0
        %8175 = vmatpush1.msra.mxu0 0.0
        %8176 = vmatprep.subr.mxu0 0.0
        %8177 = vmatpush1.msra.mxu0 0.0
        %8178 = vmatprep.subr.mxu0 0.0
        %8179 = vmatpush1.msra.mxu0 0.0
        %8180 = vmatprep.subr.mxu0 0.0
        %8181 = vmatpush1.msra.mxu0 0.0
        %8182 = vmatprep.subr.mxu0 0.0
        %8183 = vmatpush1.msra.mxu0 0.0
        %8184 = vmatprep.subr.mxu0 0.0
        %8185 = vmatpush1.msra.mxu0 0.0
        %8186 = vmatprep.subr.mxu0 0.0
        %8187 = vmatpush1.msra.mxu0 0.0
        %8188 = vmatprep.subr.mxu0 0.0
        %8189 = vmatpush1.msra.mxu0 0.0
        %8190 = vmatprep.subr.mxu0 0.0
        %8191 = vmatpush1.msra.mxu0 0.0
        %8192 = vmatprep.subr.mxu0 0.0
        %8193 = vmatpush1.msra.mxu0 0.0
        %8194 = vmatprep.subr.mxu0 0.0
        %8195 = vmatpush1.msra.mxu0 0.0
        %8196 = vmatprep.subr.mxu0 0.0
        %8197 = vmatpush1.msra.mxu0 0.0
        %8198 = vmatprep.subr.mxu0 0.0
        %8199 = vmatpush1.msra.mxu0 0.0
        %8200 = vmatprep.subr.mxu0 0.0
        %8201 = vmatpush1.msra.mxu0 0.0
        %8202 = vmatprep.subr.mxu0 0.0
        %8203 = vmatpush1.msra.mxu0 0.0
        %8204 = vmatprep.subr.mxu0 0.0
        %8205 = vmatpush1.msra.mxu0 0.0
        %8206 = vmatprep.subr.mxu0 0.0
        %8207 = vmatpush1.msra.mxu0 0.0
        %8208 = vmatprep.subr.mxu0 0.0
        %8209 = vmatpush1.msra.mxu0 0.0
        %8210 = vmatprep.subr.mxu0 0.0
        %8211 = vmatpush1.msra.mxu0 0.0
        %8212 = vmatprep.subr.mxu0 0.0
        %8213 = vmatpush1.msra.mxu0 0.0
        %8214 = vmatprep.subr.mxu0 0.0
        %8215 = vmatpush1.msra.mxu0 0.0
        %8216 = vmatprep.subr.mxu0 0.0
        %8217 = vmatpush1.msra.mxu0 0.0
        %8218 = vmatprep.subr.mxu0 0.0
        %8219 = vmatpush1.msra.mxu0 0.0
        %8220 = vmatprep.subr.mxu0 0.0
        %8221 = vmatpush1.msra.mxu0 0.0
        %8222 = vmatprep.subr.mxu0 0.0
        %8223 = vmatpush1.msra.mxu0 0.0
        %8224 = vmatprep.subr.mxu0 0.0
        %8225 = vmatpush1.msra.mxu0 0.0
        %8226 = vmatprep.subr.mxu0 0.0
        %8227 = vmatpush1.msra.mxu0 0.0
        %8228 = vmatprep.subr.mxu0 0.0
        %8229 = vmatpush1.msra.mxu0 0.0
        %8230 = vmatprep.subr.mxu0 0.0
        %8231 = vmatpush1.msra.mxu0 0.0
        %8232 = vmatprep.mubr.f32.mxu0 0.0
        %8233 = vmatmul.mubr.f32.gmra.mrb[0].mxu0 %v4540
        %v8234 = vpop.f32.mrb[0].mxu0
        %v8235 = vadd.f32 0.0, %v8234
        %v8236 = vpop.f32.mrb[0].mxu0
        %v8237 = vadd.f32 0.0, %v8236
        %8238 = vdwg.mxu0
        %8239 = vmatprep.subr.mxu0 %v8025
        %8240 = vmatpush1.msra.mxu0 %v8024
        %8241 = vmatprep.subr.mxu0 0.0
        %8242 = vmatpush1.msra.mxu0 0.0
        %8243 = vmatprep.subr.mxu0 0.0
        %8244 = vmatpush1.msra.mxu0 0.0
        %8245 = vmatprep.subr.mxu0 0.0
        %8246 = vmatpush1.msra.mxu0 0.0
        %8247 = vmatprep.subr.mxu0 0.0
        %8248 = vmatpush1.msra.mxu0 0.0
        %8249 = vmatprep.subr.mxu0 0.0
        %8250 = vmatpush1.msra.mxu0 0.0
        %8251 = vmatprep.subr.mxu0 0.0
        %8252 = vmatpush1.msra.mxu0 0.0
        %8253 = vmatprep.subr.mxu0 0.0
        %8254 = vmatpush1.msra.mxu0 0.0
        %8255 = vmatprep.subr.mxu0 0.0
        %8256 = vmatpush1.msra.mxu0 0.0
        %8257 = vmatprep.subr.mxu0 0.0
        %8258 = vmatpush1.msra.mxu0 0.0
        %8259 = vmatprep.subr.mxu0 0.0
        %8260 = vmatpush1.msra.mxu0 0.0
        %8261 = vmatprep.subr.mxu0 0.0
        %8262 = vmatpush1.msra.mxu0 0.0
        %8263 = vmatprep.subr.mxu0 0.0
        %8264 = vmatpush1.msra.mxu0 0.0
        %8265 = vmatprep.subr.mxu0 0.0
        %8266 = vmatpush1.msra.mxu0 0.0
        %8267 = vmatprep.subr.mxu0 0.0
        %8268 = vmatpush1.msra.mxu0 0.0
        %8269 = vmatprep.subr.mxu0 0.0
        %8270 = vmatpush1.msra.mxu0 0.0
        %8271 = vmatprep.subr.mxu0 0.0
        %8272 = vmatpush1.msra.mxu0 0.0
        %8273 = vmatprep.subr.mxu0 0.0
        %8274 = vmatpush1.msra.mxu0 0.0
        %8275 = vmatprep.subr.mxu0 0.0
        %8276 = vmatpush1.msra.mxu0 0.0
        %8277 = vmatprep.subr.mxu0 0.0
        %8278 = vmatpush1.msra.mxu0 0.0
        %8279 = vmatprep.subr.mxu0 0.0
        %8280 = vmatpush1.msra.mxu0 0.0
        %8281 = vmatprep.subr.mxu0 0.0
        %8282 = vmatpush1.msra.mxu0 0.0
        %8283 = vmatprep.subr.mxu0 0.0
        %8284 = vmatpush1.msra.mxu0 0.0
        %8285 = vmatprep.subr.mxu0 0.0
        %8286 = vmatpush1.msra.mxu0 0.0
        %8287 = vmatprep.subr.mxu0 0.0
        %8288 = vmatpush1.msra.mxu0 0.0
        %8289 = vmatprep.subr.mxu0 0.0
        %8290 = vmatpush1.msra.mxu0 0.0
        %8291 = vmatprep.subr.mxu0 0.0
        %8292 = vmatpush1.msra.mxu0 0.0
        %8293 = vmatprep.subr.mxu0 0.0
        %8294 = vmatpush1.msra.mxu0 0.0
        %8295 = vmatprep.subr.mxu0 0.0
        %8296 = vmatpush1.msra.mxu0 0.0
        %8297 = vmatprep.subr.mxu0 0.0
        %8298 = vmatpush1.msra.mxu0 0.0
        %8299 = vmatprep.subr.mxu0 0.0
        %8300 = vmatpush1.msra.mxu0 0.0
        %8301 = vmatprep.subr.mxu0 0.0
        %8302 = vmatpush1.msra.mxu0 0.0
        %8303 = vmatprep.mubr.f32.mxu0 0.0
        %8304 = vmatmul.mubr.f32.gmra.mrb[0].mxu0 %v4540
        %v8305 = vpop.f32.mrb[0].mxu0
        %v8306 = vadd.f32 0.0, %v8305
        %v8307 = vpop.f32.mrb[0].mxu0
        %v8308 = vadd.f32 0.0, %v8307
        %8309 = vdwg.mxu0
        %v8310 = vmul.f32 %v8093, 0.125
        %v8311 = vmul.f32 %v8095, 0.125
        %v8312 = vmul.f32 %v8164, 0.125
        %v8313 = vmul.f32 %v8166, 0.125
        %v8314 = vmul.f32 %v8235, 0.125
        %v8315 = vmul.f32 %v8237, 0.125
        %v8316 = vmul.f32 %v8306, 0.125
        %v8317 = vmul.f32 %v8308, 0.125
        %v8318 = vadd.f32 %v8310, 1e-08
        %v8319 = vadd.f32 %v8311, 1e-08
        %v8320 = vadd.f32 %v8312, 1e-08
        %v8321 = vadd.f32 %v8313, 1e-08
        %v8322 = vadd.f32 %v8314, 1e-08
        %v8323 = vadd.f32 %v8315, 1e-08
        %v8324 = vadd.f32 %v8316, 1e-08
        %v8325 = vadd.f32 %v8317, 1e-08
        %v8326 = vrsqrt.pop %v8318
        %v8327 = vrsqrt.pop %v8319
        %v8328 = vrsqrt.pop %v8320
        %v8329 = vrsqrt.pop %v8321
        %v8330 = vrsqrt.pop %v8322
        %v8331 = vrsqrt.pop %v8323
        %v8332 = vrsqrt.pop %v8324
        %v8333 = vrsqrt.pop %v8325
        %v8334 = vlaneseq
        %v8335 = vshrl.u32 %v8334, 7
        %v8336 = vsub.s32 0, %v8335
        %v8337 = vrot.slane %v8326, %v8336
        %v8338 = vlaneseq
        %v8339 = vshrl.u32 %v8338, 7
        %v8340 = vsub.s32 0, %v8339
        %v8341 = vrot.slane %v8327, %v8340
        %v8342 = vlaneseq
        %v8343 = vshrl.u32 %v8342, 7
        %v8344 = vsub.s32 0, %v8343
        %v8345 = vrot.slane %v8328, %v8344
        %v8346 = vlaneseq
        %v8347 = vshrl.u32 %v8346, 7
        %v8348 = vsub.s32 0, %v8347
        %v8349 = vrot.slane %v8329, %v8348
        %v8350 = vlaneseq
        %v8351 = vshrl.u32 %v8350, 7
        %v8352 = vsub.s32 0, %v8351
        %v8353 = vrot.slane %v8330, %v8352
        %v8354 = vlaneseq
        %v8355 = vshrl.u32 %v8354, 7
        %v8356 = vsub.s32 0, %v8355
        %v8357 = vrot.slane %v8331, %v8356
        %v8358 = vlaneseq
        %v8359 = vshrl.u32 %v8358, 7
        %v8360 = vsub.s32 0, %v8359
        %v8361 = vrot.slane %v8332, %v8360
        %v8362 = vlaneseq
        %v8363 = vshrl.u32 %v8362, 7
        %v8364 = vsub.s32 0, %v8363
        %v8365 = vrot.slane %v8333, %v8364
        %v8366 = vmul.f32 %v8010, %v8337
        %v8367 = vmul.f32 %v8011, %v8341
        %v8368 = vmul.f32 %v8012, %v8345
        %v8369 = vmul.f32 %v8013, %v8349
        %v8370 = vmul.f32 %v8014, %v8353
        %v8371 = vmul.f32 %v8015, %v8357
        %v8372 = vmul.f32 %v8016, %v8361
        %v8373 = vmul.f32 %v8017, %v8365
        %vm8374 = vcmp.gt.f32.partialorder %v8366, 0.0
        %vm8375 = vcmp.gt.f32.partialorder %v8367, 0.0
        %vm8376 = vcmp.gt.f32.partialorder %v8368, 0.0
        %vm8377 = vcmp.gt.f32.partialorder %v8369, 0.0
        %vm8378 = vcmp.gt.f32.partialorder %v8370, 0.0
        %vm8379 = vcmp.gt.f32.partialorder %v8371, 0.0
        %vm8380 = vcmp.gt.f32.partialorder %v8372, 0.0
        %vm8381 = vcmp.gt.f32.partialorder %v8373, 0.0
        %v8382 = vmul.f32 %v8366, 0.2
        %v8383 = vmul.f32 %v8367, 0.2
        %v8384 = vmul.f32 %v8368, 0.2
        %v8385 = vmul.f32 %v8369, 0.2
        %v8386 = vmul.f32 %v8370, 0.2
        %v8387 = vmul.f32 %v8371, 0.2
        %v8388 = vmul.f32 %v8372, 0.2
        %v8389 = vmul.f32 %v8373, 0.2
        %v8390 = vsel %vm8374, %v8366, %v8382
        %v8391 = vsel %vm8375, %v8367, %v8383
        %v8392 = vsel %vm8376, %v8368, %v8384
        %v8393 = vsel %vm8377, %v8369, %v8385
        %v8394 = vsel %vm8378, %v8370, %v8386
        %v8395 = vsel %vm8379, %v8371, %v8387
        %v8396 = vsel %vm8380, %v8372, %v8388
        %v8397 = vsel %vm8381, %v8373, %v8389
        %8398 = vst [vmem:[%s336] sm:$0xff] %v8390
        %8399 = vst [vmem:[%s336 + $0x8] sm:$0xff] %v8391
        %8400 = vst [vmem:[%s336 + $0x10] sm:$0xff] %v8392
        %8401 = vst [vmem:[%s336 + $0x18] sm:$0xff] %v8393
        %8402 = vst [vmem:[%s336 + $0x20] sm:$0xff] %v8394
        %8403 = vst [vmem:[%s336 + $0x28] sm:$0xff] %v8395
        %8404 = vst [vmem:[%s336 + $0x30] sm:$0xff] %v8396
        %8405 = vst [vmem:[%s336 + $0x38] sm:$0xff] %v8397
        %s8406 = sand.u32 %s186, 1
        %s8407 = scalar_lea.sflag [#allocation5], %s8406
        %s8408 = sand.u32 %s186, 1
        %s8409 = smul.addr %s8408, 64
        %s8410 = scalar_lea.vmem [#allocation11], %s8409
        // Predicated region
        $region65: #{tpu_custom_call.1} parent=47 // pred_check
          %p8411 = pneg %p196
        $region66: #{tpu_custom_call.1} parent=47 // pred_check_branch
          %8413 = sbr.rel (%p8411) target = $region68
        $region67: #{tpu_custom_call.1} parent=47 // pred_region
          %s8415 = ssub.s32 1024, 1024
          %8416 = vsyncadd %s8407, %s8415
          %s8417 = smul.addr %s26, 8
          %s8418 = smul.addr %s8417, 128
          %s8419 = scalar_lea.hbm %s7, %s8418
          %s8421 = sshll.u32 %s8410, 4
          %s8422 = int_to_ptr.vmem [resolvable:$true] %s8421
          %8424 = dma.vmem_to_hbm [thread:$0]  %s8422, 1024, %s8419, %s8407
        $region68: #{tpu_custom_call.1} parent=47 // pred_fallthru
          _
      $region48: #{tpu_custom_call.1} parent=5 // pred_fallthru
        _
      %p8425 = scmp.le.s32.totalorder 2, %s21
      // Predicated region
      $region69: #{tpu_custom_call.1} parent=5 // pred_check
        %p8426 = pneg %p8425
      $region70: #{tpu_custom_call.1} parent=5 // pred_check_branch
        %8428 = sbr.rel (%p8426) target = $region72
      $region71: #{tpu_custom_call.1} parent=5 // pred_region
        %s8429 = ssub.s32 %s21, 2
        // Predicated region
        $region73: #{tpu_custom_call.1} parent=71 // pred_check
          %p8430 = pneg %p202
        $region74: #{tpu_custom_call.1} parent=71 // pred_check_branch
          %8432 = sbr.rel (%p8430) target = $region76
        $region75: #{tpu_custom_call.1} parent=71 // pred_region
          %s8433 = sand.u32 %s187, 1
          %s8434 = scalar_lea.sflag [#allocation5], %s8433
          %s8435 = sand.u32 %s187, 1
          %s8436 = smul.addr %s8435, 64
          %s8437 = scalar_lea.vmem [#allocation11], %s8436
          %8438 = dma.done %s8434, 1024
        $region76: #{tpu_custom_call.1} parent=71 // pred_fallthru
          _
      $region72: #{tpu_custom_call.1} parent=5 // pred_fallthru
        _
    $region6: #{tpu_custom_call.1} parent=1 // loop_footer
      %s25 = sadd.s32 1, %s21
    $region7: #{tpu_custom_call.1} parent=1 // loop_footer_branch
      %20 = sbr.rel target = $region3
    $region8: #{tpu_custom_call.1} parent=1 // loop_exit
      _
    %8439 = vsyncpa [#allocation4], 1
    %s8440 = scalar_lea.sflag [#allocation4], 1
    %8441 = vsyncpa %s8440, 1
    %8442 = vsyncpa [#allocation7], 1
    %8443 = vsyncpa [#allocation10], 1
    %8444 = vsyncpa [#allocation5], 1
    %s8445 = scalar_lea.sflag [#allocation5], 1
    %8446 = vsyncpa %s8445, 1

</llo_original>
